<compile_context>
chip_gen: v5e
topology: v5e:2x2
jax: 0.10.0
libtpu: 0.0.40
codegen_flags: <defaults>
</compile_context>

<pallas_src>
import functools

import jax
import jax.numpy as jnp
from jax.experimental import pallas as pl
from jax.experimental.pallas import tpu as pltpu


LANE = 128
SUBLANE = 8


def _round_up(n, m):
    return (n + m - 1) // m * m


# ----------------------------------------------------------------------------
# Fused Pallas kernel:
#   [depthwise 3x3 (VPU) -> 1x1 conv (MXU, bf16 in / f32 acc) -> BN -> ReLU] * 2
# with the block-1 output kept resident in VMEM (halo recompute per H-tile).
# ----------------------------------------------------------------------------
def _double_dsconv_kernel(x_ref,
                          dww1_ref, dwb1_ref, pww1_ref, s1_ref, t1_ref,
                          dww2_ref, dwb2_ref, pww2_ref, s2_ref, t2_ref,
                          o_ref, *, kpl, ksize, th, w, w1p, h_total):
    pad = ksize // 2
    cinp = x_ref.shape[-1]
    midp = pww1_ref.shape[-1]
    coutp = o_ref.shape[-1]
    h1 = th + 2 * pad                       # block-1 output rows (incl. block-2 halo)

    x = x_ref[0, 0]                         # (th + 4*pad, w1p + 2*pad, cinp) f32
    dww1 = dww1_ref[...]                    # (ksize*ksize*kpl, cinp)
    dwb1 = dwb1_ref[...]                    # (kpl, cinp)

    # ---- block 1: depthwise 3x3 -> 1x1 conv -> folded BN -> ReLU -------------------
    xs1 = [x[:, dx:dx + w1p, :] for dx in range(ksize)]   # hoisted column shifts
    y1 = jnp.zeros((h1 * w1p, midp), jnp.float32)
    for m in range(kpl):                    # kernels_per_layer (block-ordered channels)
        acc = jnp.zeros((h1, w1p, cinp), jnp.float32)
        for dy in range(ksize):
            for dx in range(ksize):
                acc = acc + xs1[dx][dy:dy + h1] * dww1[(dy * ksize + dx) * kpl + m]
        acc = acc + dwb1[m]
        # Fused pointwise: depthwise tile goes straight to the MXU (bf16 in, f32 acc).
        y1 = y1 + jnp.dot(acc.reshape(h1 * w1p, cinp).astype(jnp.bfloat16),
                          pww1_ref[m * cinp:(m + 1) * cinp, :],
                          preferred_element_type=jnp.float32)
    y1 = jnp.maximum(y1 * s1_ref[...] + t1_ref[...], 0.0)
    y1 = y1.reshape(h1, w1p, midp)

    # Zero everything outside the original HxW image: the halo rows/cols recomputed
    # here may fall outside it, and block 2 must see the module's zero padding there.
    i = pl.program_id(1)
    row = jax.lax.broadcasted_iota(jnp.int32, (h1, w1p, midp), 0) + (i * th - pad)
    col = jax.lax.broadcasted_iota(jnp.int32, (h1, w1p, midp), 1) - pad
    y1 = jnp.where((row >= 0) & (row < h_total) & (col >= 0) & (col < w), y1, 0.0)

    # ---- block 2: depthwise 3x3 -> 1x1 conv -> folded BN -> ReLU -------------------
    dww2 = dww2_ref[...]                    # (ksize*ksize*kpl, midp)
    dwb2 = dwb2_ref[...]                    # (kpl, midp)
    xs2 = [y1[:, dx:dx + w, :] for dx in range(ksize)]
    y2 = jnp.zeros((th * w, coutp), jnp.float32)
    for m in range(kpl):
        acc = jnp.zeros((th, w, midp), jnp.float32)
        for dy in range(ksize):
            for dx in range(ksize):
                acc = acc + xs2[dx][dy:dy + th] * dww2[(dy * ksize + dx) * kpl + m]
        acc = acc + dwb2[m]
        y2 = y2 + jnp.dot(acc.reshape(th * w, midp).astype(jnp.bfloat16),
                          pww2_ref[m * midp:(m + 1) * midp, :],
                          preferred_element_type=jnp.float32)
    y2 = jnp.maximum(y2 * s2_ref[...] + t2_ref[...], 0.0)
    o_ref[...] = y2.reshape(1, th, w, coutp)


def fused_double_dsconv(x, p1, p2, *, kpl, h_tile=None, ksize=3,
                        vmem_budget=6 * 1024 * 1024):
    """x: (B, H, W, Cin_padded) f32 -> (B, H, W, Cout_padded) f32.

    Single pallas_call for [DSConv -> BN -> ReLU] * 2, tiled over (batch, H-rows);
    the block-1 intermediate stays in VMEM (1-row halo recomputed per tile).
    """
    B, H, W, cinp = x.shape
    assert cinp == p1['dww'].shape[1], (cinp, p1['dww'].shape)
    midp = p1['pww'].shape[1]
    assert midp == p2['dww'].shape[1], (midp, p2['dww'].shape)
    coutp = p2['pww'].shape[1]
    pad = ksize // 2
    w1p = _round_up(W + 2 * pad, SUBLANE)   # block-1 output width, sublane-aligned
    slab_w = w1p + 2 * pad                  # input slab width (extra cols are zeros)
    # TODO(synk): also tile W (manual halo DMA) for very large feature maps; only
    # batch/H are tiled here, which covers SmaAt-UNet block sizes.

    def tile_bytes(t):                      # rough per-tile VMEM working set
        return 4 * ((t + 4 * pad) * slab_w * cinp
                    + 2 * (t + 2 * pad) * w1p * max(cinp, midp)
                    + t * W * coutp)

    if h_tile is None:
        divs = [d for d in range(H, 0, -1) if H % d == 0]
        th = next((d for d in divs if tile_bytes(d) <= vmem_budget), divs[-1])
    else:
        th = h_tile if (0 < h_tile <= H and H % h_tile == 0) else H
    n_h = H // th
    slab_h = th + 4 * pad

    # 'same' spatial zero padding (two 3x3 convs deep) done once in the wrapper.
    xp = jnp.pad(x, ((0, 0), (2 * pad, 2 * pad),
                     (2 * pad, slab_w - W - 2 * pad), (0, 0)))
    if n_h == 1:
        slabs = xp[:, None]                 # no data copy for the single-tile case
    else:
        # Overlapping H slabs carry the (two-conv) stencil halo so plain Blocked
        # BlockSpecs with auto double-buffered pipelining can be used.
        slabs = jnp.stack([xp[:, i * th:i * th + slab_h] for i in range(n_h)], axis=1)

    h1 = th + 2 * pad
    flops = 2 * B * (n_h * h1 * w1p * kpl * cinp * (ksize * ksize + midp)
                     + H * W * kpl * midp * (ksize * ksize + coutp))
    bytes_accessed = (slabs.size * 4 + B * H * W * coutp * 4
                      + p1['dww'].size * 4 + p1['dwb'].size * 4 + p1['pww'].size * 2
                      + p2['dww'].size * 4 + p2['dwb'].size * 4 + p2['pww'].size * 2
                      + 2 * (midp + coutp) * 4)

    kernel = functools.partial(_double_dsconv_kernel, kpl=kpl, ksize=ksize,
                               th=th, w=W, w1p=w1p, h_total=H)
    return pl.pallas_call(
        kernel,
        out_shape=jax.ShapeDtypeStruct((B, H, W, coutp), jnp.float32),
        grid=(B, n_h),
        in_specs=[
            pl.BlockSpec((1, 1, slab_h, slab_w, cinp), lambda b, i: (b, i, 0, 0, 0)),
            pl.BlockSpec(p1['dww'].shape, lambda b, i: (0, 0)),
            pl.BlockSpec(p1['dwb'].shape, lambda b, i: (0, 0)),
            pl.BlockSpec(p1['pww'].shape, lambda b, i: (0, 0)),
            pl.BlockSpec(p1['scale'].shape, lambda b, i: (0, 0)),
            pl.BlockSpec(p1['shift'].shape, lambda b, i: (0, 0)),
            pl.BlockSpec(p2['dww'].shape, lambda b, i: (0, 0)),
            pl.BlockSpec(p2['dwb'].shape, lambda b, i: (0, 0)),
            pl.BlockSpec(p2['pww'].shape, lambda b, i: (0, 0)),
            pl.BlockSpec(p2['scale'].shape, lambda b, i: (0, 0)),
            pl.BlockSpec(p2['shift'].shape, lambda b, i: (0, 0)),
        ],
        out_specs=pl.BlockSpec((1, th, W, coutp), lambda b, i: (b, i, 0, 0)),
        compiler_params=pltpu.CompilerParams(
            dimension_semantics=("parallel", "parallel")),
        cost_estimate=pl.CostEstimate(flops=flops, transcendentals=0,
                                      bytes_accessed=bytes_accessed),
    )(slabs, p1['dww'], p1['dwb'], p1['pww'], p1['scale'], p1['shift'],
      p2['dww'], p2['dwb'], p2['pww'], p2['scale'], p2['shift'])


# ----------------------------------------------------------------------------
# Parameters: PyTorch-layout init + one-time conversion to the fused-kernel layout
# ----------------------------------------------------------------------------
def init_double_conv_ds_params(key, in_channels, out_channels,
                               mid_channels=None, kernels_per_layer=1):
    """Raw parameters in PyTorch layout (deterministic, PyTorch-default-like init)."""
    if mid_channels is None:
        mid_channels = out_channels
    kpl = kernels_per_layer
    keys = jax.random.split(key, 8)

    def u(k, shape, fan_in):
        bound = 1.0 / (fan_in ** 0.5)
        return jax.random.uniform(k, shape, jnp.float32, -bound, bound)

    def bn(c):  # inference-mode BatchNorm: gamma, beta, running_mean, running_var
        return (jnp.ones((c,), jnp.float32), jnp.zeros((c,), jnp.float32),
                jnp.zeros((c,), jnp.float32), jnp.ones((c,), jnp.float32))

    def block(ks, cin, cout):
        return {'dw_w': u(ks[0], (cin * kpl, 1, 3, 3), 9),
                'dw_b': u(ks[1], (cin * kpl,), 9),
                'pw_w': u(ks[2], (cout, cin * kpl, 1, 1), cin * kpl),
                'pw_b': u(ks[3], (cout,), cin * kpl),
                'bn': bn(cout)}

    return {'block1': block(keys[:4], in_channels, mid_channels),
            'block2': block(keys[4:], mid_channels, out_channels)}


def prepare_dsconv_params(p, kernels_per_layer, eps=1e-5):
    """Convert one DSConv+BN block to the fused-kernel layout:
       - depthwise weights flattened to rows indexed (dy*k+dx)*kpl + m, lane-padded,
       - pointwise weights row-permuted to block-of-kpl channel order, bf16, lane-padded,
       - pointwise bias + inference-mode BN folded into per-channel scale/shift (f32)."""
    kpl = kernels_per_layer
    dw_w, dw_b = p['dw_w'], p['dw_b']
    pw_w, pw_b = p['pw_w'], p['pw_b']
    cin_kpl, _, k, _ = dw_w.shape
    cin = cin_kpl // kpl
    cout = pw_w.shape[0]
    cinp = _round_up(cin, LANE)
    coutp = _round_up(cout, LANE)

    # Depthwise: torch output channel index = c*kpl + m.
    w = dw_w.reshape(cin, kpl, k, k)                          # [c, m, dy, dx]
    w = jnp.transpose(w, (2, 3, 1, 0)).reshape(k * k * kpl, cin)
    dww = jnp.pad(w, ((0, 0), (0, cinp - cin))).astype(jnp.float32)

    b = dw_b.reshape(cin, kpl).T                              # (kpl, cin)
    dwb = jnp.pad(b, ((0, 0), (0, cinp - cin))).astype(jnp.float32)

    # Pointwise: permute rows once so row index = m*cinp + c (matches the kernel's
    # block-ordered depthwise output); padded rows/cols are zero.
    pw = pw_w.reshape(cout, cin * kpl).T.reshape(cin, kpl, cout)
    pw = jnp.transpose(pw, (1, 0, 2))                         # (kpl, cin, cout)
    pw = jnp.pad(pw, ((0, 0), (0, cinp - cin), (0, coutp - cout)))
    pww = pw.reshape(kpl * cinp, coutp).astype(jnp.bfloat16)

    gamma, beta, mean, var = p['bn']
    s = gamma / jnp.sqrt(var + eps)
    scale = jnp.pad(s, (0, coutp - cout)).reshape(1, coutp).astype(jnp.float32)
    shift = jnp.pad((pw_b - mean) * s + beta,
                    (0, coutp - cout)).reshape(1, coutp).astype(jnp.float32)
    return {'dww': dww, 'dwb': dwb, 'pww': pww, 'scale': scale, 'shift': shift}


# ----------------------------------------------------------------------------
# DoubleConvDS forward (NCHW in / NCHW out, NHWC + padded-C internally)
# ----------------------------------------------------------------------------
def double_conv_ds_forward(x_nchw, p1, p2, *, out_channels, kpl, h_tile=None, ksize=3):
    x = jnp.transpose(x_nchw, (0, 2, 3, 1)).astype(jnp.float32)   # NCHW -> NHWC
    cin = x.shape[-1]
    cinp = p1['dww'].shape[1]
    x = jnp.pad(x, ((0, 0), (0, 0), (0, 0), (0, cinp - cin)))     # pad C once at entry
    x = fused_double_dsconv(x, p1, p2, kpl=kpl, h_tile=h_tile, ksize=ksize)
    x = x[..., :out_channels]                                     # slice C once at exit
    return jnp.transpose(x, (0, 3, 1, 2))                         # NHWC -> NCHW


# ----------------------------------------------------------------------------
# Pure-JAX reference (mirrors the PyTorch module, inference-mode BN)
# ----------------------------------------------------------------------------
def reference_double_conv_ds(x_nchw, raw, eps=1e-5, bf16_pw=True):
    def block(x, p):
        cin = x.shape[1]
        y = jax.lax.conv_general_dilated(
            x, p['dw_w'], window_strides=(1, 1), padding=((1, 1), (1, 1)),
            dimension_numbers=('NCHW', 'OIHW', 'NCHW'), feature_group_count=cin)
        y = y + p['dw_b'][None, :, None, None]
        pw_w = p['pw_w']
        if bf16_pw:  # the Pallas kernel stores pointwise weights in bf16
            pw_w = pw_w.astype(jnp.bfloat16).astype(jnp.float32)
        y = jax.lax.conv_general_dilated(
            y, pw_w, window_strides=(1, 1), padding='VALID',
            dimension_numbers=('NCHW', 'OIHW', 'NCHW'))
        y = y + p['pw_b'][None, :, None, None]
        gamma, beta, mean, var = p['bn']
        s = gamma / jnp.sqrt(var + eps)
        y = (y - mean[None, :, None, None]) * s[None, :, None, None] \
            + beta[None, :, None, None]
        return jnp.maximum(y, 0.0)

    return block(block(x_nchw, raw['block1']), raw['block2'])


if __name__ == "__main__":
    B, CIN, H, W = 2, 4, 16, 16
    COUT, KPL = 32, 2          # DoubleConvDS(4, 32, kernels_per_layer=2)

    key = jax.random.PRNGKey(0)
    k_param, k_x = jax.random.split(key)
    raw = init_double_conv_ds_params(k_param, CIN, COUT, mid_channels=None,
                                     kernels_per_layer=KPL)
    p1 = prepare_dsconv_params(raw['block1'], KPL)
    p2 = prepare_dsconv_params(raw['block2'], KPL)
    x = jax.random.normal(k_x, (B, CIN, H, W), jnp.float32)       # NCHW input

    ref = reference_double_conv_ds(x, raw)

    # Exercise both the single-tile (whole image per batch in VMEM) and the
    # multi-H-tile (interior halo recompute) paths of the fused kernel.
    for h_tile in (None, 8):
        fwd = jax.jit(functools.partial(double_conv_ds_forward,
                                        out_channels=COUT, kpl=KPL, h_tile=h_tile))
        out = jax.block_until_ready(fwd(x, p1, p2))
        assert out.shape == (B, COUT, H, W), out.shape
        assert bool(jnp.all(jnp.isfinite(out)))
        err = float(jnp.max(jnp.abs(out - ref)))
        assert err < 3e-2, err

    print("KERNEL_OK")
</pallas_src>

<mosaic_0001>
module attributes {stable_mosaic.version = 11 : i64} {
  func.func @_double_dsconv_kernel(%arg0: i32, %arg1: i32, %arg2: memref<1x1x20x26x128xf32, #tpu.memory_space<vmem>>, %arg3: memref<18x128xf32, #tpu.memory_space<vmem>>, %arg4: memref<2x128xf32, #tpu.memory_space<vmem>>, %arg5: memref<256x128xbf16, #tpu.memory_space<vmem>>, %arg6: memref<1x128xf32, #tpu.memory_space<vmem>>, %arg7: memref<1x128xf32, #tpu.memory_space<vmem>>, %arg8: memref<18x128xf32, #tpu.memory_space<vmem>>, %arg9: memref<2x128xf32, #tpu.memory_space<vmem>>, %arg10: memref<256x128xbf16, #tpu.memory_space<vmem>>, %arg11: memref<1x128xf32, #tpu.memory_space<vmem>>, %arg12: memref<1x128xf32, #tpu.memory_space<vmem>>, %arg13: memref<1x16x16x128xf32, #tpu.memory_space<vmem>>) attributes {dimension_semantics = [#tpu.dimension_semantics<parallel>, #tpu.dimension_semantics<parallel>], iteration_bounds = array<i64: 2, 1>, scalar_prefetch = 0 : i64, scratch_operands = 0 : i64, tpu.core_type = #tpu.core_type<tc>, window_params = [{transform_indices = @transform_0, window_bounds = array<i64: 1, 1, 20, 26, 128>}, {pipeline_mode = #tpu.pipeline_mode<synchronous>, transform_indices = @transform_1, window_bounds = array<i64: 18, 128>}, {pipeline_mode = #tpu.pipeline_mode<synchronous>, transform_indices = @transform_2, window_bounds = array<i64: 2, 128>}, {pipeline_mode = #tpu.pipeline_mode<synchronous>, transform_indices = @transform_3, window_bounds = array<i64: 256, 128>}, {pipeline_mode = #tpu.pipeline_mode<synchronous>, transform_indices = @transform_4, window_bounds = array<i64: 1, 128>}, {pipeline_mode = #tpu.pipeline_mode<synchronous>, transform_indices = @transform_5, window_bounds = array<i64: 1, 128>}, {pipeline_mode = #tpu.pipeline_mode<synchronous>, transform_indices = @transform_6, window_bounds = array<i64: 18, 128>}, {pipeline_mode = #tpu.pipeline_mode<synchronous>, transform_indices = @transform_7, window_bounds = array<i64: 2, 128>}, {pipeline_mode = #tpu.pipeline_mode<synchronous>, transform_indices = @transform_8, window_bounds = array<i64: 256, 128>}, {pipeline_mode = #tpu.pipeline_mode<synchronous>, transform_indices = @transform_9, window_bounds = array<i64: 1, 128>}, {pipeline_mode = #tpu.pipeline_mode<synchronous>, transform_indices = @transform_10, window_bounds = array<i64: 1, 128>}, {transform_indices = @transform_11, window_bounds = array<i64: 1, 16, 16, 128>}]} {
    %c0 = arith.constant 0 : index
    %c0_0 = arith.constant 0 : index
    %c0_1 = arith.constant 0 : index
    %c0_2 = arith.constant 0 : index
    %c0_3 = arith.constant 0 : index
    %0 = vector.load %arg2[%c0, %c0_0, %c0_1, %c0_2, %c0_3] : memref<1x1x20x26x128xf32, #tpu.memory_space<vmem>>, vector<1x1x20x26x128xf32>
    %1 = vector.shape_cast %0 : vector<1x1x20x26x128xf32> to vector<20x26x128xf32>
    %c0_4 = arith.constant 0 : index
    %c0_5 = arith.constant 0 : index
    %2 = vector.load %arg3[%c0_4, %c0_5] : memref<18x128xf32, #tpu.memory_space<vmem>>, vector<18x128xf32>
    %c0_6 = arith.constant 0 : index
    %c0_7 = arith.constant 0 : index
    %3 = vector.load %arg4[%c0_6, %c0_7] : memref<2x128xf32, #tpu.memory_space<vmem>>, vector<2x128xf32>
    %4 = vector.extract_strided_slice %1 {offsets = [0, 0, 0], sizes = [20, 24, 128], strides = [1, 1, 1]} : vector<20x26x128xf32> to vector<20x24x128xf32>
    %5 = vector.extract_strided_slice %1 {offsets = [0, 1, 0], sizes = [20, 24, 128], strides = [1, 1, 1]} : vector<20x26x128xf32> to vector<20x24x128xf32>
    %6 = vector.extract_strided_slice %1 {offsets = [0, 2, 0], sizes = [20, 24, 128], strides = [1, 1, 1]} : vector<20x26x128xf32> to vector<20x24x128xf32>
    %cst = arith.constant 0.000000e+00 : f32
    %7 = vector.broadcast %cst : f32 to vector<432x128xf32>
    %cst_8 = arith.constant 0.000000e+00 : f32
    %8 = vector.broadcast %cst_8 : f32 to vector<18x24x128xf32>
    %9 = vector.extract_strided_slice %4 {offsets = [0, 0, 0], sizes = [18, 24, 128], strides = [1, 1, 1]} : vector<20x24x128xf32> to vector<18x24x128xf32>
    %10 = vector.extract_strided_slice %2 {offsets = [0, 0], sizes = [1, 128], strides = [1, 1]} : vector<18x128xf32> to vector<1x128xf32>
    %11 = vector.shape_cast %10 : vector<1x128xf32> to vector<128xf32>
    %12 = vector.shape_cast %11 : vector<128xf32> to vector<1x1x128xf32>
    %13 = vector.broadcast %12 : vector<1x1x128xf32> to vector<18x24x128xf32>
    %14 = arith.mulf %9, %13 : vector<18x24x128xf32>
    %15 = arith.addf %8, %14 : vector<18x24x128xf32>
    %16 = vector.extract_strided_slice %5 {offsets = [0, 0, 0], sizes = [18, 24, 128], strides = [1, 1, 1]} : vector<20x24x128xf32> to vector<18x24x128xf32>
    %17 = vector.extract_strided_slice %2 {offsets = [2, 0], sizes = [1, 128], strides = [1, 1]} : vector<18x128xf32> to vector<1x128xf32>
    %18 = vector.shape_cast %17 : vector<1x128xf32> to vector<128xf32>
    %19 = vector.shape_cast %18 : vector<128xf32> to vector<1x1x128xf32>
    %20 = vector.broadcast %19 : vector<1x1x128xf32> to vector<18x24x128xf32>
    %21 = arith.mulf %16, %20 : vector<18x24x128xf32>
    %22 = arith.addf %15, %21 : vector<18x24x128xf32>
    %23 = vector.extract_strided_slice %6 {offsets = [0, 0, 0], sizes = [18, 24, 128], strides = [1, 1, 1]} : vector<20x24x128xf32> to vector<18x24x128xf32>
    %24 = vector.extract_strided_slice %2 {offsets = [4, 0], sizes = [1, 128], strides = [1, 1]} : vector<18x128xf32> to vector<1x128xf32>
    %25 = vector.shape_cast %24 : vector<1x128xf32> to vector<128xf32>
    %26 = vector.shape_cast %25 : vector<128xf32> to vector<1x1x128xf32>
    %27 = vector.broadcast %26 : vector<1x1x128xf32> to vector<18x24x128xf32>
    %28 = arith.mulf %23, %27 : vector<18x24x128xf32>
    %29 = arith.addf %22, %28 : vector<18x24x128xf32>
    %30 = vector.extract_strided_slice %4 {offsets = [1, 0, 0], sizes = [18, 24, 128], strides = [1, 1, 1]} : vector<20x24x128xf32> to vector<18x24x128xf32>
    %31 = vector.extract_strided_slice %2 {offsets = [6, 0], sizes = [1, 128], strides = [1, 1]} : vector<18x128xf32> to vector<1x128xf32>
    %32 = vector.shape_cast %31 : vector<1x128xf32> to vector<128xf32>
    %33 = vector.shape_cast %32 : vector<128xf32> to vector<1x1x128xf32>
    %34 = vector.broadcast %33 : vector<1x1x128xf32> to vector<18x24x128xf32>
    %35 = arith.mulf %30, %34 : vector<18x24x128xf32>
    %36 = arith.addf %29, %35 : vector<18x24x128xf32>
    %37 = vector.extract_strided_slice %5 {offsets = [1, 0, 0], sizes = [18, 24, 128], strides = [1, 1, 1]} : vector<20x24x128xf32> to vector<18x24x128xf32>
    %38 = vector.extract_strided_slice %2 {offsets = [8, 0], sizes = [1, 128], strides = [1, 1]} : vector<18x128xf32> to vector<1x128xf32>
    %39 = vector.shape_cast %38 : vector<1x128xf32> to vector<128xf32>
    %40 = vector.shape_cast %39 : vector<128xf32> to vector<1x1x128xf32>
    %41 = vector.broadcast %40 : vector<1x1x128xf32> to vector<18x24x128xf32>
    %42 = arith.mulf %37, %41 : vector<18x24x128xf32>
    %43 = arith.addf %36, %42 : vector<18x24x128xf32>
    %44 = vector.extract_strided_slice %6 {offsets = [1, 0, 0], sizes = [18, 24, 128], strides = [1, 1, 1]} : vector<20x24x128xf32> to vector<18x24x128xf32>
    %45 = vector.extract_strided_slice %2 {offsets = [10, 0], sizes = [1, 128], strides = [1, 1]} : vector<18x128xf32> to vector<1x128xf32>
    %46 = vector.shape_cast %45 : vector<1x128xf32> to vector<128xf32>
    %47 = vector.shape_cast %46 : vector<128xf32> to vector<1x1x128xf32>
    %48 = vector.broadcast %47 : vector<1x1x128xf32> to vector<18x24x128xf32>
    %49 = arith.mulf %44, %48 : vector<18x24x128xf32>
    %50 = arith.addf %43, %49 : vector<18x24x128xf32>
    %51 = vector.extract_strided_slice %4 {offsets = [2, 0, 0], sizes = [18, 24, 128], strides = [1, 1, 1]} : vector<20x24x128xf32> to vector<18x24x128xf32>
    %52 = vector.extract_strided_slice %2 {offsets = [12, 0], sizes = [1, 128], strides = [1, 1]} : vector<18x128xf32> to vector<1x128xf32>
    %53 = vector.shape_cast %52 : vector<1x128xf32> to vector<128xf32>
    %54 = vector.shape_cast %53 : vector<128xf32> to vector<1x1x128xf32>
    %55 = vector.broadcast %54 : vector<1x1x128xf32> to vector<18x24x128xf32>
    %56 = arith.mulf %51, %55 : vector<18x24x128xf32>
    %57 = arith.addf %50, %56 : vector<18x24x128xf32>
    %58 = vector.extract_strided_slice %5 {offsets = [2, 0, 0], sizes = [18, 24, 128], strides = [1, 1, 1]} : vector<20x24x128xf32> to vector<18x24x128xf32>
    %59 = vector.extract_strided_slice %2 {offsets = [14, 0], sizes = [1, 128], strides = [1, 1]} : vector<18x128xf32> to vector<1x128xf32>
    %60 = vector.shape_cast %59 : vector<1x128xf32> to vector<128xf32>
    %61 = vector.shape_cast %60 : vector<128xf32> to vector<1x1x128xf32>
    %62 = vector.broadcast %61 : vector<1x1x128xf32> to vector<18x24x128xf32>
    %63 = arith.mulf %58, %62 : vector<18x24x128xf32>
    %64 = arith.addf %57, %63 : vector<18x24x128xf32>
    %65 = vector.extract_strided_slice %6 {offsets = [2, 0, 0], sizes = [18, 24, 128], strides = [1, 1, 1]} : vector<20x24x128xf32> to vector<18x24x128xf32>
    %66 = vector.extract_strided_slice %2 {offsets = [16, 0], sizes = [1, 128], strides = [1, 1]} : vector<18x128xf32> to vector<1x128xf32>
    %67 = vector.shape_cast %66 : vector<1x128xf32> to vector<128xf32>
    %68 = vector.shape_cast %67 : vector<128xf32> to vector<1x1x128xf32>
    %69 = vector.broadcast %68 : vector<1x1x128xf32> to vector<18x24x128xf32>
    %70 = arith.mulf %65, %69 : vector<18x24x128xf32>
    %71 = arith.addf %64, %70 : vector<18x24x128xf32>
    %72 = vector.extract_strided_slice %3 {offsets = [0, 0], sizes = [1, 128], strides = [1, 1]} : vector<2x128xf32> to vector<1x128xf32>
    %73 = vector.shape_cast %72 : vector<1x128xf32> to vector<128xf32>
    %74 = vector.shape_cast %73 : vector<128xf32> to vector<1x1x128xf32>
    %75 = vector.broadcast %74 : vector<1x1x128xf32> to vector<18x24x128xf32>
    %76 = arith.addf %71, %75 : vector<18x24x128xf32>
    %77 = vector.shape_cast %76 : vector<18x24x128xf32> to vector<432x128xf32>
    %78 = arith.truncf %77 : vector<432x128xf32> to vector<432x128xbf16>
    %c0_9 = arith.constant 0 : index
    %c0_10 = arith.constant 0 : index
    %79 = vector.load %arg5[%c0_9, %c0_10] : memref<256x128xbf16, #tpu.memory_space<vmem>>, vector<128x128xbf16>
    %cst_11 = arith.constant dense<0.000000e+00> : vector<432x128xf32>
    %80 = tpu.matmul %78, %79, %cst_11 {dimension_numbers = #tpu.dot_dimension_numbers<[1], [0], [0], [1], [0, 0, 1, 1], [], []>} : vector<432x128xbf16>, vector<128x128xbf16>, vector<432x128xf32> -> vector<432x128xf32>
    %81 = arith.addf %7, %80 : vector<432x128xf32>
    %cst_12 = arith.constant 0.000000e+00 : f32
    %82 = vector.broadcast %cst_12 : f32 to vector<18x24x128xf32>
    %83 = vector.extract_strided_slice %4 {offsets = [0, 0, 0], sizes = [18, 24, 128], strides = [1, 1, 1]} : vector<20x24x128xf32> to vector<18x24x128xf32>
    %84 = vector.extract_strided_slice %2 {offsets = [1, 0], sizes = [1, 128], strides = [1, 1]} : vector<18x128xf32> to vector<1x128xf32>
    %85 = vector.shape_cast %84 : vector<1x128xf32> to vector<128xf32>
    %86 = vector.shape_cast %85 : vector<128xf32> to vector<1x1x128xf32>
    %87 = vector.broadcast %86 : vector<1x1x128xf32> to vector<18x24x128xf32>
    %88 = arith.mulf %83, %87 : vector<18x24x128xf32>
    %89 = arith.addf %82, %88 : vector<18x24x128xf32>
    %90 = vector.extract_strided_slice %5 {offsets = [0, 0, 0], sizes = [18, 24, 128], strides = [1, 1, 1]} : vector<20x24x128xf32> to vector<18x24x128xf32>
    %91 = vector.extract_strided_slice %2 {offsets = [3, 0], sizes = [1, 128], strides = [1, 1]} : vector<18x128xf32> to vector<1x128xf32>
    %92 = vector.shape_cast %91 : vector<1x128xf32> to vector<128xf32>
    %93 = vector.shape_cast %92 : vector<128xf32> to vector<1x1x128xf32>
    %94 = vector.broadcast %93 : vector<1x1x128xf32> to vector<18x24x128xf32>
    %95 = arith.mulf %90, %94 : vector<18x24x128xf32>
    %96 = arith.addf %89, %95 : vector<18x24x128xf32>
    %97 = vector.extract_strided_slice %6 {offsets = [0, 0, 0], sizes = [18, 24, 128], strides = [1, 1, 1]} : vector<20x24x128xf32> to vector<18x24x128xf32>
    %98 = vector.extract_strided_slice %2 {offsets = [5, 0], sizes = [1, 128], strides = [1, 1]} : vector<18x128xf32> to vector<1x128xf32>
    %99 = vector.shape_cast %98 : vector<1x128xf32> to vector<128xf32>
    %100 = vector.shape_cast %99 : vector<128xf32> to vector<1x1x128xf32>
    %101 = vector.broadcast %100 : vector<1x1x128xf32> to vector<18x24x128xf32>
    %102 = arith.mulf %97, %101 : vector<18x24x128xf32>
    %103 = arith.addf %96, %102 : vector<18x24x128xf32>
    %104 = vector.extract_strided_slice %4 {offsets = [1, 0, 0], sizes = [18, 24, 128], strides = [1, 1, 1]} : vector<20x24x128xf32> to vector<18x24x128xf32>
    %105 = vector.extract_strided_slice %2 {offsets = [7, 0], sizes = [1, 128], strides = [1, 1]} : vector<18x128xf32> to vector<1x128xf32>
    %106 = vector.shape_cast %105 : vector<1x128xf32> to vector<128xf32>
    %107 = vector.shape_cast %106 : vector<128xf32> to vector<1x1x128xf32>
    %108 = vector.broadcast %107 : vector<1x1x128xf32> to vector<18x24x128xf32>
    %109 = arith.mulf %104, %108 : vector<18x24x128xf32>
    %110 = arith.addf %103, %109 : vector<18x24x128xf32>
    %111 = vector.extract_strided_slice %5 {offsets = [1, 0, 0], sizes = [18, 24, 128], strides = [1, 1, 1]} : vector<20x24x128xf32> to vector<18x24x128xf32>
    %112 = vector.extract_strided_slice %2 {offsets = [9, 0], sizes = [1, 128], strides = [1, 1]} : vector<18x128xf32> to vector<1x128xf32>
    %113 = vector.shape_cast %112 : vector<1x128xf32> to vector<128xf32>
    %114 = vector.shape_cast %113 : vector<128xf32> to vector<1x1x128xf32>
    %115 = vector.broadcast %114 : vector<1x1x128xf32> to vector<18x24x128xf32>
    %116 = arith.mulf %111, %115 : vector<18x24x128xf32>
    %117 = arith.addf %110, %116 : vector<18x24x128xf32>
    %118 = vector.extract_strided_slice %6 {offsets = [1, 0, 0], sizes = [18, 24, 128], strides = [1, 1, 1]} : vector<20x24x128xf32> to vector<18x24x128xf32>
    %119 = vector.extract_strided_slice %2 {offsets = [11, 0], sizes = [1, 128], strides = [1, 1]} : vector<18x128xf32> to vector<1x128xf32>
    %120 = vector.shape_cast %119 : vector<1x128xf32> to vector<128xf32>
    %121 = vector.shape_cast %120 : vector<128xf32> to vector<1x1x128xf32>
    %122 = vector.broadcast %121 : vector<1x1x128xf32> to vector<18x24x128xf32>
    %123 = arith.mulf %118, %122 : vector<18x24x128xf32>
    %124 = arith.addf %117, %123 : vector<18x24x128xf32>
    %125 = vector.extract_strided_slice %4 {offsets = [2, 0, 0], sizes = [18, 24, 128], strides = [1, 1, 1]} : vector<20x24x128xf32> to vector<18x24x128xf32>
    %126 = vector.extract_strided_slice %2 {offsets = [13, 0], sizes = [1, 128], strides = [1, 1]} : vector<18x128xf32> to vector<1x128xf32>
    %127 = vector.shape_cast %126 : vector<1x128xf32> to vector<128xf32>
    %128 = vector.shape_cast %127 : vector<128xf32> to vector<1x1x128xf32>
    %129 = vector.broadcast %128 : vector<1x1x128xf32> to vector<18x24x128xf32>
    %130 = arith.mulf %125, %129 : vector<18x24x128xf32>
    %131 = arith.addf %124, %130 : vector<18x24x128xf32>
    %132 = vector.extract_strided_slice %5 {offsets = [2, 0, 0], sizes = [18, 24, 128], strides = [1, 1, 1]} : vector<20x24x128xf32> to vector<18x24x128xf32>
    %133 = vector.extract_strided_slice %2 {offsets = [15, 0], sizes = [1, 128], strides = [1, 1]} : vector<18x128xf32> to vector<1x128xf32>
    %134 = vector.shape_cast %133 : vector<1x128xf32> to vector<128xf32>
    %135 = vector.shape_cast %134 : vector<128xf32> to vector<1x1x128xf32>
    %136 = vector.broadcast %135 : vector<1x1x128xf32> to vector<18x24x128xf32>
    %137 = arith.mulf %132, %136 : vector<18x24x128xf32>
    %138 = arith.addf %131, %137 : vector<18x24x128xf32>
    %139 = vector.extract_strided_slice %6 {offsets = [2, 0, 0], sizes = [18, 24, 128], strides = [1, 1, 1]} : vector<20x24x128xf32> to vector<18x24x128xf32>
    %140 = vector.extract_strided_slice %2 {offsets = [17, 0], sizes = [1, 128], strides = [1, 1]} : vector<18x128xf32> to vector<1x128xf32>
    %141 = vector.shape_cast %140 : vector<1x128xf32> to vector<128xf32>
    %142 = vector.shape_cast %141 : vector<128xf32> to vector<1x1x128xf32>
    %143 = vector.broadcast %142 : vector<1x1x128xf32> to vector<18x24x128xf32>
    %144 = arith.mulf %139, %143 : vector<18x24x128xf32>
    %145 = arith.addf %138, %144 : vector<18x24x128xf32>
    %146 = vector.extract_strided_slice %3 {offsets = [1, 0], sizes = [1, 128], strides = [1, 1]} : vector<2x128xf32> to vector<1x128xf32>
    %147 = vector.shape_cast %146 : vector<1x128xf32> to vector<128xf32>
    %148 = vector.shape_cast %147 : vector<128xf32> to vector<1x1x128xf32>
    %149 = vector.broadcast %148 : vector<1x1x128xf32> to vector<18x24x128xf32>
    %150 = arith.addf %145, %149 : vector<18x24x128xf32>
    %151 = vector.shape_cast %150 : vector<18x24x128xf32> to vector<432x128xf32>
    %152 = arith.truncf %151 : vector<432x128xf32> to vector<432x128xbf16>
    %c128 = arith.constant 128 : index
    %c0_13 = arith.constant 0 : index
    %153 = vector.load %arg5[%c128, %c0_13] : memref<256x128xbf16, #tpu.memory_space<vmem>>, vector<128x128xbf16>
    %cst_14 = arith.constant dense<0.000000e+00> : vector<432x128xf32>
    %154 = tpu.matmul %152, %153, %cst_14 {dimension_numbers = #tpu.dot_dimension_numbers<[1], [0], [0], [1], [0, 0, 1, 1], [], []>} : vector<432x128xbf16>, vector<128x128xbf16>, vector<432x128xf32> -> vector<432x128xf32>
    %155 = arith.addf %81, %154 : vector<432x128xf32>
    %c0_15 = arith.constant 0 : index
    %c0_16 = arith.constant 0 : index
    %156 = vector.load %arg6[%c0_15, %c0_16] : memref<1x128xf32, #tpu.memory_space<vmem>>, vector<1x128xf32>
    %157 = vector.broadcast %156 : vector<1x128xf32> to vector<432x128xf32>
    %158 = arith.mulf %155, %157 : vector<432x128xf32>
    %c0_17 = arith.constant 0 : index
    %c0_18 = arith.constant 0 : index
    %159 = vector.load %arg7[%c0_17, %c0_18] : memref<1x128xf32, #tpu.memory_space<vmem>>, vector<1x128xf32>
    %160 = vector.broadcast %159 : vector<1x128xf32> to vector<432x128xf32>
    %161 = arith.addf %158, %160 : vector<432x128xf32>
    %cst_19 = arith.constant 0.000000e+00 : f32
    %162 = vector.broadcast %cst_19 : f32 to vector<432x128xf32>
    %163 = arith.maximumf %161, %162 : vector<432x128xf32>
    %164 = vector.shape_cast %163 : vector<432x128xf32> to vector<18x24x128xf32>
    %165 = tpu.iota {dimensions = array<i32: 0>} : vector<18x24x128xi32>
    %c16_i32 = arith.constant 16 : i32
    %166 = arith.muli %arg1, %c16_i32 : i32
    %c1_i32 = arith.constant 1 : i32
    %167 = arith.subi %166, %c1_i32 : i32
    %168 = vector.broadcast %167 : i32 to vector<18x24x128xi32>
    %169 = arith.addi %165, %168 : vector<18x24x128xi32>
    %170 = tpu.iota {dimensions = array<i32: 1>} : vector<18x24x128xi32>
    %c1_i32_20 = arith.constant 1 : i32
    %171 = vector.broadcast %c1_i32_20 : i32 to vector<18x24x128xi32>
    %172 = arith.subi %170, %171 : vector<18x24x128xi32>
    %c0_i32 = arith.constant 0 : i32
    %173 = vector.broadcast %c0_i32 : i32 to vector<18x24x128xi32>
    %174 = arith.cmpi sge, %169, %173 : vector<18x24x128xi32>
    %c16_i32_21 = arith.constant 16 : i32
    %175 = vector.broadcast %c16_i32_21 : i32 to vector<18x24x128xi32>
    %176 = arith.cmpi slt, %169, %175 : vector<18x24x128xi32>
    %177 = arith.andi %174, %176 : vector<18x24x128xi1>
    %c0_i32_22 = arith.constant 0 : i32
    %178 = vector.broadcast %c0_i32_22 : i32 to vector<18x24x128xi32>
    %179 = arith.cmpi sge, %172, %178 : vector<18x24x128xi32>
    %180 = arith.andi %177, %179 : vector<18x24x128xi1>
    %c16_i32_23 = arith.constant 16 : i32
    %181 = vector.broadcast %c16_i32_23 : i32 to vector<18x24x128xi32>
    %182 = arith.cmpi slt, %172, %181 : vector<18x24x128xi32>
    %183 = arith.andi %180, %182 : vector<18x24x128xi1>
    %cst_24 = arith.constant 0.000000e+00 : f32
    %184 = vector.broadcast %cst_24 : f32 to vector<18x24x128xf32>
    %185 = arith.select %183, %164, %184 : vector<18x24x128xi1>, vector<18x24x128xf32>
    %c0_25 = arith.constant 0 : index
    %c0_26 = arith.constant 0 : index
    %186 = vector.load %arg8[%c0_25, %c0_26] : memref<18x128xf32, #tpu.memory_space<vmem>>, vector<18x128xf32>
    %c0_27 = arith.constant 0 : index
    %c0_28 = arith.constant 0 : index
    %187 = vector.load %arg9[%c0_27, %c0_28] : memref<2x128xf32, #tpu.memory_space<vmem>>, vector<2x128xf32>
    %188 = vector.extract_strided_slice %185 {offsets = [0, 0, 0], sizes = [18, 16, 128], strides = [1, 1, 1]} : vector<18x24x128xf32> to vector<18x16x128xf32>
    %189 = vector.extract_strided_slice %185 {offsets = [0, 1, 0], sizes = [18, 16, 128], strides = [1, 1, 1]} : vector<18x24x128xf32> to vector<18x16x128xf32>
    %190 = vector.extract_strided_slice %185 {offsets = [0, 2, 0], sizes = [18, 16, 128], strides = [1, 1, 1]} : vector<18x24x128xf32> to vector<18x16x128xf32>
    %cst_29 = arith.constant 0.000000e+00 : f32
    %191 = vector.broadcast %cst_29 : f32 to vector<256x128xf32>
    %cst_30 = arith.constant 0.000000e+00 : f32
    %192 = vector.broadcast %cst_30 : f32 to vector<16x16x128xf32>
    %193 = vector.extract_strided_slice %188 {offsets = [0, 0, 0], sizes = [16, 16, 128], strides = [1, 1, 1]} : vector<18x16x128xf32> to vector<16x16x128xf32>
    %194 = vector.extract_strided_slice %186 {offsets = [0, 0], sizes = [1, 128], strides = [1, 1]} : vector<18x128xf32> to vector<1x128xf32>
    %195 = vector.shape_cast %194 : vector<1x128xf32> to vector<128xf32>
    %196 = vector.shape_cast %195 : vector<128xf32> to vector<1x1x128xf32>
    %197 = vector.broadcast %196 : vector<1x1x128xf32> to vector<16x16x128xf32>
    %198 = arith.mulf %193, %197 : vector<16x16x128xf32>
    %199 = arith.addf %192, %198 : vector<16x16x128xf32>
    %200 = vector.extract_strided_slice %189 {offsets = [0, 0, 0], sizes = [16, 16, 128], strides = [1, 1, 1]} : vector<18x16x128xf32> to vector<16x16x128xf32>
    %201 = vector.extract_strided_slice %186 {offsets = [2, 0], sizes = [1, 128], strides = [1, 1]} : vector<18x128xf32> to vector<1x128xf32>
    %202 = vector.shape_cast %201 : vector<1x128xf32> to vector<128xf32>
    %203 = vector.shape_cast %202 : vector<128xf32> to vector<1x1x128xf32>
    %204 = vector.broadcast %203 : vector<1x1x128xf32> to vector<16x16x128xf32>
    %205 = arith.mulf %200, %204 : vector<16x16x128xf32>
    %206 = arith.addf %199, %205 : vector<16x16x128xf32>
    %207 = vector.extract_strided_slice %190 {offsets = [0, 0, 0], sizes = [16, 16, 128], strides = [1, 1, 1]} : vector<18x16x128xf32> to vector<16x16x128xf32>
    %208 = vector.extract_strided_slice %186 {offsets = [4, 0], sizes = [1, 128], strides = [1, 1]} : vector<18x128xf32> to vector<1x128xf32>
    %209 = vector.shape_cast %208 : vector<1x128xf32> to vector<128xf32>
    %210 = vector.shape_cast %209 : vector<128xf32> to vector<1x1x128xf32>
    %211 = vector.broadcast %210 : vector<1x1x128xf32> to vector<16x16x128xf32>
    %212 = arith.mulf %207, %211 : vector<16x16x128xf32>
    %213 = arith.addf %206, %212 : vector<16x16x128xf32>
    %214 = vector.extract_strided_slice %188 {offsets = [1, 0, 0], sizes = [16, 16, 128], strides = [1, 1, 1]} : vector<18x16x128xf32> to vector<16x16x128xf32>
    %215 = vector.extract_strided_slice %186 {offsets = [6, 0], sizes = [1, 128], strides = [1, 1]} : vector<18x128xf32> to vector<1x128xf32>
    %216 = vector.shape_cast %215 : vector<1x128xf32> to vector<128xf32>
    %217 = vector.shape_cast %216 : vector<128xf32> to vector<1x1x128xf32>
    %218 = vector.broadcast %217 : vector<1x1x128xf32> to vector<16x16x128xf32>
    %219 = arith.mulf %214, %218 : vector<16x16x128xf32>
    %220 = arith.addf %213, %219 : vector<16x16x128xf32>
    %221 = vector.extract_strided_slice %189 {offsets = [1, 0, 0], sizes = [16, 16, 128], strides = [1, 1, 1]} : vector<18x16x128xf32> to vector<16x16x128xf32>
    %222 = vector.extract_strided_slice %186 {offsets = [8, 0], sizes = [1, 128], strides = [1, 1]} : vector<18x128xf32> to vector<1x128xf32>
    %223 = vector.shape_cast %222 : vector<1x128xf32> to vector<128xf32>
    %224 = vector.shape_cast %223 : vector<128xf32> to vector<1x1x128xf32>
    %225 = vector.broadcast %224 : vector<1x1x128xf32> to vector<16x16x128xf32>
    %226 = arith.mulf %221, %225 : vector<16x16x128xf32>
    %227 = arith.addf %220, %226 : vector<16x16x128xf32>
    %228 = vector.extract_strided_slice %190 {offsets = [1, 0, 0], sizes = [16, 16, 128], strides = [1, 1, 1]} : vector<18x16x128xf32> to vector<16x16x128xf32>
    %229 = vector.extract_strided_slice %186 {offsets = [10, 0], sizes = [1, 128], strides = [1, 1]} : vector<18x128xf32> to vector<1x128xf32>
    %230 = vector.shape_cast %229 : vector<1x128xf32> to vector<128xf32>
    %231 = vector.shape_cast %230 : vector<128xf32> to vector<1x1x128xf32>
    %232 = vector.broadcast %231 : vector<1x1x128xf32> to vector<16x16x128xf32>
    %233 = arith.mulf %228, %232 : vector<16x16x128xf32>
    %234 = arith.addf %227, %233 : vector<16x16x128xf32>
    %235 = vector.extract_strided_slice %188 {offsets = [2, 0, 0], sizes = [16, 16, 128], strides = [1, 1, 1]} : vector<18x16x128xf32> to vector<16x16x128xf32>
    %236 = vector.extract_strided_slice %186 {offsets = [12, 0], sizes = [1, 128], strides = [1, 1]} : vector<18x128xf32> to vector<1x128xf32>
    %237 = vector.shape_cast %236 : vector<1x128xf32> to vector<128xf32>
    %238 = vector.shape_cast %237 : vector<128xf32> to vector<1x1x128xf32>
    %239 = vector.broadcast %238 : vector<1x1x128xf32> to vector<16x16x128xf32>
    %240 = arith.mulf %235, %239 : vector<16x16x128xf32>
    %241 = arith.addf %234, %240 : vector<16x16x128xf32>
    %242 = vector.extract_strided_slice %189 {offsets = [2, 0, 0], sizes = [16, 16, 128], strides = [1, 1, 1]} : vector<18x16x128xf32> to vector<16x16x128xf32>
    %243 = vector.extract_strided_slice %186 {offsets = [14, 0], sizes = [1, 128], strides = [1, 1]} : vector<18x128xf32> to vector<1x128xf32>
    %244 = vector.shape_cast %243 : vector<1x128xf32> to vector<128xf32>
    %245 = vector.shape_cast %244 : vector<128xf32> to vector<1x1x128xf32>
    %246 = vector.broadcast %245 : vector<1x1x128xf32> to vector<16x16x128xf32>
    %247 = arith.mulf %242, %246 : vector<16x16x128xf32>
    %248 = arith.addf %241, %247 : vector<16x16x128xf32>
    %249 = vector.extract_strided_slice %190 {offsets = [2, 0, 0], sizes = [16, 16, 128], strides = [1, 1, 1]} : vector<18x16x128xf32> to vector<16x16x128xf32>
    %250 = vector.extract_strided_slice %186 {offsets = [16, 0], sizes = [1, 128], strides = [1, 1]} : vector<18x128xf32> to vector<1x128xf32>
    %251 = vector.shape_cast %250 : vector<1x128xf32> to vector<128xf32>
    %252 = vector.shape_cast %251 : vector<128xf32> to vector<1x1x128xf32>
    %253 = vector.broadcast %252 : vector<1x1x128xf32> to vector<16x16x128xf32>
    %254 = arith.mulf %249, %253 : vector<16x16x128xf32>
    %255 = arith.addf %248, %254 : vector<16x16x128xf32>
    %256 = vector.extract_strided_slice %187 {offsets = [0, 0], sizes = [1, 128], strides = [1, 1]} : vector<2x128xf32> to vector<1x128xf32>
    %257 = vector.shape_cast %256 : vector<1x128xf32> to vector<128xf32>
    %258 = vector.shape_cast %257 : vector<128xf32> to vector<1x1x128xf32>
    %259 = vector.broadcast %258 : vector<1x1x128xf32> to vector<16x16x128xf32>
    %260 = arith.addf %255, %259 : vector<16x16x128xf32>
    %261 = vector.shape_cast %260 : vector<16x16x128xf32> to vector<256x128xf32>
    %262 = arith.truncf %261 : vector<256x128xf32> to vector<256x128xbf16>
    %c0_31 = arith.constant 0 : index
    %c0_32 = arith.constant 0 : index
    %263 = vector.load %arg10[%c0_31, %c0_32] : memref<256x128xbf16, #tpu.memory_space<vmem>>, vector<128x128xbf16>
    %cst_33 = arith.constant dense<0.000000e+00> : vector<256x128xf32>
    %264 = tpu.matmul %262, %263, %cst_33 {dimension_numbers = #tpu.dot_dimension_numbers<[1], [0], [0], [1], [0, 0, 1, 1], [], []>} : vector<256x128xbf16>, vector<128x128xbf16>, vector<256x128xf32> -> vector<256x128xf32>
    %265 = arith.addf %191, %264 : vector<256x128xf32>
    %cst_34 = arith.constant 0.000000e+00 : f32
    %266 = vector.broadcast %cst_34 : f32 to vector<16x16x128xf32>
    %267 = vector.extract_strided_slice %188 {offsets = [0, 0, 0], sizes = [16, 16, 128], strides = [1, 1, 1]} : vector<18x16x128xf32> to vector<16x16x128xf32>
    %268 = vector.extract_strided_slice %186 {offsets = [1, 0], sizes = [1, 128], strides = [1, 1]} : vector<18x128xf32> to vector<1x128xf32>
    %269 = vector.shape_cast %268 : vector<1x128xf32> to vector<128xf32>
    %270 = vector.shape_cast %269 : vector<128xf32> to vector<1x1x128xf32>
    %271 = vector.broadcast %270 : vector<1x1x128xf32> to vector<16x16x128xf32>
    %272 = arith.mulf %267, %271 : vector<16x16x128xf32>
    %273 = arith.addf %266, %272 : vector<16x16x128xf32>
    %274 = vector.extract_strided_slice %189 {offsets = [0, 0, 0], sizes = [16, 16, 128], strides = [1, 1, 1]} : vector<18x16x128xf32> to vector<16x16x128xf32>
    %275 = vector.extract_strided_slice %186 {offsets = [3, 0], sizes = [1, 128], strides = [1, 1]} : vector<18x128xf32> to vector<1x128xf32>
    %276 = vector.shape_cast %275 : vector<1x128xf32> to vector<128xf32>
    %277 = vector.shape_cast %276 : vector<128xf32> to vector<1x1x128xf32>
    %278 = vector.broadcast %277 : vector<1x1x128xf32> to vector<16x16x128xf32>
    %279 = arith.mulf %274, %278 : vector<16x16x128xf32>
    %280 = arith.addf %273, %279 : vector<16x16x128xf32>
    %281 = vector.extract_strided_slice %190 {offsets = [0, 0, 0], sizes = [16, 16, 128], strides = [1, 1, 1]} : vector<18x16x128xf32> to vector<16x16x128xf32>
    %282 = vector.extract_strided_slice %186 {offsets = [5, 0], sizes = [1, 128], strides = [1, 1]} : vector<18x128xf32> to vector<1x128xf32>
    %283 = vector.shape_cast %282 : vector<1x128xf32> to vector<128xf32>
    %284 = vector.shape_cast %283 : vector<128xf32> to vector<1x1x128xf32>
    %285 = vector.broadcast %284 : vector<1x1x128xf32> to vector<16x16x128xf32>
    %286 = arith.mulf %281, %285 : vector<16x16x128xf32>
    %287 = arith.addf %280, %286 : vector<16x16x128xf32>
    %288 = vector.extract_strided_slice %188 {offsets = [1, 0, 0], sizes = [16, 16, 128], strides = [1, 1, 1]} : vector<18x16x128xf32> to vector<16x16x128xf32>
    %289 = vector.extract_strided_slice %186 {offsets = [7, 0], sizes = [1, 128], strides = [1, 1]} : vector<18x128xf32> to vector<1x128xf32>
    %290 = vector.shape_cast %289 : vector<1x128xf32> to vector<128xf32>
    %291 = vector.shape_cast %290 : vector<128xf32> to vector<1x1x128xf32>
    %292 = vector.broadcast %291 : vector<1x1x128xf32> to vector<16x16x128xf32>
    %293 = arith.mulf %288, %292 : vector<16x16x128xf32>
    %294 = arith.addf %287, %293 : vector<16x16x128xf32>
    %295 = vector.extract_strided_slice %189 {offsets = [1, 0, 0], sizes = [16, 16, 128], strides = [1, 1, 1]} : vector<18x16x128xf32> to vector<16x16x128xf32>
    %296 = vector.extract_strided_slice %186 {offsets = [9, 0], sizes = [1, 128], strides = [1, 1]} : vector<18x128xf32> to vector<1x128xf32>
    %297 = vector.shape_cast %296 : vector<1x128xf32> to vector<128xf32>
    %298 = vector.shape_cast %297 : vector<128xf32> to vector<1x1x128xf32>
    %299 = vector.broadcast %298 : vector<1x1x128xf32> to vector<16x16x128xf32>
    %300 = arith.mulf %295, %299 : vector<16x16x128xf32>
    %301 = arith.addf %294, %300 : vector<16x16x128xf32>
    %302 = vector.extract_strided_slice %190 {offsets = [1, 0, 0], sizes = [16, 16, 128], strides = [1, 1, 1]} : vector<18x16x128xf32> to vector<16x16x128xf32>
    %303 = vector.extract_strided_slice %186 {offsets = [11, 0], sizes = [1, 128], strides = [1, 1]} : vector<18x128xf32> to vector<1x128xf32>
    %304 = vector.shape_cast %303 : vector<1x128xf32> to vector<128xf32>
    %305 = vector.shape_cast %304 : vector<128xf32> to vector<1x1x128xf32>
    %306 = vector.broadcast %305 : vector<1x1x128xf32> to vector<16x16x128xf32>
    %307 = arith.mulf %302, %306 : vector<16x16x128xf32>
    %308 = arith.addf %301, %307 : vector<16x16x128xf32>
    %309 = vector.extract_strided_slice %188 {offsets = [2, 0, 0], sizes = [16, 16, 128], strides = [1, 1, 1]} : vector<18x16x128xf32> to vector<16x16x128xf32>
    %310 = vector.extract_strided_slice %186 {offsets = [13, 0], sizes = [1, 128], strides = [1, 1]} : vector<18x128xf32> to vector<1x128xf32>
    %311 = vector.shape_cast %310 : vector<1x128xf32> to vector<128xf32>
    %312 = vector.shape_cast %311 : vector<128xf32> to vector<1x1x128xf32>
    %313 = vector.broadcast %312 : vector<1x1x128xf32> to vector<16x16x128xf32>
    %314 = arith.mulf %309, %313 : vector<16x16x128xf32>
    %315 = arith.addf %308, %314 : vector<16x16x128xf32>
    %316 = vector.extract_strided_slice %189 {offsets = [2, 0, 0], sizes = [16, 16, 128], strides = [1, 1, 1]} : vector<18x16x128xf32> to vector<16x16x128xf32>
    %317 = vector.extract_strided_slice %186 {offsets = [15, 0], sizes = [1, 128], strides = [1, 1]} : vector<18x128xf32> to vector<1x128xf32>
    %318 = vector.shape_cast %317 : vector<1x128xf32> to vector<128xf32>
    %319 = vector.shape_cast %318 : vector<128xf32> to vector<1x1x128xf32>
    %320 = vector.broadcast %319 : vector<1x1x128xf32> to vector<16x16x128xf32>
    %321 = arith.mulf %316, %320 : vector<16x16x128xf32>
    %322 = arith.addf %315, %321 : vector<16x16x128xf32>
    %323 = vector.extract_strided_slice %190 {offsets = [2, 0, 0], sizes = [16, 16, 128], strides = [1, 1, 1]} : vector<18x16x128xf32> to vector<16x16x128xf32>
    %324 = vector.extract_strided_slice %186 {offsets = [17, 0], sizes = [1, 128], strides = [1, 1]} : vector<18x128xf32> to vector<1x128xf32>
    %325 = vector.shape_cast %324 : vector<1x128xf32> to vector<128xf32>
    %326 = vector.shape_cast %325 : vector<128xf32> to vector<1x1x128xf32>
    %327 = vector.broadcast %326 : vector<1x1x128xf32> to vector<16x16x128xf32>
    %328 = arith.mulf %323, %327 : vector<16x16x128xf32>
    %329 = arith.addf %322, %328 : vector<16x16x128xf32>
    %330 = vector.extract_strided_slice %187 {offsets = [1, 0], sizes = [1, 128], strides = [1, 1]} : vector<2x128xf32> to vector<1x128xf32>
    %331 = vector.shape_cast %330 : vector<1x128xf32> to vector<128xf32>
    %332 = vector.shape_cast %331 : vector<128xf32> to vector<1x1x128xf32>
    %333 = vector.broadcast %332 : vector<1x1x128xf32> to vector<16x16x128xf32>
    %334 = arith.addf %329, %333 : vector<16x16x128xf32>
    %335 = vector.shape_cast %334 : vector<16x16x128xf32> to vector<256x128xf32>
    %336 = arith.truncf %335 : vector<256x128xf32> to vector<256x128xbf16>
    %c128_35 = arith.constant 128 : index
    %c0_36 = arith.constant 0 : index
    %337 = vector.load %arg10[%c128_35, %c0_36] : memref<256x128xbf16, #tpu.memory_space<vmem>>, vector<128x128xbf16>
    %cst_37 = arith.constant dense<0.000000e+00> : vector<256x128xf32>
    %338 = tpu.matmul %336, %337, %cst_37 {dimension_numbers = #tpu.dot_dimension_numbers<[1], [0], [0], [1], [0, 0, 1, 1], [], []>} : vector<256x128xbf16>, vector<128x128xbf16>, vector<256x128xf32> -> vector<256x128xf32>
    %339 = arith.addf %265, %338 : vector<256x128xf32>
    %c0_38 = arith.constant 0 : index
    %c0_39 = arith.constant 0 : index
    %340 = vector.load %arg11[%c0_38, %c0_39] : memref<1x128xf32, #tpu.memory_space<vmem>>, vector<1x128xf32>
    %341 = vector.broadcast %340 : vector<1x128xf32> to vector<256x128xf32>
    %342 = arith.mulf %339, %341 : vector<256x128xf32>
    %c0_40 = arith.constant 0 : index
    %c0_41 = arith.constant 0 : index
    %343 = vector.load %arg12[%c0_40, %c0_41] : memref<1x128xf32, #tpu.memory_space<vmem>>, vector<1x128xf32>
    %344 = vector.broadcast %343 : vector<1x128xf32> to vector<256x128xf32>
    %345 = arith.addf %342, %344 : vector<256x128xf32>
    %cst_42 = arith.constant 0.000000e+00 : f32
    %346 = vector.broadcast %cst_42 : f32 to vector<256x128xf32>
    %347 = arith.maximumf %345, %346 : vector<256x128xf32>
    %348 = vector.shape_cast %347 : vector<256x128xf32> to vector<1x16x16x128xf32>
    %c0_43 = arith.constant 0 : index
    %c0_44 = arith.constant 0 : index
    %c0_45 = arith.constant 0 : index
    %c0_46 = arith.constant 0 : index
    %349 = vector.load %arg13[%c0_43, %c0_44, %c0_45, %c0_46] : memref<1x16x16x128xf32, #tpu.memory_space<vmem>>, vector<1x16x16x128xf32>
    tpu.vector_store %arg13[%c0_43, %c0_44, %c0_45, %c0_46], %348 {strides = array<i32>} : memref<1x16x16x128xf32, #tpu.memory_space<vmem>>, vector<1x16x16x128xf32>,
    return
  }
  func.func @transform_0(%arg0: i32, %arg1: i32) -> (i32, i32, i32, i32, i32) {
    %c0_i32 = arith.constant 0 : i32
    %c0_i32_0 = arith.constant 0 : i32
    %c0_i32_1 = arith.constant 0 : i32
    %c0_i32_2 = arith.constant 0 : i32
    return %arg0, %arg1, %c0_i32, %c0_i32_0, %c0_i32_1 : i32, i32, i32, i32, i32
  }
  func.func @transform_1(%arg0: i32, %arg1: i32) -> (i32, i32) {
    %c0_i32 = arith.constant 0 : i32
    %c0_i32_0 = arith.constant 0 : i32
    %c0_i32_1 = arith.constant 0 : i32
    return %c0_i32, %c0_i32_0 : i32, i32
  }
  func.func @transform_2(%arg0: i32, %arg1: i32) -> (i32, i32) {
    %c0_i32 = arith.constant 0 : i32
    %c0_i32_0 = arith.constant 0 : i32
    %c0_i32_1 = arith.constant 0 : i32
    return %c0_i32, %c0_i32_0 : i32, i32
  }
  func.func @transform_3(%arg0: i32, %arg1: i32) -> (i32, i32) {
    %c0_i32 = arith.constant 0 : i32
    %c0_i32_0 = arith.constant 0 : i32
    %c0_i32_1 = arith.constant 0 : i32
    return %c0_i32, %c0_i32_0 : i32, i32
  }
  func.func @transform_4(%arg0: i32, %arg1: i32) -> (i32, i32) {
    %c0_i32 = arith.constant 0 : i32
    %c0_i32_0 = arith.constant 0 : i32
    %c0_i32_1 = arith.constant 0 : i32
    return %c0_i32, %c0_i32_0 : i32, i32
  }
  func.func @transform_5(%arg0: i32, %arg1: i32) -> (i32, i32) {
    %c0_i32 = arith.constant 0 : i32
    %c0_i32_0 = arith.constant 0 : i32
    %c0_i32_1 = arith.constant 0 : i32
    return %c0_i32, %c0_i32_0 : i32, i32
  }
  func.func @transform_6(%arg0: i32, %arg1: i32) -> (i32, i32) {
    %c0_i32 = arith.constant 0 : i32
    %c0_i32_0 = arith.constant 0 : i32
    %c0_i32_1 = arith.constant 0 : i32
    return %c0_i32, %c0_i32_0 : i32, i32
  }
  func.func @transform_7(%arg0: i32, %arg1: i32) -> (i32, i32) {
    %c0_i32 = arith.constant 0 : i32
    %c0_i32_0 = arith.constant 0 : i32
    %c0_i32_1 = arith.constant 0 : i32
    return %c0_i32, %c0_i32_0 : i32, i32
  }
  func.func @transform_8(%arg0: i32, %arg1: i32) -> (i32, i32) {
    %c0_i32 = arith.constant 0 : i32
    %c0_i32_0 = arith.constant 0 : i32
    %c0_i32_1 = arith.constant 0 : i32
    return %c0_i32, %c0_i32_0 : i32, i32
  }
  func.func @transform_9(%arg0: i32, %arg1: i32) -> (i32, i32) {
    %c0_i32 = arith.constant 0 : i32
    %c0_i32_0 = arith.constant 0 : i32
    %c0_i32_1 = arith.constant 0 : i32
    return %c0_i32, %c0_i32_0 : i32, i32
  }
  func.func @transform_10(%arg0: i32, %arg1: i32) -> (i32, i32) {
    %c0_i32 = arith.constant 0 : i32
    %c0_i32_0 = arith.constant 0 : i32
    %c0_i32_1 = arith.constant 0 : i32
    return %c0_i32, %c0_i32_0 : i32, i32
  }
  func.func @transform_11(%arg0: i32, %arg1: i32) -> (i32, i32, i32, i32) {
    %c0_i32 = arith.constant 0 : i32
    %c0_i32_0 = arith.constant 0 : i32
    %c0_i32_1 = arith.constant 0 : i32
    return %arg0, %arg1, %c0_i32, %c0_i32_0 : i32, i32, i32, i32
  }
}

</mosaic_0001>

<llo_original>
// kernel: double_conv_ds_forward.1
$region0: #{double_conv_ds_forward.1}
  #allocation0 [shape = 'u32[]', space=smem, size = 0x4, offset = 0x4, fixed_abs, tag = 'smem constant byte address 0x4 - core index']
  #allocation1 [shape = 'u32[72,128]{1,0:T(1,128)}', space=vmem, size = 0x9000, scoped, tag = 'internal scratch']
  %s0 = inlined_call_operand.vmem [shape: f32[2,1,20,26,128], index: 0, kind: input, shape index: {}]
  %s1 = inlined_call_operand.vmem [shape: f32[18,128], index: 1, kind: input, shape index: {}]
  %s2 = inlined_call_operand.vmem [shape: f32[2,128], index: 2, kind: input, shape index: {}]
  %s3 = inlined_call_operand.vmem [shape: bf16[256,128], index: 3, kind: input, shape index: {}]
  %s4 = inlined_call_operand.vmem [shape: f32[1,128], index: 4, kind: input, shape index: {}]
  %s5 = inlined_call_operand.vmem [shape: f32[1,128], index: 5, kind: input, shape index: {}]
  %s6 = inlined_call_operand.vmem [shape: f32[18,128], index: 6, kind: input, shape index: {}]
  %s7 = inlined_call_operand.vmem [shape: f32[2,128], index: 7, kind: input, shape index: {}]
  %s8 = inlined_call_operand.vmem [shape: bf16[256,128], index: 8, kind: input, shape index: {}]
  %s9 = inlined_call_operand.vmem [shape: f32[1,128], index: 9, kind: input, shape index: {}]
  %s10 = inlined_call_operand.vmem [shape: f32[1,128], index: 10, kind: input, shape index: {}]
  %s11 = inlined_call_operand.vmem [shape: f32[2,16,16,128], index: 11, kind: output, shape index: {}]
  %s12 = sld [smem:[#allocation0]]
  $region77: #{double_conv_ds_forward.1} parent=0
    _
  %s14 = ssub.s32 1, %s12
  %s15 = scalar_select 0, %s14, %s12
  loop: start=0, step=1, limit=4
  $region2: #{double_conv_ds_forward.1} parent=0 // loop_pre_header
    _
  $region3: #{double_conv_ds_forward.1} parent=0 // loop_header
    %s17 = sphi 0, %s21
    %p18 = scmp.ge.s32.totalorder %s17, 4
    %s24 = sphi 0, %s36
    %s25 = sphi 0, %s32
    %s26 = sphi 0, %s24
    %s27 = sphi 0, %s25
    %s28 = sphi 0, %s26
    %s29 = sphi 0, %s27
    %s41 = sphi 0, %s43
    %s44 = sphi 0, %s41
    %s45 = sphi 0, %s44
    %s61 = sphi 0, %s45
    %s65 = sphi 0, %s65
    %s67 = sphi 0, %s65
    %s68 = sphi 0, %s67
    %s82 = sphi 0, %s68
    %s86 = sphi 0, %s86
    %s88 = sphi 0, %s86
    %s89 = sphi 0, %s88
    %s103 = sphi 0, %s89
    %s107 = sphi 0, %s107
    %s109 = sphi 0, %s107
    %s110 = sphi 0, %s109
    %s124 = sphi 0, %s110
    %s128 = sphi 0, %s128
    %s130 = sphi 0, %s128
    %s131 = sphi 0, %s130
    %s145 = sphi 0, %s131
    %s149 = sphi 0, %s149
    %s151 = sphi 0, %s149
    %s152 = sphi 0, %s151
    %s166 = sphi 0, %s152
    %s170 = sphi 0, %s170
    %s172 = sphi 0, %s170
    %s173 = sphi 0, %s172
    %s187 = sphi 0, %s173
    %s191 = sphi 0, %s191
    %s193 = sphi 0, %s191
    %s194 = sphi 0, %s193
    %s208 = sphi 0, %s194
    %s212 = sphi 0, %s212
    %s214 = sphi 0, %s212
    %s215 = sphi 0, %s214
    %s229 = sphi 0, %s215
    %s233 = sphi 0, %s233
    %s235 = sphi 0, %s233
    %s236 = sphi 0, %s235
    %s250 = sphi 0, %s236
    %s254 = sphi 0, %s254
    %s256 = sphi 0, %s254
    %s257 = sphi 0, %s256
    %s271 = sphi 0, %s257
    %s279 = sphi 0, %s281
    %s282 = sphi 0, %s279
    %s283 = sphi 0, %s282
    %s299 = sphi 0, %s283
  $region4: #{double_conv_ds_forward.1} parent=0 // loop_header_branch
    %20 = sbr.rel (%p18) target = $region8
  $region5: #{double_conv_ds_forward.1} parent=0 // loop_body
    %s22 = ssub.s32 %s17, 1
    %s23 = ssub.s32 %s17, 2
    %s30 = sadd.s32 1, %s25
    %p31 = scmp.ge.s32.totalorder %s30, 1
    %s32 = scalar_select %p31, 0, %s30
    %s33 = sadd.s32 1, %s24
    %s34 = scalar_select %p31, %s33, %s24
    %p35 = scmp.ge.s32.totalorder %s34, 2
    %s36 = scalar_select %p35, 0, %s34
    %s37 = ssub.s32 %s24, %s36
    %s38 = ssub.s32 %s25, %s32
    %s39 = sor.u32 %s37, %s38
    %p40 = scmp.eq.s32.totalorder %s39, 0
    %s42 = sadd.s32 %s41, 1
    %s43 = scalar_select %p40, %s41, %s42
    %p46 = pneg %p40
    %p47 = scmp.eq.s32.totalorder %s17, 1
    %p48 = por %p46, %p47
    %p49 = scmp.ne.s32.totalorder %s41, %s44
    %p50 = scmp.eq.s32.totalorder %s17, 0
    %p51 = por %p49, %p50
    %p52 = scmp.ne.s32.totalorder %s41, %s44
    %p53 = scmp.eq.s32.totalorder %s22, 1
    %p54 = por %p52, %p53
    %p55 = scmp.ne.s32.totalorder %s44, %s45
    %p56 = scmp.eq.s32.totalorder %s22, 0
    %p57 = por %p55, %p56
    %p58 = scmp.ne.s32.totalorder %s44, %s45
    %p59 = scmp.eq.s32.totalorder %s23, 1
    %p60 = por %p58, %p59
    %p62 = scmp.ne.s32.totalorder %s45, %s61
    %p63 = scmp.eq.s32.totalorder %s23, 0
    %p64 = por %p62, %p63
    %s66 = sadd.s32 %s65, 1
    %p69 = scmp.eq.s32.totalorder %s17, 1
    %p70 = scmp.ne.s32.totalorder %s65, %s67
    %p71 = scmp.eq.s32.totalorder %s17, 0
    %p72 = por %p70, %p71
    %p73 = scmp.ne.s32.totalorder %s65, %s67
    %p74 = scmp.eq.s32.totalorder %s22, 1
    %p75 = por %p73, %p74
    %p76 = scmp.ne.s32.totalorder %s67, %s68
    %p77 = scmp.eq.s32.totalorder %s22, 0
    %p78 = por %p76, %p77
    %p79 = scmp.ne.s32.totalorder %s67, %s68
    %p80 = scmp.eq.s32.totalorder %s23, 1
    %p81 = por %p79, %p80
    %p83 = scmp.ne.s32.totalorder %s68, %s82
    %p84 = scmp.eq.s32.totalorder %s23, 0
    %p85 = por %p83, %p84
    %s87 = sadd.s32 %s86, 1
    %p90 = scmp.eq.s32.totalorder %s17, 1
    %p91 = scmp.ne.s32.totalorder %s86, %s88
    %p92 = scmp.eq.s32.totalorder %s17, 0
    %p93 = por %p91, %p92
    %p94 = scmp.ne.s32.totalorder %s86, %s88
    %p95 = scmp.eq.s32.totalorder %s22, 1
    %p96 = por %p94, %p95
    %p97 = scmp.ne.s32.totalorder %s88, %s89
    %p98 = scmp.eq.s32.totalorder %s22, 0
    %p99 = por %p97, %p98
    %p100 = scmp.ne.s32.totalorder %s88, %s89
    %p101 = scmp.eq.s32.totalorder %s23, 1
    %p102 = por %p100, %p101
    %p104 = scmp.ne.s32.totalorder %s89, %s103
    %p105 = scmp.eq.s32.totalorder %s23, 0
    %p106 = por %p104, %p105
    %s108 = sadd.s32 %s107, 1
    %p111 = scmp.eq.s32.totalorder %s17, 1
    %p112 = scmp.ne.s32.totalorder %s107, %s109
    %p113 = scmp.eq.s32.totalorder %s17, 0
    %p114 = por %p112, %p113
    %p115 = scmp.ne.s32.totalorder %s107, %s109
    %p116 = scmp.eq.s32.totalorder %s22, 1
    %p117 = por %p115, %p116
    %p118 = scmp.ne.s32.totalorder %s109, %s110
    %p119 = scmp.eq.s32.totalorder %s22, 0
    %p120 = por %p118, %p119
    %p121 = scmp.ne.s32.totalorder %s109, %s110
    %p122 = scmp.eq.s32.totalorder %s23, 1
    %p123 = por %p121, %p122
    %p125 = scmp.ne.s32.totalorder %s110, %s124
    %p126 = scmp.eq.s32.totalorder %s23, 0
    %p127 = por %p125, %p126
    %s129 = sadd.s32 %s128, 1
    %p132 = scmp.eq.s32.totalorder %s17, 1
    %p133 = scmp.ne.s32.totalorder %s128, %s130
    %p134 = scmp.eq.s32.totalorder %s17, 0
    %p135 = por %p133, %p134
    %p136 = scmp.ne.s32.totalorder %s128, %s130
    %p137 = scmp.eq.s32.totalorder %s22, 1
    %p138 = por %p136, %p137
    %p139 = scmp.ne.s32.totalorder %s130, %s131
    %p140 = scmp.eq.s32.totalorder %s22, 0
    %p141 = por %p139, %p140
    %p142 = scmp.ne.s32.totalorder %s130, %s131
    %p143 = scmp.eq.s32.totalorder %s23, 1
    %p144 = por %p142, %p143
    %p146 = scmp.ne.s32.totalorder %s131, %s145
    %p147 = scmp.eq.s32.totalorder %s23, 0
    %p148 = por %p146, %p147
    %s150 = sadd.s32 %s149, 1
    %p153 = scmp.eq.s32.totalorder %s17, 1
    %p154 = scmp.ne.s32.totalorder %s149, %s151
    %p155 = scmp.eq.s32.totalorder %s17, 0
    %p156 = por %p154, %p155
    %p157 = scmp.ne.s32.totalorder %s149, %s151
    %p158 = scmp.eq.s32.totalorder %s22, 1
    %p159 = por %p157, %p158
    %p160 = scmp.ne.s32.totalorder %s151, %s152
    %p161 = scmp.eq.s32.totalorder %s22, 0
    %p162 = por %p160, %p161
    %p163 = scmp.ne.s32.totalorder %s151, %s152
    %p164 = scmp.eq.s32.totalorder %s23, 1
    %p165 = por %p163, %p164
    %p167 = scmp.ne.s32.totalorder %s152, %s166
    %p168 = scmp.eq.s32.totalorder %s23, 0
    %p169 = por %p167, %p168
    %s171 = sadd.s32 %s170, 1
    %p174 = scmp.eq.s32.totalorder %s17, 1
    %p175 = scmp.ne.s32.totalorder %s170, %s172
    %p176 = scmp.eq.s32.totalorder %s17, 0
    %p177 = por %p175, %p176
    %p178 = scmp.ne.s32.totalorder %s170, %s172
    %p179 = scmp.eq.s32.totalorder %s22, 1
    %p180 = por %p178, %p179
    %p181 = scmp.ne.s32.totalorder %s172, %s173
    %p182 = scmp.eq.s32.totalorder %s22, 0
    %p183 = por %p181, %p182
    %p184 = scmp.ne.s32.totalorder %s172, %s173
    %p185 = scmp.eq.s32.totalorder %s23, 1
    %p186 = por %p184, %p185
    %p188 = scmp.ne.s32.totalorder %s173, %s187
    %p189 = scmp.eq.s32.totalorder %s23, 0
    %p190 = por %p188, %p189
    %s192 = sadd.s32 %s191, 1
    %p195 = scmp.eq.s32.totalorder %s17, 1
    %p196 = scmp.ne.s32.totalorder %s191, %s193
    %p197 = scmp.eq.s32.totalorder %s17, 0
    %p198 = por %p196, %p197
    %p199 = scmp.ne.s32.totalorder %s191, %s193
    %p200 = scmp.eq.s32.totalorder %s22, 1
    %p201 = por %p199, %p200
    %p202 = scmp.ne.s32.totalorder %s193, %s194
    %p203 = scmp.eq.s32.totalorder %s22, 0
    %p204 = por %p202, %p203
    %p205 = scmp.ne.s32.totalorder %s193, %s194
    %p206 = scmp.eq.s32.totalorder %s23, 1
    %p207 = por %p205, %p206
    %p209 = scmp.ne.s32.totalorder %s194, %s208
    %p210 = scmp.eq.s32.totalorder %s23, 0
    %p211 = por %p209, %p210
    %s213 = sadd.s32 %s212, 1
    %p216 = scmp.eq.s32.totalorder %s17, 1
    %p217 = scmp.ne.s32.totalorder %s212, %s214
    %p218 = scmp.eq.s32.totalorder %s17, 0
    %p219 = por %p217, %p218
    %p220 = scmp.ne.s32.totalorder %s212, %s214
    %p221 = scmp.eq.s32.totalorder %s22, 1
    %p222 = por %p220, %p221
    %p223 = scmp.ne.s32.totalorder %s214, %s215
    %p224 = scmp.eq.s32.totalorder %s22, 0
    %p225 = por %p223, %p224
    %p226 = scmp.ne.s32.totalorder %s214, %s215
    %p227 = scmp.eq.s32.totalorder %s23, 1
    %p228 = por %p226, %p227
    %p230 = scmp.ne.s32.totalorder %s215, %s229
    %p231 = scmp.eq.s32.totalorder %s23, 0
    %p232 = por %p230, %p231
    %s234 = sadd.s32 %s233, 1
    %p237 = scmp.eq.s32.totalorder %s17, 1
    %p238 = scmp.ne.s32.totalorder %s233, %s235
    %p239 = scmp.eq.s32.totalorder %s17, 0
    %p240 = por %p238, %p239
    %p241 = scmp.ne.s32.totalorder %s233, %s235
    %p242 = scmp.eq.s32.totalorder %s22, 1
    %p243 = por %p241, %p242
    %p244 = scmp.ne.s32.totalorder %s235, %s236
    %p245 = scmp.eq.s32.totalorder %s22, 0
    %p246 = por %p244, %p245
    %p247 = scmp.ne.s32.totalorder %s235, %s236
    %p248 = scmp.eq.s32.totalorder %s23, 1
    %p249 = por %p247, %p248
    %p251 = scmp.ne.s32.totalorder %s236, %s250
    %p252 = scmp.eq.s32.totalorder %s23, 0
    %p253 = por %p251, %p252
    %s255 = sadd.s32 %s254, 1
    %p258 = scmp.eq.s32.totalorder %s17, 1
    %p259 = scmp.ne.s32.totalorder %s254, %s256
    %p260 = scmp.eq.s32.totalorder %s17, 0
    %p261 = por %p259, %p260
    %p262 = scmp.ne.s32.totalorder %s254, %s256
    %p263 = scmp.eq.s32.totalorder %s22, 1
    %p264 = por %p262, %p263
    %p265 = scmp.ne.s32.totalorder %s256, %s257
    %p266 = scmp.eq.s32.totalorder %s22, 0
    %p267 = por %p265, %p266
    %p268 = scmp.ne.s32.totalorder %s256, %s257
    %p269 = scmp.eq.s32.totalorder %s23, 1
    %p270 = por %p268, %p269
    %p272 = scmp.ne.s32.totalorder %s257, %s271
    %p273 = scmp.eq.s32.totalorder %s23, 0
    %p274 = por %p272, %p273
    %s275 = ssub.s32 %s24, %s36
    %s276 = ssub.s32 %s25, %s32
    %s277 = sor.u32 %s275, %s276
    %p278 = scmp.eq.s32.totalorder %s277, 0
    %s280 = sadd.s32 %s279, 1
    %s281 = scalar_select %p278, %s279, %s280
    %p284 = pneg %p278
    %p285 = scmp.eq.s32.totalorder %s17, 1
    %p286 = por %p284, %p285
    %p287 = scmp.ne.s32.totalorder %s279, %s282
    %p288 = scmp.eq.s32.totalorder %s17, 0
    %p289 = por %p287, %p288
    %p290 = scmp.ne.s32.totalorder %s279, %s282
    %p291 = scmp.eq.s32.totalorder %s22, 1
    %p292 = por %p290, %p291
    %p293 = scmp.ne.s32.totalorder %s282, %s283
    %p294 = scmp.eq.s32.totalorder %s22, 0
    %p295 = por %p293, %p294
    %p296 = scmp.ne.s32.totalorder %s282, %s283
    %p297 = scmp.eq.s32.totalorder %s23, 1
    %p298 = por %p296, %p297
    %p300 = scmp.ne.s32.totalorder %s283, %s299
    %p301 = scmp.eq.s32.totalorder %s23, 0
    %p302 = por %p300, %p301
    %p303 = scmp.le.s32.totalorder 1, %s17
    %p304 = scmp.lt.s32.totalorder %s17, 3
    %p305 = pnand %p303, %p304
    %p306 = pneg %p305
    // Predicated region
    $region9: #{double_conv_ds_forward.1} parent=5 // pred_check
      _
    $region10: #{double_conv_ds_forward.1} parent=5 // pred_check_branch
      %308 = sbr.rel (%p305) target = $region12
    $region11: #{double_conv_ds_forward.1} parent=5 // pred_region
      %s309 = ssub.s32 %s17, 1
      // Predicated region
      $region13: #{double_conv_ds_forward.1} parent=11 // pred_check
        %p310 = pneg %p78
      $region14: #{double_conv_ds_forward.1} parent=11 // pred_check_branch
        %312 = sbr.rel (%p310) target = $region16
      $region15: #{double_conv_ds_forward.1} parent=11 // pred_region
        _
      $region16: #{double_conv_ds_forward.1} parent=11 // pred_fallthru
        _
      // Predicated region
      $region17: #{double_conv_ds_forward.1} parent=11 // pred_check
        %p313 = pneg %p99
      $region18: #{double_conv_ds_forward.1} parent=11 // pred_check_branch
        %315 = sbr.rel (%p313) target = $region20
      $region19: #{double_conv_ds_forward.1} parent=11 // pred_region
        _
      $region20: #{double_conv_ds_forward.1} parent=11 // pred_fallthru
        _
      // Predicated region
      $region21: #{double_conv_ds_forward.1} parent=11 // pred_check
        %p316 = pneg %p120
      $region22: #{double_conv_ds_forward.1} parent=11 // pred_check_branch
        %318 = sbr.rel (%p316) target = $region24
      $region23: #{double_conv_ds_forward.1} parent=11 // pred_region
        _
      $region24: #{double_conv_ds_forward.1} parent=11 // pred_fallthru
        _
      // Predicated region
      $region25: #{double_conv_ds_forward.1} parent=11 // pred_check
        %p319 = pneg %p141
      $region26: #{double_conv_ds_forward.1} parent=11 // pred_check_branch
        %321 = sbr.rel (%p319) target = $region28
      $region27: #{double_conv_ds_forward.1} parent=11 // pred_region
        _
      $region28: #{double_conv_ds_forward.1} parent=11 // pred_fallthru
        _
      // Predicated region
      $region29: #{double_conv_ds_forward.1} parent=11 // pred_check
        %p322 = pneg %p162
      $region30: #{double_conv_ds_forward.1} parent=11 // pred_check_branch
        %324 = sbr.rel (%p322) target = $region32
      $region31: #{double_conv_ds_forward.1} parent=11 // pred_region
        _
      $region32: #{double_conv_ds_forward.1} parent=11 // pred_fallthru
        _
      // Predicated region
      $region33: #{double_conv_ds_forward.1} parent=11 // pred_check
        %p325 = pneg %p183
      $region34: #{double_conv_ds_forward.1} parent=11 // pred_check_branch
        %327 = sbr.rel (%p325) target = $region36
      $region35: #{double_conv_ds_forward.1} parent=11 // pred_region
        _
      $region36: #{double_conv_ds_forward.1} parent=11 // pred_fallthru
        _
      // Predicated region
      $region37: #{double_conv_ds_forward.1} parent=11 // pred_check
        %p328 = pneg %p204
      $region38: #{double_conv_ds_forward.1} parent=11 // pred_check_branch
        %330 = sbr.rel (%p328) target = $region40
      $region39: #{double_conv_ds_forward.1} parent=11 // pred_region
        _
      $region40: #{double_conv_ds_forward.1} parent=11 // pred_fallthru
        _
      // Predicated region
      $region41: #{double_conv_ds_forward.1} parent=11 // pred_check
        %p331 = pneg %p225
      $region42: #{double_conv_ds_forward.1} parent=11 // pred_check_branch
        %333 = sbr.rel (%p331) target = $region44
      $region43: #{double_conv_ds_forward.1} parent=11 // pred_region
        _
      $region44: #{double_conv_ds_forward.1} parent=11 // pred_fallthru
        _
      // Predicated region
      $region45: #{double_conv_ds_forward.1} parent=11 // pred_check
        %p334 = pneg %p246
      $region46: #{double_conv_ds_forward.1} parent=11 // pred_check_branch
        %336 = sbr.rel (%p334) target = $region48
      $region47: #{double_conv_ds_forward.1} parent=11 // pred_region
        _
      $region48: #{double_conv_ds_forward.1} parent=11 // pred_fallthru
        _
      // Predicated region
      $region49: #{double_conv_ds_forward.1} parent=11 // pred_check
        %p337 = pneg %p267
      $region50: #{double_conv_ds_forward.1} parent=11 // pred_check_branch
        %339 = sbr.rel (%p337) target = $region52
      $region51: #{double_conv_ds_forward.1} parent=11 // pred_region
        _
      $region52: #{double_conv_ds_forward.1} parent=11 // pred_fallthru
        _
    $region12: #{double_conv_ds_forward.1} parent=5 // pred_fallthru
      _
    %p340 = scmp.lt.s32.totalorder %s17, 2
    // Predicated region
    $region53: #{double_conv_ds_forward.1} parent=5 // pred_check
      %p341 = pneg %p340
    $region54: #{double_conv_ds_forward.1} parent=5 // pred_check_branch
      %343 = sbr.rel (%p341) target = $region56
    $region55: #{double_conv_ds_forward.1} parent=5 // pred_region
      // Predicated region
      $region57: #{double_conv_ds_forward.1} parent=55 // pred_check
        %p344 = pneg %p51
      $region58: #{double_conv_ds_forward.1} parent=55 // pred_check_branch
        %346 = sbr.rel (%p344) target = $region60
      $region59: #{double_conv_ds_forward.1} parent=55 // pred_region
        %p347 = scmp.lt.s32.totalorder %s24, 1
        %s348 = scalar_select %p347, %s24, 1
        %p349 = scmp.lt.s32.totalorder %s25, 0
        %s350 = scalar_select %p349, %s25, 0
        %s351 = smul.addr %s350, 80
        %s352 = smul.addr %s348, 80
        %s353 = sadd.s32 %s351, %s352
        %s354 = smul.addr %s353, 8
        %s355 = scalar_lea.vmem %s0, %s354
      $region60: #{double_conv_ds_forward.1} parent=55 // pred_fallthru
        _
    $region56: #{double_conv_ds_forward.1} parent=5 // pred_fallthru
      _
    %p356 = scmp.le.s32.totalorder 1, %s17
    %p357 = scmp.lt.s32.totalorder %s17, 3
    %p358 = pnand %p356, %p357
    %p359 = pneg %p358
    // Predicated region
    $region61: #{double_conv_ds_forward.1} parent=5 // pred_check
      _
    $region62: #{double_conv_ds_forward.1} parent=5 // pred_check_branch
      %361 = sbr.rel (%p358) target = $region64
    $region63: #{double_conv_ds_forward.1} parent=5 // pred_region
      %s362 = ssub.s32 %s17, 1
      %p363 = scmp.lt.s32.totalorder %s26, 1
      %s364 = scalar_select %p363, %s26, 1
      %p365 = scmp.lt.s32.totalorder %s27, 0
      %s366 = scalar_select %p365, %s27, 0
      %s367 = smul.addr %s366, 80
      %s368 = smul.addr %s364, 80
      %s369 = sadd.s32 %s367, %s368
      %s370 = smul.addr %s369, 8
      %s371 = scalar_lea.vmem %s0, %s370
      %p372 = pneg %p57
      %p373 = pneg %p54
      %p374 = pneg %p78
      %p375 = pneg %p75
      %p376 = pneg %p99
      %p377 = pneg %p96
      %p378 = pneg %p120
      %p379 = pneg %p117
      %p380 = pneg %p141
      %p381 = pneg %p138
      %p382 = pneg %p162
      %p383 = pneg %p159
      %p384 = pneg %p183
      %p385 = pneg %p180
      %p386 = pneg %p204
      %p387 = pneg %p201
      %p388 = pneg %p225
      %p389 = pneg %p222
      %p390 = pneg %p246
      %p391 = pneg %p243
      %p392 = pneg %p267
      %p393 = pneg %p264
      %p394 = pneg %p295
      %p395 = pneg %p292
      %s396 = smul.u32 16, %s27
      %p397 = scmp.lt.s32.totalorder %s26, 1
      %s398 = scalar_select %p397, %s26, 1
      %p399 = scmp.lt.s32.totalorder %s396, 15
      %s400 = scalar_select %p399, %s396, 15
      %s401 = smul.addr %s400, 2
      %s402 = smul.addr %s398, 32
      %s403 = sadd.s32 %s401, %s402
      %s404 = smul.addr %s403, 8
      %s405 = scalar_lea.vmem %s11, %s404
      %p406 = scmp.lt.s32.totalorder %s26, 1
      %s407 = scalar_select %p406, %s26, 1
      %p408 = scmp.lt.s32.totalorder %s27, 0
      %s409 = scalar_select %p408, %s27, 0
      %s410 = smul.addr %s409, 80
      %s411 = smul.addr %s407, 80
      %s412 = sadd.s32 %s410, %s411
      %s413 = smul.addr %s412, 8
      %s414 = scalar_lea.vmem %s0, %s413
      %s415 = smul.u32 16, %s27
      %p416 = scmp.lt.s32.totalorder %s26, 1
      %s417 = scalar_select %p416, %s26, 1
      %p418 = scmp.lt.s32.totalorder %s415, 15
      %s419 = scalar_select %p418, %s415, 15
      %s420 = smul.addr %s419, 2
      %s421 = smul.addr %s417, 32
      %s422 = sadd.s32 %s420, %s421
      %s423 = smul.addr %s422, 8
      %s424 = scalar_lea.vmem %s11, %s423
      %s425 = smul.u32 16, %s27
      %v426 = vld [vmem:[%s414] sm:$0xff]
      %v427 = vld [vmem:[%s414 + $0x8] sm:$0xff]
      %v428 = vld [vmem:[%s414 + $0x10] sm:$0xff]
      %v429 = vld [vmem:[%s414 + $0x18] sm:$0x3]
      %v430 = vld [vmem:[%s414 + $0x20] sm:$0xff]
      %v431 = vld [vmem:[%s414 + $0x28] sm:$0xff]
      %v432 = vld [vmem:[%s414 + $0x30] sm:$0xff]
      %v433 = vld [vmem:[%s414 + $0x38] sm:$0x3]
      %v434 = vld [vmem:[%s414 + $0x40] sm:$0xff]
      %v435 = vld [vmem:[%s414 + $0x48] sm:$0xff]
      %v436 = vld [vmem:[%s414 + $0x50] sm:$0xff]
      %v437 = vld [vmem:[%s414 + $0x58] sm:$0x3]
      %v438 = vld [vmem:[%s414 + $0x60] sm:$0xff]
      %v439 = vld [vmem:[%s414 + $0x68] sm:$0xff]
      %v440 = vld [vmem:[%s414 + $0x70] sm:$0xff]
      %v441 = vld [vmem:[%s414 + $0x78] sm:$0x3]
      %v442 = vld [vmem:[%s414 + $0x80] sm:$0xff]
      %v443 = vld [vmem:[%s414 + $0x88] sm:$0xff]
      %v444 = vld [vmem:[%s414 + $0x90] sm:$0xff]
      %v445 = vld [vmem:[%s414 + $0x98] sm:$0x3]
      %v446 = vld [vmem:[%s414 + $0xa0] sm:$0xff]
      %v447 = vld [vmem:[%s414 + $0xa8] sm:$0xff]
      %v448 = vld [vmem:[%s414 + $0xb0] sm:$0xff]
      %v449 = vld [vmem:[%s414 + $0xb8] sm:$0x3]
      %v450 = vld [vmem:[%s414 + $0xc0] sm:$0xff]
      %v451 = vld [vmem:[%s414 + $0xc8] sm:$0xff]
      %v452 = vld [vmem:[%s414 + $0xd0] sm:$0xff]
      %v453 = vld [vmem:[%s414 + $0xd8] sm:$0x3]
      %v454 = vld [vmem:[%s414 + $0xe0] sm:$0xff]
      %v455 = vld [vmem:[%s414 + $0xe8] sm:$0xff]
      %v456 = vld [vmem:[%s414 + $0xf0] sm:$0xff]
      %v457 = vld [vmem:[%s414 + $0xf8] sm:$0x3]
      %v458 = vld [vmem:[%s414 + $0x100] sm:$0xff]
      %v459 = vld [vmem:[%s414 + $0x108] sm:$0xff]
      %v460 = vld [vmem:[%s414 + $0x110] sm:$0xff]
      %v461 = vld [vmem:[%s414 + $0x118] sm:$0x3]
      %v462 = vld [vmem:[%s414 + $0x120] sm:$0xff]
      %v463 = vld [vmem:[%s414 + $0x128] sm:$0xff]
      %v464 = vld [vmem:[%s414 + $0x130] sm:$0xff]
      %v465 = vld [vmem:[%s414 + $0x138] sm:$0x3]
      %v466 = vld [vmem:[%s414 + $0x140] sm:$0xff]
      %v467 = vld [vmem:[%s414 + $0x148] sm:$0xff]
      %v468 = vld [vmem:[%s414 + $0x150] sm:$0xff]
      %v469 = vld [vmem:[%s414 + $0x158] sm:$0x3]
      %v470 = vld [vmem:[%s414 + $0x160] sm:$0xff]
      %v471 = vld [vmem:[%s414 + $0x168] sm:$0xff]
      %v472 = vld [vmem:[%s414 + $0x170] sm:$0xff]
      %v473 = vld [vmem:[%s414 + $0x178] sm:$0x3]
      %v474 = vld [vmem:[%s414 + $0x180] sm:$0xff]
      %v475 = vld [vmem:[%s414 + $0x188] sm:$0xff]
      %v476 = vld [vmem:[%s414 + $0x190] sm:$0xff]
      %v477 = vld [vmem:[%s414 + $0x198] sm:$0x3]
      %v478 = vld [vmem:[%s414 + $0x1a0] sm:$0xff]
      %v479 = vld [vmem:[%s414 + $0x1a8] sm:$0xff]
      %v480 = vld [vmem:[%s414 + $0x1b0] sm:$0xff]
      %v481 = vld [vmem:[%s414 + $0x1b8] sm:$0x3]
      %v482 = vld [vmem:[%s414 + $0x1c0] sm:$0xff]
      %v483 = vld [vmem:[%s414 + $0x1c8] sm:$0xff]
      %v484 = vld [vmem:[%s414 + $0x1d0] sm:$0xff]
      %v485 = vld [vmem:[%s414 + $0x1d8] sm:$0x3]
      %v486 = vld [vmem:[%s414 + $0x1e0] sm:$0xff]
      %v487 = vld [vmem:[%s414 + $0x1e8] sm:$0xff]
      %v488 = vld [vmem:[%s414 + $0x1f0] sm:$0xff]
      %v489 = vld [vmem:[%s414 + $0x1f8] sm:$0x3]
      %v490 = vld [vmem:[%s414 + $0x200] sm:$0xff]
      %v491 = vld [vmem:[%s414 + $0x208] sm:$0xff]
      %v492 = vld [vmem:[%s414 + $0x210] sm:$0xff]
      %v493 = vld [vmem:[%s414 + $0x218] sm:$0x3]
      %v494 = vld [vmem:[%s414 + $0x220] sm:$0xff]
      %v495 = vld [vmem:[%s414 + $0x228] sm:$0xff]
      %v496 = vld [vmem:[%s414 + $0x230] sm:$0xff]
      %v497 = vld [vmem:[%s414 + $0x238] sm:$0x3]
      %v498 = vld [vmem:[%s414 + $0x240] sm:$0xff]
      %v499 = vld [vmem:[%s414 + $0x248] sm:$0xff]
      %v500 = vld [vmem:[%s414 + $0x250] sm:$0xff]
      %v501 = vld [vmem:[%s414 + $0x258] sm:$0x3]
      %v502 = vld [vmem:[%s414 + $0x260] sm:$0xff]
      %v503 = vld [vmem:[%s414 + $0x268] sm:$0xff]
      %v504 = vld [vmem:[%s414 + $0x270] sm:$0xff]
      %v505 = vld [vmem:[%s414 + $0x278] sm:$0x3]
      %v506 = vld [vmem:[%s1] sm:$0xff]
      %v507 = vld [vmem:[%s1 + $0x8] sm:$0xff]
      %v508 = vld [vmem:[%s1 + $0x10] sm:$0x3]
      %v509 = vld [vmem:[%s2] sm:$0x3]
      %v510 = vperm.slane %v506, 0
      %v511 = vmul.f32 %v426, %v510
      %v512 = vmul.f32 %v427, %v510
      %v513 = vmul.f32 %v428, %v510
      %v514 = vmul.f32 %v430, %v510
      %v515 = vmul.f32 %v431, %v510
      %v516 = vmul.f32 %v432, %v510
      %v517 = vmul.f32 %v434, %v510
      %v518 = vmul.f32 %v435, %v510
      %v519 = vmul.f32 %v436, %v510
      %v520 = vmul.f32 %v438, %v510
      %v521 = vmul.f32 %v439, %v510
      %v522 = vmul.f32 %v440, %v510
      %v523 = vmul.f32 %v442, %v510
      %v524 = vmul.f32 %v443, %v510
      %v525 = vmul.f32 %v444, %v510
      %v526 = vmul.f32 %v446, %v510
      %v527 = vmul.f32 %v447, %v510
      %v528 = vmul.f32 %v448, %v510
      %v529 = vmul.f32 %v450, %v510
      %v530 = vmul.f32 %v451, %v510
      %v531 = vmul.f32 %v452, %v510
      %v532 = vmul.f32 %v454, %v510
      %v533 = vmul.f32 %v455, %v510
      %v534 = vmul.f32 %v456, %v510
      %v535 = vmul.f32 %v458, %v510
      %v536 = vmul.f32 %v459, %v510
      %v537 = vmul.f32 %v460, %v510
      %v538 = vmul.f32 %v462, %v510
      %v539 = vmul.f32 %v463, %v510
      %v540 = vmul.f32 %v464, %v510
      %v541 = vmul.f32 %v466, %v510
      %v542 = vmul.f32 %v467, %v510
      %v543 = vmul.f32 %v468, %v510
      %v544 = vmul.f32 %v470, %v510
      %v545 = vmul.f32 %v471, %v510
      %v546 = vmul.f32 %v472, %v510
      %v547 = vmul.f32 %v474, %v510
      %v548 = vmul.f32 %v475, %v510
      %v549 = vmul.f32 %v476, %v510
      %v550 = vmul.f32 %v478, %v510
      %v551 = vmul.f32 %v479, %v510
      %v552 = vmul.f32 %v480, %v510
      %v553 = vmul.f32 %v482, %v510
      %v554 = vmul.f32 %v483, %v510
      %v555 = vmul.f32 %v484, %v510
      %v556 = vmul.f32 %v486, %v510
      %v557 = vmul.f32 %v487, %v510
      %v558 = vmul.f32 %v488, %v510
      %v559 = vmul.f32 %v490, %v510
      %v560 = vmul.f32 %v491, %v510
      %v561 = vmul.f32 %v492, %v510
      %v562 = vmul.f32 %v494, %v510
      %v563 = vmul.f32 %v495, %v510
      %v564 = vmul.f32 %v496, %v510
      %v565 = vadd.f32 %v511, 0.0
      %v566 = vadd.f32 %v512, 0.0
      %v567 = vadd.f32 %v513, 0.0
      %v568 = vadd.f32 %v514, 0.0
      %v569 = vadd.f32 %v515, 0.0
      %v570 = vadd.f32 %v516, 0.0
      %v571 = vadd.f32 %v517, 0.0
      %v572 = vadd.f32 %v518, 0.0
      %v573 = vadd.f32 %v519, 0.0
      %v574 = vadd.f32 %v520, 0.0
      %v575 = vadd.f32 %v521, 0.0
      %v576 = vadd.f32 %v522, 0.0
      %v577 = vadd.f32 %v523, 0.0
      %v578 = vadd.f32 %v524, 0.0
      %v579 = vadd.f32 %v525, 0.0
      %v580 = vadd.f32 %v526, 0.0
      %v581 = vadd.f32 %v527, 0.0
      %v582 = vadd.f32 %v528, 0.0
      %v583 = vadd.f32 %v529, 0.0
      %v584 = vadd.f32 %v530, 0.0
      %v585 = vadd.f32 %v531, 0.0
      %v586 = vadd.f32 %v532, 0.0
      %v587 = vadd.f32 %v533, 0.0
      %v588 = vadd.f32 %v534, 0.0
      %v589 = vadd.f32 %v535, 0.0
      %v590 = vadd.f32 %v536, 0.0
      %v591 = vadd.f32 %v537, 0.0
      %v592 = vadd.f32 %v538, 0.0
      %v593 = vadd.f32 %v539, 0.0
      %v594 = vadd.f32 %v540, 0.0
      %v595 = vadd.f32 %v541, 0.0
      %v596 = vadd.f32 %v542, 0.0
      %v597 = vadd.f32 %v543, 0.0
      %v598 = vadd.f32 %v544, 0.0
      %v599 = vadd.f32 %v545, 0.0
      %v600 = vadd.f32 %v546, 0.0
      %v601 = vadd.f32 %v547, 0.0
      %v602 = vadd.f32 %v548, 0.0
      %v603 = vadd.f32 %v549, 0.0
      %v604 = vadd.f32 %v550, 0.0
      %v605 = vadd.f32 %v551, 0.0
      %v606 = vadd.f32 %v552, 0.0
      %v607 = vadd.f32 %v553, 0.0
      %v608 = vadd.f32 %v554, 0.0
      %v609 = vadd.f32 %v555, 0.0
      %v610 = vadd.f32 %v556, 0.0
      %v611 = vadd.f32 %v557, 0.0
      %v612 = vadd.f32 %v558, 0.0
      %v613 = vadd.f32 %v559, 0.0
      %v614 = vadd.f32 %v560, 0.0
      %v615 = vadd.f32 %v561, 0.0
      %v616 = vadd.f32 %v562, 0.0
      %v617 = vadd.f32 %v563, 0.0
      %v618 = vadd.f32 %v564, 0.0
      %v619 = vperm.slane %v506, 2
      %v620 = vmul.f32 %v426, %v619
      %v621 = vmul.f32 %v427, %v619
      %v622 = vmul.f32 %v428, %v619
      %v623 = vmul.f32 %v429, %v619
      %v624 = vmul.f32 %v430, %v619
      %v625 = vmul.f32 %v431, %v619
      %v626 = vmul.f32 %v432, %v619
      %v627 = vmul.f32 %v433, %v619
      %v628 = vmul.f32 %v434, %v619
      %v629 = vmul.f32 %v435, %v619
      %v630 = vmul.f32 %v436, %v619
      %v631 = vmul.f32 %v437, %v619
      %v632 = vmul.f32 %v438, %v619
      %v633 = vmul.f32 %v439, %v619
      %v634 = vmul.f32 %v440, %v619
      %v635 = vmul.f32 %v441, %v619
      %v636 = vmul.f32 %v442, %v619
      %v637 = vmul.f32 %v443, %v619
      %v638 = vmul.f32 %v444, %v619
      %v639 = vmul.f32 %v445, %v619
      %v640 = vmul.f32 %v446, %v619
      %v641 = vmul.f32 %v447, %v619
      %v642 = vmul.f32 %v448, %v619
      %v643 = vmul.f32 %v449, %v619
      %v644 = vmul.f32 %v450, %v619
      %v645 = vmul.f32 %v451, %v619
      %v646 = vmul.f32 %v452, %v619
      %v647 = vmul.f32 %v453, %v619
      %v648 = vmul.f32 %v454, %v619
      %v649 = vmul.f32 %v455, %v619
      %v650 = vmul.f32 %v456, %v619
      %v651 = vmul.f32 %v457, %v619
      %v652 = vmul.f32 %v458, %v619
      %v653 = vmul.f32 %v459, %v619
      %v654 = vmul.f32 %v460, %v619
      %v655 = vmul.f32 %v461, %v619
      %v656 = vmul.f32 %v462, %v619
      %v657 = vmul.f32 %v463, %v619
      %v658 = vmul.f32 %v464, %v619
      %v659 = vmul.f32 %v465, %v619
      %v660 = vmul.f32 %v466, %v619
      %v661 = vmul.f32 %v467, %v619
      %v662 = vmul.f32 %v468, %v619
      %v663 = vmul.f32 %v469, %v619
      %v664 = vmul.f32 %v470, %v619
      %v665 = vmul.f32 %v471, %v619
      %v666 = vmul.f32 %v472, %v619
      %v667 = vmul.f32 %v473, %v619
      %v668 = vmul.f32 %v474, %v619
      %v669 = vmul.f32 %v475, %v619
      %v670 = vmul.f32 %v476, %v619
      %v671 = vmul.f32 %v477, %v619
      %v672 = vmul.f32 %v478, %v619
      %v673 = vmul.f32 %v479, %v619
      %v674 = vmul.f32 %v480, %v619
      %v675 = vmul.f32 %v481, %v619
      %v676 = vmul.f32 %v482, %v619
      %v677 = vmul.f32 %v483, %v619
      %v678 = vmul.f32 %v484, %v619
      %v679 = vmul.f32 %v485, %v619
      %v680 = vmul.f32 %v486, %v619
      %v681 = vmul.f32 %v487, %v619
      %v682 = vmul.f32 %v488, %v619
      %v683 = vmul.f32 %v489, %v619
      %v684 = vmul.f32 %v490, %v619
      %v685 = vmul.f32 %v491, %v619
      %v686 = vmul.f32 %v492, %v619
      %v687 = vmul.f32 %v493, %v619
      %v688 = vmul.f32 %v494, %v619
      %v689 = vmul.f32 %v495, %v619
      %v690 = vmul.f32 %v496, %v619
      %v691 = vmul.f32 %v497, %v619
      %vm764 = vcmask 1046528
      %v765 = vrot.slane %v620, 1
      %v766 = vrot.slane %v621, 1
      %v767 = vsel %vm764, %v765, %v766
      %v768 = vrot.slane %v622, 1
      %v769 = vsel %vm764, %v766, %v768
      %v770 = vrot.slane %v623, 1
      %v771 = vsel %vm764, %v768, %v770
      %v772 = vrot.slane %v624, 1
      %v773 = vrot.slane %v625, 1
      %v774 = vsel %vm764, %v772, %v773
      %v775 = vrot.slane %v626, 1
      %v776 = vsel %vm764, %v773, %v775
      %v777 = vrot.slane %v627, 1
      %v778 = vsel %vm764, %v775, %v777
      %v779 = vrot.slane %v628, 1
      %v780 = vrot.slane %v629, 1
      %v781 = vsel %vm764, %v779, %v780
      %v782 = vrot.slane %v630, 1
      %v783 = vsel %vm764, %v780, %v782
      %v784 = vrot.slane %v631, 1
      %v785 = vsel %vm764, %v782, %v784
      %v786 = vrot.slane %v632, 1
      %v787 = vrot.slane %v633, 1
      %v788 = vsel %vm764, %v786, %v787
      %v789 = vrot.slane %v634, 1
      %v790 = vsel %vm764, %v787, %v789
      %v791 = vrot.slane %v635, 1
      %v792 = vsel %vm764, %v789, %v791
      %v793 = vrot.slane %v636, 1
      %v794 = vrot.slane %v637, 1
      %v795 = vsel %vm764, %v793, %v794
      %v796 = vrot.slane %v638, 1
      %v797 = vsel %vm764, %v794, %v796
      %v798 = vrot.slane %v639, 1
      %v799 = vsel %vm764, %v796, %v798
      %v800 = vrot.slane %v640, 1
      %v801 = vrot.slane %v641, 1
      %v802 = vsel %vm764, %v800, %v801
      %v803 = vrot.slane %v642, 1
      %v804 = vsel %vm764, %v801, %v803
      %v805 = vrot.slane %v643, 1
      %v806 = vsel %vm764, %v803, %v805
      %v807 = vrot.slane %v644, 1
      %v808 = vrot.slane %v645, 1
      %v809 = vsel %vm764, %v807, %v808
      %v810 = vrot.slane %v646, 1
      %v811 = vsel %vm764, %v808, %v810
      %v812 = vrot.slane %v647, 1
      %v813 = vsel %vm764, %v810, %v812
      %v814 = vrot.slane %v648, 1
      %v815 = vrot.slane %v649, 1
      %v816 = vsel %vm764, %v814, %v815
      %v817 = vrot.slane %v650, 1
      %v818 = vsel %vm764, %v815, %v817
      %v819 = vrot.slane %v651, 1
      %v820 = vsel %vm764, %v817, %v819
      %v821 = vrot.slane %v652, 1
      %v822 = vrot.slane %v653, 1
      %v823 = vsel %vm764, %v821, %v822
      %v824 = vrot.slane %v654, 1
      %v825 = vsel %vm764, %v822, %v824
      %v826 = vrot.slane %v655, 1
      %v827 = vsel %vm764, %v824, %v826
      %v828 = vrot.slane %v656, 1
      %v829 = vrot.slane %v657, 1
      %v830 = vsel %vm764, %v828, %v829
      %v831 = vrot.slane %v658, 1
      %v832 = vsel %vm764, %v829, %v831
      %v833 = vrot.slane %v659, 1
      %v834 = vsel %vm764, %v831, %v833
      %v835 = vrot.slane %v660, 1
      %v836 = vrot.slane %v661, 1
      %v837 = vsel %vm764, %v835, %v836
      %v838 = vrot.slane %v662, 1
      %v839 = vsel %vm764, %v836, %v838
      %v840 = vrot.slane %v663, 1
      %v841 = vsel %vm764, %v838, %v840
      %v842 = vrot.slane %v664, 1
      %v843 = vrot.slane %v665, 1
      %v844 = vsel %vm764, %v842, %v843
      %v845 = vrot.slane %v666, 1
      %v846 = vsel %vm764, %v843, %v845
      %v847 = vrot.slane %v667, 1
      %v848 = vsel %vm764, %v845, %v847
      %v849 = vrot.slane %v668, 1
      %v850 = vrot.slane %v669, 1
      %v851 = vsel %vm764, %v849, %v850
      %v852 = vrot.slane %v670, 1
      %v853 = vsel %vm764, %v850, %v852
      %v854 = vrot.slane %v671, 1
      %v855 = vsel %vm764, %v852, %v854
      %v856 = vrot.slane %v672, 1
      %v857 = vrot.slane %v673, 1
      %v858 = vsel %vm764, %v856, %v857
      %v859 = vrot.slane %v674, 1
      %v860 = vsel %vm764, %v857, %v859
      %v861 = vrot.slane %v675, 1
      %v862 = vsel %vm764, %v859, %v861
      %v863 = vrot.slane %v676, 1
      %v864 = vrot.slane %v677, 1
      %v865 = vsel %vm764, %v863, %v864
      %v866 = vrot.slane %v678, 1
      %v867 = vsel %vm764, %v864, %v866
      %v868 = vrot.slane %v679, 1
      %v869 = vsel %vm764, %v866, %v868
      %v870 = vrot.slane %v680, 1
      %v871 = vrot.slane %v681, 1
      %v872 = vsel %vm764, %v870, %v871
      %v873 = vrot.slane %v682, 1
      %v874 = vsel %vm764, %v871, %v873
      %v875 = vrot.slane %v683, 1
      %v876 = vsel %vm764, %v873, %v875
      %v877 = vrot.slane %v684, 1
      %v878 = vrot.slane %v685, 1
      %v879 = vsel %vm764, %v877, %v878
      %v880 = vrot.slane %v686, 1
      %v881 = vsel %vm764, %v878, %v880
      %v882 = vrot.slane %v687, 1
      %v883 = vsel %vm764, %v880, %v882
      %v884 = vrot.slane %v688, 1
      %v885 = vrot.slane %v689, 1
      %v886 = vsel %vm764, %v884, %v885
      %v887 = vrot.slane %v690, 1
      %v888 = vsel %vm764, %v885, %v887
      %v889 = vrot.slane %v691, 1
      %v890 = vsel %vm764, %v887, %v889
      %v945 = vadd.f32 %v565, %v767
      %v946 = vadd.f32 %v566, %v769
      %v947 = vadd.f32 %v567, %v771
      %v948 = vadd.f32 %v568, %v774
      %v949 = vadd.f32 %v569, %v776
      %v950 = vadd.f32 %v570, %v778
      %v951 = vadd.f32 %v571, %v781
      %v952 = vadd.f32 %v572, %v783
      %v953 = vadd.f32 %v573, %v785
      %v954 = vadd.f32 %v574, %v788
      %v955 = vadd.f32 %v575, %v790
      %v956 = vadd.f32 %v576, %v792
      %v957 = vadd.f32 %v577, %v795
      %v958 = vadd.f32 %v578, %v797
      %v959 = vadd.f32 %v579, %v799
      %v960 = vadd.f32 %v580, %v802
      %v961 = vadd.f32 %v581, %v804
      %v962 = vadd.f32 %v582, %v806
      %v963 = vadd.f32 %v583, %v809
      %v964 = vadd.f32 %v584, %v811
      %v965 = vadd.f32 %v585, %v813
      %v966 = vadd.f32 %v586, %v816
      %v967 = vadd.f32 %v587, %v818
      %v968 = vadd.f32 %v588, %v820
      %v969 = vadd.f32 %v589, %v823
      %v970 = vadd.f32 %v590, %v825
      %v971 = vadd.f32 %v591, %v827
      %v972 = vadd.f32 %v592, %v830
      %v973 = vadd.f32 %v593, %v832
      %v974 = vadd.f32 %v594, %v834
      %v975 = vadd.f32 %v595, %v837
      %v976 = vadd.f32 %v596, %v839
      %v977 = vadd.f32 %v597, %v841
      %v978 = vadd.f32 %v598, %v844
      %v979 = vadd.f32 %v599, %v846
      %v980 = vadd.f32 %v600, %v848
      %v981 = vadd.f32 %v601, %v851
      %v982 = vadd.f32 %v602, %v853
      %v983 = vadd.f32 %v603, %v855
      %v984 = vadd.f32 %v604, %v858
      %v985 = vadd.f32 %v605, %v860
      %v986 = vadd.f32 %v606, %v862
      %v987 = vadd.f32 %v607, %v865
      %v988 = vadd.f32 %v608, %v867
      %v989 = vadd.f32 %v609, %v869
      %v990 = vadd.f32 %v610, %v872
      %v991 = vadd.f32 %v611, %v874
      %v992 = vadd.f32 %v612, %v876
      %v993 = vadd.f32 %v613, %v879
      %v994 = vadd.f32 %v614, %v881
      %v995 = vadd.f32 %v615, %v883
      %v996 = vadd.f32 %v616, %v886
      %v997 = vadd.f32 %v617, %v888
      %v998 = vadd.f32 %v618, %v890
      %v999 = vperm.slane %v506, 4
      %v1000 = vmul.f32 %v426, %v999
      %v1001 = vmul.f32 %v427, %v999
      %v1002 = vmul.f32 %v428, %v999
      %v1003 = vmul.f32 %v429, %v999
      %v1004 = vmul.f32 %v430, %v999
      %v1005 = vmul.f32 %v431, %v999
      %v1006 = vmul.f32 %v432, %v999
      %v1007 = vmul.f32 %v433, %v999
      %v1008 = vmul.f32 %v434, %v999
      %v1009 = vmul.f32 %v435, %v999
      %v1010 = vmul.f32 %v436, %v999
      %v1011 = vmul.f32 %v437, %v999
      %v1012 = vmul.f32 %v438, %v999
      %v1013 = vmul.f32 %v439, %v999
      %v1014 = vmul.f32 %v440, %v999
      %v1015 = vmul.f32 %v441, %v999
      %v1016 = vmul.f32 %v442, %v999
      %v1017 = vmul.f32 %v443, %v999
      %v1018 = vmul.f32 %v444, %v999
      %v1019 = vmul.f32 %v445, %v999
      %v1020 = vmul.f32 %v446, %v999
      %v1021 = vmul.f32 %v447, %v999
      %v1022 = vmul.f32 %v448, %v999
      %v1023 = vmul.f32 %v449, %v999
      %v1024 = vmul.f32 %v450, %v999
      %v1025 = vmul.f32 %v451, %v999
      %v1026 = vmul.f32 %v452, %v999
      %v1027 = vmul.f32 %v453, %v999
      %v1028 = vmul.f32 %v454, %v999
      %v1029 = vmul.f32 %v455, %v999
      %v1030 = vmul.f32 %v456, %v999
      %v1031 = vmul.f32 %v457, %v999
      %v1032 = vmul.f32 %v458, %v999
      %v1033 = vmul.f32 %v459, %v999
      %v1034 = vmul.f32 %v460, %v999
      %v1035 = vmul.f32 %v461, %v999
      %v1036 = vmul.f32 %v462, %v999
      %v1037 = vmul.f32 %v463, %v999
      %v1038 = vmul.f32 %v464, %v999
      %v1039 = vmul.f32 %v465, %v999
      %v1040 = vmul.f32 %v466, %v999
      %v1041 = vmul.f32 %v467, %v999
      %v1042 = vmul.f32 %v468, %v999
      %v1043 = vmul.f32 %v469, %v999
      %v1044 = vmul.f32 %v470, %v999
      %v1045 = vmul.f32 %v471, %v999
      %v1046 = vmul.f32 %v472, %v999
      %v1047 = vmul.f32 %v473, %v999
      %v1048 = vmul.f32 %v474, %v999
      %v1049 = vmul.f32 %v475, %v999
      %v1050 = vmul.f32 %v476, %v999
      %v1051 = vmul.f32 %v477, %v999
      %v1052 = vmul.f32 %v478, %v999
      %v1053 = vmul.f32 %v479, %v999
      %v1054 = vmul.f32 %v480, %v999
      %v1055 = vmul.f32 %v481, %v999
      %v1056 = vmul.f32 %v482, %v999
      %v1057 = vmul.f32 %v483, %v999
      %v1058 = vmul.f32 %v484, %v999
      %v1059 = vmul.f32 %v485, %v999
      %v1060 = vmul.f32 %v486, %v999
      %v1061 = vmul.f32 %v487, %v999
      %v1062 = vmul.f32 %v488, %v999
      %v1063 = vmul.f32 %v489, %v999
      %v1064 = vmul.f32 %v490, %v999
      %v1065 = vmul.f32 %v491, %v999
      %v1066 = vmul.f32 %v492, %v999
      %v1067 = vmul.f32 %v493, %v999
      %v1068 = vmul.f32 %v494, %v999
      %v1069 = vmul.f32 %v495, %v999
      %v1070 = vmul.f32 %v496, %v999
      %v1071 = vmul.f32 %v497, %v999
      %vm1144 = vcmask 1045504
      %v1145 = vrot.slane %v1000, 2
      %v1146 = vrot.slane %v1001, 2
      %v1147 = vsel %vm1144, %v1145, %v1146
      %v1148 = vrot.slane %v1002, 2
      %v1149 = vsel %vm1144, %v1146, %v1148
      %v1150 = vrot.slane %v1003, 2
      %v1151 = vsel %vm1144, %v1148, %v1150
      %v1152 = vrot.slane %v1004, 2
      %v1153 = vrot.slane %v1005, 2
      %v1154 = vsel %vm1144, %v1152, %v1153
      %v1155 = vrot.slane %v1006, 2
      %v1156 = vsel %vm1144, %v1153, %v1155
      %v1157 = vrot.slane %v1007, 2
      %v1158 = vsel %vm1144, %v1155, %v1157
      %v1159 = vrot.slane %v1008, 2
      %v1160 = vrot.slane %v1009, 2
      %v1161 = vsel %vm1144, %v1159, %v1160
      %v1162 = vrot.slane %v1010, 2
      %v1163 = vsel %vm1144, %v1160, %v1162
      %v1164 = vrot.slane %v1011, 2
      %v1165 = vsel %vm1144, %v1162, %v1164
      %v1166 = vrot.slane %v1012, 2
      %v1167 = vrot.slane %v1013, 2
      %v1168 = vsel %vm1144, %v1166, %v1167
      %v1169 = vrot.slane %v1014, 2
      %v1170 = vsel %vm1144, %v1167, %v1169
      %v1171 = vrot.slane %v1015, 2
      %v1172 = vsel %vm1144, %v1169, %v1171
      %v1173 = vrot.slane %v1016, 2
      %v1174 = vrot.slane %v1017, 2
      %v1175 = vsel %vm1144, %v1173, %v1174
      %v1176 = vrot.slane %v1018, 2
      %v1177 = vsel %vm1144, %v1174, %v1176
      %v1178 = vrot.slane %v1019, 2
      %v1179 = vsel %vm1144, %v1176, %v1178
      %v1180 = vrot.slane %v1020, 2
      %v1181 = vrot.slane %v1021, 2
      %v1182 = vsel %vm1144, %v1180, %v1181
      %v1183 = vrot.slane %v1022, 2
      %v1184 = vsel %vm1144, %v1181, %v1183
      %v1185 = vrot.slane %v1023, 2
      %v1186 = vsel %vm1144, %v1183, %v1185
      %v1187 = vrot.slane %v1024, 2
      %v1188 = vrot.slane %v1025, 2
      %v1189 = vsel %vm1144, %v1187, %v1188
      %v1190 = vrot.slane %v1026, 2
      %v1191 = vsel %vm1144, %v1188, %v1190
      %v1192 = vrot.slane %v1027, 2
      %v1193 = vsel %vm1144, %v1190, %v1192
      %v1194 = vrot.slane %v1028, 2
      %v1195 = vrot.slane %v1029, 2
      %v1196 = vsel %vm1144, %v1194, %v1195
      %v1197 = vrot.slane %v1030, 2
      %v1198 = vsel %vm1144, %v1195, %v1197
      %v1199 = vrot.slane %v1031, 2
      %v1200 = vsel %vm1144, %v1197, %v1199
      %v1201 = vrot.slane %v1032, 2
      %v1202 = vrot.slane %v1033, 2
      %v1203 = vsel %vm1144, %v1201, %v1202
      %v1204 = vrot.slane %v1034, 2
      %v1205 = vsel %vm1144, %v1202, %v1204
      %v1206 = vrot.slane %v1035, 2
      %v1207 = vsel %vm1144, %v1204, %v1206
      %v1208 = vrot.slane %v1036, 2
      %v1209 = vrot.slane %v1037, 2
      %v1210 = vsel %vm1144, %v1208, %v1209
      %v1211 = vrot.slane %v1038, 2
      %v1212 = vsel %vm1144, %v1209, %v1211
      %v1213 = vrot.slane %v1039, 2
      %v1214 = vsel %vm1144, %v1211, %v1213
      %v1215 = vrot.slane %v1040, 2
      %v1216 = vrot.slane %v1041, 2
      %v1217 = vsel %vm1144, %v1215, %v1216
      %v1218 = vrot.slane %v1042, 2
      %v1219 = vsel %vm1144, %v1216, %v1218
      %v1220 = vrot.slane %v1043, 2
      %v1221 = vsel %vm1144, %v1218, %v1220
      %v1222 = vrot.slane %v1044, 2
      %v1223 = vrot.slane %v1045, 2
      %v1224 = vsel %vm1144, %v1222, %v1223
      %v1225 = vrot.slane %v1046, 2
      %v1226 = vsel %vm1144, %v1223, %v1225
      %v1227 = vrot.slane %v1047, 2
      %v1228 = vsel %vm1144, %v1225, %v1227
      %v1229 = vrot.slane %v1048, 2
      %v1230 = vrot.slane %v1049, 2
      %v1231 = vsel %vm1144, %v1229, %v1230
      %v1232 = vrot.slane %v1050, 2
      %v1233 = vsel %vm1144, %v1230, %v1232
      %v1234 = vrot.slane %v1051, 2
      %v1235 = vsel %vm1144, %v1232, %v1234
      %v1236 = vrot.slane %v1052, 2
      %v1237 = vrot.slane %v1053, 2
      %v1238 = vsel %vm1144, %v1236, %v1237
      %v1239 = vrot.slane %v1054, 2
      %v1240 = vsel %vm1144, %v1237, %v1239
      %v1241 = vrot.slane %v1055, 2
      %v1242 = vsel %vm1144, %v1239, %v1241
      %v1243 = vrot.slane %v1056, 2
      %v1244 = vrot.slane %v1057, 2
      %v1245 = vsel %vm1144, %v1243, %v1244
      %v1246 = vrot.slane %v1058, 2
      %v1247 = vsel %vm1144, %v1244, %v1246
      %v1248 = vrot.slane %v1059, 2
      %v1249 = vsel %vm1144, %v1246, %v1248
      %v1250 = vrot.slane %v1060, 2
      %v1251 = vrot.slane %v1061, 2
      %v1252 = vsel %vm1144, %v1250, %v1251
      %v1253 = vrot.slane %v1062, 2
      %v1254 = vsel %vm1144, %v1251, %v1253
      %v1255 = vrot.slane %v1063, 2
      %v1256 = vsel %vm1144, %v1253, %v1255
      %v1257 = vrot.slane %v1064, 2
      %v1258 = vrot.slane %v1065, 2
      %v1259 = vsel %vm1144, %v1257, %v1258
      %v1260 = vrot.slane %v1066, 2
      %v1261 = vsel %vm1144, %v1258, %v1260
      %v1262 = vrot.slane %v1067, 2
      %v1263 = vsel %vm1144, %v1260, %v1262
      %v1264 = vrot.slane %v1068, 2
      %v1265 = vrot.slane %v1069, 2
      %v1266 = vsel %vm1144, %v1264, %v1265
      %v1267 = vrot.slane %v1070, 2
      %v1268 = vsel %vm1144, %v1265, %v1267
      %v1269 = vrot.slane %v1071, 2
      %v1270 = vsel %vm1144, %v1267, %v1269
      %v1325 = vadd.f32 %v945, %v1147
      %v1326 = vadd.f32 %v946, %v1149
      %v1327 = vadd.f32 %v947, %v1151
      %v1328 = vadd.f32 %v948, %v1154
      %v1329 = vadd.f32 %v949, %v1156
      %v1330 = vadd.f32 %v950, %v1158
      %v1331 = vadd.f32 %v951, %v1161
      %v1332 = vadd.f32 %v952, %v1163
      %v1333 = vadd.f32 %v953, %v1165
      %v1334 = vadd.f32 %v954, %v1168
      %v1335 = vadd.f32 %v955, %v1170
      %v1336 = vadd.f32 %v956, %v1172
      %v1337 = vadd.f32 %v957, %v1175
      %v1338 = vadd.f32 %v958, %v1177
      %v1339 = vadd.f32 %v959, %v1179
      %v1340 = vadd.f32 %v960, %v1182
      %v1341 = vadd.f32 %v961, %v1184
      %v1342 = vadd.f32 %v962, %v1186
      %v1343 = vadd.f32 %v963, %v1189
      %v1344 = vadd.f32 %v964, %v1191
      %v1345 = vadd.f32 %v965, %v1193
      %v1346 = vadd.f32 %v966, %v1196
      %v1347 = vadd.f32 %v967, %v1198
      %v1348 = vadd.f32 %v968, %v1200
      %v1349 = vadd.f32 %v969, %v1203
      %v1350 = vadd.f32 %v970, %v1205
      %v1351 = vadd.f32 %v971, %v1207
      %v1352 = vadd.f32 %v972, %v1210
      %v1353 = vadd.f32 %v973, %v1212
      %v1354 = vadd.f32 %v974, %v1214
      %v1355 = vadd.f32 %v975, %v1217
      %v1356 = vadd.f32 %v976, %v1219
      %v1357 = vadd.f32 %v977, %v1221
      %v1358 = vadd.f32 %v978, %v1224
      %v1359 = vadd.f32 %v979, %v1226
      %v1360 = vadd.f32 %v980, %v1228
      %v1361 = vadd.f32 %v981, %v1231
      %v1362 = vadd.f32 %v982, %v1233
      %v1363 = vadd.f32 %v983, %v1235
      %v1364 = vadd.f32 %v984, %v1238
      %v1365 = vadd.f32 %v985, %v1240
      %v1366 = vadd.f32 %v986, %v1242
      %v1367 = vadd.f32 %v987, %v1245
      %v1368 = vadd.f32 %v988, %v1247
      %v1369 = vadd.f32 %v989, %v1249
      %v1370 = vadd.f32 %v990, %v1252
      %v1371 = vadd.f32 %v991, %v1254
      %v1372 = vadd.f32 %v992, %v1256
      %v1373 = vadd.f32 %v993, %v1259
      %v1374 = vadd.f32 %v994, %v1261
      %v1375 = vadd.f32 %v995, %v1263
      %v1376 = vadd.f32 %v996, %v1266
      %v1377 = vadd.f32 %v997, %v1268
      %v1378 = vadd.f32 %v998, %v1270
      %v1379 = vperm.slane %v506, 6
      %v1380 = vmul.f32 %v430, %v1379
      %v1381 = vmul.f32 %v431, %v1379
      %v1382 = vmul.f32 %v432, %v1379
      %v1383 = vmul.f32 %v434, %v1379
      %v1384 = vmul.f32 %v435, %v1379
      %v1385 = vmul.f32 %v436, %v1379
      %v1386 = vmul.f32 %v438, %v1379
      %v1387 = vmul.f32 %v439, %v1379
      %v1388 = vmul.f32 %v440, %v1379
      %v1389 = vmul.f32 %v442, %v1379
      %v1390 = vmul.f32 %v443, %v1379
      %v1391 = vmul.f32 %v444, %v1379
      %v1392 = vmul.f32 %v446, %v1379
      %v1393 = vmul.f32 %v447, %v1379
      %v1394 = vmul.f32 %v448, %v1379
      %v1395 = vmul.f32 %v450, %v1379
      %v1396 = vmul.f32 %v451, %v1379
      %v1397 = vmul.f32 %v452, %v1379
      %v1398 = vmul.f32 %v454, %v1379
      %v1399 = vmul.f32 %v455, %v1379
      %v1400 = vmul.f32 %v456, %v1379
      %v1401 = vmul.f32 %v458, %v1379
      %v1402 = vmul.f32 %v459, %v1379
      %v1403 = vmul.f32 %v460, %v1379
      %v1404 = vmul.f32 %v462, %v1379
      %v1405 = vmul.f32 %v463, %v1379
      %v1406 = vmul.f32 %v464, %v1379
      %v1407 = vmul.f32 %v466, %v1379
      %v1408 = vmul.f32 %v467, %v1379
      %v1409 = vmul.f32 %v468, %v1379
      %v1410 = vmul.f32 %v470, %v1379
      %v1411 = vmul.f32 %v471, %v1379
      %v1412 = vmul.f32 %v472, %v1379
      %v1413 = vmul.f32 %v474, %v1379
      %v1414 = vmul.f32 %v475, %v1379
      %v1415 = vmul.f32 %v476, %v1379
      %v1416 = vmul.f32 %v478, %v1379
      %v1417 = vmul.f32 %v479, %v1379
      %v1418 = vmul.f32 %v480, %v1379
      %v1419 = vmul.f32 %v482, %v1379
      %v1420 = vmul.f32 %v483, %v1379
      %v1421 = vmul.f32 %v484, %v1379
      %v1422 = vmul.f32 %v486, %v1379
      %v1423 = vmul.f32 %v487, %v1379
      %v1424 = vmul.f32 %v488, %v1379
      %v1425 = vmul.f32 %v490, %v1379
      %v1426 = vmul.f32 %v491, %v1379
      %v1427 = vmul.f32 %v492, %v1379
      %v1428 = vmul.f32 %v494, %v1379
      %v1429 = vmul.f32 %v495, %v1379
      %v1430 = vmul.f32 %v496, %v1379
      %v1431 = vmul.f32 %v498, %v1379
      %v1432 = vmul.f32 %v499, %v1379
      %v1433 = vmul.f32 %v500, %v1379
      %v1434 = vadd.f32 %v1325, %v1380
      %v1435 = vadd.f32 %v1326, %v1381
      %v1436 = vadd.f32 %v1327, %v1382
      %v1437 = vadd.f32 %v1328, %v1383
      %v1438 = vadd.f32 %v1329, %v1384
      %v1439 = vadd.f32 %v1330, %v1385
      %v1440 = vadd.f32 %v1331, %v1386
      %v1441 = vadd.f32 %v1332, %v1387
      %v1442 = vadd.f32 %v1333, %v1388
      %v1443 = vadd.f32 %v1334, %v1389
      %v1444 = vadd.f32 %v1335, %v1390
      %v1445 = vadd.f32 %v1336, %v1391
      %v1446 = vadd.f32 %v1337, %v1392
      %v1447 = vadd.f32 %v1338, %v1393
      %v1448 = vadd.f32 %v1339, %v1394
      %v1449 = vadd.f32 %v1340, %v1395
      %v1450 = vadd.f32 %v1341, %v1396
      %v1451 = vadd.f32 %v1342, %v1397
      %v1452 = vadd.f32 %v1343, %v1398
      %v1453 = vadd.f32 %v1344, %v1399
      %v1454 = vadd.f32 %v1345, %v1400
      %v1455 = vadd.f32 %v1346, %v1401
      %v1456 = vadd.f32 %v1347, %v1402
      %v1457 = vadd.f32 %v1348, %v1403
      %v1458 = vadd.f32 %v1349, %v1404
      %v1459 = vadd.f32 %v1350, %v1405
      %v1460 = vadd.f32 %v1351, %v1406
      %v1461 = vadd.f32 %v1352, %v1407
      %v1462 = vadd.f32 %v1353, %v1408
      %v1463 = vadd.f32 %v1354, %v1409
      %v1464 = vadd.f32 %v1355, %v1410
      %v1465 = vadd.f32 %v1356, %v1411
      %v1466 = vadd.f32 %v1357, %v1412
      %v1467 = vadd.f32 %v1358, %v1413
      %v1468 = vadd.f32 %v1359, %v1414
      %v1469 = vadd.f32 %v1360, %v1415
      %v1470 = vadd.f32 %v1361, %v1416
      %v1471 = vadd.f32 %v1362, %v1417
      %v1472 = vadd.f32 %v1363, %v1418
      %v1473 = vadd.f32 %v1364, %v1419
      %v1474 = vadd.f32 %v1365, %v1420
      %v1475 = vadd.f32 %v1366, %v1421
      %v1476 = vadd.f32 %v1367, %v1422
      %v1477 = vadd.f32 %v1368, %v1423
      %v1478 = vadd.f32 %v1369, %v1424
      %v1479 = vadd.f32 %v1370, %v1425
      %v1480 = vadd.f32 %v1371, %v1426
      %v1481 = vadd.f32 %v1372, %v1427
      %v1482 = vadd.f32 %v1373, %v1428
      %v1483 = vadd.f32 %v1374, %v1429
      %v1484 = vadd.f32 %v1375, %v1430
      %v1485 = vadd.f32 %v1376, %v1431
      %v1486 = vadd.f32 %v1377, %v1432
      %v1487 = vadd.f32 %v1378, %v1433
      %v1488 = vperm.slane %v507, 0
      %v1489 = vmul.f32 %v430, %v1488
      %v1490 = vmul.f32 %v431, %v1488
      %v1491 = vmul.f32 %v432, %v1488
      %v1492 = vmul.f32 %v433, %v1488
      %v1493 = vmul.f32 %v434, %v1488
      %v1494 = vmul.f32 %v435, %v1488
      %v1495 = vmul.f32 %v436, %v1488
      %v1496 = vmul.f32 %v437, %v1488
      %v1497 = vmul.f32 %v438, %v1488
      %v1498 = vmul.f32 %v439, %v1488
      %v1499 = vmul.f32 %v440, %v1488
      %v1500 = vmul.f32 %v441, %v1488
      %v1501 = vmul.f32 %v442, %v1488
      %v1502 = vmul.f32 %v443, %v1488
      %v1503 = vmul.f32 %v444, %v1488
      %v1504 = vmul.f32 %v445, %v1488
      %v1505 = vmul.f32 %v446, %v1488
      %v1506 = vmul.f32 %v447, %v1488
      %v1507 = vmul.f32 %v448, %v1488
      %v1508 = vmul.f32 %v449, %v1488
      %v1509 = vmul.f32 %v450, %v1488
      %v1510 = vmul.f32 %v451, %v1488
      %v1511 = vmul.f32 %v452, %v1488
      %v1512 = vmul.f32 %v453, %v1488
      %v1513 = vmul.f32 %v454, %v1488
      %v1514 = vmul.f32 %v455, %v1488
      %v1515 = vmul.f32 %v456, %v1488
      %v1516 = vmul.f32 %v457, %v1488
      %v1517 = vmul.f32 %v458, %v1488
      %v1518 = vmul.f32 %v459, %v1488
      %v1519 = vmul.f32 %v460, %v1488
      %v1520 = vmul.f32 %v461, %v1488
      %v1521 = vmul.f32 %v462, %v1488
      %v1522 = vmul.f32 %v463, %v1488
      %v1523 = vmul.f32 %v464, %v1488
      %v1524 = vmul.f32 %v465, %v1488
      %v1525 = vmul.f32 %v466, %v1488
      %v1526 = vmul.f32 %v467, %v1488
      %v1527 = vmul.f32 %v468, %v1488
      %v1528 = vmul.f32 %v469, %v1488
      %v1529 = vmul.f32 %v470, %v1488
      %v1530 = vmul.f32 %v471, %v1488
      %v1531 = vmul.f32 %v472, %v1488
      %v1532 = vmul.f32 %v473, %v1488
      %v1533 = vmul.f32 %v474, %v1488
      %v1534 = vmul.f32 %v475, %v1488
      %v1535 = vmul.f32 %v476, %v1488
      %v1536 = vmul.f32 %v477, %v1488
      %v1537 = vmul.f32 %v478, %v1488
      %v1538 = vmul.f32 %v479, %v1488
      %v1539 = vmul.f32 %v480, %v1488
      %v1540 = vmul.f32 %v481, %v1488
      %v1541 = vmul.f32 %v482, %v1488
      %v1542 = vmul.f32 %v483, %v1488
      %v1543 = vmul.f32 %v484, %v1488
      %v1544 = vmul.f32 %v485, %v1488
      %v1545 = vmul.f32 %v486, %v1488
      %v1546 = vmul.f32 %v487, %v1488
      %v1547 = vmul.f32 %v488, %v1488
      %v1548 = vmul.f32 %v489, %v1488
      %v1549 = vmul.f32 %v490, %v1488
      %v1550 = vmul.f32 %v491, %v1488
      %v1551 = vmul.f32 %v492, %v1488
      %v1552 = vmul.f32 %v493, %v1488
      %v1553 = vmul.f32 %v494, %v1488
      %v1554 = vmul.f32 %v495, %v1488
      %v1555 = vmul.f32 %v496, %v1488
      %v1556 = vmul.f32 %v497, %v1488
      %v1557 = vmul.f32 %v498, %v1488
      %v1558 = vmul.f32 %v499, %v1488
      %v1559 = vmul.f32 %v500, %v1488
      %v1560 = vmul.f32 %v501, %v1488
      %v1633 = vrot.slane %v1489, 1
      %v1634 = vrot.slane %v1490, 1
      %v1635 = vsel %vm764, %v1633, %v1634
      %v1636 = vrot.slane %v1491, 1
      %v1637 = vsel %vm764, %v1634, %v1636
      %v1638 = vrot.slane %v1492, 1
      %v1639 = vsel %vm764, %v1636, %v1638
      %v1640 = vrot.slane %v1493, 1
      %v1641 = vrot.slane %v1494, 1
      %v1642 = vsel %vm764, %v1640, %v1641
      %v1643 = vrot.slane %v1495, 1
      %v1644 = vsel %vm764, %v1641, %v1643
      %v1645 = vrot.slane %v1496, 1
      %v1646 = vsel %vm764, %v1643, %v1645
      %v1647 = vrot.slane %v1497, 1
      %v1648 = vrot.slane %v1498, 1
      %v1649 = vsel %vm764, %v1647, %v1648
      %v1650 = vrot.slane %v1499, 1
      %v1651 = vsel %vm764, %v1648, %v1650
      %v1652 = vrot.slane %v1500, 1
      %v1653 = vsel %vm764, %v1650, %v1652
      %v1654 = vrot.slane %v1501, 1
      %v1655 = vrot.slane %v1502, 1
      %v1656 = vsel %vm764, %v1654, %v1655
      %v1657 = vrot.slane %v1503, 1
      %v1658 = vsel %vm764, %v1655, %v1657
      %v1659 = vrot.slane %v1504, 1
      %v1660 = vsel %vm764, %v1657, %v1659
      %v1661 = vrot.slane %v1505, 1
      %v1662 = vrot.slane %v1506, 1
      %v1663 = vsel %vm764, %v1661, %v1662
      %v1664 = vrot.slane %v1507, 1
      %v1665 = vsel %vm764, %v1662, %v1664
      %v1666 = vrot.slane %v1508, 1
      %v1667 = vsel %vm764, %v1664, %v1666
      %v1668 = vrot.slane %v1509, 1
      %v1669 = vrot.slane %v1510, 1
      %v1670 = vsel %vm764, %v1668, %v1669
      %v1671 = vrot.slane %v1511, 1
      %v1672 = vsel %vm764, %v1669, %v1671
      %v1673 = vrot.slane %v1512, 1
      %v1674 = vsel %vm764, %v1671, %v1673
      %v1675 = vrot.slane %v1513, 1
      %v1676 = vrot.slane %v1514, 1
      %v1677 = vsel %vm764, %v1675, %v1676
      %v1678 = vrot.slane %v1515, 1
      %v1679 = vsel %vm764, %v1676, %v1678
      %v1680 = vrot.slane %v1516, 1
      %v1681 = vsel %vm764, %v1678, %v1680
      %v1682 = vrot.slane %v1517, 1
      %v1683 = vrot.slane %v1518, 1
      %v1684 = vsel %vm764, %v1682, %v1683
      %v1685 = vrot.slane %v1519, 1
      %v1686 = vsel %vm764, %v1683, %v1685
      %v1687 = vrot.slane %v1520, 1
      %v1688 = vsel %vm764, %v1685, %v1687
      %v1689 = vrot.slane %v1521, 1
      %v1690 = vrot.slane %v1522, 1
      %v1691 = vsel %vm764, %v1689, %v1690
      %v1692 = vrot.slane %v1523, 1
      %v1693 = vsel %vm764, %v1690, %v1692
      %v1694 = vrot.slane %v1524, 1
      %v1695 = vsel %vm764, %v1692, %v1694
      %v1696 = vrot.slane %v1525, 1
      %v1697 = vrot.slane %v1526, 1
      %v1698 = vsel %vm764, %v1696, %v1697
      %v1699 = vrot.slane %v1527, 1
      %v1700 = vsel %vm764, %v1697, %v1699
      %v1701 = vrot.slane %v1528, 1
      %v1702 = vsel %vm764, %v1699, %v1701
      %v1703 = vrot.slane %v1529, 1
      %v1704 = vrot.slane %v1530, 1
      %v1705 = vsel %vm764, %v1703, %v1704
      %v1706 = vrot.slane %v1531, 1
      %v1707 = vsel %vm764, %v1704, %v1706
      %v1708 = vrot.slane %v1532, 1
      %v1709 = vsel %vm764, %v1706, %v1708
      %v1710 = vrot.slane %v1533, 1
      %v1711 = vrot.slane %v1534, 1
      %v1712 = vsel %vm764, %v1710, %v1711
      %v1713 = vrot.slane %v1535, 1
      %v1714 = vsel %vm764, %v1711, %v1713
      %v1715 = vrot.slane %v1536, 1
      %v1716 = vsel %vm764, %v1713, %v1715
      %v1717 = vrot.slane %v1537, 1
      %v1718 = vrot.slane %v1538, 1
      %v1719 = vsel %vm764, %v1717, %v1718
      %v1720 = vrot.slane %v1539, 1
      %v1721 = vsel %vm764, %v1718, %v1720
      %v1722 = vrot.slane %v1540, 1
      %v1723 = vsel %vm764, %v1720, %v1722
      %v1724 = vrot.slane %v1541, 1
      %v1725 = vrot.slane %v1542, 1
      %v1726 = vsel %vm764, %v1724, %v1725
      %v1727 = vrot.slane %v1543, 1
      %v1728 = vsel %vm764, %v1725, %v1727
      %v1729 = vrot.slane %v1544, 1
      %v1730 = vsel %vm764, %v1727, %v1729
      %v1731 = vrot.slane %v1545, 1
      %v1732 = vrot.slane %v1546, 1
      %v1733 = vsel %vm764, %v1731, %v1732
      %v1734 = vrot.slane %v1547, 1
      %v1735 = vsel %vm764, %v1732, %v1734
      %v1736 = vrot.slane %v1548, 1
      %v1737 = vsel %vm764, %v1734, %v1736
      %v1738 = vrot.slane %v1549, 1
      %v1739 = vrot.slane %v1550, 1
      %v1740 = vsel %vm764, %v1738, %v1739
      %v1741 = vrot.slane %v1551, 1
      %v1742 = vsel %vm764, %v1739, %v1741
      %v1743 = vrot.slane %v1552, 1
      %v1744 = vsel %vm764, %v1741, %v1743
      %v1745 = vrot.slane %v1553, 1
      %v1746 = vrot.slane %v1554, 1
      %v1747 = vsel %vm764, %v1745, %v1746
      %v1748 = vrot.slane %v1555, 1
      %v1749 = vsel %vm764, %v1746, %v1748
      %v1750 = vrot.slane %v1556, 1
      %v1751 = vsel %vm764, %v1748, %v1750
      %v1752 = vrot.slane %v1557, 1
      %v1753 = vrot.slane %v1558, 1
      %v1754 = vsel %vm764, %v1752, %v1753
      %v1755 = vrot.slane %v1559, 1
      %v1756 = vsel %vm764, %v1753, %v1755
      %v1757 = vrot.slane %v1560, 1
      %v1758 = vsel %vm764, %v1755, %v1757
      %v1813 = vadd.f32 %v1434, %v1635
      %v1814 = vadd.f32 %v1435, %v1637
      %v1815 = vadd.f32 %v1436, %v1639
      %v1816 = vadd.f32 %v1437, %v1642
      %v1817 = vadd.f32 %v1438, %v1644
      %v1818 = vadd.f32 %v1439, %v1646
      %v1819 = vadd.f32 %v1440, %v1649
      %v1820 = vadd.f32 %v1441, %v1651
      %v1821 = vadd.f32 %v1442, %v1653
      %v1822 = vadd.f32 %v1443, %v1656
      %v1823 = vadd.f32 %v1444, %v1658
      %v1824 = vadd.f32 %v1445, %v1660
      %v1825 = vadd.f32 %v1446, %v1663
      %v1826 = vadd.f32 %v1447, %v1665
      %v1827 = vadd.f32 %v1448, %v1667
      %v1828 = vadd.f32 %v1449, %v1670
      %v1829 = vadd.f32 %v1450, %v1672
      %v1830 = vadd.f32 %v1451, %v1674
      %v1831 = vadd.f32 %v1452, %v1677
      %v1832 = vadd.f32 %v1453, %v1679
      %v1833 = vadd.f32 %v1454, %v1681
      %v1834 = vadd.f32 %v1455, %v1684
      %v1835 = vadd.f32 %v1456, %v1686
      %v1836 = vadd.f32 %v1457, %v1688
      %v1837 = vadd.f32 %v1458, %v1691
      %v1838 = vadd.f32 %v1459, %v1693
      %v1839 = vadd.f32 %v1460, %v1695
      %v1840 = vadd.f32 %v1461, %v1698
      %v1841 = vadd.f32 %v1462, %v1700
      %v1842 = vadd.f32 %v1463, %v1702
      %v1843 = vadd.f32 %v1464, %v1705
      %v1844 = vadd.f32 %v1465, %v1707
      %v1845 = vadd.f32 %v1466, %v1709
      %v1846 = vadd.f32 %v1467, %v1712
      %v1847 = vadd.f32 %v1468, %v1714
      %v1848 = vadd.f32 %v1469, %v1716
      %v1849 = vadd.f32 %v1470, %v1719
      %v1850 = vadd.f32 %v1471, %v1721
      %v1851 = vadd.f32 %v1472, %v1723
      %v1852 = vadd.f32 %v1473, %v1726
      %v1853 = vadd.f32 %v1474, %v1728
      %v1854 = vadd.f32 %v1475, %v1730
      %v1855 = vadd.f32 %v1476, %v1733
      %v1856 = vadd.f32 %v1477, %v1735
      %v1857 = vadd.f32 %v1478, %v1737
      %v1858 = vadd.f32 %v1479, %v1740
      %v1859 = vadd.f32 %v1480, %v1742
      %v1860 = vadd.f32 %v1481, %v1744
      %v1861 = vadd.f32 %v1482, %v1747
      %v1862 = vadd.f32 %v1483, %v1749
      %v1863 = vadd.f32 %v1484, %v1751
      %v1864 = vadd.f32 %v1485, %v1754
      %v1865 = vadd.f32 %v1486, %v1756
      %v1866 = vadd.f32 %v1487, %v1758
      %v1867 = vperm.slane %v507, 2
      %v1868 = vmul.f32 %v430, %v1867
      %v1869 = vmul.f32 %v431, %v1867
      %v1870 = vmul.f32 %v432, %v1867
      %v1871 = vmul.f32 %v433, %v1867
      %v1872 = vmul.f32 %v434, %v1867
      %v1873 = vmul.f32 %v435, %v1867
      %v1874 = vmul.f32 %v436, %v1867
      %v1875 = vmul.f32 %v437, %v1867
      %v1876 = vmul.f32 %v438, %v1867
      %v1877 = vmul.f32 %v439, %v1867
      %v1878 = vmul.f32 %v440, %v1867
      %v1879 = vmul.f32 %v441, %v1867
      %v1880 = vmul.f32 %v442, %v1867
      %v1881 = vmul.f32 %v443, %v1867
      %v1882 = vmul.f32 %v444, %v1867
      %v1883 = vmul.f32 %v445, %v1867
      %v1884 = vmul.f32 %v446, %v1867
      %v1885 = vmul.f32 %v447, %v1867
      %v1886 = vmul.f32 %v448, %v1867
      %v1887 = vmul.f32 %v449, %v1867
      %v1888 = vmul.f32 %v450, %v1867
      %v1889 = vmul.f32 %v451, %v1867
      %v1890 = vmul.f32 %v452, %v1867
      %v1891 = vmul.f32 %v453, %v1867
      %v1892 = vmul.f32 %v454, %v1867
      %v1893 = vmul.f32 %v455, %v1867
      %v1894 = vmul.f32 %v456, %v1867
      %v1895 = vmul.f32 %v457, %v1867
      %v1896 = vmul.f32 %v458, %v1867
      %v1897 = vmul.f32 %v459, %v1867
      %v1898 = vmul.f32 %v460, %v1867
      %v1899 = vmul.f32 %v461, %v1867
      %v1900 = vmul.f32 %v462, %v1867
      %v1901 = vmul.f32 %v463, %v1867
      %v1902 = vmul.f32 %v464, %v1867
      %v1903 = vmul.f32 %v465, %v1867
      %v1904 = vmul.f32 %v466, %v1867
      %v1905 = vmul.f32 %v467, %v1867
      %v1906 = vmul.f32 %v468, %v1867
      %v1907 = vmul.f32 %v469, %v1867
      %v1908 = vmul.f32 %v470, %v1867
      %v1909 = vmul.f32 %v471, %v1867
      %v1910 = vmul.f32 %v472, %v1867
      %v1911 = vmul.f32 %v473, %v1867
      %v1912 = vmul.f32 %v474, %v1867
      %v1913 = vmul.f32 %v475, %v1867
      %v1914 = vmul.f32 %v476, %v1867
      %v1915 = vmul.f32 %v477, %v1867
      %v1916 = vmul.f32 %v478, %v1867
      %v1917 = vmul.f32 %v479, %v1867
      %v1918 = vmul.f32 %v480, %v1867
      %v1919 = vmul.f32 %v481, %v1867
      %v1920 = vmul.f32 %v482, %v1867
      %v1921 = vmul.f32 %v483, %v1867
      %v1922 = vmul.f32 %v484, %v1867
      %v1923 = vmul.f32 %v485, %v1867
      %v1924 = vmul.f32 %v486, %v1867
      %v1925 = vmul.f32 %v487, %v1867
      %v1926 = vmul.f32 %v488, %v1867
      %v1927 = vmul.f32 %v489, %v1867
      %v1928 = vmul.f32 %v490, %v1867
      %v1929 = vmul.f32 %v491, %v1867
      %v1930 = vmul.f32 %v492, %v1867
      %v1931 = vmul.f32 %v493, %v1867
      %v1932 = vmul.f32 %v494, %v1867
      %v1933 = vmul.f32 %v495, %v1867
      %v1934 = vmul.f32 %v496, %v1867
      %v1935 = vmul.f32 %v497, %v1867
      %v1936 = vmul.f32 %v498, %v1867
      %v1937 = vmul.f32 %v499, %v1867
      %v1938 = vmul.f32 %v500, %v1867
      %v1939 = vmul.f32 %v501, %v1867
      %v2012 = vrot.slane %v1868, 2
      %v2013 = vrot.slane %v1869, 2
      %v2014 = vsel %vm1144, %v2012, %v2013
      %v2015 = vrot.slane %v1870, 2
      %v2016 = vsel %vm1144, %v2013, %v2015
      %v2017 = vrot.slane %v1871, 2
      %v2018 = vsel %vm1144, %v2015, %v2017
      %v2019 = vrot.slane %v1872, 2
      %v2020 = vrot.slane %v1873, 2
      %v2021 = vsel %vm1144, %v2019, %v2020
      %v2022 = vrot.slane %v1874, 2
      %v2023 = vsel %vm1144, %v2020, %v2022
      %v2024 = vrot.slane %v1875, 2
      %v2025 = vsel %vm1144, %v2022, %v2024
      %v2026 = vrot.slane %v1876, 2
      %v2027 = vrot.slane %v1877, 2
      %v2028 = vsel %vm1144, %v2026, %v2027
      %v2029 = vrot.slane %v1878, 2
      %v2030 = vsel %vm1144, %v2027, %v2029
      %v2031 = vrot.slane %v1879, 2
      %v2032 = vsel %vm1144, %v2029, %v2031
      %v2033 = vrot.slane %v1880, 2
      %v2034 = vrot.slane %v1881, 2
      %v2035 = vsel %vm1144, %v2033, %v2034
      %v2036 = vrot.slane %v1882, 2
      %v2037 = vsel %vm1144, %v2034, %v2036
      %v2038 = vrot.slane %v1883, 2
      %v2039 = vsel %vm1144, %v2036, %v2038
      %v2040 = vrot.slane %v1884, 2
      %v2041 = vrot.slane %v1885, 2
      %v2042 = vsel %vm1144, %v2040, %v2041
      %v2043 = vrot.slane %v1886, 2
      %v2044 = vsel %vm1144, %v2041, %v2043
      %v2045 = vrot.slane %v1887, 2
      %v2046 = vsel %vm1144, %v2043, %v2045
      %v2047 = vrot.slane %v1888, 2
      %v2048 = vrot.slane %v1889, 2
      %v2049 = vsel %vm1144, %v2047, %v2048
      %v2050 = vrot.slane %v1890, 2
      %v2051 = vsel %vm1144, %v2048, %v2050
      %v2052 = vrot.slane %v1891, 2
      %v2053 = vsel %vm1144, %v2050, %v2052
      %v2054 = vrot.slane %v1892, 2
      %v2055 = vrot.slane %v1893, 2
      %v2056 = vsel %vm1144, %v2054, %v2055
      %v2057 = vrot.slane %v1894, 2
      %v2058 = vsel %vm1144, %v2055, %v2057
      %v2059 = vrot.slane %v1895, 2
      %v2060 = vsel %vm1144, %v2057, %v2059
      %v2061 = vrot.slane %v1896, 2
      %v2062 = vrot.slane %v1897, 2
      %v2063 = vsel %vm1144, %v2061, %v2062
      %v2064 = vrot.slane %v1898, 2
      %v2065 = vsel %vm1144, %v2062, %v2064
      %v2066 = vrot.slane %v1899, 2
      %v2067 = vsel %vm1144, %v2064, %v2066
      %v2068 = vrot.slane %v1900, 2
      %v2069 = vrot.slane %v1901, 2
      %v2070 = vsel %vm1144, %v2068, %v2069
      %v2071 = vrot.slane %v1902, 2
      %v2072 = vsel %vm1144, %v2069, %v2071
      %v2073 = vrot.slane %v1903, 2
      %v2074 = vsel %vm1144, %v2071, %v2073
      %v2075 = vrot.slane %v1904, 2
      %v2076 = vrot.slane %v1905, 2
      %v2077 = vsel %vm1144, %v2075, %v2076
      %v2078 = vrot.slane %v1906, 2
      %v2079 = vsel %vm1144, %v2076, %v2078
      %v2080 = vrot.slane %v1907, 2
      %v2081 = vsel %vm1144, %v2078, %v2080
      %v2082 = vrot.slane %v1908, 2
      %v2083 = vrot.slane %v1909, 2
      %v2084 = vsel %vm1144, %v2082, %v2083
      %v2085 = vrot.slane %v1910, 2
      %v2086 = vsel %vm1144, %v2083, %v2085
      %v2087 = vrot.slane %v1911, 2
      %v2088 = vsel %vm1144, %v2085, %v2087
      %v2089 = vrot.slane %v1912, 2
      %v2090 = vrot.slane %v1913, 2
      %v2091 = vsel %vm1144, %v2089, %v2090
      %v2092 = vrot.slane %v1914, 2
      %v2093 = vsel %vm1144, %v2090, %v2092
      %v2094 = vrot.slane %v1915, 2
      %v2095 = vsel %vm1144, %v2092, %v2094
      %v2096 = vrot.slane %v1916, 2
      %v2097 = vrot.slane %v1917, 2
      %v2098 = vsel %vm1144, %v2096, %v2097
      %v2099 = vrot.slane %v1918, 2
      %v2100 = vsel %vm1144, %v2097, %v2099
      %v2101 = vrot.slane %v1919, 2
      %v2102 = vsel %vm1144, %v2099, %v2101
      %v2103 = vrot.slane %v1920, 2
      %v2104 = vrot.slane %v1921, 2
      %v2105 = vsel %vm1144, %v2103, %v2104
      %v2106 = vrot.slane %v1922, 2
      %v2107 = vsel %vm1144, %v2104, %v2106
      %v2108 = vrot.slane %v1923, 2
      %v2109 = vsel %vm1144, %v2106, %v2108
      %v2110 = vrot.slane %v1924, 2
      %v2111 = vrot.slane %v1925, 2
      %v2112 = vsel %vm1144, %v2110, %v2111
      %v2113 = vrot.slane %v1926, 2
      %v2114 = vsel %vm1144, %v2111, %v2113
      %v2115 = vrot.slane %v1927, 2
      %v2116 = vsel %vm1144, %v2113, %v2115
      %v2117 = vrot.slane %v1928, 2
      %v2118 = vrot.slane %v1929, 2
      %v2119 = vsel %vm1144, %v2117, %v2118
      %v2120 = vrot.slane %v1930, 2
      %v2121 = vsel %vm1144, %v2118, %v2120
      %v2122 = vrot.slane %v1931, 2
      %v2123 = vsel %vm1144, %v2120, %v2122
      %v2124 = vrot.slane %v1932, 2
      %v2125 = vrot.slane %v1933, 2
      %v2126 = vsel %vm1144, %v2124, %v2125
      %v2127 = vrot.slane %v1934, 2
      %v2128 = vsel %vm1144, %v2125, %v2127
      %v2129 = vrot.slane %v1935, 2
      %v2130 = vsel %vm1144, %v2127, %v2129
      %v2131 = vrot.slane %v1936, 2
      %v2132 = vrot.slane %v1937, 2
      %v2133 = vsel %vm1144, %v2131, %v2132
      %v2134 = vrot.slane %v1938, 2
      %v2135 = vsel %vm1144, %v2132, %v2134
      %v2136 = vrot.slane %v1939, 2
      %v2137 = vsel %vm1144, %v2134, %v2136
      %v2192 = vadd.f32 %v1813, %v2014
      %v2193 = vadd.f32 %v1814, %v2016
      %v2194 = vadd.f32 %v1815, %v2018
      %v2195 = vadd.f32 %v1816, %v2021
      %v2196 = vadd.f32 %v1817, %v2023
      %v2197 = vadd.f32 %v1818, %v2025
      %v2198 = vadd.f32 %v1819, %v2028
      %v2199 = vadd.f32 %v1820, %v2030
      %v2200 = vadd.f32 %v1821, %v2032
      %v2201 = vadd.f32 %v1822, %v2035
      %v2202 = vadd.f32 %v1823, %v2037
      %v2203 = vadd.f32 %v1824, %v2039
      %v2204 = vadd.f32 %v1825, %v2042
      %v2205 = vadd.f32 %v1826, %v2044
      %v2206 = vadd.f32 %v1827, %v2046
      %v2207 = vadd.f32 %v1828, %v2049
      %v2208 = vadd.f32 %v1829, %v2051
      %v2209 = vadd.f32 %v1830, %v2053
      %v2210 = vadd.f32 %v1831, %v2056
      %v2211 = vadd.f32 %v1832, %v2058
      %v2212 = vadd.f32 %v1833, %v2060
      %v2213 = vadd.f32 %v1834, %v2063
      %v2214 = vadd.f32 %v1835, %v2065
      %v2215 = vadd.f32 %v1836, %v2067
      %v2216 = vadd.f32 %v1837, %v2070
      %v2217 = vadd.f32 %v1838, %v2072
      %v2218 = vadd.f32 %v1839, %v2074
      %v2219 = vadd.f32 %v1840, %v2077
      %v2220 = vadd.f32 %v1841, %v2079
      %v2221 = vadd.f32 %v1842, %v2081
      %v2222 = vadd.f32 %v1843, %v2084
      %v2223 = vadd.f32 %v1844, %v2086
      %v2224 = vadd.f32 %v1845, %v2088
      %v2225 = vadd.f32 %v1846, %v2091
      %v2226 = vadd.f32 %v1847, %v2093
      %v2227 = vadd.f32 %v1848, %v2095
      %v2228 = vadd.f32 %v1849, %v2098
      %v2229 = vadd.f32 %v1850, %v2100
      %v2230 = vadd.f32 %v1851, %v2102
      %v2231 = vadd.f32 %v1852, %v2105
      %v2232 = vadd.f32 %v1853, %v2107
      %v2233 = vadd.f32 %v1854, %v2109
      %v2234 = vadd.f32 %v1855, %v2112
      %v2235 = vadd.f32 %v1856, %v2114
      %v2236 = vadd.f32 %v1857, %v2116
      %v2237 = vadd.f32 %v1858, %v2119
      %v2238 = vadd.f32 %v1859, %v2121
      %v2239 = vadd.f32 %v1860, %v2123
      %v2240 = vadd.f32 %v1861, %v2126
      %v2241 = vadd.f32 %v1862, %v2128
      %v2242 = vadd.f32 %v1863, %v2130
      %v2243 = vadd.f32 %v1864, %v2133
      %v2244 = vadd.f32 %v1865, %v2135
      %v2245 = vadd.f32 %v1866, %v2137
      %v2246 = vperm.slane %v507, 4
      %v2247 = vmul.f32 %v434, %v2246
      %v2248 = vmul.f32 %v435, %v2246
      %v2249 = vmul.f32 %v436, %v2246
      %v2250 = vmul.f32 %v438, %v2246
      %v2251 = vmul.f32 %v439, %v2246
      %v2252 = vmul.f32 %v440, %v2246
      %v2253 = vmul.f32 %v442, %v2246
      %v2254 = vmul.f32 %v443, %v2246
      %v2255 = vmul.f32 %v444, %v2246
      %v2256 = vmul.f32 %v446, %v2246
      %v2257 = vmul.f32 %v447, %v2246
      %v2258 = vmul.f32 %v448, %v2246
      %v2259 = vmul.f32 %v450, %v2246
      %v2260 = vmul.f32 %v451, %v2246
      %v2261 = vmul.f32 %v452, %v2246
      %v2262 = vmul.f32 %v454, %v2246
      %v2263 = vmul.f32 %v455, %v2246
      %v2264 = vmul.f32 %v456, %v2246
      %v2265 = vmul.f32 %v458, %v2246
      %v2266 = vmul.f32 %v459, %v2246
      %v2267 = vmul.f32 %v460, %v2246
      %v2268 = vmul.f32 %v462, %v2246
      %v2269 = vmul.f32 %v463, %v2246
      %v2270 = vmul.f32 %v464, %v2246
      %v2271 = vmul.f32 %v466, %v2246
      %v2272 = vmul.f32 %v467, %v2246
      %v2273 = vmul.f32 %v468, %v2246
      %v2274 = vmul.f32 %v470, %v2246
      %v2275 = vmul.f32 %v471, %v2246
      %v2276 = vmul.f32 %v472, %v2246
      %v2277 = vmul.f32 %v474, %v2246
      %v2278 = vmul.f32 %v475, %v2246
      %v2279 = vmul.f32 %v476, %v2246
      %v2280 = vmul.f32 %v478, %v2246
      %v2281 = vmul.f32 %v479, %v2246
      %v2282 = vmul.f32 %v480, %v2246
      %v2283 = vmul.f32 %v482, %v2246
      %v2284 = vmul.f32 %v483, %v2246
      %v2285 = vmul.f32 %v484, %v2246
      %v2286 = vmul.f32 %v486, %v2246
      %v2287 = vmul.f32 %v487, %v2246
      %v2288 = vmul.f32 %v488, %v2246
      %v2289 = vmul.f32 %v490, %v2246
      %v2290 = vmul.f32 %v491, %v2246
      %v2291 = vmul.f32 %v492, %v2246
      %v2292 = vmul.f32 %v494, %v2246
      %v2293 = vmul.f32 %v495, %v2246
      %v2294 = vmul.f32 %v496, %v2246
      %v2295 = vmul.f32 %v498, %v2246
      %v2296 = vmul.f32 %v499, %v2246
      %v2297 = vmul.f32 %v500, %v2246
      %v2298 = vmul.f32 %v502, %v2246
      %v2299 = vmul.f32 %v503, %v2246
      %v2300 = vmul.f32 %v504, %v2246
      %v2301 = vadd.f32 %v2192, %v2247
      %v2302 = vadd.f32 %v2193, %v2248
      %v2303 = vadd.f32 %v2194, %v2249
      %v2304 = vadd.f32 %v2195, %v2250
      %v2305 = vadd.f32 %v2196, %v2251
      %v2306 = vadd.f32 %v2197, %v2252
      %v2307 = vadd.f32 %v2198, %v2253
      %v2308 = vadd.f32 %v2199, %v2254
      %v2309 = vadd.f32 %v2200, %v2255
      %v2310 = vadd.f32 %v2201, %v2256
      %v2311 = vadd.f32 %v2202, %v2257
      %v2312 = vadd.f32 %v2203, %v2258
      %v2313 = vadd.f32 %v2204, %v2259
      %v2314 = vadd.f32 %v2205, %v2260
      %v2315 = vadd.f32 %v2206, %v2261
      %v2316 = vadd.f32 %v2207, %v2262
      %v2317 = vadd.f32 %v2208, %v2263
      %v2318 = vadd.f32 %v2209, %v2264
      %v2319 = vadd.f32 %v2210, %v2265
      %v2320 = vadd.f32 %v2211, %v2266
      %v2321 = vadd.f32 %v2212, %v2267
      %v2322 = vadd.f32 %v2213, %v2268
      %v2323 = vadd.f32 %v2214, %v2269
      %v2324 = vadd.f32 %v2215, %v2270
      %v2325 = vadd.f32 %v2216, %v2271
      %v2326 = vadd.f32 %v2217, %v2272
      %v2327 = vadd.f32 %v2218, %v2273
      %v2328 = vadd.f32 %v2219, %v2274
      %v2329 = vadd.f32 %v2220, %v2275
      %v2330 = vadd.f32 %v2221, %v2276
      %v2331 = vadd.f32 %v2222, %v2277
      %v2332 = vadd.f32 %v2223, %v2278
      %v2333 = vadd.f32 %v2224, %v2279
      %v2334 = vadd.f32 %v2225, %v2280
      %v2335 = vadd.f32 %v2226, %v2281
      %v2336 = vadd.f32 %v2227, %v2282
      %v2337 = vadd.f32 %v2228, %v2283
      %v2338 = vadd.f32 %v2229, %v2284
      %v2339 = vadd.f32 %v2230, %v2285
      %v2340 = vadd.f32 %v2231, %v2286
      %v2341 = vadd.f32 %v2232, %v2287
      %v2342 = vadd.f32 %v2233, %v2288
      %v2343 = vadd.f32 %v2234, %v2289
      %v2344 = vadd.f32 %v2235, %v2290
      %v2345 = vadd.f32 %v2236, %v2291
      %v2346 = vadd.f32 %v2237, %v2292
      %v2347 = vadd.f32 %v2238, %v2293
      %v2348 = vadd.f32 %v2239, %v2294
      %v2349 = vadd.f32 %v2240, %v2295
      %v2350 = vadd.f32 %v2241, %v2296
      %v2351 = vadd.f32 %v2242, %v2297
      %v2352 = vadd.f32 %v2243, %v2298
      %v2353 = vadd.f32 %v2244, %v2299
      %v2354 = vadd.f32 %v2245, %v2300
      %v2355 = vperm.slane %v507, 6
      %v2356 = vmul.f32 %v434, %v2355
      %v2357 = vmul.f32 %v435, %v2355
      %v2358 = vmul.f32 %v436, %v2355
      %v2359 = vmul.f32 %v437, %v2355
      %v2360 = vmul.f32 %v438, %v2355
      %v2361 = vmul.f32 %v439, %v2355
      %v2362 = vmul.f32 %v440, %v2355
      %v2363 = vmul.f32 %v441, %v2355
      %v2364 = vmul.f32 %v442, %v2355
      %v2365 = vmul.f32 %v443, %v2355
      %v2366 = vmul.f32 %v444, %v2355
      %v2367 = vmul.f32 %v445, %v2355
      %v2368 = vmul.f32 %v446, %v2355
      %v2369 = vmul.f32 %v447, %v2355
      %v2370 = vmul.f32 %v448, %v2355
      %v2371 = vmul.f32 %v449, %v2355
      %v2372 = vmul.f32 %v450, %v2355
      %v2373 = vmul.f32 %v451, %v2355
      %v2374 = vmul.f32 %v452, %v2355
      %v2375 = vmul.f32 %v453, %v2355
      %v2376 = vmul.f32 %v454, %v2355
      %v2377 = vmul.f32 %v455, %v2355
      %v2378 = vmul.f32 %v456, %v2355
      %v2379 = vmul.f32 %v457, %v2355
      %v2380 = vmul.f32 %v458, %v2355
      %v2381 = vmul.f32 %v459, %v2355
      %v2382 = vmul.f32 %v460, %v2355
      %v2383 = vmul.f32 %v461, %v2355
      %v2384 = vmul.f32 %v462, %v2355
      %v2385 = vmul.f32 %v463, %v2355
      %v2386 = vmul.f32 %v464, %v2355
      %v2387 = vmul.f32 %v465, %v2355
      %v2388 = vmul.f32 %v466, %v2355
      %v2389 = vmul.f32 %v467, %v2355
      %v2390 = vmul.f32 %v468, %v2355
      %v2391 = vmul.f32 %v469, %v2355
      %v2392 = vmul.f32 %v470, %v2355
      %v2393 = vmul.f32 %v471, %v2355
      %v2394 = vmul.f32 %v472, %v2355
      %v2395 = vmul.f32 %v473, %v2355
      %v2396 = vmul.f32 %v474, %v2355
      %v2397 = vmul.f32 %v475, %v2355
      %v2398 = vmul.f32 %v476, %v2355
      %v2399 = vmul.f32 %v477, %v2355
      %v2400 = vmul.f32 %v478, %v2355
      %v2401 = vmul.f32 %v479, %v2355
      %v2402 = vmul.f32 %v480, %v2355
      %v2403 = vmul.f32 %v481, %v2355
      %v2404 = vmul.f32 %v482, %v2355
      %v2405 = vmul.f32 %v483, %v2355
      %v2406 = vmul.f32 %v484, %v2355
      %v2407 = vmul.f32 %v485, %v2355
      %v2408 = vmul.f32 %v486, %v2355
      %v2409 = vmul.f32 %v487, %v2355
      %v2410 = vmul.f32 %v488, %v2355
      %v2411 = vmul.f32 %v489, %v2355
      %v2412 = vmul.f32 %v490, %v2355
      %v2413 = vmul.f32 %v491, %v2355
      %v2414 = vmul.f32 %v492, %v2355
      %v2415 = vmul.f32 %v493, %v2355
      %v2416 = vmul.f32 %v494, %v2355
      %v2417 = vmul.f32 %v495, %v2355
      %v2418 = vmul.f32 %v496, %v2355
      %v2419 = vmul.f32 %v497, %v2355
      %v2420 = vmul.f32 %v498, %v2355
      %v2421 = vmul.f32 %v499, %v2355
      %v2422 = vmul.f32 %v500, %v2355
      %v2423 = vmul.f32 %v501, %v2355
      %v2424 = vmul.f32 %v502, %v2355
      %v2425 = vmul.f32 %v503, %v2355
      %v2426 = vmul.f32 %v504, %v2355
      %v2427 = vmul.f32 %v505, %v2355
      %v2500 = vrot.slane %v2356, 1
      %v2501 = vrot.slane %v2357, 1
      %v2502 = vsel %vm764, %v2500, %v2501
      %v2503 = vrot.slane %v2358, 1
      %v2504 = vsel %vm764, %v2501, %v2503
      %v2505 = vrot.slane %v2359, 1
      %v2506 = vsel %vm764, %v2503, %v2505
      %v2507 = vrot.slane %v2360, 1
      %v2508 = vrot.slane %v2361, 1
      %v2509 = vsel %vm764, %v2507, %v2508
      %v2510 = vrot.slane %v2362, 1
      %v2511 = vsel %vm764, %v2508, %v2510
      %v2512 = vrot.slane %v2363, 1
      %v2513 = vsel %vm764, %v2510, %v2512
      %v2514 = vrot.slane %v2364, 1
      %v2515 = vrot.slane %v2365, 1
      %v2516 = vsel %vm764, %v2514, %v2515
      %v2517 = vrot.slane %v2366, 1
      %v2518 = vsel %vm764, %v2515, %v2517
      %v2519 = vrot.slane %v2367, 1
      %v2520 = vsel %vm764, %v2517, %v2519
      %v2521 = vrot.slane %v2368, 1
      %v2522 = vrot.slane %v2369, 1
      %v2523 = vsel %vm764, %v2521, %v2522
      %v2524 = vrot.slane %v2370, 1
      %v2525 = vsel %vm764, %v2522, %v2524
      %v2526 = vrot.slane %v2371, 1
      %v2527 = vsel %vm764, %v2524, %v2526
      %v2528 = vrot.slane %v2372, 1
      %v2529 = vrot.slane %v2373, 1
      %v2530 = vsel %vm764, %v2528, %v2529
      %v2531 = vrot.slane %v2374, 1
      %v2532 = vsel %vm764, %v2529, %v2531
      %v2533 = vrot.slane %v2375, 1
      %v2534 = vsel %vm764, %v2531, %v2533
      %v2535 = vrot.slane %v2376, 1
      %v2536 = vrot.slane %v2377, 1
      %v2537 = vsel %vm764, %v2535, %v2536
      %v2538 = vrot.slane %v2378, 1
      %v2539 = vsel %vm764, %v2536, %v2538
      %v2540 = vrot.slane %v2379, 1
      %v2541 = vsel %vm764, %v2538, %v2540
      %v2542 = vrot.slane %v2380, 1
      %v2543 = vrot.slane %v2381, 1
      %v2544 = vsel %vm764, %v2542, %v2543
      %v2545 = vrot.slane %v2382, 1
      %v2546 = vsel %vm764, %v2543, %v2545
      %v2547 = vrot.slane %v2383, 1
      %v2548 = vsel %vm764, %v2545, %v2547
      %v2549 = vrot.slane %v2384, 1
      %v2550 = vrot.slane %v2385, 1
      %v2551 = vsel %vm764, %v2549, %v2550
      %v2552 = vrot.slane %v2386, 1
      %v2553 = vsel %vm764, %v2550, %v2552
      %v2554 = vrot.slane %v2387, 1
      %v2555 = vsel %vm764, %v2552, %v2554
      %v2556 = vrot.slane %v2388, 1
      %v2557 = vrot.slane %v2389, 1
      %v2558 = vsel %vm764, %v2556, %v2557
      %v2559 = vrot.slane %v2390, 1
      %v2560 = vsel %vm764, %v2557, %v2559
      %v2561 = vrot.slane %v2391, 1
      %v2562 = vsel %vm764, %v2559, %v2561
      %v2563 = vrot.slane %v2392, 1
      %v2564 = vrot.slane %v2393, 1
      %v2565 = vsel %vm764, %v2563, %v2564
      %v2566 = vrot.slane %v2394, 1
      %v2567 = vsel %vm764, %v2564, %v2566
      %v2568 = vrot.slane %v2395, 1
      %v2569 = vsel %vm764, %v2566, %v2568
      %v2570 = vrot.slane %v2396, 1
      %v2571 = vrot.slane %v2397, 1
      %v2572 = vsel %vm764, %v2570, %v2571
      %v2573 = vrot.slane %v2398, 1
      %v2574 = vsel %vm764, %v2571, %v2573
      %v2575 = vrot.slane %v2399, 1
      %v2576 = vsel %vm764, %v2573, %v2575
      %v2577 = vrot.slane %v2400, 1
      %v2578 = vrot.slane %v2401, 1
      %v2579 = vsel %vm764, %v2577, %v2578
      %v2580 = vrot.slane %v2402, 1
      %v2581 = vsel %vm764, %v2578, %v2580
      %v2582 = vrot.slane %v2403, 1
      %v2583 = vsel %vm764, %v2580, %v2582
      %v2584 = vrot.slane %v2404, 1
      %v2585 = vrot.slane %v2405, 1
      %v2586 = vsel %vm764, %v2584, %v2585
      %v2587 = vrot.slane %v2406, 1
      %v2588 = vsel %vm764, %v2585, %v2587
      %v2589 = vrot.slane %v2407, 1
      %v2590 = vsel %vm764, %v2587, %v2589
      %v2591 = vrot.slane %v2408, 1
      %v2592 = vrot.slane %v2409, 1
      %v2593 = vsel %vm764, %v2591, %v2592
      %v2594 = vrot.slane %v2410, 1
      %v2595 = vsel %vm764, %v2592, %v2594
      %v2596 = vrot.slane %v2411, 1
      %v2597 = vsel %vm764, %v2594, %v2596
      %v2598 = vrot.slane %v2412, 1
      %v2599 = vrot.slane %v2413, 1
      %v2600 = vsel %vm764, %v2598, %v2599
      %v2601 = vrot.slane %v2414, 1
      %v2602 = vsel %vm764, %v2599, %v2601
      %v2603 = vrot.slane %v2415, 1
      %v2604 = vsel %vm764, %v2601, %v2603
      %v2605 = vrot.slane %v2416, 1
      %v2606 = vrot.slane %v2417, 1
      %v2607 = vsel %vm764, %v2605, %v2606
      %v2608 = vrot.slane %v2418, 1
      %v2609 = vsel %vm764, %v2606, %v2608
      %v2610 = vrot.slane %v2419, 1
      %v2611 = vsel %vm764, %v2608, %v2610
      %v2612 = vrot.slane %v2420, 1
      %v2613 = vrot.slane %v2421, 1
      %v2614 = vsel %vm764, %v2612, %v2613
      %v2615 = vrot.slane %v2422, 1
      %v2616 = vsel %vm764, %v2613, %v2615
      %v2617 = vrot.slane %v2423, 1
      %v2618 = vsel %vm764, %v2615, %v2617
      %v2619 = vrot.slane %v2424, 1
      %v2620 = vrot.slane %v2425, 1
      %v2621 = vsel %vm764, %v2619, %v2620
      %v2622 = vrot.slane %v2426, 1
      %v2623 = vsel %vm764, %v2620, %v2622
      %v2624 = vrot.slane %v2427, 1
      %v2625 = vsel %vm764, %v2622, %v2624
      %v2680 = vadd.f32 %v2301, %v2502
      %v2681 = vadd.f32 %v2302, %v2504
      %v2682 = vadd.f32 %v2303, %v2506
      %v2683 = vadd.f32 %v2304, %v2509
      %v2684 = vadd.f32 %v2305, %v2511
      %v2685 = vadd.f32 %v2306, %v2513
      %v2686 = vadd.f32 %v2307, %v2516
      %v2687 = vadd.f32 %v2308, %v2518
      %v2688 = vadd.f32 %v2309, %v2520
      %v2689 = vadd.f32 %v2310, %v2523
      %v2690 = vadd.f32 %v2311, %v2525
      %v2691 = vadd.f32 %v2312, %v2527
      %v2692 = vadd.f32 %v2313, %v2530
      %v2693 = vadd.f32 %v2314, %v2532
      %v2694 = vadd.f32 %v2315, %v2534
      %v2695 = vadd.f32 %v2316, %v2537
      %v2696 = vadd.f32 %v2317, %v2539
      %v2697 = vadd.f32 %v2318, %v2541
      %v2698 = vadd.f32 %v2319, %v2544
      %v2699 = vadd.f32 %v2320, %v2546
      %v2700 = vadd.f32 %v2321, %v2548
      %v2701 = vadd.f32 %v2322, %v2551
      %v2702 = vadd.f32 %v2323, %v2553
      %v2703 = vadd.f32 %v2324, %v2555
      %v2704 = vadd.f32 %v2325, %v2558
      %v2705 = vadd.f32 %v2326, %v2560
      %v2706 = vadd.f32 %v2327, %v2562
      %v2707 = vadd.f32 %v2328, %v2565
      %v2708 = vadd.f32 %v2329, %v2567
      %v2709 = vadd.f32 %v2330, %v2569
      %v2710 = vadd.f32 %v2331, %v2572
      %v2711 = vadd.f32 %v2332, %v2574
      %v2712 = vadd.f32 %v2333, %v2576
      %v2713 = vadd.f32 %v2334, %v2579
      %v2714 = vadd.f32 %v2335, %v2581
      %v2715 = vadd.f32 %v2336, %v2583
      %v2716 = vadd.f32 %v2337, %v2586
      %v2717 = vadd.f32 %v2338, %v2588
      %v2718 = vadd.f32 %v2339, %v2590
      %v2719 = vadd.f32 %v2340, %v2593
      %v2720 = vadd.f32 %v2341, %v2595
      %v2721 = vadd.f32 %v2342, %v2597
      %v2722 = vadd.f32 %v2343, %v2600
      %v2723 = vadd.f32 %v2344, %v2602
      %v2724 = vadd.f32 %v2345, %v2604
      %v2725 = vadd.f32 %v2346, %v2607
      %v2726 = vadd.f32 %v2347, %v2609
      %v2727 = vadd.f32 %v2348, %v2611
      %v2728 = vadd.f32 %v2349, %v2614
      %v2729 = vadd.f32 %v2350, %v2616
      %v2730 = vadd.f32 %v2351, %v2618
      %v2731 = vadd.f32 %v2352, %v2621
      %v2732 = vadd.f32 %v2353, %v2623
      %v2733 = vadd.f32 %v2354, %v2625
      %v2734 = vperm.slane %v508, 0
      %v2735 = vmul.f32 %v434, %v2734
      %v2736 = vmul.f32 %v435, %v2734
      %v2737 = vmul.f32 %v436, %v2734
      %v2738 = vmul.f32 %v437, %v2734
      %v2739 = vmul.f32 %v438, %v2734
      %v2740 = vmul.f32 %v439, %v2734
      %v2741 = vmul.f32 %v440, %v2734
      %v2742 = vmul.f32 %v441, %v2734
      %v2743 = vmul.f32 %v442, %v2734
      %v2744 = vmul.f32 %v443, %v2734
      %v2745 = vmul.f32 %v444, %v2734
      %v2746 = vmul.f32 %v445, %v2734
      %v2747 = vmul.f32 %v446, %v2734
      %v2748 = vmul.f32 %v447, %v2734
      %v2749 = vmul.f32 %v448, %v2734
      %v2750 = vmul.f32 %v449, %v2734
      %v2751 = vmul.f32 %v450, %v2734
      %v2752 = vmul.f32 %v451, %v2734
      %v2753 = vmul.f32 %v452, %v2734
      %v2754 = vmul.f32 %v453, %v2734
      %v2755 = vmul.f32 %v454, %v2734
      %v2756 = vmul.f32 %v455, %v2734
      %v2757 = vmul.f32 %v456, %v2734
      %v2758 = vmul.f32 %v457, %v2734
      %v2759 = vmul.f32 %v458, %v2734
      %v2760 = vmul.f32 %v459, %v2734
      %v2761 = vmul.f32 %v460, %v2734
      %v2762 = vmul.f32 %v461, %v2734
      %v2763 = vmul.f32 %v462, %v2734
      %v2764 = vmul.f32 %v463, %v2734
      %v2765 = vmul.f32 %v464, %v2734
      %v2766 = vmul.f32 %v465, %v2734
      %v2767 = vmul.f32 %v466, %v2734
      %v2768 = vmul.f32 %v467, %v2734
      %v2769 = vmul.f32 %v468, %v2734
      %v2770 = vmul.f32 %v469, %v2734
      %v2771 = vmul.f32 %v470, %v2734
      %v2772 = vmul.f32 %v471, %v2734
      %v2773 = vmul.f32 %v472, %v2734
      %v2774 = vmul.f32 %v473, %v2734
      %v2775 = vmul.f32 %v474, %v2734
      %v2776 = vmul.f32 %v475, %v2734
      %v2777 = vmul.f32 %v476, %v2734
      %v2778 = vmul.f32 %v477, %v2734
      %v2779 = vmul.f32 %v478, %v2734
      %v2780 = vmul.f32 %v479, %v2734
      %v2781 = vmul.f32 %v480, %v2734
      %v2782 = vmul.f32 %v481, %v2734
      %v2783 = vmul.f32 %v482, %v2734
      %v2784 = vmul.f32 %v483, %v2734
      %v2785 = vmul.f32 %v484, %v2734
      %v2786 = vmul.f32 %v485, %v2734
      %v2787 = vmul.f32 %v486, %v2734
      %v2788 = vmul.f32 %v487, %v2734
      %v2789 = vmul.f32 %v488, %v2734
      %v2790 = vmul.f32 %v489, %v2734
      %v2791 = vmul.f32 %v490, %v2734
      %v2792 = vmul.f32 %v491, %v2734
      %v2793 = vmul.f32 %v492, %v2734
      %v2794 = vmul.f32 %v493, %v2734
      %v2795 = vmul.f32 %v494, %v2734
      %v2796 = vmul.f32 %v495, %v2734
      %v2797 = vmul.f32 %v496, %v2734
      %v2798 = vmul.f32 %v497, %v2734
      %v2799 = vmul.f32 %v498, %v2734
      %v2800 = vmul.f32 %v499, %v2734
      %v2801 = vmul.f32 %v500, %v2734
      %v2802 = vmul.f32 %v501, %v2734
      %v2803 = vmul.f32 %v502, %v2734
      %v2804 = vmul.f32 %v503, %v2734
      %v2805 = vmul.f32 %v504, %v2734
      %v2806 = vmul.f32 %v505, %v2734
      %v2879 = vrot.slane %v2735, 2
      %v2880 = vrot.slane %v2736, 2
      %v2881 = vsel %vm1144, %v2879, %v2880
      %v2882 = vrot.slane %v2737, 2
      %v2883 = vsel %vm1144, %v2880, %v2882
      %v2884 = vrot.slane %v2738, 2
      %v2885 = vsel %vm1144, %v2882, %v2884
      %v2886 = vrot.slane %v2739, 2
      %v2887 = vrot.slane %v2740, 2
      %v2888 = vsel %vm1144, %v2886, %v2887
      %v2889 = vrot.slane %v2741, 2
      %v2890 = vsel %vm1144, %v2887, %v2889
      %v2891 = vrot.slane %v2742, 2
      %v2892 = vsel %vm1144, %v2889, %v2891
      %v2893 = vrot.slane %v2743, 2
      %v2894 = vrot.slane %v2744, 2
      %v2895 = vsel %vm1144, %v2893, %v2894
      %v2896 = vrot.slane %v2745, 2
      %v2897 = vsel %vm1144, %v2894, %v2896
      %v2898 = vrot.slane %v2746, 2
      %v2899 = vsel %vm1144, %v2896, %v2898
      %v2900 = vrot.slane %v2747, 2
      %v2901 = vrot.slane %v2748, 2
      %v2902 = vsel %vm1144, %v2900, %v2901
      %v2903 = vrot.slane %v2749, 2
      %v2904 = vsel %vm1144, %v2901, %v2903
      %v2905 = vrot.slane %v2750, 2
      %v2906 = vsel %vm1144, %v2903, %v2905
      %v2907 = vrot.slane %v2751, 2
      %v2908 = vrot.slane %v2752, 2
      %v2909 = vsel %vm1144, %v2907, %v2908
      %v2910 = vrot.slane %v2753, 2
      %v2911 = vsel %vm1144, %v2908, %v2910
      %v2912 = vrot.slane %v2754, 2
      %v2913 = vsel %vm1144, %v2910, %v2912
      %v2914 = vrot.slane %v2755, 2
      %v2915 = vrot.slane %v2756, 2
      %v2916 = vsel %vm1144, %v2914, %v2915
      %v2917 = vrot.slane %v2757, 2
      %v2918 = vsel %vm1144, %v2915, %v2917
      %v2919 = vrot.slane %v2758, 2
      %v2920 = vsel %vm1144, %v2917, %v2919
      %v2921 = vrot.slane %v2759, 2
      %v2922 = vrot.slane %v2760, 2
      %v2923 = vsel %vm1144, %v2921, %v2922
      %v2924 = vrot.slane %v2761, 2
      %v2925 = vsel %vm1144, %v2922, %v2924
      %v2926 = vrot.slane %v2762, 2
      %v2927 = vsel %vm1144, %v2924, %v2926
      %v2928 = vrot.slane %v2763, 2
      %v2929 = vrot.slane %v2764, 2
      %v2930 = vsel %vm1144, %v2928, %v2929
      %v2931 = vrot.slane %v2765, 2
      %v2932 = vsel %vm1144, %v2929, %v2931
      %v2933 = vrot.slane %v2766, 2
      %v2934 = vsel %vm1144, %v2931, %v2933
      %v2935 = vrot.slane %v2767, 2
      %v2936 = vrot.slane %v2768, 2
      %v2937 = vsel %vm1144, %v2935, %v2936
      %v2938 = vrot.slane %v2769, 2
      %v2939 = vsel %vm1144, %v2936, %v2938
      %v2940 = vrot.slane %v2770, 2
      %v2941 = vsel %vm1144, %v2938, %v2940
      %v2942 = vrot.slane %v2771, 2
      %v2943 = vrot.slane %v2772, 2
      %v2944 = vsel %vm1144, %v2942, %v2943
      %v2945 = vrot.slane %v2773, 2
      %v2946 = vsel %vm1144, %v2943, %v2945
      %v2947 = vrot.slane %v2774, 2
      %v2948 = vsel %vm1144, %v2945, %v2947
      %v2949 = vrot.slane %v2775, 2
      %v2950 = vrot.slane %v2776, 2
      %v2951 = vsel %vm1144, %v2949, %v2950
      %v2952 = vrot.slane %v2777, 2
      %v2953 = vsel %vm1144, %v2950, %v2952
      %v2954 = vrot.slane %v2778, 2
      %v2955 = vsel %vm1144, %v2952, %v2954
      %v2956 = vrot.slane %v2779, 2
      %v2957 = vrot.slane %v2780, 2
      %v2958 = vsel %vm1144, %v2956, %v2957
      %v2959 = vrot.slane %v2781, 2
      %v2960 = vsel %vm1144, %v2957, %v2959
      %v2961 = vrot.slane %v2782, 2
      %v2962 = vsel %vm1144, %v2959, %v2961
      %v2963 = vrot.slane %v2783, 2
      %v2964 = vrot.slane %v2784, 2
      %v2965 = vsel %vm1144, %v2963, %v2964
      %v2966 = vrot.slane %v2785, 2
      %v2967 = vsel %vm1144, %v2964, %v2966
      %v2968 = vrot.slane %v2786, 2
      %v2969 = vsel %vm1144, %v2966, %v2968
      %v2970 = vrot.slane %v2787, 2
      %v2971 = vrot.slane %v2788, 2
      %v2972 = vsel %vm1144, %v2970, %v2971
      %v2973 = vrot.slane %v2789, 2
      %v2974 = vsel %vm1144, %v2971, %v2973
      %v2975 = vrot.slane %v2790, 2
      %v2976 = vsel %vm1144, %v2973, %v2975
      %v2977 = vrot.slane %v2791, 2
      %v2978 = vrot.slane %v2792, 2
      %v2979 = vsel %vm1144, %v2977, %v2978
      %v2980 = vrot.slane %v2793, 2
      %v2981 = vsel %vm1144, %v2978, %v2980
      %v2982 = vrot.slane %v2794, 2
      %v2983 = vsel %vm1144, %v2980, %v2982
      %v2984 = vrot.slane %v2795, 2
      %v2985 = vrot.slane %v2796, 2
      %v2986 = vsel %vm1144, %v2984, %v2985
      %v2987 = vrot.slane %v2797, 2
      %v2988 = vsel %vm1144, %v2985, %v2987
      %v2989 = vrot.slane %v2798, 2
      %v2990 = vsel %vm1144, %v2987, %v2989
      %v2991 = vrot.slane %v2799, 2
      %v2992 = vrot.slane %v2800, 2
      %v2993 = vsel %vm1144, %v2991, %v2992
      %v2994 = vrot.slane %v2801, 2
      %v2995 = vsel %vm1144, %v2992, %v2994
      %v2996 = vrot.slane %v2802, 2
      %v2997 = vsel %vm1144, %v2994, %v2996
      %v2998 = vrot.slane %v2803, 2
      %v2999 = vrot.slane %v2804, 2
      %v3000 = vsel %vm1144, %v2998, %v2999
      %v3001 = vrot.slane %v2805, 2
      %v3002 = vsel %vm1144, %v2999, %v3001
      %v3003 = vrot.slane %v2806, 2
      %v3004 = vsel %vm1144, %v3001, %v3003
      %v3059 = vadd.f32 %v2680, %v2881
      %v3060 = vadd.f32 %v2681, %v2883
      %v3061 = vadd.f32 %v2682, %v2885
      %v3062 = vadd.f32 %v2683, %v2888
      %v3063 = vadd.f32 %v2684, %v2890
      %v3064 = vadd.f32 %v2685, %v2892
      %v3065 = vadd.f32 %v2686, %v2895
      %v3066 = vadd.f32 %v2687, %v2897
      %v3067 = vadd.f32 %v2688, %v2899
      %v3068 = vadd.f32 %v2689, %v2902
      %v3069 = vadd.f32 %v2690, %v2904
      %v3070 = vadd.f32 %v2691, %v2906
      %v3071 = vadd.f32 %v2692, %v2909
      %v3072 = vadd.f32 %v2693, %v2911
      %v3073 = vadd.f32 %v2694, %v2913
      %v3074 = vadd.f32 %v2695, %v2916
      %v3075 = vadd.f32 %v2696, %v2918
      %v3076 = vadd.f32 %v2697, %v2920
      %v3077 = vadd.f32 %v2698, %v2923
      %v3078 = vadd.f32 %v2699, %v2925
      %v3079 = vadd.f32 %v2700, %v2927
      %v3080 = vadd.f32 %v2701, %v2930
      %v3081 = vadd.f32 %v2702, %v2932
      %v3082 = vadd.f32 %v2703, %v2934
      %v3083 = vadd.f32 %v2704, %v2937
      %v3084 = vadd.f32 %v2705, %v2939
      %v3085 = vadd.f32 %v2706, %v2941
      %v3086 = vadd.f32 %v2707, %v2944
      %v3087 = vadd.f32 %v2708, %v2946
      %v3088 = vadd.f32 %v2709, %v2948
      %v3089 = vadd.f32 %v2710, %v2951
      %v3090 = vadd.f32 %v2711, %v2953
      %v3091 = vadd.f32 %v2712, %v2955
      %v3092 = vadd.f32 %v2713, %v2958
      %v3093 = vadd.f32 %v2714, %v2960
      %v3094 = vadd.f32 %v2715, %v2962
      %v3095 = vadd.f32 %v2716, %v2965
      %v3096 = vadd.f32 %v2717, %v2967
      %v3097 = vadd.f32 %v2718, %v2969
      %v3098 = vadd.f32 %v2719, %v2972
      %v3099 = vadd.f32 %v2720, %v2974
      %v3100 = vadd.f32 %v2721, %v2976
      %v3101 = vadd.f32 %v2722, %v2979
      %v3102 = vadd.f32 %v2723, %v2981
      %v3103 = vadd.f32 %v2724, %v2983
      %v3104 = vadd.f32 %v2725, %v2986
      %v3105 = vadd.f32 %v2726, %v2988
      %v3106 = vadd.f32 %v2727, %v2990
      %v3107 = vadd.f32 %v2728, %v2993
      %v3108 = vadd.f32 %v2729, %v2995
      %v3109 = vadd.f32 %v2730, %v2997
      %v3110 = vadd.f32 %v2731, %v3000
      %v3111 = vadd.f32 %v2732, %v3002
      %v3112 = vadd.f32 %v2733, %v3004
      %v3113 = vperm.slane %v509, 0
      %v3114 = vadd.f32 %v3059, %v3113
      %v3115 = vadd.f32 %v3060, %v3113
      %v3116 = vadd.f32 %v3061, %v3113
      %v3117 = vadd.f32 %v3062, %v3113
      %v3118 = vadd.f32 %v3063, %v3113
      %v3119 = vadd.f32 %v3064, %v3113
      %v3120 = vadd.f32 %v3065, %v3113
      %v3121 = vadd.f32 %v3066, %v3113
      %v3122 = vadd.f32 %v3067, %v3113
      %v3123 = vadd.f32 %v3068, %v3113
      %v3124 = vadd.f32 %v3069, %v3113
      %v3125 = vadd.f32 %v3070, %v3113
      %v3126 = vadd.f32 %v3071, %v3113
      %v3127 = vadd.f32 %v3072, %v3113
      %v3128 = vadd.f32 %v3073, %v3113
      %v3129 = vadd.f32 %v3074, %v3113
      %v3130 = vadd.f32 %v3075, %v3113
      %v3131 = vadd.f32 %v3076, %v3113
      %v3132 = vadd.f32 %v3077, %v3113
      %v3133 = vadd.f32 %v3078, %v3113
      %v3134 = vadd.f32 %v3079, %v3113
      %v3135 = vadd.f32 %v3080, %v3113
      %v3136 = vadd.f32 %v3081, %v3113
      %v3137 = vadd.f32 %v3082, %v3113
      %v3138 = vadd.f32 %v3083, %v3113
      %v3139 = vadd.f32 %v3084, %v3113
      %v3140 = vadd.f32 %v3085, %v3113
      %v3141 = vadd.f32 %v3086, %v3113
      %v3142 = vadd.f32 %v3087, %v3113
      %v3143 = vadd.f32 %v3088, %v3113
      %v3144 = vadd.f32 %v3089, %v3113
      %v3145 = vadd.f32 %v3090, %v3113
      %v3146 = vadd.f32 %v3091, %v3113
      %v3147 = vadd.f32 %v3092, %v3113
      %v3148 = vadd.f32 %v3093, %v3113
      %v3149 = vadd.f32 %v3094, %v3113
      %v3150 = vadd.f32 %v3095, %v3113
      %v3151 = vadd.f32 %v3096, %v3113
      %v3152 = vadd.f32 %v3097, %v3113
      %v3153 = vadd.f32 %v3098, %v3113
      %v3154 = vadd.f32 %v3099, %v3113
      %v3155 = vadd.f32 %v3100, %v3113
      %v3156 = vadd.f32 %v3101, %v3113
      %v3157 = vadd.f32 %v3102, %v3113
      %v3158 = vadd.f32 %v3103, %v3113
      %v3159 = vadd.f32 %v3104, %v3113
      %v3160 = vadd.f32 %v3105, %v3113
      %v3161 = vadd.f32 %v3106, %v3113
      %v3162 = vadd.f32 %v3107, %v3113
      %v3163 = vadd.f32 %v3108, %v3113
      %v3164 = vadd.f32 %v3109, %v3113
      %v3165 = vadd.f32 %v3110, %v3113
      %v3166 = vadd.f32 %v3111, %v3113
      %v3167 = vadd.f32 %v3112, %v3113
      %v3168 = vpack.c.bf16 %v3115, %v3114
      %v3169 = vpack.c.bf16 %v3117, %v3116
      %v3170 = vpack.c.bf16 %v3119, %v3118
      %v3171 = vpack.c.bf16 %v3121, %v3120
      %v3172 = vpack.c.bf16 %v3123, %v3122
      %v3173 = vpack.c.bf16 %v3125, %v3124
      %v3174 = vpack.c.bf16 %v3127, %v3126
      %v3175 = vpack.c.bf16 %v3129, %v3128
      %v3176 = vpack.c.bf16 %v3131, %v3130
      %v3177 = vpack.c.bf16 %v3133, %v3132
      %v3178 = vpack.c.bf16 %v3135, %v3134
      %v3179 = vpack.c.bf16 %v3137, %v3136
      %v3180 = vpack.c.bf16 %v3139, %v3138
      %v3181 = vpack.c.bf16 %v3141, %v3140
      %v3182 = vpack.c.bf16 %v3143, %v3142
      %v3183 = vpack.c.bf16 %v3145, %v3144
      %v3184 = vpack.c.bf16 %v3147, %v3146
      %v3185 = vpack.c.bf16 %v3149, %v3148
      %v3186 = vpack.c.bf16 %v3151, %v3150
      %v3187 = vpack.c.bf16 %v3153, %v3152
      %v3188 = vpack.c.bf16 %v3155, %v3154
      %v3189 = vpack.c.bf16 %v3157, %v3156
      %v3190 = vpack.c.bf16 %v3159, %v3158
      %v3191 = vpack.c.bf16 %v3161, %v3160
      %v3192 = vpack.c.bf16 %v3163, %v3162
      %v3193 = vpack.c.bf16 %v3165, %v3164
      %v3194 = vpack.c.bf16 %v3167, %v3166
      %v3195 = vld [vmem:[%s3] sm:$0xf]
      %v3196 = vld [vmem:[%s3 + $0x4] sm:$0xf]
      %v3197 = vld [vmem:[%s3 + $0x8] sm:$0xf]
      %v3198 = vld [vmem:[%s3 + $0xc] sm:$0xf]
      %v3199 = vld [vmem:[%s3 + $0x10] sm:$0xf]
      %v3200 = vld [vmem:[%s3 + $0x14] sm:$0xf]
      %v3201 = vld [vmem:[%s3 + $0x18] sm:$0xf]
      %v3202 = vld [vmem:[%s3 + $0x1c] sm:$0xf]
      %v3203 = vld [vmem:[%s3 + $0x20] sm:$0xf]
      %v3204 = vld [vmem:[%s3 + $0x24] sm:$0xf]
      %v3205 = vld [vmem:[%s3 + $0x28] sm:$0xf]
      %v3206 = vld [vmem:[%s3 + $0x2c] sm:$0xf]
      %v3207 = vld [vmem:[%s3 + $0x30] sm:$0xf]
      %v3208 = vld [vmem:[%s3 + $0x34] sm:$0xf]
      %v3209 = vld [vmem:[%s3 + $0x38] sm:$0xf]
      %v3210 = vld [vmem:[%s3 + $0x3c] sm:$0xf]
      %v3211 = vperm.slane %v506, 1
      %v3212 = vmul.f32 %v426, %v3211
      %v3213 = vmul.f32 %v427, %v3211
      %v3214 = vmul.f32 %v428, %v3211
      %v3215 = vmul.f32 %v430, %v3211
      %v3216 = vmul.f32 %v431, %v3211
      %v3217 = vmul.f32 %v432, %v3211
      %v3218 = vmul.f32 %v434, %v3211
      %v3219 = vmul.f32 %v435, %v3211
      %v3220 = vmul.f32 %v436, %v3211
      %v3221 = vmul.f32 %v438, %v3211
      %v3222 = vmul.f32 %v439, %v3211
      %v3223 = vmul.f32 %v440, %v3211
      %v3224 = vmul.f32 %v442, %v3211
      %v3225 = vmul.f32 %v443, %v3211
      %v3226 = vmul.f32 %v444, %v3211
      %v3227 = vmul.f32 %v446, %v3211
      %v3228 = vmul.f32 %v447, %v3211
      %v3229 = vmul.f32 %v448, %v3211
      %v3230 = vmul.f32 %v450, %v3211
      %v3231 = vmul.f32 %v451, %v3211
      %v3232 = vmul.f32 %v452, %v3211
      %v3233 = vmul.f32 %v454, %v3211
      %v3234 = vmul.f32 %v455, %v3211
      %v3235 = vmul.f32 %v456, %v3211
      %v3236 = vmul.f32 %v458, %v3211
      %v3237 = vmul.f32 %v459, %v3211
      %v3238 = vmul.f32 %v460, %v3211
      %v3239 = vmul.f32 %v462, %v3211
      %v3240 = vmul.f32 %v463, %v3211
      %v3241 = vmul.f32 %v464, %v3211
      %v3242 = vmul.f32 %v466, %v3211
      %v3243 = vmul.f32 %v467, %v3211
      %v3244 = vmul.f32 %v468, %v3211
      %v3245 = vmul.f32 %v470, %v3211
      %v3246 = vmul.f32 %v471, %v3211
      %v3247 = vmul.f32 %v472, %v3211
      %v3248 = vmul.f32 %v474, %v3211
      %v3249 = vmul.f32 %v475, %v3211
      %v3250 = vmul.f32 %v476, %v3211
      %v3251 = vmul.f32 %v478, %v3211
      %v3252 = vmul.f32 %v479, %v3211
      %v3253 = vmul.f32 %v480, %v3211
      %v3254 = vmul.f32 %v482, %v3211
      %v3255 = vmul.f32 %v483, %v3211
      %v3256 = vmul.f32 %v484, %v3211
      %v3257 = vmul.f32 %v486, %v3211
      %v3258 = vmul.f32 %v487, %v3211
      %v3259 = vmul.f32 %v488, %v3211
      %v3260 = vmul.f32 %v490, %v3211
      %v3261 = vmul.f32 %v491, %v3211
      %v3262 = vmul.f32 %v492, %v3211
      %v3263 = vmul.f32 %v494, %v3211
      %v3264 = vmul.f32 %v495, %v3211
      %v3265 = vmul.f32 %v496, %v3211
      %v3266 = vadd.f32 %v3212, 0.0
      %v3267 = vadd.f32 %v3213, 0.0
      %v3268 = vadd.f32 %v3214, 0.0
      %v3269 = vadd.f32 %v3215, 0.0
      %v3270 = vadd.f32 %v3216, 0.0
      %v3271 = vadd.f32 %v3217, 0.0
      %v3272 = vadd.f32 %v3218, 0.0
      %v3273 = vadd.f32 %v3219, 0.0
      %v3274 = vadd.f32 %v3220, 0.0
      %v3275 = vadd.f32 %v3221, 0.0
      %v3276 = vadd.f32 %v3222, 0.0
      %v3277 = vadd.f32 %v3223, 0.0
      %v3278 = vadd.f32 %v3224, 0.0
      %v3279 = vadd.f32 %v3225, 0.0
      %v3280 = vadd.f32 %v3226, 0.0
      %v3281 = vadd.f32 %v3227, 0.0
      %v3282 = vadd.f32 %v3228, 0.0
      %v3283 = vadd.f32 %v3229, 0.0
      %v3284 = vadd.f32 %v3230, 0.0
      %v3285 = vadd.f32 %v3231, 0.0
      %v3286 = vadd.f32 %v3232, 0.0
      %v3287 = vadd.f32 %v3233, 0.0
      %v3288 = vadd.f32 %v3234, 0.0
      %v3289 = vadd.f32 %v3235, 0.0
      %v3290 = vadd.f32 %v3236, 0.0
      %v3291 = vadd.f32 %v3237, 0.0
      %v3292 = vadd.f32 %v3238, 0.0
      %v3293 = vadd.f32 %v3239, 0.0
      %v3294 = vadd.f32 %v3240, 0.0
      %v3295 = vadd.f32 %v3241, 0.0
      %v3296 = vadd.f32 %v3242, 0.0
      %v3297 = vadd.f32 %v3243, 0.0
      %v3298 = vadd.f32 %v3244, 0.0
      %v3299 = vadd.f32 %v3245, 0.0
      %v3300 = vadd.f32 %v3246, 0.0
      %v3301 = vadd.f32 %v3247, 0.0
      %v3302 = vadd.f32 %v3248, 0.0
      %v3303 = vadd.f32 %v3249, 0.0
      %v3304 = vadd.f32 %v3250, 0.0
      %v3305 = vadd.f32 %v3251, 0.0
      %v3306 = vadd.f32 %v3252, 0.0
      %v3307 = vadd.f32 %v3253, 0.0
      %v3308 = vadd.f32 %v3254, 0.0
      %v3309 = vadd.f32 %v3255, 0.0
      %v3310 = vadd.f32 %v3256, 0.0
      %v3311 = vadd.f32 %v3257, 0.0
      %v3312 = vadd.f32 %v3258, 0.0
      %v3313 = vadd.f32 %v3259, 0.0
      %v3314 = vadd.f32 %v3260, 0.0
      %v3315 = vadd.f32 %v3261, 0.0
      %v3316 = vadd.f32 %v3262, 0.0
      %v3317 = vadd.f32 %v3263, 0.0
      %v3318 = vadd.f32 %v3264, 0.0
      %v3319 = vadd.f32 %v3265, 0.0
      %v3320 = vperm.slane %v506, 3
      %v3321 = vmul.f32 %v426, %v3320
      %v3322 = vmul.f32 %v427, %v3320
      %v3323 = vmul.f32 %v428, %v3320
      %v3324 = vmul.f32 %v429, %v3320
      %v3325 = vmul.f32 %v430, %v3320
      %v3326 = vmul.f32 %v431, %v3320
      %v3327 = vmul.f32 %v432, %v3320
      %v3328 = vmul.f32 %v433, %v3320
      %v3329 = vmul.f32 %v434, %v3320
      %v3330 = vmul.f32 %v435, %v3320
      %v3331 = vmul.f32 %v436, %v3320
      %v3332 = vmul.f32 %v437, %v3320
      %v3333 = vmul.f32 %v438, %v3320
      %v3334 = vmul.f32 %v439, %v3320
      %v3335 = vmul.f32 %v440, %v3320
      %v3336 = vmul.f32 %v441, %v3320
      %v3337 = vmul.f32 %v442, %v3320
      %v3338 = vmul.f32 %v443, %v3320
      %v3339 = vmul.f32 %v444, %v3320
      %v3340 = vmul.f32 %v445, %v3320
      %v3341 = vmul.f32 %v446, %v3320
      %v3342 = vmul.f32 %v447, %v3320
      %v3343 = vmul.f32 %v448, %v3320
      %v3344 = vmul.f32 %v449, %v3320
      %v3345 = vmul.f32 %v450, %v3320
      %v3346 = vmul.f32 %v451, %v3320
      %v3347 = vmul.f32 %v452, %v3320
      %v3348 = vmul.f32 %v453, %v3320
      %v3349 = vmul.f32 %v454, %v3320
      %v3350 = vmul.f32 %v455, %v3320
      %v3351 = vmul.f32 %v456, %v3320
      %v3352 = vmul.f32 %v457, %v3320
      %v3353 = vmul.f32 %v458, %v3320
      %v3354 = vmul.f32 %v459, %v3320
      %v3355 = vmul.f32 %v460, %v3320
      %v3356 = vmul.f32 %v461, %v3320
      %v3357 = vmul.f32 %v462, %v3320
      %v3358 = vmul.f32 %v463, %v3320
      %v3359 = vmul.f32 %v464, %v3320
      %v3360 = vmul.f32 %v465, %v3320
      %v3361 = vmul.f32 %v466, %v3320
      %v3362 = vmul.f32 %v467, %v3320
      %v3363 = vmul.f32 %v468, %v3320
      %v3364 = vmul.f32 %v469, %v3320
      %v3365 = vmul.f32 %v470, %v3320
      %v3366 = vmul.f32 %v471, %v3320
      %v3367 = vmul.f32 %v472, %v3320
      %v3368 = vmul.f32 %v473, %v3320
      %v3369 = vmul.f32 %v474, %v3320
      %v3370 = vmul.f32 %v475, %v3320
      %v3371 = vmul.f32 %v476, %v3320
      %v3372 = vmul.f32 %v477, %v3320
      %v3373 = vmul.f32 %v478, %v3320
      %v3374 = vmul.f32 %v479, %v3320
      %v3375 = vmul.f32 %v480, %v3320
      %v3376 = vmul.f32 %v481, %v3320
      %v3377 = vmul.f32 %v482, %v3320
      %v3378 = vmul.f32 %v483, %v3320
      %v3379 = vmul.f32 %v484, %v3320
      %v3380 = vmul.f32 %v485, %v3320
      %v3381 = vmul.f32 %v486, %v3320
      %v3382 = vmul.f32 %v487, %v3320
      %v3383 = vmul.f32 %v488, %v3320
      %v3384 = vmul.f32 %v489, %v3320
      %v3385 = vmul.f32 %v490, %v3320
      %v3386 = vmul.f32 %v491, %v3320
      %v3387 = vmul.f32 %v492, %v3320
      %v3388 = vmul.f32 %v493, %v3320
      %v3389 = vmul.f32 %v494, %v3320
      %v3390 = vmul.f32 %v495, %v3320
      %v3391 = vmul.f32 %v496, %v3320
      %v3392 = vmul.f32 %v497, %v3320
      %v3465 = vrot.slane %v3321, 1
      %v3466 = vrot.slane %v3322, 1
      %v3467 = vsel %vm764, %v3465, %v3466
      %v3468 = vrot.slane %v3323, 1
      %v3469 = vsel %vm764, %v3466, %v3468
      %v3470 = vrot.slane %v3324, 1
      %v3471 = vsel %vm764, %v3468, %v3470
      %v3472 = vrot.slane %v3325, 1
      %v3473 = vrot.slane %v3326, 1
      %v3474 = vsel %vm764, %v3472, %v3473
      %v3475 = vrot.slane %v3327, 1
      %v3476 = vsel %vm764, %v3473, %v3475
      %v3477 = vrot.slane %v3328, 1
      %v3478 = vsel %vm764, %v3475, %v3477
      %v3479 = vrot.slane %v3329, 1
      %v3480 = vrot.slane %v3330, 1
      %v3481 = vsel %vm764, %v3479, %v3480
      %v3482 = vrot.slane %v3331, 1
      %v3483 = vsel %vm764, %v3480, %v3482
      %v3484 = vrot.slane %v3332, 1
      %v3485 = vsel %vm764, %v3482, %v3484
      %v3486 = vrot.slane %v3333, 1
      %v3487 = vrot.slane %v3334, 1
      %v3488 = vsel %vm764, %v3486, %v3487
      %v3489 = vrot.slane %v3335, 1
      %v3490 = vsel %vm764, %v3487, %v3489
      %v3491 = vrot.slane %v3336, 1
      %v3492 = vsel %vm764, %v3489, %v3491
      %v3493 = vrot.slane %v3337, 1
      %v3494 = vrot.slane %v3338, 1
      %v3495 = vsel %vm764, %v3493, %v3494
      %v3496 = vrot.slane %v3339, 1
      %v3497 = vsel %vm764, %v3494, %v3496
      %v3498 = vrot.slane %v3340, 1
      %v3499 = vsel %vm764, %v3496, %v3498
      %v3500 = vrot.slane %v3341, 1
      %v3501 = vrot.slane %v3342, 1
      %v3502 = vsel %vm764, %v3500, %v3501
      %v3503 = vrot.slane %v3343, 1
      %v3504 = vsel %vm764, %v3501, %v3503
      %v3505 = vrot.slane %v3344, 1
      %v3506 = vsel %vm764, %v3503, %v3505
      %v3507 = vrot.slane %v3345, 1
      %v3508 = vrot.slane %v3346, 1
      %v3509 = vsel %vm764, %v3507, %v3508
      %v3510 = vrot.slane %v3347, 1
      %v3511 = vsel %vm764, %v3508, %v3510
      %v3512 = vrot.slane %v3348, 1
      %v3513 = vsel %vm764, %v3510, %v3512
      %v3514 = vrot.slane %v3349, 1
      %v3515 = vrot.slane %v3350, 1
      %v3516 = vsel %vm764, %v3514, %v3515
      %v3517 = vrot.slane %v3351, 1
      %v3518 = vsel %vm764, %v3515, %v3517
      %v3519 = vrot.slane %v3352, 1
      %v3520 = vsel %vm764, %v3517, %v3519
      %v3521 = vrot.slane %v3353, 1
      %v3522 = vrot.slane %v3354, 1
      %v3523 = vsel %vm764, %v3521, %v3522
      %v3524 = vrot.slane %v3355, 1
      %v3525 = vsel %vm764, %v3522, %v3524
      %v3526 = vrot.slane %v3356, 1
      %v3527 = vsel %vm764, %v3524, %v3526
      %v3528 = vrot.slane %v3357, 1
      %v3529 = vrot.slane %v3358, 1
      %v3530 = vsel %vm764, %v3528, %v3529
      %v3531 = vrot.slane %v3359, 1
      %v3532 = vsel %vm764, %v3529, %v3531
      %v3533 = vrot.slane %v3360, 1
      %v3534 = vsel %vm764, %v3531, %v3533
      %v3535 = vrot.slane %v3361, 1
      %v3536 = vrot.slane %v3362, 1
      %v3537 = vsel %vm764, %v3535, %v3536
      %v3538 = vrot.slane %v3363, 1
      %v3539 = vsel %vm764, %v3536, %v3538
      %v3540 = vrot.slane %v3364, 1
      %v3541 = vsel %vm764, %v3538, %v3540
      %v3542 = vrot.slane %v3365, 1
      %v3543 = vrot.slane %v3366, 1
      %v3544 = vsel %vm764, %v3542, %v3543
      %v3545 = vrot.slane %v3367, 1
      %v3546 = vsel %vm764, %v3543, %v3545
      %v3547 = vrot.slane %v3368, 1
      %v3548 = vsel %vm764, %v3545, %v3547
      %v3549 = vrot.slane %v3369, 1
      %v3550 = vrot.slane %v3370, 1
      %v3551 = vsel %vm764, %v3549, %v3550
      %v3552 = vrot.slane %v3371, 1
      %v3553 = vsel %vm764, %v3550, %v3552
      %v3554 = vrot.slane %v3372, 1
      %v3555 = vsel %vm764, %v3552, %v3554
      %v3556 = vrot.slane %v3373, 1
      %v3557 = vrot.slane %v3374, 1
      %v3558 = vsel %vm764, %v3556, %v3557
      %v3559 = vrot.slane %v3375, 1
      %v3560 = vsel %vm764, %v3557, %v3559
      %v3561 = vrot.slane %v3376, 1
      %v3562 = vsel %vm764, %v3559, %v3561
      %v3563 = vrot.slane %v3377, 1
      %v3564 = vrot.slane %v3378, 1
      %v3565 = vsel %vm764, %v3563, %v3564
      %v3566 = vrot.slane %v3379, 1
      %v3567 = vsel %vm764, %v3564, %v3566
      %v3568 = vrot.slane %v3380, 1
      %v3569 = vsel %vm764, %v3566, %v3568
      %v3570 = vrot.slane %v3381, 1
      %v3571 = vrot.slane %v3382, 1
      %v3572 = vsel %vm764, %v3570, %v3571
      %v3573 = vrot.slane %v3383, 1
      %v3574 = vsel %vm764, %v3571, %v3573
      %v3575 = vrot.slane %v3384, 1
      %v3576 = vsel %vm764, %v3573, %v3575
      %v3577 = vrot.slane %v3385, 1
      %v3578 = vrot.slane %v3386, 1
      %v3579 = vsel %vm764, %v3577, %v3578
      %v3580 = vrot.slane %v3387, 1
      %v3581 = vsel %vm764, %v3578, %v3580
      %v3582 = vrot.slane %v3388, 1
      %v3583 = vsel %vm764, %v3580, %v3582
      %v3584 = vrot.slane %v3389, 1
      %v3585 = vrot.slane %v3390, 1
      %v3586 = vsel %vm764, %v3584, %v3585
      %v3587 = vrot.slane %v3391, 1
      %v3588 = vsel %vm764, %v3585, %v3587
      %v3589 = vrot.slane %v3392, 1
      %v3590 = vsel %vm764, %v3587, %v3589
      %v3645 = vadd.f32 %v3266, %v3467
      %v3646 = vadd.f32 %v3267, %v3469
      %v3647 = vadd.f32 %v3268, %v3471
      %v3648 = vadd.f32 %v3269, %v3474
      %v3649 = vadd.f32 %v3270, %v3476
      %v3650 = vadd.f32 %v3271, %v3478
      %v3651 = vadd.f32 %v3272, %v3481
      %v3652 = vadd.f32 %v3273, %v3483
      %v3653 = vadd.f32 %v3274, %v3485
      %v3654 = vadd.f32 %v3275, %v3488
      %v3655 = vadd.f32 %v3276, %v3490
      %v3656 = vadd.f32 %v3277, %v3492
      %v3657 = vadd.f32 %v3278, %v3495
      %v3658 = vadd.f32 %v3279, %v3497
      %v3659 = vadd.f32 %v3280, %v3499
      %v3660 = vadd.f32 %v3281, %v3502
      %v3661 = vadd.f32 %v3282, %v3504
      %v3662 = vadd.f32 %v3283, %v3506
      %v3663 = vadd.f32 %v3284, %v3509
      %v3664 = vadd.f32 %v3285, %v3511
      %v3665 = vadd.f32 %v3286, %v3513
      %v3666 = vadd.f32 %v3287, %v3516
      %v3667 = vadd.f32 %v3288, %v3518
      %v3668 = vadd.f32 %v3289, %v3520
      %v3669 = vadd.f32 %v3290, %v3523
      %v3670 = vadd.f32 %v3291, %v3525
      %v3671 = vadd.f32 %v3292, %v3527
      %v3672 = vadd.f32 %v3293, %v3530
      %v3673 = vadd.f32 %v3294, %v3532
      %v3674 = vadd.f32 %v3295, %v3534
      %v3675 = vadd.f32 %v3296, %v3537
      %v3676 = vadd.f32 %v3297, %v3539
      %v3677 = vadd.f32 %v3298, %v3541
      %v3678 = vadd.f32 %v3299, %v3544
      %v3679 = vadd.f32 %v3300, %v3546
      %v3680 = vadd.f32 %v3301, %v3548
      %v3681 = vadd.f32 %v3302, %v3551
      %v3682 = vadd.f32 %v3303, %v3553
      %v3683 = vadd.f32 %v3304, %v3555
      %v3684 = vadd.f32 %v3305, %v3558
      %v3685 = vadd.f32 %v3306, %v3560
      %v3686 = vadd.f32 %v3307, %v3562
      %v3687 = vadd.f32 %v3308, %v3565
      %v3688 = vadd.f32 %v3309, %v3567
      %v3689 = vadd.f32 %v3310, %v3569
      %v3690 = vadd.f32 %v3311, %v3572
      %v3691 = vadd.f32 %v3312, %v3574
      %v3692 = vadd.f32 %v3313, %v3576
      %v3693 = vadd.f32 %v3314, %v3579
      %v3694 = vadd.f32 %v3315, %v3581
      %v3695 = vadd.f32 %v3316, %v3583
      %v3696 = vadd.f32 %v3317, %v3586
      %v3697 = vadd.f32 %v3318, %v3588
      %v3698 = vadd.f32 %v3319, %v3590
      %v3699 = vperm.slane %v506, 5
      %v3700 = vmul.f32 %v426, %v3699
      %v3701 = vmul.f32 %v427, %v3699
      %v3702 = vmul.f32 %v428, %v3699
      %v3703 = vmul.f32 %v429, %v3699
      %v3704 = vmul.f32 %v430, %v3699
      %v3705 = vmul.f32 %v431, %v3699
      %v3706 = vmul.f32 %v432, %v3699
      %v3707 = vmul.f32 %v433, %v3699
      %v3708 = vmul.f32 %v434, %v3699
      %v3709 = vmul.f32 %v435, %v3699
      %v3710 = vmul.f32 %v436, %v3699
      %v3711 = vmul.f32 %v437, %v3699
      %v3712 = vmul.f32 %v438, %v3699
      %v3713 = vmul.f32 %v439, %v3699
      %v3714 = vmul.f32 %v440, %v3699
      %v3715 = vmul.f32 %v441, %v3699
      %v3716 = vmul.f32 %v442, %v3699
      %v3717 = vmul.f32 %v443, %v3699
      %v3718 = vmul.f32 %v444, %v3699
      %v3719 = vmul.f32 %v445, %v3699
      %v3720 = vmul.f32 %v446, %v3699
      %v3721 = vmul.f32 %v447, %v3699
      %v3722 = vmul.f32 %v448, %v3699
      %v3723 = vmul.f32 %v449, %v3699
      %v3724 = vmul.f32 %v450, %v3699
      %v3725 = vmul.f32 %v451, %v3699
      %v3726 = vmul.f32 %v452, %v3699
      %v3727 = vmul.f32 %v453, %v3699
      %v3728 = vmul.f32 %v454, %v3699
      %v3729 = vmul.f32 %v455, %v3699
      %v3730 = vmul.f32 %v456, %v3699
      %v3731 = vmul.f32 %v457, %v3699
      %v3732 = vmul.f32 %v458, %v3699
      %v3733 = vmul.f32 %v459, %v3699
      %v3734 = vmul.f32 %v460, %v3699
      %v3735 = vmul.f32 %v461, %v3699
      %v3736 = vmul.f32 %v462, %v3699
      %v3737 = vmul.f32 %v463, %v3699
      %v3738 = vmul.f32 %v464, %v3699
      %v3739 = vmul.f32 %v465, %v3699
      %v3740 = vmul.f32 %v466, %v3699
      %v3741 = vmul.f32 %v467, %v3699
      %v3742 = vmul.f32 %v468, %v3699
      %v3743 = vmul.f32 %v469, %v3699
      %v3744 = vmul.f32 %v470, %v3699
      %v3745 = vmul.f32 %v471, %v3699
      %v3746 = vmul.f32 %v472, %v3699
      %v3747 = vmul.f32 %v473, %v3699
      %v3748 = vmul.f32 %v474, %v3699
      %v3749 = vmul.f32 %v475, %v3699
      %v3750 = vmul.f32 %v476, %v3699
      %v3751 = vmul.f32 %v477, %v3699
      %v3752 = vmul.f32 %v478, %v3699
      %v3753 = vmul.f32 %v479, %v3699
      %v3754 = vmul.f32 %v480, %v3699
      %v3755 = vmul.f32 %v481, %v3699
      %v3756 = vmul.f32 %v482, %v3699
      %v3757 = vmul.f32 %v483, %v3699
      %v3758 = vmul.f32 %v484, %v3699
      %v3759 = vmul.f32 %v485, %v3699
      %v3760 = vmul.f32 %v486, %v3699
      %v3761 = vmul.f32 %v487, %v3699
      %v3762 = vmul.f32 %v488, %v3699
      %v3763 = vmul.f32 %v489, %v3699
      %v3764 = vmul.f32 %v490, %v3699
      %v3765 = vmul.f32 %v491, %v3699
      %v3766 = vmul.f32 %v492, %v3699
      %v3767 = vmul.f32 %v493, %v3699
      %v3768 = vmul.f32 %v494, %v3699
      %v3769 = vmul.f32 %v495, %v3699
      %v3770 = vmul.f32 %v496, %v3699
      %v3771 = vmul.f32 %v497, %v3699
      %v3844 = vrot.slane %v3700, 2
      %v3845 = vrot.slane %v3701, 2
      %v3846 = vsel %vm1144, %v3844, %v3845
      %v3847 = vrot.slane %v3702, 2
      %v3848 = vsel %vm1144, %v3845, %v3847
      %v3849 = vrot.slane %v3703, 2
      %v3850 = vsel %vm1144, %v3847, %v3849
      %v3851 = vrot.slane %v3704, 2
      %v3852 = vrot.slane %v3705, 2
      %v3853 = vsel %vm1144, %v3851, %v3852
      %v3854 = vrot.slane %v3706, 2
      %v3855 = vsel %vm1144, %v3852, %v3854
      %v3856 = vrot.slane %v3707, 2
      %v3857 = vsel %vm1144, %v3854, %v3856
      %v3858 = vrot.slane %v3708, 2
      %v3859 = vrot.slane %v3709, 2
      %v3860 = vsel %vm1144, %v3858, %v3859
      %v3861 = vrot.slane %v3710, 2
      %v3862 = vsel %vm1144, %v3859, %v3861
      %v3863 = vrot.slane %v3711, 2
      %v3864 = vsel %vm1144, %v3861, %v3863
      %v3865 = vrot.slane %v3712, 2
      %v3866 = vrot.slane %v3713, 2
      %v3867 = vsel %vm1144, %v3865, %v3866
      %v3868 = vrot.slane %v3714, 2
      %v3869 = vsel %vm1144, %v3866, %v3868
      %v3870 = vrot.slane %v3715, 2
      %v3871 = vsel %vm1144, %v3868, %v3870
      %v3872 = vrot.slane %v3716, 2
      %v3873 = vrot.slane %v3717, 2
      %v3874 = vsel %vm1144, %v3872, %v3873
      %v3875 = vrot.slane %v3718, 2
      %v3876 = vsel %vm1144, %v3873, %v3875
      %v3877 = vrot.slane %v3719, 2
      %v3878 = vsel %vm1144, %v3875, %v3877
      %v3879 = vrot.slane %v3720, 2
      %v3880 = vrot.slane %v3721, 2
      %v3881 = vsel %vm1144, %v3879, %v3880
      %v3882 = vrot.slane %v3722, 2
      %v3883 = vsel %vm1144, %v3880, %v3882
      %v3884 = vrot.slane %v3723, 2
      %v3885 = vsel %vm1144, %v3882, %v3884
      %v3886 = vrot.slane %v3724, 2
      %v3887 = vrot.slane %v3725, 2
      %v3888 = vsel %vm1144, %v3886, %v3887
      %v3889 = vrot.slane %v3726, 2
      %v3890 = vsel %vm1144, %v3887, %v3889
      %v3891 = vrot.slane %v3727, 2
      %v3892 = vsel %vm1144, %v3889, %v3891
      %v3893 = vrot.slane %v3728, 2
      %v3894 = vrot.slane %v3729, 2
      %v3895 = vsel %vm1144, %v3893, %v3894
      %v3896 = vrot.slane %v3730, 2
      %v3897 = vsel %vm1144, %v3894, %v3896
      %v3898 = vrot.slane %v3731, 2
      %v3899 = vsel %vm1144, %v3896, %v3898
      %v3900 = vrot.slane %v3732, 2
      %v3901 = vrot.slane %v3733, 2
      %v3902 = vsel %vm1144, %v3900, %v3901
      %v3903 = vrot.slane %v3734, 2
      %v3904 = vsel %vm1144, %v3901, %v3903
      %v3905 = vrot.slane %v3735, 2
      %v3906 = vsel %vm1144, %v3903, %v3905
      %v3907 = vrot.slane %v3736, 2
      %v3908 = vrot.slane %v3737, 2
      %v3909 = vsel %vm1144, %v3907, %v3908
      %v3910 = vrot.slane %v3738, 2
      %v3911 = vsel %vm1144, %v3908, %v3910
      %v3912 = vrot.slane %v3739, 2
      %v3913 = vsel %vm1144, %v3910, %v3912
      %v3914 = vrot.slane %v3740, 2
      %v3915 = vrot.slane %v3741, 2
      %v3916 = vsel %vm1144, %v3914, %v3915
      %v3917 = vrot.slane %v3742, 2
      %v3918 = vsel %vm1144, %v3915, %v3917
      %v3919 = vrot.slane %v3743, 2
      %v3920 = vsel %vm1144, %v3917, %v3919
      %v3921 = vrot.slane %v3744, 2
      %v3922 = vrot.slane %v3745, 2
      %v3923 = vsel %vm1144, %v3921, %v3922
      %v3924 = vrot.slane %v3746, 2
      %v3925 = vsel %vm1144, %v3922, %v3924
      %v3926 = vrot.slane %v3747, 2
      %v3927 = vsel %vm1144, %v3924, %v3926
      %v3928 = vrot.slane %v3748, 2
      %v3929 = vrot.slane %v3749, 2
      %v3930 = vsel %vm1144, %v3928, %v3929
      %v3931 = vrot.slane %v3750, 2
      %v3932 = vsel %vm1144, %v3929, %v3931
      %v3933 = vrot.slane %v3751, 2
      %v3934 = vsel %vm1144, %v3931, %v3933
      %v3935 = vrot.slane %v3752, 2
      %v3936 = vrot.slane %v3753, 2
      %v3937 = vsel %vm1144, %v3935, %v3936
      %v3938 = vrot.slane %v3754, 2
      %v3939 = vsel %vm1144, %v3936, %v3938
      %v3940 = vrot.slane %v3755, 2
      %v3941 = vsel %vm1144, %v3938, %v3940
      %v3942 = vrot.slane %v3756, 2
      %v3943 = vrot.slane %v3757, 2
      %v3944 = vsel %vm1144, %v3942, %v3943
      %v3945 = vrot.slane %v3758, 2
      %v3946 = vsel %vm1144, %v3943, %v3945
      %v3947 = vrot.slane %v3759, 2
      %v3948 = vsel %vm1144, %v3945, %v3947
      %v3949 = vrot.slane %v3760, 2
      %v3950 = vrot.slane %v3761, 2
      %v3951 = vsel %vm1144, %v3949, %v3950
      %v3952 = vrot.slane %v3762, 2
      %v3953 = vsel %vm1144, %v3950, %v3952
      %v3954 = vrot.slane %v3763, 2
      %v3955 = vsel %vm1144, %v3952, %v3954
      %v3956 = vrot.slane %v3764, 2
      %v3957 = vrot.slane %v3765, 2
      %v3958 = vsel %vm1144, %v3956, %v3957
      %v3959 = vrot.slane %v3766, 2
      %v3960 = vsel %vm1144, %v3957, %v3959
      %v3961 = vrot.slane %v3767, 2
      %v3962 = vsel %vm1144, %v3959, %v3961
      %v3963 = vrot.slane %v3768, 2
      %v3964 = vrot.slane %v3769, 2
      %v3965 = vsel %vm1144, %v3963, %v3964
      %v3966 = vrot.slane %v3770, 2
      %v3967 = vsel %vm1144, %v3964, %v3966
      %v3968 = vrot.slane %v3771, 2
      %v3969 = vsel %vm1144, %v3966, %v3968
      %v4024 = vadd.f32 %v3645, %v3846
      %v4025 = vadd.f32 %v3646, %v3848
      %v4026 = vadd.f32 %v3647, %v3850
      %v4027 = vadd.f32 %v3648, %v3853
      %v4028 = vadd.f32 %v3649, %v3855
      %v4029 = vadd.f32 %v3650, %v3857
      %v4030 = vadd.f32 %v3651, %v3860
      %v4031 = vadd.f32 %v3652, %v3862
      %v4032 = vadd.f32 %v3653, %v3864
      %v4033 = vadd.f32 %v3654, %v3867
      %v4034 = vadd.f32 %v3655, %v3869
      %v4035 = vadd.f32 %v3656, %v3871
      %v4036 = vadd.f32 %v3657, %v3874
      %v4037 = vadd.f32 %v3658, %v3876
      %v4038 = vadd.f32 %v3659, %v3878
      %v4039 = vadd.f32 %v3660, %v3881
      %v4040 = vadd.f32 %v3661, %v3883
      %v4041 = vadd.f32 %v3662, %v3885
      %v4042 = vadd.f32 %v3663, %v3888
      %v4043 = vadd.f32 %v3664, %v3890
      %v4044 = vadd.f32 %v3665, %v3892
      %v4045 = vadd.f32 %v3666, %v3895
      %v4046 = vadd.f32 %v3667, %v3897
      %v4047 = vadd.f32 %v3668, %v3899
      %v4048 = vadd.f32 %v3669, %v3902
      %v4049 = vadd.f32 %v3670, %v3904
      %v4050 = vadd.f32 %v3671, %v3906
      %v4051 = vadd.f32 %v3672, %v3909
      %v4052 = vadd.f32 %v3673, %v3911
      %v4053 = vadd.f32 %v3674, %v3913
      %v4054 = vadd.f32 %v3675, %v3916
      %v4055 = vadd.f32 %v3676, %v3918
      %v4056 = vadd.f32 %v3677, %v3920
      %v4057 = vadd.f32 %v3678, %v3923
      %v4058 = vadd.f32 %v3679, %v3925
      %v4059 = vadd.f32 %v3680, %v3927
      %v4060 = vadd.f32 %v3681, %v3930
      %v4061 = vadd.f32 %v3682, %v3932
      %v4062 = vadd.f32 %v3683, %v3934
      %v4063 = vadd.f32 %v3684, %v3937
      %v4064 = vadd.f32 %v3685, %v3939
      %v4065 = vadd.f32 %v3686, %v3941
      %v4066 = vadd.f32 %v3687, %v3944
      %v4067 = vadd.f32 %v3688, %v3946
      %v4068 = vadd.f32 %v3689, %v3948
      %v4069 = vadd.f32 %v3690, %v3951
      %v4070 = vadd.f32 %v3691, %v3953
      %v4071 = vadd.f32 %v3692, %v3955
      %v4072 = vadd.f32 %v3693, %v3958
      %v4073 = vadd.f32 %v3694, %v3960
      %v4074 = vadd.f32 %v3695, %v3962
      %v4075 = vadd.f32 %v3696, %v3965
      %v4076 = vadd.f32 %v3697, %v3967
      %v4077 = vadd.f32 %v3698, %v3969
      %v4078 = vperm.slane %v506, 7
      %v4079 = vmul.f32 %v430, %v4078
      %v4080 = vmul.f32 %v431, %v4078
      %v4081 = vmul.f32 %v432, %v4078
      %v4082 = vmul.f32 %v434, %v4078
      %v4083 = vmul.f32 %v435, %v4078
      %v4084 = vmul.f32 %v436, %v4078
      %v4085 = vmul.f32 %v438, %v4078
      %v4086 = vmul.f32 %v439, %v4078
      %v4087 = vmul.f32 %v440, %v4078
      %v4088 = vmul.f32 %v442, %v4078
      %v4089 = vmul.f32 %v443, %v4078
      %v4090 = vmul.f32 %v444, %v4078
      %v4091 = vmul.f32 %v446, %v4078
      %v4092 = vmul.f32 %v447, %v4078
      %v4093 = vmul.f32 %v448, %v4078
      %v4094 = vmul.f32 %v450, %v4078
      %v4095 = vmul.f32 %v451, %v4078
      %v4096 = vmul.f32 %v452, %v4078
      %v4097 = vmul.f32 %v454, %v4078
      %v4098 = vmul.f32 %v455, %v4078
      %v4099 = vmul.f32 %v456, %v4078
      %v4100 = vmul.f32 %v458, %v4078
      %v4101 = vmul.f32 %v459, %v4078
      %v4102 = vmul.f32 %v460, %v4078
      %v4103 = vmul.f32 %v462, %v4078
      %v4104 = vmul.f32 %v463, %v4078
      %v4105 = vmul.f32 %v464, %v4078
      %v4106 = vmul.f32 %v466, %v4078
      %v4107 = vmul.f32 %v467, %v4078
      %v4108 = vmul.f32 %v468, %v4078
      %v4109 = vmul.f32 %v470, %v4078
      %v4110 = vmul.f32 %v471, %v4078
      %v4111 = vmul.f32 %v472, %v4078
      %v4112 = vmul.f32 %v474, %v4078
      %v4113 = vmul.f32 %v475, %v4078
      %v4114 = vmul.f32 %v476, %v4078
      %v4115 = vmul.f32 %v478, %v4078
      %v4116 = vmul.f32 %v479, %v4078
      %v4117 = vmul.f32 %v480, %v4078
      %v4118 = vmul.f32 %v482, %v4078
      %v4119 = vmul.f32 %v483, %v4078
      %v4120 = vmul.f32 %v484, %v4078
      %v4121 = vmul.f32 %v486, %v4078
      %v4122 = vmul.f32 %v487, %v4078
      %v4123 = vmul.f32 %v488, %v4078
      %v4124 = vmul.f32 %v490, %v4078
      %v4125 = vmul.f32 %v491, %v4078
      %v4126 = vmul.f32 %v492, %v4078
      %v4127 = vmul.f32 %v494, %v4078
      %v4128 = vmul.f32 %v495, %v4078
      %v4129 = vmul.f32 %v496, %v4078
      %v4130 = vmul.f32 %v498, %v4078
      %v4131 = vmul.f32 %v499, %v4078
      %v4132 = vmul.f32 %v500, %v4078
      %v4133 = vadd.f32 %v4024, %v4079
      %v4134 = vadd.f32 %v4025, %v4080
      %v4135 = vadd.f32 %v4026, %v4081
      %v4136 = vadd.f32 %v4027, %v4082
      %v4137 = vadd.f32 %v4028, %v4083
      %v4138 = vadd.f32 %v4029, %v4084
      %v4139 = vadd.f32 %v4030, %v4085
      %v4140 = vadd.f32 %v4031, %v4086
      %v4141 = vadd.f32 %v4032, %v4087
      %v4142 = vadd.f32 %v4033, %v4088
      %v4143 = vadd.f32 %v4034, %v4089
      %v4144 = vadd.f32 %v4035, %v4090
      %v4145 = vadd.f32 %v4036, %v4091
      %v4146 = vadd.f32 %v4037, %v4092
      %v4147 = vadd.f32 %v4038, %v4093
      %v4148 = vadd.f32 %v4039, %v4094
      %v4149 = vadd.f32 %v4040, %v4095
      %v4150 = vadd.f32 %v4041, %v4096
      %v4151 = vadd.f32 %v4042, %v4097
      %v4152 = vadd.f32 %v4043, %v4098
      %v4153 = vadd.f32 %v4044, %v4099
      %v4154 = vadd.f32 %v4045, %v4100
      %v4155 = vadd.f32 %v4046, %v4101
      %v4156 = vadd.f32 %v4047, %v4102
      %v4157 = vadd.f32 %v4048, %v4103
      %v4158 = vadd.f32 %v4049, %v4104
      %v4159 = vadd.f32 %v4050, %v4105
      %v4160 = vadd.f32 %v4051, %v4106
      %v4161 = vadd.f32 %v4052, %v4107
      %v4162 = vadd.f32 %v4053, %v4108
      %v4163 = vadd.f32 %v4054, %v4109
      %v4164 = vadd.f32 %v4055, %v4110
      %v4165 = vadd.f32 %v4056, %v4111
      %v4166 = vadd.f32 %v4057, %v4112
      %v4167 = vadd.f32 %v4058, %v4113
      %v4168 = vadd.f32 %v4059, %v4114
      %v4169 = vadd.f32 %v4060, %v4115
      %v4170 = vadd.f32 %v4061, %v4116
      %v4171 = vadd.f32 %v4062, %v4117
      %v4172 = vadd.f32 %v4063, %v4118
      %v4173 = vadd.f32 %v4064, %v4119
      %v4174 = vadd.f32 %v4065, %v4120
      %v4175 = vadd.f32 %v4066, %v4121
      %v4176 = vadd.f32 %v4067, %v4122
      %v4177 = vadd.f32 %v4068, %v4123
      %v4178 = vadd.f32 %v4069, %v4124
      %v4179 = vadd.f32 %v4070, %v4125
      %v4180 = vadd.f32 %v4071, %v4126
      %v4181 = vadd.f32 %v4072, %v4127
      %v4182 = vadd.f32 %v4073, %v4128
      %v4183 = vadd.f32 %v4074, %v4129
      %v4184 = vadd.f32 %v4075, %v4130
      %v4185 = vadd.f32 %v4076, %v4131
      %v4186 = vadd.f32 %v4077, %v4132
      %v4187 = vperm.slane %v507, 1
      %v4188 = vmul.f32 %v430, %v4187
      %v4189 = vmul.f32 %v431, %v4187
      %v4190 = vmul.f32 %v432, %v4187
      %v4191 = vmul.f32 %v433, %v4187
      %v4192 = vmul.f32 %v434, %v4187
      %v4193 = vmul.f32 %v435, %v4187
      %v4194 = vmul.f32 %v436, %v4187
      %v4195 = vmul.f32 %v437, %v4187
      %v4196 = vmul.f32 %v438, %v4187
      %v4197 = vmul.f32 %v439, %v4187
      %v4198 = vmul.f32 %v440, %v4187
      %v4199 = vmul.f32 %v441, %v4187
      %v4200 = vmul.f32 %v442, %v4187
      %v4201 = vmul.f32 %v443, %v4187
      %v4202 = vmul.f32 %v444, %v4187
      %v4203 = vmul.f32 %v445, %v4187
      %v4204 = vmul.f32 %v446, %v4187
      %v4205 = vmul.f32 %v447, %v4187
      %v4206 = vmul.f32 %v448, %v4187
      %v4207 = vmul.f32 %v449, %v4187
      %v4208 = vmul.f32 %v450, %v4187
      %v4209 = vmul.f32 %v451, %v4187
      %v4210 = vmul.f32 %v452, %v4187
      %v4211 = vmul.f32 %v453, %v4187
      %v4212 = vmul.f32 %v454, %v4187
      %v4213 = vmul.f32 %v455, %v4187
      %v4214 = vmul.f32 %v456, %v4187
      %v4215 = vmul.f32 %v457, %v4187
      %v4216 = vmul.f32 %v458, %v4187
      %v4217 = vmul.f32 %v459, %v4187
      %v4218 = vmul.f32 %v460, %v4187
      %v4219 = vmul.f32 %v461, %v4187
      %v4220 = vmul.f32 %v462, %v4187
      %v4221 = vmul.f32 %v463, %v4187
      %v4222 = vmul.f32 %v464, %v4187
      %v4223 = vmul.f32 %v465, %v4187
      %v4224 = vmul.f32 %v466, %v4187
      %v4225 = vmul.f32 %v467, %v4187
      %v4226 = vmul.f32 %v468, %v4187
      %v4227 = vmul.f32 %v469, %v4187
      %v4228 = vmul.f32 %v470, %v4187
      %v4229 = vmul.f32 %v471, %v4187
      %v4230 = vmul.f32 %v472, %v4187
      %v4231 = vmul.f32 %v473, %v4187
      %v4232 = vmul.f32 %v474, %v4187
      %v4233 = vmul.f32 %v475, %v4187
      %v4234 = vmul.f32 %v476, %v4187
      %v4235 = vmul.f32 %v477, %v4187
      %v4236 = vmul.f32 %v478, %v4187
      %v4237 = vmul.f32 %v479, %v4187
      %v4238 = vmul.f32 %v480, %v4187
      %v4239 = vmul.f32 %v481, %v4187
      %v4240 = vmul.f32 %v482, %v4187
      %v4241 = vmul.f32 %v483, %v4187
      %v4242 = vmul.f32 %v484, %v4187
      %v4243 = vmul.f32 %v485, %v4187
      %v4244 = vmul.f32 %v486, %v4187
      %v4245 = vmul.f32 %v487, %v4187
      %v4246 = vmul.f32 %v488, %v4187
      %v4247 = vmul.f32 %v489, %v4187
      %v4248 = vmul.f32 %v490, %v4187
      %v4249 = vmul.f32 %v491, %v4187
      %v4250 = vmul.f32 %v492, %v4187
      %v4251 = vmul.f32 %v493, %v4187
      %v4252 = vmul.f32 %v494, %v4187
      %v4253 = vmul.f32 %v495, %v4187
      %v4254 = vmul.f32 %v496, %v4187
      %v4255 = vmul.f32 %v497, %v4187
      %v4256 = vmul.f32 %v498, %v4187
      %v4257 = vmul.f32 %v499, %v4187
      %v4258 = vmul.f32 %v500, %v4187
      %v4259 = vmul.f32 %v501, %v4187
      %v4332 = vrot.slane %v4188, 1
      %v4333 = vrot.slane %v4189, 1
      %v4334 = vsel %vm764, %v4332, %v4333
      %v4335 = vrot.slane %v4190, 1
      %v4336 = vsel %vm764, %v4333, %v4335
      %v4337 = vrot.slane %v4191, 1
      %v4338 = vsel %vm764, %v4335, %v4337
      %v4339 = vrot.slane %v4192, 1
      %v4340 = vrot.slane %v4193, 1
      %v4341 = vsel %vm764, %v4339, %v4340
      %v4342 = vrot.slane %v4194, 1
      %v4343 = vsel %vm764, %v4340, %v4342
      %v4344 = vrot.slane %v4195, 1
      %v4345 = vsel %vm764, %v4342, %v4344
      %v4346 = vrot.slane %v4196, 1
      %v4347 = vrot.slane %v4197, 1
      %v4348 = vsel %vm764, %v4346, %v4347
      %v4349 = vrot.slane %v4198, 1
      %v4350 = vsel %vm764, %v4347, %v4349
      %v4351 = vrot.slane %v4199, 1
      %v4352 = vsel %vm764, %v4349, %v4351
      %v4353 = vrot.slane %v4200, 1
      %v4354 = vrot.slane %v4201, 1
      %v4355 = vsel %vm764, %v4353, %v4354
      %v4356 = vrot.slane %v4202, 1
      %v4357 = vsel %vm764, %v4354, %v4356
      %v4358 = vrot.slane %v4203, 1
      %v4359 = vsel %vm764, %v4356, %v4358
      %v4360 = vrot.slane %v4204, 1
      %v4361 = vrot.slane %v4205, 1
      %v4362 = vsel %vm764, %v4360, %v4361
      %v4363 = vrot.slane %v4206, 1
      %v4364 = vsel %vm764, %v4361, %v4363
      %v4365 = vrot.slane %v4207, 1
      %v4366 = vsel %vm764, %v4363, %v4365
      %v4367 = vrot.slane %v4208, 1
      %v4368 = vrot.slane %v4209, 1
      %v4369 = vsel %vm764, %v4367, %v4368
      %v4370 = vrot.slane %v4210, 1
      %v4371 = vsel %vm764, %v4368, %v4370
      %v4372 = vrot.slane %v4211, 1
      %v4373 = vsel %vm764, %v4370, %v4372
      %v4374 = vrot.slane %v4212, 1
      %v4375 = vrot.slane %v4213, 1
      %v4376 = vsel %vm764, %v4374, %v4375
      %v4377 = vrot.slane %v4214, 1
      %v4378 = vsel %vm764, %v4375, %v4377
      %v4379 = vrot.slane %v4215, 1
      %v4380 = vsel %vm764, %v4377, %v4379
      %v4381 = vrot.slane %v4216, 1
      %v4382 = vrot.slane %v4217, 1
      %v4383 = vsel %vm764, %v4381, %v4382
      %v4384 = vrot.slane %v4218, 1
      %v4385 = vsel %vm764, %v4382, %v4384
      %v4386 = vrot.slane %v4219, 1
      %v4387 = vsel %vm764, %v4384, %v4386
      %v4388 = vrot.slane %v4220, 1
      %v4389 = vrot.slane %v4221, 1
      %v4390 = vsel %vm764, %v4388, %v4389
      %v4391 = vrot.slane %v4222, 1
      %v4392 = vsel %vm764, %v4389, %v4391
      %v4393 = vrot.slane %v4223, 1
      %v4394 = vsel %vm764, %v4391, %v4393
      %v4395 = vrot.slane %v4224, 1
      %v4396 = vrot.slane %v4225, 1
      %v4397 = vsel %vm764, %v4395, %v4396
      %v4398 = vrot.slane %v4226, 1
      %v4399 = vsel %vm764, %v4396, %v4398
      %v4400 = vrot.slane %v4227, 1
      %v4401 = vsel %vm764, %v4398, %v4400
      %v4402 = vrot.slane %v4228, 1
      %v4403 = vrot.slane %v4229, 1
      %v4404 = vsel %vm764, %v4402, %v4403
      %v4405 = vrot.slane %v4230, 1
      %v4406 = vsel %vm764, %v4403, %v4405
      %v4407 = vrot.slane %v4231, 1
      %v4408 = vsel %vm764, %v4405, %v4407
      %v4409 = vrot.slane %v4232, 1
      %v4410 = vrot.slane %v4233, 1
      %v4411 = vsel %vm764, %v4409, %v4410
      %v4412 = vrot.slane %v4234, 1
      %v4413 = vsel %vm764, %v4410, %v4412
      %v4414 = vrot.slane %v4235, 1
      %v4415 = vsel %vm764, %v4412, %v4414
      %v4416 = vrot.slane %v4236, 1
      %v4417 = vrot.slane %v4237, 1
      %v4418 = vsel %vm764, %v4416, %v4417
      %v4419 = vrot.slane %v4238, 1
      %v4420 = vsel %vm764, %v4417, %v4419
      %v4421 = vrot.slane %v4239, 1
      %v4422 = vsel %vm764, %v4419, %v4421
      %v4423 = vrot.slane %v4240, 1
      %v4424 = vrot.slane %v4241, 1
      %v4425 = vsel %vm764, %v4423, %v4424
      %v4426 = vrot.slane %v4242, 1
      %v4427 = vsel %vm764, %v4424, %v4426
      %v4428 = vrot.slane %v4243, 1
      %v4429 = vsel %vm764, %v4426, %v4428
      %v4430 = vrot.slane %v4244, 1
      %v4431 = vrot.slane %v4245, 1
      %v4432 = vsel %vm764, %v4430, %v4431
      %v4433 = vrot.slane %v4246, 1
      %v4434 = vsel %vm764, %v4431, %v4433
      %v4435 = vrot.slane %v4247, 1
      %v4436 = vsel %vm764, %v4433, %v4435
      %v4437 = vrot.slane %v4248, 1
      %v4438 = vrot.slane %v4249, 1
      %v4439 = vsel %vm764, %v4437, %v4438
      %v4440 = vrot.slane %v4250, 1
      %v4441 = vsel %vm764, %v4438, %v4440
      %v4442 = vrot.slane %v4251, 1
      %v4443 = vsel %vm764, %v4440, %v4442
      %v4444 = vrot.slane %v4252, 1
      %v4445 = vrot.slane %v4253, 1
      %v4446 = vsel %vm764, %v4444, %v4445
      %v4447 = vrot.slane %v4254, 1
      %v4448 = vsel %vm764, %v4445, %v4447
      %v4449 = vrot.slane %v4255, 1
      %v4450 = vsel %vm764, %v4447, %v4449
      %v4451 = vrot.slane %v4256, 1
      %v4452 = vrot.slane %v4257, 1
      %v4453 = vsel %vm764, %v4451, %v4452
      %v4454 = vrot.slane %v4258, 1
      %v4455 = vsel %vm764, %v4452, %v4454
      %v4456 = vrot.slane %v4259, 1
      %v4457 = vsel %vm764, %v4454, %v4456
      %v4512 = vadd.f32 %v4133, %v4334
      %v4513 = vadd.f32 %v4134, %v4336
      %v4514 = vadd.f32 %v4135, %v4338
      %v4515 = vadd.f32 %v4136, %v4341
      %v4516 = vadd.f32 %v4137, %v4343
      %v4517 = vadd.f32 %v4138, %v4345
      %v4518 = vadd.f32 %v4139, %v4348
      %v4519 = vadd.f32 %v4140, %v4350
      %v4520 = vadd.f32 %v4141, %v4352
      %v4521 = vadd.f32 %v4142, %v4355
      %v4522 = vadd.f32 %v4143, %v4357
      %v4523 = vadd.f32 %v4144, %v4359
      %v4524 = vadd.f32 %v4145, %v4362
      %v4525 = vadd.f32 %v4146, %v4364
      %v4526 = vadd.f32 %v4147, %v4366
      %v4527 = vadd.f32 %v4148, %v4369
      %v4528 = vadd.f32 %v4149, %v4371
      %v4529 = vadd.f32 %v4150, %v4373
      %v4530 = vadd.f32 %v4151, %v4376
      %v4531 = vadd.f32 %v4152, %v4378
      %v4532 = vadd.f32 %v4153, %v4380
      %v4533 = vadd.f32 %v4154, %v4383
      %v4534 = vadd.f32 %v4155, %v4385
      %v4535 = vadd.f32 %v4156, %v4387
      %v4536 = vadd.f32 %v4157, %v4390
      %v4537 = vadd.f32 %v4158, %v4392
      %v4538 = vadd.f32 %v4159, %v4394
      %v4539 = vadd.f32 %v4160, %v4397
      %v4540 = vadd.f32 %v4161, %v4399
      %v4541 = vadd.f32 %v4162, %v4401
      %v4542 = vadd.f32 %v4163, %v4404
      %v4543 = vadd.f32 %v4164, %v4406
      %v4544 = vadd.f32 %v4165, %v4408
      %v4545 = vadd.f32 %v4166, %v4411
      %v4546 = vadd.f32 %v4167, %v4413
      %v4547 = vadd.f32 %v4168, %v4415
      %v4548 = vadd.f32 %v4169, %v4418
      %v4549 = vadd.f32 %v4170, %v4420
      %v4550 = vadd.f32 %v4171, %v4422
      %v4551 = vadd.f32 %v4172, %v4425
      %v4552 = vadd.f32 %v4173, %v4427
      %v4553 = vadd.f32 %v4174, %v4429
      %v4554 = vadd.f32 %v4175, %v4432
      %v4555 = vadd.f32 %v4176, %v4434
      %v4556 = vadd.f32 %v4177, %v4436
      %v4557 = vadd.f32 %v4178, %v4439
      %v4558 = vadd.f32 %v4179, %v4441
      %v4559 = vadd.f32 %v4180, %v4443
      %v4560 = vadd.f32 %v4181, %v4446
      %v4561 = vadd.f32 %v4182, %v4448
      %v4562 = vadd.f32 %v4183, %v4450
      %v4563 = vadd.f32 %v4184, %v4453
      %v4564 = vadd.f32 %v4185, %v4455
      %v4565 = vadd.f32 %v4186, %v4457
      %v4566 = vperm.slane %v507, 3
      %v4567 = vmul.f32 %v430, %v4566
      %v4568 = vmul.f32 %v431, %v4566
      %v4569 = vmul.f32 %v432, %v4566
      %v4570 = vmul.f32 %v433, %v4566
      %v4571 = vmul.f32 %v434, %v4566
      %v4572 = vmul.f32 %v435, %v4566
      %v4573 = vmul.f32 %v436, %v4566
      %v4574 = vmul.f32 %v437, %v4566
      %v4575 = vmul.f32 %v438, %v4566
      %v4576 = vmul.f32 %v439, %v4566
      %v4577 = vmul.f32 %v440, %v4566
      %v4578 = vmul.f32 %v441, %v4566
      %v4579 = vmul.f32 %v442, %v4566
      %v4580 = vmul.f32 %v443, %v4566
      %v4581 = vmul.f32 %v444, %v4566
      %v4582 = vmul.f32 %v445, %v4566
      %v4583 = vmul.f32 %v446, %v4566
      %v4584 = vmul.f32 %v447, %v4566
      %v4585 = vmul.f32 %v448, %v4566
      %v4586 = vmul.f32 %v449, %v4566
      %v4587 = vmul.f32 %v450, %v4566
      %v4588 = vmul.f32 %v451, %v4566
      %v4589 = vmul.f32 %v452, %v4566
      %v4590 = vmul.f32 %v453, %v4566
      %v4591 = vmul.f32 %v454, %v4566
      %v4592 = vmul.f32 %v455, %v4566
      %v4593 = vmul.f32 %v456, %v4566
      %v4594 = vmul.f32 %v457, %v4566
      %v4595 = vmul.f32 %v458, %v4566
      %v4596 = vmul.f32 %v459, %v4566
      %v4597 = vmul.f32 %v460, %v4566
      %v4598 = vmul.f32 %v461, %v4566
      %v4599 = vmul.f32 %v462, %v4566
      %v4600 = vmul.f32 %v463, %v4566
      %v4601 = vmul.f32 %v464, %v4566
      %v4602 = vmul.f32 %v465, %v4566
      %v4603 = vmul.f32 %v466, %v4566
      %v4604 = vmul.f32 %v467, %v4566
      %v4605 = vmul.f32 %v468, %v4566
      %v4606 = vmul.f32 %v469, %v4566
      %v4607 = vmul.f32 %v470, %v4566
      %v4608 = vmul.f32 %v471, %v4566
      %v4609 = vmul.f32 %v472, %v4566
      %v4610 = vmul.f32 %v473, %v4566
      %v4611 = vmul.f32 %v474, %v4566
      %v4612 = vmul.f32 %v475, %v4566
      %v4613 = vmul.f32 %v476, %v4566
      %v4614 = vmul.f32 %v477, %v4566
      %v4615 = vmul.f32 %v478, %v4566
      %v4616 = vmul.f32 %v479, %v4566
      %v4617 = vmul.f32 %v480, %v4566
      %v4618 = vmul.f32 %v481, %v4566
      %v4619 = vmul.f32 %v482, %v4566
      %v4620 = vmul.f32 %v483, %v4566
      %v4621 = vmul.f32 %v484, %v4566
      %v4622 = vmul.f32 %v485, %v4566
      %v4623 = vmul.f32 %v486, %v4566
      %v4624 = vmul.f32 %v487, %v4566
      %v4625 = vmul.f32 %v488, %v4566
      %v4626 = vmul.f32 %v489, %v4566
      %v4627 = vmul.f32 %v490, %v4566
      %v4628 = vmul.f32 %v491, %v4566
      %v4629 = vmul.f32 %v492, %v4566
      %v4630 = vmul.f32 %v493, %v4566
      %v4631 = vmul.f32 %v494, %v4566
      %v4632 = vmul.f32 %v495, %v4566
      %v4633 = vmul.f32 %v496, %v4566
      %v4634 = vmul.f32 %v497, %v4566
      %v4635 = vmul.f32 %v498, %v4566
      %v4636 = vmul.f32 %v499, %v4566
      %v4637 = vmul.f32 %v500, %v4566
      %v4638 = vmul.f32 %v501, %v4566
      %v4711 = vrot.slane %v4567, 2
      %v4712 = vrot.slane %v4568, 2
      %v4713 = vsel %vm1144, %v4711, %v4712
      %v4714 = vrot.slane %v4569, 2
      %v4715 = vsel %vm1144, %v4712, %v4714
      %v4716 = vrot.slane %v4570, 2
      %v4717 = vsel %vm1144, %v4714, %v4716
      %v4718 = vrot.slane %v4571, 2
      %v4719 = vrot.slane %v4572, 2
      %v4720 = vsel %vm1144, %v4718, %v4719
      %v4721 = vrot.slane %v4573, 2
      %v4722 = vsel %vm1144, %v4719, %v4721
      %v4723 = vrot.slane %v4574, 2
      %v4724 = vsel %vm1144, %v4721, %v4723
      %v4725 = vrot.slane %v4575, 2
      %v4726 = vrot.slane %v4576, 2
      %v4727 = vsel %vm1144, %v4725, %v4726
      %v4728 = vrot.slane %v4577, 2
      %v4729 = vsel %vm1144, %v4726, %v4728
      %v4730 = vrot.slane %v4578, 2
      %v4731 = vsel %vm1144, %v4728, %v4730
      %v4732 = vrot.slane %v4579, 2
      %v4733 = vrot.slane %v4580, 2
      %v4734 = vsel %vm1144, %v4732, %v4733
      %v4735 = vrot.slane %v4581, 2
      %v4736 = vsel %vm1144, %v4733, %v4735
      %v4737 = vrot.slane %v4582, 2
      %v4738 = vsel %vm1144, %v4735, %v4737
      %v4739 = vrot.slane %v4583, 2
      %v4740 = vrot.slane %v4584, 2
      %v4741 = vsel %vm1144, %v4739, %v4740
      %v4742 = vrot.slane %v4585, 2
      %v4743 = vsel %vm1144, %v4740, %v4742
      %v4744 = vrot.slane %v4586, 2
      %v4745 = vsel %vm1144, %v4742, %v4744
      %v4746 = vrot.slane %v4587, 2
      %v4747 = vrot.slane %v4588, 2
      %v4748 = vsel %vm1144, %v4746, %v4747
      %v4749 = vrot.slane %v4589, 2
      %v4750 = vsel %vm1144, %v4747, %v4749
      %v4751 = vrot.slane %v4590, 2
      %v4752 = vsel %vm1144, %v4749, %v4751
      %v4753 = vrot.slane %v4591, 2
      %v4754 = vrot.slane %v4592, 2
      %v4755 = vsel %vm1144, %v4753, %v4754
      %v4756 = vrot.slane %v4593, 2
      %v4757 = vsel %vm1144, %v4754, %v4756
      %v4758 = vrot.slane %v4594, 2
      %v4759 = vsel %vm1144, %v4756, %v4758
      %v4760 = vrot.slane %v4595, 2
      %v4761 = vrot.slane %v4596, 2
      %v4762 = vsel %vm1144, %v4760, %v4761
      %v4763 = vrot.slane %v4597, 2
      %v4764 = vsel %vm1144, %v4761, %v4763
      %v4765 = vrot.slane %v4598, 2
      %v4766 = vsel %vm1144, %v4763, %v4765
      %v4767 = vrot.slane %v4599, 2
      %v4768 = vrot.slane %v4600, 2
      %v4769 = vsel %vm1144, %v4767, %v4768
      %v4770 = vrot.slane %v4601, 2
      %v4771 = vsel %vm1144, %v4768, %v4770
      %v4772 = vrot.slane %v4602, 2
      %v4773 = vsel %vm1144, %v4770, %v4772
      %v4774 = vrot.slane %v4603, 2
      %v4775 = vrot.slane %v4604, 2
      %v4776 = vsel %vm1144, %v4774, %v4775
      %v4777 = vrot.slane %v4605, 2
      %v4778 = vsel %vm1144, %v4775, %v4777
      %v4779 = vrot.slane %v4606, 2
      %v4780 = vsel %vm1144, %v4777, %v4779
      %v4781 = vrot.slane %v4607, 2
      %v4782 = vrot.slane %v4608, 2
      %v4783 = vsel %vm1144, %v4781, %v4782
      %v4784 = vrot.slane %v4609, 2
      %v4785 = vsel %vm1144, %v4782, %v4784
      %v4786 = vrot.slane %v4610, 2
      %v4787 = vsel %vm1144, %v4784, %v4786
      %v4788 = vrot.slane %v4611, 2
      %v4789 = vrot.slane %v4612, 2
      %v4790 = vsel %vm1144, %v4788, %v4789
      %v4791 = vrot.slane %v4613, 2
      %v4792 = vsel %vm1144, %v4789, %v4791
      %v4793 = vrot.slane %v4614, 2
      %v4794 = vsel %vm1144, %v4791, %v4793
      %v4795 = vrot.slane %v4615, 2
      %v4796 = vrot.slane %v4616, 2
      %v4797 = vsel %vm1144, %v4795, %v4796
      %v4798 = vrot.slane %v4617, 2
      %v4799 = vsel %vm1144, %v4796, %v4798
      %v4800 = vrot.slane %v4618, 2
      %v4801 = vsel %vm1144, %v4798, %v4800
      %v4802 = vrot.slane %v4619, 2
      %v4803 = vrot.slane %v4620, 2
      %v4804 = vsel %vm1144, %v4802, %v4803
      %v4805 = vrot.slane %v4621, 2
      %v4806 = vsel %vm1144, %v4803, %v4805
      %v4807 = vrot.slane %v4622, 2
      %v4808 = vsel %vm1144, %v4805, %v4807
      %v4809 = vrot.slane %v4623, 2
      %v4810 = vrot.slane %v4624, 2
      %v4811 = vsel %vm1144, %v4809, %v4810
      %v4812 = vrot.slane %v4625, 2
      %v4813 = vsel %vm1144, %v4810, %v4812
      %v4814 = vrot.slane %v4626, 2
      %v4815 = vsel %vm1144, %v4812, %v4814
      %v4816 = vrot.slane %v4627, 2
      %v4817 = vrot.slane %v4628, 2
      %v4818 = vsel %vm1144, %v4816, %v4817
      %v4819 = vrot.slane %v4629, 2
      %v4820 = vsel %vm1144, %v4817, %v4819
      %v4821 = vrot.slane %v4630, 2
      %v4822 = vsel %vm1144, %v4819, %v4821
      %v4823 = vrot.slane %v4631, 2
      %v4824 = vrot.slane %v4632, 2
      %v4825 = vsel %vm1144, %v4823, %v4824
      %v4826 = vrot.slane %v4633, 2
      %v4827 = vsel %vm1144, %v4824, %v4826
      %v4828 = vrot.slane %v4634, 2
      %v4829 = vsel %vm1144, %v4826, %v4828
      %v4830 = vrot.slane %v4635, 2
      %v4831 = vrot.slane %v4636, 2
      %v4832 = vsel %vm1144, %v4830, %v4831
      %v4833 = vrot.slane %v4637, 2
      %v4834 = vsel %vm1144, %v4831, %v4833
      %v4835 = vrot.slane %v4638, 2
      %v4836 = vsel %vm1144, %v4833, %v4835
      %v4891 = vadd.f32 %v4512, %v4713
      %v4892 = vadd.f32 %v4513, %v4715
      %v4893 = vadd.f32 %v4514, %v4717
      %v4894 = vadd.f32 %v4515, %v4720
      %v4895 = vadd.f32 %v4516, %v4722
      %v4896 = vadd.f32 %v4517, %v4724
      %v4897 = vadd.f32 %v4518, %v4727
      %v4898 = vadd.f32 %v4519, %v4729
      %v4899 = vadd.f32 %v4520, %v4731
      %v4900 = vadd.f32 %v4521, %v4734
      %v4901 = vadd.f32 %v4522, %v4736
      %v4902 = vadd.f32 %v4523, %v4738
      %v4903 = vadd.f32 %v4524, %v4741
      %v4904 = vadd.f32 %v4525, %v4743
      %v4905 = vadd.f32 %v4526, %v4745
      %v4906 = vadd.f32 %v4527, %v4748
      %v4907 = vadd.f32 %v4528, %v4750
      %v4908 = vadd.f32 %v4529, %v4752
      %v4909 = vadd.f32 %v4530, %v4755
      %v4910 = vadd.f32 %v4531, %v4757
      %v4911 = vadd.f32 %v4532, %v4759
      %v4912 = vadd.f32 %v4533, %v4762
      %v4913 = vadd.f32 %v4534, %v4764
      %v4914 = vadd.f32 %v4535, %v4766
      %v4915 = vadd.f32 %v4536, %v4769
      %v4916 = vadd.f32 %v4537, %v4771
      %v4917 = vadd.f32 %v4538, %v4773
      %v4918 = vadd.f32 %v4539, %v4776
      %v4919 = vadd.f32 %v4540, %v4778
      %v4920 = vadd.f32 %v4541, %v4780
      %v4921 = vadd.f32 %v4542, %v4783
      %v4922 = vadd.f32 %v4543, %v4785
      %v4923 = vadd.f32 %v4544, %v4787
      %v4924 = vadd.f32 %v4545, %v4790
      %v4925 = vadd.f32 %v4546, %v4792
      %v4926 = vadd.f32 %v4547, %v4794
      %v4927 = vadd.f32 %v4548, %v4797
      %v4928 = vadd.f32 %v4549, %v4799
      %v4929 = vadd.f32 %v4550, %v4801
      %v4930 = vadd.f32 %v4551, %v4804
      %v4931 = vadd.f32 %v4552, %v4806
      %v4932 = vadd.f32 %v4553, %v4808
      %v4933 = vadd.f32 %v4554, %v4811
      %v4934 = vadd.f32 %v4555, %v4813
      %v4935 = vadd.f32 %v4556, %v4815
      %v4936 = vadd.f32 %v4557, %v4818
      %v4937 = vadd.f32 %v4558, %v4820
      %v4938 = vadd.f32 %v4559, %v4822
      %v4939 = vadd.f32 %v4560, %v4825
      %v4940 = vadd.f32 %v4561, %v4827
      %v4941 = vadd.f32 %v4562, %v4829
      %v4942 = vadd.f32 %v4563, %v4832
      %v4943 = vadd.f32 %v4564, %v4834
      %v4944 = vadd.f32 %v4565, %v4836
      %v4945 = vperm.slane %v507, 5
      %v4946 = vmul.f32 %v434, %v4945
      %v4947 = vmul.f32 %v435, %v4945
      %v4948 = vmul.f32 %v436, %v4945
      %v4949 = vmul.f32 %v438, %v4945
      %v4950 = vmul.f32 %v439, %v4945
      %v4951 = vmul.f32 %v440, %v4945
      %v4952 = vmul.f32 %v442, %v4945
      %v4953 = vmul.f32 %v443, %v4945
      %v4954 = vmul.f32 %v444, %v4945
      %v4955 = vmul.f32 %v446, %v4945
      %v4956 = vmul.f32 %v447, %v4945
      %v4957 = vmul.f32 %v448, %v4945
      %v4958 = vmul.f32 %v450, %v4945
      %v4959 = vmul.f32 %v451, %v4945
      %v4960 = vmul.f32 %v452, %v4945
      %v4961 = vmul.f32 %v454, %v4945
      %v4962 = vmul.f32 %v455, %v4945
      %v4963 = vmul.f32 %v456, %v4945
      %v4964 = vmul.f32 %v458, %v4945
      %v4965 = vmul.f32 %v459, %v4945
      %v4966 = vmul.f32 %v460, %v4945
      %v4967 = vmul.f32 %v462, %v4945
      %v4968 = vmul.f32 %v463, %v4945
      %v4969 = vmul.f32 %v464, %v4945
      %v4970 = vmul.f32 %v466, %v4945
      %v4971 = vmul.f32 %v467, %v4945
      %v4972 = vmul.f32 %v468, %v4945
      %v4973 = vmul.f32 %v470, %v4945
      %v4974 = vmul.f32 %v471, %v4945
      %v4975 = vmul.f32 %v472, %v4945
      %v4976 = vmul.f32 %v474, %v4945
      %v4977 = vmul.f32 %v475, %v4945
      %v4978 = vmul.f32 %v476, %v4945
      %v4979 = vmul.f32 %v478, %v4945
      %v4980 = vmul.f32 %v479, %v4945
      %v4981 = vmul.f32 %v480, %v4945
      %v4982 = vmul.f32 %v482, %v4945
      %v4983 = vmul.f32 %v483, %v4945
      %v4984 = vmul.f32 %v484, %v4945
      %v4985 = vmul.f32 %v486, %v4945
      %v4986 = vmul.f32 %v487, %v4945
      %v4987 = vmul.f32 %v488, %v4945
      %v4988 = vmul.f32 %v490, %v4945
      %v4989 = vmul.f32 %v491, %v4945
      %v4990 = vmul.f32 %v492, %v4945
      %v4991 = vmul.f32 %v494, %v4945
      %v4992 = vmul.f32 %v495, %v4945
      %v4993 = vmul.f32 %v496, %v4945
      %v4994 = vmul.f32 %v498, %v4945
      %v4995 = vmul.f32 %v499, %v4945
      %v4996 = vmul.f32 %v500, %v4945
      %v4997 = vmul.f32 %v502, %v4945
      %v4998 = vmul.f32 %v503, %v4945
      %v4999 = vmul.f32 %v504, %v4945
      %v5000 = vadd.f32 %v4891, %v4946
      %v5001 = vadd.f32 %v4892, %v4947
      %v5002 = vadd.f32 %v4893, %v4948
      %v5003 = vadd.f32 %v4894, %v4949
      %v5004 = vadd.f32 %v4895, %v4950
      %v5005 = vadd.f32 %v4896, %v4951
      %v5006 = vadd.f32 %v4897, %v4952
      %v5007 = vadd.f32 %v4898, %v4953
      %v5008 = vadd.f32 %v4899, %v4954
      %v5009 = vadd.f32 %v4900, %v4955
      %v5010 = vadd.f32 %v4901, %v4956
      %v5011 = vadd.f32 %v4902, %v4957
      %v5012 = vadd.f32 %v4903, %v4958
      %v5013 = vadd.f32 %v4904, %v4959
      %v5014 = vadd.f32 %v4905, %v4960
      %v5015 = vadd.f32 %v4906, %v4961
      %v5016 = vadd.f32 %v4907, %v4962
      %v5017 = vadd.f32 %v4908, %v4963
      %v5018 = vadd.f32 %v4909, %v4964
      %v5019 = vadd.f32 %v4910, %v4965
      %v5020 = vadd.f32 %v4911, %v4966
      %v5021 = vadd.f32 %v4912, %v4967
      %v5022 = vadd.f32 %v4913, %v4968
      %v5023 = vadd.f32 %v4914, %v4969
      %v5024 = vadd.f32 %v4915, %v4970
      %v5025 = vadd.f32 %v4916, %v4971
      %v5026 = vadd.f32 %v4917, %v4972
      %v5027 = vadd.f32 %v4918, %v4973
      %v5028 = vadd.f32 %v4919, %v4974
      %v5029 = vadd.f32 %v4920, %v4975
      %v5030 = vadd.f32 %v4921, %v4976
      %v5031 = vadd.f32 %v4922, %v4977
      %v5032 = vadd.f32 %v4923, %v4978
      %v5033 = vadd.f32 %v4924, %v4979
      %v5034 = vadd.f32 %v4925, %v4980
      %v5035 = vadd.f32 %v4926, %v4981
      %v5036 = vadd.f32 %v4927, %v4982
      %v5037 = vadd.f32 %v4928, %v4983
      %v5038 = vadd.f32 %v4929, %v4984
      %v5039 = vadd.f32 %v4930, %v4985
      %v5040 = vadd.f32 %v4931, %v4986
      %v5041 = vadd.f32 %v4932, %v4987
      %v5042 = vadd.f32 %v4933, %v4988
      %v5043 = vadd.f32 %v4934, %v4989
      %v5044 = vadd.f32 %v4935, %v4990
      %v5045 = vadd.f32 %v4936, %v4991
      %v5046 = vadd.f32 %v4937, %v4992
      %v5047 = vadd.f32 %v4938, %v4993
      %v5048 = vadd.f32 %v4939, %v4994
      %v5049 = vadd.f32 %v4940, %v4995
      %v5050 = vadd.f32 %v4941, %v4996
      %v5051 = vadd.f32 %v4942, %v4997
      %v5052 = vadd.f32 %v4943, %v4998
      %v5053 = vadd.f32 %v4944, %v4999
      %v5054 = vperm.slane %v507, 7
      %v5055 = vmul.f32 %v434, %v5054
      %v5056 = vmul.f32 %v435, %v5054
      %v5057 = vmul.f32 %v436, %v5054
      %v5058 = vmul.f32 %v437, %v5054
      %v5059 = vmul.f32 %v438, %v5054
      %v5060 = vmul.f32 %v439, %v5054
      %v5061 = vmul.f32 %v440, %v5054
      %v5062 = vmul.f32 %v441, %v5054
      %v5063 = vmul.f32 %v442, %v5054
      %v5064 = vmul.f32 %v443, %v5054
      %v5065 = vmul.f32 %v444, %v5054
      %v5066 = vmul.f32 %v445, %v5054
      %v5067 = vmul.f32 %v446, %v5054
      %v5068 = vmul.f32 %v447, %v5054
      %v5069 = vmul.f32 %v448, %v5054
      %v5070 = vmul.f32 %v449, %v5054
      %v5071 = vmul.f32 %v450, %v5054
      %v5072 = vmul.f32 %v451, %v5054
      %v5073 = vmul.f32 %v452, %v5054
      %v5074 = vmul.f32 %v453, %v5054
      %v5075 = vmul.f32 %v454, %v5054
      %v5076 = vmul.f32 %v455, %v5054
      %v5077 = vmul.f32 %v456, %v5054
      %v5078 = vmul.f32 %v457, %v5054
      %v5079 = vmul.f32 %v458, %v5054
      %v5080 = vmul.f32 %v459, %v5054
      %v5081 = vmul.f32 %v460, %v5054
      %v5082 = vmul.f32 %v461, %v5054
      %v5083 = vmul.f32 %v462, %v5054
      %v5084 = vmul.f32 %v463, %v5054
      %v5085 = vmul.f32 %v464, %v5054
      %v5086 = vmul.f32 %v465, %v5054
      %v5087 = vmul.f32 %v466, %v5054
      %v5088 = vmul.f32 %v467, %v5054
      %v5089 = vmul.f32 %v468, %v5054
      %v5090 = vmul.f32 %v469, %v5054
      %v5091 = vmul.f32 %v470, %v5054
      %v5092 = vmul.f32 %v471, %v5054
      %v5093 = vmul.f32 %v472, %v5054
      %v5094 = vmul.f32 %v473, %v5054
      %v5095 = vmul.f32 %v474, %v5054
      %v5096 = vmul.f32 %v475, %v5054
      %v5097 = vmul.f32 %v476, %v5054
      %v5098 = vmul.f32 %v477, %v5054
      %v5099 = vmul.f32 %v478, %v5054
      %v5100 = vmul.f32 %v479, %v5054
      %v5101 = vmul.f32 %v480, %v5054
      %v5102 = vmul.f32 %v481, %v5054
      %v5103 = vmul.f32 %v482, %v5054
      %v5104 = vmul.f32 %v483, %v5054
      %v5105 = vmul.f32 %v484, %v5054
      %v5106 = vmul.f32 %v485, %v5054
      %v5107 = vmul.f32 %v486, %v5054
      %v5108 = vmul.f32 %v487, %v5054
      %v5109 = vmul.f32 %v488, %v5054
      %v5110 = vmul.f32 %v489, %v5054
      %v5111 = vmul.f32 %v490, %v5054
      %v5112 = vmul.f32 %v491, %v5054
      %v5113 = vmul.f32 %v492, %v5054
      %v5114 = vmul.f32 %v493, %v5054
      %v5115 = vmul.f32 %v494, %v5054
      %v5116 = vmul.f32 %v495, %v5054
      %v5117 = vmul.f32 %v496, %v5054
      %v5118 = vmul.f32 %v497, %v5054
      %v5119 = vmul.f32 %v498, %v5054
      %v5120 = vmul.f32 %v499, %v5054
      %v5121 = vmul.f32 %v500, %v5054
      %v5122 = vmul.f32 %v501, %v5054
      %v5123 = vmul.f32 %v502, %v5054
      %v5124 = vmul.f32 %v503, %v5054
      %v5125 = vmul.f32 %v504, %v5054
      %v5126 = vmul.f32 %v505, %v5054
      %v5199 = vrot.slane %v5055, 1
      %v5200 = vrot.slane %v5056, 1
      %v5201 = vsel %vm764, %v5199, %v5200
      %v5202 = vrot.slane %v5057, 1
      %v5203 = vsel %vm764, %v5200, %v5202
      %v5204 = vrot.slane %v5058, 1
      %v5205 = vsel %vm764, %v5202, %v5204
      %v5206 = vrot.slane %v5059, 1
      %v5207 = vrot.slane %v5060, 1
      %v5208 = vsel %vm764, %v5206, %v5207
      %v5209 = vrot.slane %v5061, 1
      %v5210 = vsel %vm764, %v5207, %v5209
      %v5211 = vrot.slane %v5062, 1
      %v5212 = vsel %vm764, %v5209, %v5211
      %v5213 = vrot.slane %v5063, 1
      %v5214 = vrot.slane %v5064, 1
      %v5215 = vsel %vm764, %v5213, %v5214
      %v5216 = vrot.slane %v5065, 1
      %v5217 = vsel %vm764, %v5214, %v5216
      %v5218 = vrot.slane %v5066, 1
      %v5219 = vsel %vm764, %v5216, %v5218
      %v5220 = vrot.slane %v5067, 1
      %v5221 = vrot.slane %v5068, 1
      %v5222 = vsel %vm764, %v5220, %v5221
      %v5223 = vrot.slane %v5069, 1
      %v5224 = vsel %vm764, %v5221, %v5223
      %v5225 = vrot.slane %v5070, 1
      %v5226 = vsel %vm764, %v5223, %v5225
      %v5227 = vrot.slane %v5071, 1
      %v5228 = vrot.slane %v5072, 1
      %v5229 = vsel %vm764, %v5227, %v5228
      %v5230 = vrot.slane %v5073, 1
      %v5231 = vsel %vm764, %v5228, %v5230
      %v5232 = vrot.slane %v5074, 1
      %v5233 = vsel %vm764, %v5230, %v5232
      %v5234 = vrot.slane %v5075, 1
      %v5235 = vrot.slane %v5076, 1
      %v5236 = vsel %vm764, %v5234, %v5235
      %v5237 = vrot.slane %v5077, 1
      %v5238 = vsel %vm764, %v5235, %v5237
      %v5239 = vrot.slane %v5078, 1
      %v5240 = vsel %vm764, %v5237, %v5239
      %v5241 = vrot.slane %v5079, 1
      %v5242 = vrot.slane %v5080, 1
      %v5243 = vsel %vm764, %v5241, %v5242
      %v5244 = vrot.slane %v5081, 1
      %v5245 = vsel %vm764, %v5242, %v5244
      %v5246 = vrot.slane %v5082, 1
      %v5247 = vsel %vm764, %v5244, %v5246
      %v5248 = vrot.slane %v5083, 1
      %v5249 = vrot.slane %v5084, 1
      %v5250 = vsel %vm764, %v5248, %v5249
      %v5251 = vrot.slane %v5085, 1
      %v5252 = vsel %vm764, %v5249, %v5251
      %v5253 = vrot.slane %v5086, 1
      %v5254 = vsel %vm764, %v5251, %v5253
      %v5255 = vrot.slane %v5087, 1
      %v5256 = vrot.slane %v5088, 1
      %v5257 = vsel %vm764, %v5255, %v5256
      %v5258 = vrot.slane %v5089, 1
      %v5259 = vsel %vm764, %v5256, %v5258
      %v5260 = vrot.slane %v5090, 1
      %v5261 = vsel %vm764, %v5258, %v5260
      %v5262 = vrot.slane %v5091, 1
      %v5263 = vrot.slane %v5092, 1
      %v5264 = vsel %vm764, %v5262, %v5263
      %v5265 = vrot.slane %v5093, 1
      %v5266 = vsel %vm764, %v5263, %v5265
      %v5267 = vrot.slane %v5094, 1
      %v5268 = vsel %vm764, %v5265, %v5267
      %v5269 = vrot.slane %v5095, 1
      %v5270 = vrot.slane %v5096, 1
      %v5271 = vsel %vm764, %v5269, %v5270
      %v5272 = vrot.slane %v5097, 1
      %v5273 = vsel %vm764, %v5270, %v5272
      %v5274 = vrot.slane %v5098, 1
      %v5275 = vsel %vm764, %v5272, %v5274
      %v5276 = vrot.slane %v5099, 1
      %v5277 = vrot.slane %v5100, 1
      %v5278 = vsel %vm764, %v5276, %v5277
      %v5279 = vrot.slane %v5101, 1
      %v5280 = vsel %vm764, %v5277, %v5279
      %v5281 = vrot.slane %v5102, 1
      %v5282 = vsel %vm764, %v5279, %v5281
      %v5283 = vrot.slane %v5103, 1
      %v5284 = vrot.slane %v5104, 1
      %v5285 = vsel %vm764, %v5283, %v5284
      %v5286 = vrot.slane %v5105, 1
      %v5287 = vsel %vm764, %v5284, %v5286
      %v5288 = vrot.slane %v5106, 1
      %v5289 = vsel %vm764, %v5286, %v5288
      %v5290 = vrot.slane %v5107, 1
      %v5291 = vrot.slane %v5108, 1
      %v5292 = vsel %vm764, %v5290, %v5291
      %v5293 = vrot.slane %v5109, 1
      %v5294 = vsel %vm764, %v5291, %v5293
      %v5295 = vrot.slane %v5110, 1
      %v5296 = vsel %vm764, %v5293, %v5295
      %v5297 = vrot.slane %v5111, 1
      %v5298 = vrot.slane %v5112, 1
      %v5299 = vsel %vm764, %v5297, %v5298
      %v5300 = vrot.slane %v5113, 1
      %v5301 = vsel %vm764, %v5298, %v5300
      %v5302 = vrot.slane %v5114, 1
      %v5303 = vsel %vm764, %v5300, %v5302
      %v5304 = vrot.slane %v5115, 1
      %v5305 = vrot.slane %v5116, 1
      %v5306 = vsel %vm764, %v5304, %v5305
      %v5307 = vrot.slane %v5117, 1
      %v5308 = vsel %vm764, %v5305, %v5307
      %v5309 = vrot.slane %v5118, 1
      %v5310 = vsel %vm764, %v5307, %v5309
      %v5311 = vrot.slane %v5119, 1
      %v5312 = vrot.slane %v5120, 1
      %v5313 = vsel %vm764, %v5311, %v5312
      %v5314 = vrot.slane %v5121, 1
      %v5315 = vsel %vm764, %v5312, %v5314
      %v5316 = vrot.slane %v5122, 1
      %v5317 = vsel %vm764, %v5314, %v5316
      %v5318 = vrot.slane %v5123, 1
      %v5319 = vrot.slane %v5124, 1
      %v5320 = vsel %vm764, %v5318, %v5319
      %v5321 = vrot.slane %v5125, 1
      %v5322 = vsel %vm764, %v5319, %v5321
      %v5323 = vrot.slane %v5126, 1
      %v5324 = vsel %vm764, %v5321, %v5323
      %v5379 = vadd.f32 %v5000, %v5201
      %v5380 = vadd.f32 %v5001, %v5203
      %v5381 = vadd.f32 %v5002, %v5205
      %v5382 = vadd.f32 %v5003, %v5208
      %v5383 = vadd.f32 %v5004, %v5210
      %v5384 = vadd.f32 %v5005, %v5212
      %v5385 = vadd.f32 %v5006, %v5215
      %v5386 = vadd.f32 %v5007, %v5217
      %v5387 = vadd.f32 %v5008, %v5219
      %v5388 = vadd.f32 %v5009, %v5222
      %v5389 = vadd.f32 %v5010, %v5224
      %v5390 = vadd.f32 %v5011, %v5226
      %v5391 = vadd.f32 %v5012, %v5229
      %v5392 = vadd.f32 %v5013, %v5231
      %v5393 = vadd.f32 %v5014, %v5233
      %v5394 = vadd.f32 %v5015, %v5236
      %v5395 = vadd.f32 %v5016, %v5238
      %v5396 = vadd.f32 %v5017, %v5240
      %v5397 = vadd.f32 %v5018, %v5243
      %v5398 = vadd.f32 %v5019, %v5245
      %v5399 = vadd.f32 %v5020, %v5247
      %v5400 = vadd.f32 %v5021, %v5250
      %v5401 = vadd.f32 %v5022, %v5252
      %v5402 = vadd.f32 %v5023, %v5254
      %v5403 = vadd.f32 %v5024, %v5257
      %v5404 = vadd.f32 %v5025, %v5259
      %v5405 = vadd.f32 %v5026, %v5261
      %v5406 = vadd.f32 %v5027, %v5264
      %v5407 = vadd.f32 %v5028, %v5266
      %v5408 = vadd.f32 %v5029, %v5268
      %v5409 = vadd.f32 %v5030, %v5271
      %v5410 = vadd.f32 %v5031, %v5273
      %v5411 = vadd.f32 %v5032, %v5275
      %v5412 = vadd.f32 %v5033, %v5278
      %v5413 = vadd.f32 %v5034, %v5280
      %v5414 = vadd.f32 %v5035, %v5282
      %v5415 = vadd.f32 %v5036, %v5285
      %v5416 = vadd.f32 %v5037, %v5287
      %v5417 = vadd.f32 %v5038, %v5289
      %v5418 = vadd.f32 %v5039, %v5292
      %v5419 = vadd.f32 %v5040, %v5294
      %v5420 = vadd.f32 %v5041, %v5296
      %v5421 = vadd.f32 %v5042, %v5299
      %v5422 = vadd.f32 %v5043, %v5301
      %v5423 = vadd.f32 %v5044, %v5303
      %v5424 = vadd.f32 %v5045, %v5306
      %v5425 = vadd.f32 %v5046, %v5308
      %v5426 = vadd.f32 %v5047, %v5310
      %v5427 = vadd.f32 %v5048, %v5313
      %v5428 = vadd.f32 %v5049, %v5315
      %v5429 = vadd.f32 %v5050, %v5317
      %v5430 = vadd.f32 %v5051, %v5320
      %v5431 = vadd.f32 %v5052, %v5322
      %v5432 = vadd.f32 %v5053, %v5324
      %v5433 = vperm.slane %v508, 1
      %v5434 = vmul.f32 %v434, %v5433
      %v5435 = vmul.f32 %v435, %v5433
      %v5436 = vmul.f32 %v436, %v5433
      %v5437 = vmul.f32 %v437, %v5433
      %v5438 = vmul.f32 %v438, %v5433
      %v5439 = vmul.f32 %v439, %v5433
      %v5440 = vmul.f32 %v440, %v5433
      %v5441 = vmul.f32 %v441, %v5433
      %v5442 = vmul.f32 %v442, %v5433
      %v5443 = vmul.f32 %v443, %v5433
      %v5444 = vmul.f32 %v444, %v5433
      %v5445 = vmul.f32 %v445, %v5433
      %v5446 = vmul.f32 %v446, %v5433
      %v5447 = vmul.f32 %v447, %v5433
      %v5448 = vmul.f32 %v448, %v5433
      %v5449 = vmul.f32 %v449, %v5433
      %v5450 = vmul.f32 %v450, %v5433
      %v5451 = vmul.f32 %v451, %v5433
      %v5452 = vmul.f32 %v452, %v5433
      %v5453 = vmul.f32 %v453, %v5433
      %v5454 = vmul.f32 %v454, %v5433
      %v5455 = vmul.f32 %v455, %v5433
      %v5456 = vmul.f32 %v456, %v5433
      %v5457 = vmul.f32 %v457, %v5433
      %v5458 = vmul.f32 %v458, %v5433
      %v5459 = vmul.f32 %v459, %v5433
      %v5460 = vmul.f32 %v460, %v5433
      %v5461 = vmul.f32 %v461, %v5433
      %v5462 = vmul.f32 %v462, %v5433
      %v5463 = vmul.f32 %v463, %v5433
      %v5464 = vmul.f32 %v464, %v5433
      %v5465 = vmul.f32 %v465, %v5433
      %v5466 = vmul.f32 %v466, %v5433
      %v5467 = vmul.f32 %v467, %v5433
      %v5468 = vmul.f32 %v468, %v5433
      %v5469 = vmul.f32 %v469, %v5433
      %v5470 = vmul.f32 %v470, %v5433
      %v5471 = vmul.f32 %v471, %v5433
      %v5472 = vmul.f32 %v472, %v5433
      %v5473 = vmul.f32 %v473, %v5433
      %v5474 = vmul.f32 %v474, %v5433
      %v5475 = vmul.f32 %v475, %v5433
      %v5476 = vmul.f32 %v476, %v5433
      %v5477 = vmul.f32 %v477, %v5433
      %v5478 = vmul.f32 %v478, %v5433
      %v5479 = vmul.f32 %v479, %v5433
      %v5480 = vmul.f32 %v480, %v5433
      %v5481 = vmul.f32 %v481, %v5433
      %v5482 = vmul.f32 %v482, %v5433
      %v5483 = vmul.f32 %v483, %v5433
      %v5484 = vmul.f32 %v484, %v5433
      %v5485 = vmul.f32 %v485, %v5433
      %v5486 = vmul.f32 %v486, %v5433
      %v5487 = vmul.f32 %v487, %v5433
      %v5488 = vmul.f32 %v488, %v5433
      %v5489 = vmul.f32 %v489, %v5433
      %v5490 = vmul.f32 %v490, %v5433
      %v5491 = vmul.f32 %v491, %v5433
      %v5492 = vmul.f32 %v492, %v5433
      %v5493 = vmul.f32 %v493, %v5433
      %v5494 = vmul.f32 %v494, %v5433
      %v5495 = vmul.f32 %v495, %v5433
      %v5496 = vmul.f32 %v496, %v5433
      %v5497 = vmul.f32 %v497, %v5433
      %v5498 = vmul.f32 %v498, %v5433
      %v5499 = vmul.f32 %v499, %v5433
      %v5500 = vmul.f32 %v500, %v5433
      %v5501 = vmul.f32 %v501, %v5433
      %v5502 = vmul.f32 %v502, %v5433
      %v5503 = vmul.f32 %v503, %v5433
      %v5504 = vmul.f32 %v504, %v5433
      %v5505 = vmul.f32 %v505, %v5433
      %v5578 = vrot.slane %v5434, 2
      %v5579 = vrot.slane %v5435, 2
      %v5580 = vsel %vm1144, %v5578, %v5579
      %v5581 = vrot.slane %v5436, 2
      %v5582 = vsel %vm1144, %v5579, %v5581
      %v5583 = vrot.slane %v5437, 2
      %v5584 = vsel %vm1144, %v5581, %v5583
      %v5585 = vrot.slane %v5438, 2
      %v5586 = vrot.slane %v5439, 2
      %v5587 = vsel %vm1144, %v5585, %v5586
      %v5588 = vrot.slane %v5440, 2
      %v5589 = vsel %vm1144, %v5586, %v5588
      %v5590 = vrot.slane %v5441, 2
      %v5591 = vsel %vm1144, %v5588, %v5590
      %v5592 = vrot.slane %v5442, 2
      %v5593 = vrot.slane %v5443, 2
      %v5594 = vsel %vm1144, %v5592, %v5593
      %v5595 = vrot.slane %v5444, 2
      %v5596 = vsel %vm1144, %v5593, %v5595
      %v5597 = vrot.slane %v5445, 2
      %v5598 = vsel %vm1144, %v5595, %v5597
      %v5599 = vrot.slane %v5446, 2
      %v5600 = vrot.slane %v5447, 2
      %v5601 = vsel %vm1144, %v5599, %v5600
      %v5602 = vrot.slane %v5448, 2
      %v5603 = vsel %vm1144, %v5600, %v5602
      %v5604 = vrot.slane %v5449, 2
      %v5605 = vsel %vm1144, %v5602, %v5604
      %v5606 = vrot.slane %v5450, 2
      %v5607 = vrot.slane %v5451, 2
      %v5608 = vsel %vm1144, %v5606, %v5607
      %v5609 = vrot.slane %v5452, 2
      %v5610 = vsel %vm1144, %v5607, %v5609
      %v5611 = vrot.slane %v5453, 2
      %v5612 = vsel %vm1144, %v5609, %v5611
      %v5613 = vrot.slane %v5454, 2
      %v5614 = vrot.slane %v5455, 2
      %v5615 = vsel %vm1144, %v5613, %v5614
      %v5616 = vrot.slane %v5456, 2
      %v5617 = vsel %vm1144, %v5614, %v5616
      %v5618 = vrot.slane %v5457, 2
      %v5619 = vsel %vm1144, %v5616, %v5618
      %v5620 = vrot.slane %v5458, 2
      %v5621 = vrot.slane %v5459, 2
      %v5622 = vsel %vm1144, %v5620, %v5621
      %v5623 = vrot.slane %v5460, 2
      %v5624 = vsel %vm1144, %v5621, %v5623
      %v5625 = vrot.slane %v5461, 2
      %v5626 = vsel %vm1144, %v5623, %v5625
      %v5627 = vrot.slane %v5462, 2
      %v5628 = vrot.slane %v5463, 2
      %v5629 = vsel %vm1144, %v5627, %v5628
      %v5630 = vrot.slane %v5464, 2
      %v5631 = vsel %vm1144, %v5628, %v5630
      %v5632 = vrot.slane %v5465, 2
      %v5633 = vsel %vm1144, %v5630, %v5632
      %v5634 = vrot.slane %v5466, 2
      %v5635 = vrot.slane %v5467, 2
      %v5636 = vsel %vm1144, %v5634, %v5635
      %v5637 = vrot.slane %v5468, 2
      %v5638 = vsel %vm1144, %v5635, %v5637
      %v5639 = vrot.slane %v5469, 2
      %v5640 = vsel %vm1144, %v5637, %v5639
      %v5641 = vrot.slane %v5470, 2
      %v5642 = vrot.slane %v5471, 2
      %v5643 = vsel %vm1144, %v5641, %v5642
      %v5644 = vrot.slane %v5472, 2
      %v5645 = vsel %vm1144, %v5642, %v5644
      %v5646 = vrot.slane %v5473, 2
      %v5647 = vsel %vm1144, %v5644, %v5646
      %v5648 = vrot.slane %v5474, 2
      %v5649 = vrot.slane %v5475, 2
      %v5650 = vsel %vm1144, %v5648, %v5649
      %v5651 = vrot.slane %v5476, 2
      %v5652 = vsel %vm1144, %v5649, %v5651
      %v5653 = vrot.slane %v5477, 2
      %v5654 = vsel %vm1144, %v5651, %v5653
      %v5655 = vrot.slane %v5478, 2
      %v5656 = vrot.slane %v5479, 2
      %v5657 = vsel %vm1144, %v5655, %v5656
      %v5658 = vrot.slane %v5480, 2
      %v5659 = vsel %vm1144, %v5656, %v5658
      %v5660 = vrot.slane %v5481, 2
      %v5661 = vsel %vm1144, %v5658, %v5660
      %v5662 = vrot.slane %v5482, 2
      %v5663 = vrot.slane %v5483, 2
      %v5664 = vsel %vm1144, %v5662, %v5663
      %v5665 = vrot.slane %v5484, 2
      %v5666 = vsel %vm1144, %v5663, %v5665
      %v5667 = vrot.slane %v5485, 2
      %v5668 = vsel %vm1144, %v5665, %v5667
      %v5669 = vrot.slane %v5486, 2
      %v5670 = vrot.slane %v5487, 2
      %v5671 = vsel %vm1144, %v5669, %v5670
      %v5672 = vrot.slane %v5488, 2
      %v5673 = vsel %vm1144, %v5670, %v5672
      %v5674 = vrot.slane %v5489, 2
      %v5675 = vsel %vm1144, %v5672, %v5674
      %v5676 = vrot.slane %v5490, 2
      %v5677 = vrot.slane %v5491, 2
      %v5678 = vsel %vm1144, %v5676, %v5677
      %v5679 = vrot.slane %v5492, 2
      %v5680 = vsel %vm1144, %v5677, %v5679
      %v5681 = vrot.slane %v5493, 2
      %v5682 = vsel %vm1144, %v5679, %v5681
      %v5683 = vrot.slane %v5494, 2
      %v5684 = vrot.slane %v5495, 2
      %v5685 = vsel %vm1144, %v5683, %v5684
      %v5686 = vrot.slane %v5496, 2
      %v5687 = vsel %vm1144, %v5684, %v5686
      %v5688 = vrot.slane %v5497, 2
      %v5689 = vsel %vm1144, %v5686, %v5688
      %v5690 = vrot.slane %v5498, 2
      %v5691 = vrot.slane %v5499, 2
      %v5692 = vsel %vm1144, %v5690, %v5691
      %v5693 = vrot.slane %v5500, 2
      %v5694 = vsel %vm1144, %v5691, %v5693
      %v5695 = vrot.slane %v5501, 2
      %v5696 = vsel %vm1144, %v5693, %v5695
      %v5697 = vrot.slane %v5502, 2
      %v5698 = vrot.slane %v5503, 2
      %v5699 = vsel %vm1144, %v5697, %v5698
      %v5700 = vrot.slane %v5504, 2
      %v5701 = vsel %vm1144, %v5698, %v5700
      %v5702 = vrot.slane %v5505, 2
      %v5703 = vsel %vm1144, %v5700, %v5702
      %v5758 = vadd.f32 %v5379, %v5580
      %v5759 = vadd.f32 %v5380, %v5582
      %v5760 = vadd.f32 %v5381, %v5584
      %v5761 = vadd.f32 %v5382, %v5587
      %v5762 = vadd.f32 %v5383, %v5589
      %v5763 = vadd.f32 %v5384, %v5591
      %v5764 = vadd.f32 %v5385, %v5594
      %v5765 = vadd.f32 %v5386, %v5596
      %v5766 = vadd.f32 %v5387, %v5598
      %v5767 = vadd.f32 %v5388, %v5601
      %v5768 = vadd.f32 %v5389, %v5603
      %v5769 = vadd.f32 %v5390, %v5605
      %v5770 = vadd.f32 %v5391, %v5608
      %v5771 = vadd.f32 %v5392, %v5610
      %v5772 = vadd.f32 %v5393, %v5612
      %v5773 = vadd.f32 %v5394, %v5615
      %v5774 = vadd.f32 %v5395, %v5617
      %v5775 = vadd.f32 %v5396, %v5619
      %v5776 = vadd.f32 %v5397, %v5622
      %v5777 = vadd.f32 %v5398, %v5624
      %v5778 = vadd.f32 %v5399, %v5626
      %v5779 = vadd.f32 %v5400, %v5629
      %v5780 = vadd.f32 %v5401, %v5631
      %v5781 = vadd.f32 %v5402, %v5633
      %v5782 = vadd.f32 %v5403, %v5636
      %v5783 = vadd.f32 %v5404, %v5638
      %v5784 = vadd.f32 %v5405, %v5640
      %v5785 = vadd.f32 %v5406, %v5643
      %v5786 = vadd.f32 %v5407, %v5645
      %v5787 = vadd.f32 %v5408, %v5647
      %v5788 = vadd.f32 %v5409, %v5650
      %v5789 = vadd.f32 %v5410, %v5652
      %v5790 = vadd.f32 %v5411, %v5654
      %v5791 = vadd.f32 %v5412, %v5657
      %v5792 = vadd.f32 %v5413, %v5659
      %v5793 = vadd.f32 %v5414, %v5661
      %v5794 = vadd.f32 %v5415, %v5664
      %v5795 = vadd.f32 %v5416, %v5666
      %v5796 = vadd.f32 %v5417, %v5668
      %v5797 = vadd.f32 %v5418, %v5671
      %v5798 = vadd.f32 %v5419, %v5673
      %v5799 = vadd.f32 %v5420, %v5675
      %v5800 = vadd.f32 %v5421, %v5678
      %v5801 = vadd.f32 %v5422, %v5680
      %v5802 = vadd.f32 %v5423, %v5682
      %v5803 = vadd.f32 %v5424, %v5685
      %v5804 = vadd.f32 %v5425, %v5687
      %v5805 = vadd.f32 %v5426, %v5689
      %v5806 = vadd.f32 %v5427, %v5692
      %v5807 = vadd.f32 %v5428, %v5694
      %v5808 = vadd.f32 %v5429, %v5696
      %v5809 = vadd.f32 %v5430, %v5699
      %v5810 = vadd.f32 %v5431, %v5701
      %v5811 = vadd.f32 %v5432, %v5703
      %v5812 = vperm.slane %v509, 1
      %v5813 = vadd.f32 %v5758, %v5812
      %v5814 = vadd.f32 %v5759, %v5812
      %v5815 = vadd.f32 %v5760, %v5812
      %v5816 = vadd.f32 %v5761, %v5812
      %v5817 = vadd.f32 %v5762, %v5812
      %v5818 = vadd.f32 %v5763, %v5812
      %v5819 = vadd.f32 %v5764, %v5812
      %v5820 = vadd.f32 %v5765, %v5812
      %v5821 = vadd.f32 %v5766, %v5812
      %v5822 = vadd.f32 %v5767, %v5812
      %v5823 = vadd.f32 %v5768, %v5812
      %v5824 = vadd.f32 %v5769, %v5812
      %v5825 = vadd.f32 %v5770, %v5812
      %v5826 = vadd.f32 %v5771, %v5812
      %v5827 = vadd.f32 %v5772, %v5812
      %v5828 = vadd.f32 %v5773, %v5812
      %v5829 = vadd.f32 %v5774, %v5812
      %v5830 = vadd.f32 %v5775, %v5812
      %v5831 = vadd.f32 %v5776, %v5812
      %v5832 = vadd.f32 %v5777, %v5812
      %v5833 = vadd.f32 %v5778, %v5812
      %v5834 = vadd.f32 %v5779, %v5812
      %v5835 = vadd.f32 %v5780, %v5812
      %v5836 = vadd.f32 %v5781, %v5812
      %v5837 = vadd.f32 %v5782, %v5812
      %v5838 = vadd.f32 %v5783, %v5812
      %v5839 = vadd.f32 %v5784, %v5812
      %v5840 = vadd.f32 %v5785, %v5812
      %v5841 = vadd.f32 %v5786, %v5812
      %v5842 = vadd.f32 %v5787, %v5812
      %v5843 = vadd.f32 %v5788, %v5812
      %v5844 = vadd.f32 %v5789, %v5812
      %v5845 = vadd.f32 %v5790, %v5812
      %v5846 = vadd.f32 %v5791, %v5812
      %v5847 = vadd.f32 %v5792, %v5812
      %v5848 = vadd.f32 %v5793, %v5812
      %v5849 = vadd.f32 %v5794, %v5812
      %v5850 = vadd.f32 %v5795, %v5812
      %v5851 = vadd.f32 %v5796, %v5812
      %v5852 = vadd.f32 %v5797, %v5812
      %v5853 = vadd.f32 %v5798, %v5812
      %v5854 = vadd.f32 %v5799, %v5812
      %v5855 = vadd.f32 %v5800, %v5812
      %v5856 = vadd.f32 %v5801, %v5812
      %v5857 = vadd.f32 %v5802, %v5812
      %v5858 = vadd.f32 %v5803, %v5812
      %v5859 = vadd.f32 %v5804, %v5812
      %v5860 = vadd.f32 %v5805, %v5812
      %v5861 = vadd.f32 %v5806, %v5812
      %v5862 = vadd.f32 %v5807, %v5812
      %v5863 = vadd.f32 %v5808, %v5812
      %v5864 = vadd.f32 %v5809, %v5812
      %v5865 = vadd.f32 %v5810, %v5812
      %v5866 = vadd.f32 %v5811, %v5812
      %v5867 = vpack.c.bf16 %v5814, %v5813
      %v5868 = vpack.c.bf16 %v5816, %v5815
      %v5869 = vpack.c.bf16 %v5818, %v5817
      %v5870 = vpack.c.bf16 %v5820, %v5819
      %v5871 = vpack.c.bf16 %v5822, %v5821
      %v5872 = vpack.c.bf16 %v5824, %v5823
      %v5873 = vpack.c.bf16 %v5826, %v5825
      %v5874 = vpack.c.bf16 %v5828, %v5827
      %v5875 = vpack.c.bf16 %v5830, %v5829
      %v5876 = vpack.c.bf16 %v5832, %v5831
      %v5877 = vpack.c.bf16 %v5834, %v5833
      %v5878 = vpack.c.bf16 %v5836, %v5835
      %v5879 = vpack.c.bf16 %v5838, %v5837
      %v5880 = vpack.c.bf16 %v5840, %v5839
      %v5881 = vpack.c.bf16 %v5842, %v5841
      %v5882 = vpack.c.bf16 %v5844, %v5843
      %v5883 = vpack.c.bf16 %v5846, %v5845
      %v5884 = vpack.c.bf16 %v5848, %v5847
      %v5885 = vpack.c.bf16 %v5850, %v5849
      %v5886 = vpack.c.bf16 %v5852, %v5851
      %v5887 = vpack.c.bf16 %v5854, %v5853
      %v5888 = vpack.c.bf16 %v5856, %v5855
      %v5889 = vpack.c.bf16 %v5858, %v5857
      %v5890 = vpack.c.bf16 %v5860, %v5859
      %v5891 = vpack.c.bf16 %v5862, %v5861
      %v5892 = vpack.c.bf16 %v5864, %v5863
      %v5893 = vpack.c.bf16 %v5866, %v5865
      %v5894 = vld [vmem:[%s3 + $0x40] sm:$0xf]
      %v5895 = vld [vmem:[%s3 + $0x44] sm:$0xf]
      %v5896 = vld [vmem:[%s3 + $0x48] sm:$0xf]
      %v5897 = vld [vmem:[%s3 + $0x4c] sm:$0xf]
      %v5898 = vld [vmem:[%s3 + $0x50] sm:$0xf]
      %v5899 = vld [vmem:[%s3 + $0x54] sm:$0xf]
      %v5900 = vld [vmem:[%s3 + $0x58] sm:$0xf]
      %v5901 = vld [vmem:[%s3 + $0x5c] sm:$0xf]
      %v5902 = vld [vmem:[%s3 + $0x60] sm:$0xf]
      %v5903 = vld [vmem:[%s3 + $0x64] sm:$0xf]
      %v5904 = vld [vmem:[%s3 + $0x68] sm:$0xf]
      %v5905 = vld [vmem:[%s3 + $0x6c] sm:$0xf]
      %v5906 = vld [vmem:[%s3 + $0x70] sm:$0xf]
      %v5907 = vld [vmem:[%s3 + $0x74] sm:$0xf]
      %v5908 = vld [vmem:[%s3 + $0x78] sm:$0xf]
      %v5909 = vld [vmem:[%s3 + $0x7c] sm:$0xf]
      %v5926 = vunpack.c.l.b16 %v5894
      %v5927 = vunpack.c.l.b16 %v5895
      %v5928 = vunpack.c.l.b16 %v5896
      %v5929 = vunpack.c.l.b16 %v5897
      %v5930 = vunpack.c.l.b16 %v5898
      %v5931 = vunpack.c.l.b16 %v5899
      %v5932 = vunpack.c.l.b16 %v5900
      %v5933 = vunpack.c.l.b16 %v5901
      %v5934 = vunpack.c.l.b16 %v5902
      %v5935 = vunpack.c.l.b16 %v5903
      %v5936 = vunpack.c.l.b16 %v5904
      %v5937 = vunpack.c.l.b16 %v5905
      %v5938 = vunpack.c.l.b16 %v5906
      %v5939 = vunpack.c.l.b16 %v5907
      %v5940 = vunpack.c.l.b16 %v5908
      %v5941 = vunpack.c.l.b16 %v5909
      %v5942 = vpack.c.b16 %v5927, %v5926
      %v5943 = vpack.c.b16 %v5929, %v5928
      %v5944 = vpack.c.b16 %v5931, %v5930
      %v5945 = vpack.c.b16 %v5933, %v5932
      %v5946 = vpack.c.b16 %v5935, %v5934
      %v5947 = vpack.c.b16 %v5937, %v5936
      %v5948 = vpack.c.b16 %v5939, %v5938
      %v5949 = vpack.c.b16 %v5941, %v5940
      %5958 = vmatpush.bf16.msra.mxu0 %v5949
      %5959 = vmatpush.bf16.msra.mxu0 %v5948
      %5960 = vmatpush.bf16.msra.mxu0 %v5947
      %5961 = vmatpush.bf16.msra.mxu0 %v5946
      %5962 = vmatpush.bf16.msra.mxu0 %v5945
      %5963 = vmatpush.bf16.msra.mxu0 %v5944
      %5964 = vmatpush.bf16.msra.mxu0 %v5943
      %5965 = vmatpush.bf16.msra.mxu0 %v5942
      %5966 = vmatmul.bf16.gmra.mxu0 %v5867
      %v5967 = vpop.f32.mrf.mxu0
      %v5968 = vadd.f32 0.0, %v5967
      %v5969 = vpop.f32.mrf.mxu0
      %v5970 = vadd.f32 0.0, %v5969
      %5971 = vmatmul.bf16.gmra.mxu0 %v5868
      %v5972 = vpop.f32.mrf.mxu0
      %v5973 = vadd.f32 0.0, %v5972
      %v5974 = vpop.f32.mrf.mxu0
      %v5975 = vadd.f32 0.0, %v5974
      %5976 = vmatmul.bf16.gmra.mxu0 %v5869
      %v5977 = vpop.f32.mrf.mxu0
      %v5978 = vadd.f32 0.0, %v5977
      %v5979 = vpop.f32.mrf.mxu0
      %v5980 = vadd.f32 0.0, %v5979
      %5981 = vmatmul.bf16.gmra.mxu0 %v5870
      %v5982 = vpop.f32.mrf.mxu0
      %v5983 = vadd.f32 0.0, %v5982
      %v5984 = vpop.f32.mrf.mxu0
      %v5985 = vadd.f32 0.0, %v5984
      %5986 = vmatmul.bf16.gmra.mxu0 %v5871
      %v5987 = vpop.f32.mrf.mxu0
      %v5988 = vadd.f32 0.0, %v5987
      %v5989 = vpop.f32.mrf.mxu0
      %v5990 = vadd.f32 0.0, %v5989
      %5991 = vmatmul.bf16.gmra.mxu0 %v5872
      %v5992 = vpop.f32.mrf.mxu0
      %v5993 = vadd.f32 0.0, %v5992
      %v5994 = vpop.f32.mrf.mxu0
      %v5995 = vadd.f32 0.0, %v5994
      %5996 = vmatmul.bf16.gmra.mxu0 %v5873
      %v5997 = vpop.f32.mrf.mxu0
      %v5998 = vadd.f32 0.0, %v5997
      %v5999 = vpop.f32.mrf.mxu0
      %v6000 = vadd.f32 0.0, %v5999
      %6001 = vmatmul.bf16.gmra.mxu0 %v5874
      %v6002 = vpop.f32.mrf.mxu0
      %v6003 = vadd.f32 0.0, %v6002
      %v6004 = vpop.f32.mrf.mxu0
      %v6005 = vadd.f32 0.0, %v6004
      %6006 = vmatmul.bf16.gmra.mxu0 %v5875
      %v6007 = vpop.f32.mrf.mxu0
      %v6008 = vadd.f32 0.0, %v6007
      %v6009 = vpop.f32.mrf.mxu0
      %v6010 = vadd.f32 0.0, %v6009
      %6011 = vmatmul.bf16.gmra.mxu0 %v5876
      %v6012 = vpop.f32.mrf.mxu0
      %v6013 = vadd.f32 0.0, %v6012
      %v6014 = vpop.f32.mrf.mxu0
      %v6015 = vadd.f32 0.0, %v6014
      %6016 = vmatmul.bf16.gmra.mxu0 %v5877
      %v6017 = vpop.f32.mrf.mxu0
      %v6018 = vadd.f32 0.0, %v6017
      %v6019 = vpop.f32.mrf.mxu0
      %v6020 = vadd.f32 0.0, %v6019
      %6021 = vmatmul.bf16.gmra.mxu0 %v5878
      %v6022 = vpop.f32.mrf.mxu0
      %v6023 = vadd.f32 0.0, %v6022
      %v6024 = vpop.f32.mrf.mxu0
      %v6025 = vadd.f32 0.0, %v6024
      %6026 = vmatmul.bf16.gmra.mxu0 %v5879
      %v6027 = vpop.f32.mrf.mxu0
      %v6028 = vadd.f32 0.0, %v6027
      %v6029 = vpop.f32.mrf.mxu0
      %v6030 = vadd.f32 0.0, %v6029
      %6031 = vmatmul.bf16.gmra.mxu0 %v5880
      %v6032 = vpop.f32.mrf.mxu0
      %v6033 = vadd.f32 0.0, %v6032
      %v6034 = vpop.f32.mrf.mxu0
      %v6035 = vadd.f32 0.0, %v6034
      %6036 = vmatmul.bf16.gmra.mxu0 %v5881
      %v6037 = vpop.f32.mrf.mxu0
      %v6038 = vadd.f32 0.0, %v6037
      %v6039 = vpop.f32.mrf.mxu0
      %v6040 = vadd.f32 0.0, %v6039
      %6041 = vmatmul.bf16.gmra.mxu0 %v5882
      %v6042 = vpop.f32.mrf.mxu0
      %v6043 = vadd.f32 0.0, %v6042
      %v6044 = vpop.f32.mrf.mxu0
      %v6045 = vadd.f32 0.0, %v6044
      %6046 = vmatmul.bf16.gmra.mxu0 %v5883
      %v6047 = vpop.f32.mrf.mxu0
      %v6048 = vadd.f32 0.0, %v6047
      %v6049 = vpop.f32.mrf.mxu0
      %v6050 = vadd.f32 0.0, %v6049
      %6051 = vmatmul.bf16.gmra.mxu0 %v5884
      %v6052 = vpop.f32.mrf.mxu0
      %v6053 = vadd.f32 0.0, %v6052
      %v6054 = vpop.f32.mrf.mxu0
      %v6055 = vadd.f32 0.0, %v6054
      %6056 = vmatmul.bf16.gmra.mxu0 %v5885
      %v6057 = vpop.f32.mrf.mxu0
      %v6058 = vadd.f32 0.0, %v6057
      %v6059 = vpop.f32.mrf.mxu0
      %v6060 = vadd.f32 0.0, %v6059
      %6061 = vmatmul.bf16.gmra.mxu0 %v5886
      %v6062 = vpop.f32.mrf.mxu0
      %v6063 = vadd.f32 0.0, %v6062
      %v6064 = vpop.f32.mrf.mxu0
      %v6065 = vadd.f32 0.0, %v6064
      %6066 = vmatmul.bf16.gmra.mxu0 %v5887
      %v6067 = vpop.f32.mrf.mxu0
      %v6068 = vadd.f32 0.0, %v6067
      %v6069 = vpop.f32.mrf.mxu0
      %v6070 = vadd.f32 0.0, %v6069
      %6071 = vmatmul.bf16.gmra.mxu0 %v5888
      %v6072 = vpop.f32.mrf.mxu0
      %v6073 = vadd.f32 0.0, %v6072
      %v6074 = vpop.f32.mrf.mxu0
      %v6075 = vadd.f32 0.0, %v6074
      %6076 = vmatmul.bf16.gmra.mxu0 %v5889
      %v6077 = vpop.f32.mrf.mxu0
      %v6078 = vadd.f32 0.0, %v6077
      %v6079 = vpop.f32.mrf.mxu0
      %v6080 = vadd.f32 0.0, %v6079
      %6081 = vmatmul.bf16.gmra.mxu0 %v5890
      %v6082 = vpop.f32.mrf.mxu0
      %v6083 = vadd.f32 0.0, %v6082
      %v6084 = vpop.f32.mrf.mxu0
      %v6085 = vadd.f32 0.0, %v6084
      %6086 = vmatmul.bf16.gmra.mxu0 %v5891
      %v6087 = vpop.f32.mrf.mxu0
      %v6088 = vadd.f32 0.0, %v6087
      %v6089 = vpop.f32.mrf.mxu0
      %v6090 = vadd.f32 0.0, %v6089
      %6091 = vmatmul.bf16.gmra.mxu0 %v5892
      %v6092 = vpop.f32.mrf.mxu0
      %v6093 = vadd.f32 0.0, %v6092
      %v6094 = vpop.f32.mrf.mxu0
      %v6095 = vadd.f32 0.0, %v6094
      %6096 = vmatmul.bf16.gmra.mxu0 %v5893
      %v6097 = vpop.f32.mrf.mxu0
      %v6098 = vadd.f32 0.0, %v6097
      %v6099 = vpop.f32.mrf.mxu0
      %v6100 = vadd.f32 0.0, %v6099
      %6101 = vdwg.mxu0
      %v6118 = vunpack.c.l.b16 %v3195
      %v6119 = vunpack.c.l.b16 %v3196
      %v6120 = vunpack.c.l.b16 %v3197
      %v6121 = vunpack.c.l.b16 %v3198
      %v6122 = vunpack.c.l.b16 %v3199
      %v6123 = vunpack.c.l.b16 %v3200
      %v6124 = vunpack.c.l.b16 %v3201
      %v6125 = vunpack.c.l.b16 %v3202
      %v6126 = vunpack.c.l.b16 %v3203
      %v6127 = vunpack.c.l.b16 %v3204
      %v6128 = vunpack.c.l.b16 %v3205
      %v6129 = vunpack.c.l.b16 %v3206
      %v6130 = vunpack.c.l.b16 %v3207
      %v6131 = vunpack.c.l.b16 %v3208
      %v6132 = vunpack.c.l.b16 %v3209
      %v6133 = vunpack.c.l.b16 %v3210
      %v6134 = vpack.c.b16 %v6119, %v6118
      %v6135 = vpack.c.b16 %v6121, %v6120
      %v6136 = vpack.c.b16 %v6123, %v6122
      %v6137 = vpack.c.b16 %v6125, %v6124
      %v6138 = vpack.c.b16 %v6127, %v6126
      %v6139 = vpack.c.b16 %v6129, %v6128
      %v6140 = vpack.c.b16 %v6131, %v6130
      %v6141 = vpack.c.b16 %v6133, %v6132
      %6150 = vmatpush.bf16.msra.mxu0 %v6141
      %6151 = vmatpush.bf16.msra.mxu0 %v6140
      %6152 = vmatpush.bf16.msra.mxu0 %v6139
      %6153 = vmatpush.bf16.msra.mxu0 %v6138
      %6154 = vmatpush.bf16.msra.mxu0 %v6137
      %6155 = vmatpush.bf16.msra.mxu0 %v6136
      %6156 = vmatpush.bf16.msra.mxu0 %v6135
      %6157 = vmatpush.bf16.msra.mxu0 %v6134
      %6158 = vmatmul.bf16.gmra.mxu0 %v3168
      %v6159 = vpop.f32.mrf.mxu0
      %v6160 = vadd.f32 %v5968, %v6159
      %v6161 = vpop.f32.mrf.mxu0
      %v6162 = vadd.f32 %v5970, %v6161
      %6163 = vmatmul.bf16.gmra.mxu0 %v3169
      %v6164 = vpop.f32.mrf.mxu0
      %v6165 = vadd.f32 %v5973, %v6164
      %v6166 = vpop.f32.mrf.mxu0
      %v6167 = vadd.f32 %v5975, %v6166
      %6168 = vmatmul.bf16.gmra.mxu0 %v3170
      %v6169 = vpop.f32.mrf.mxu0
      %v6170 = vadd.f32 %v5978, %v6169
      %v6171 = vpop.f32.mrf.mxu0
      %v6172 = vadd.f32 %v5980, %v6171
      %6173 = vmatmul.bf16.gmra.mxu0 %v3171
      %v6174 = vpop.f32.mrf.mxu0
      %v6175 = vadd.f32 %v5983, %v6174
      %v6176 = vpop.f32.mrf.mxu0
      %v6177 = vadd.f32 %v5985, %v6176
      %6178 = vmatmul.bf16.gmra.mxu0 %v3172
      %v6179 = vpop.f32.mrf.mxu0
      %v6180 = vadd.f32 %v5988, %v6179
      %v6181 = vpop.f32.mrf.mxu0
      %v6182 = vadd.f32 %v5990, %v6181
      %6183 = vmatmul.bf16.gmra.mxu0 %v3173
      %v6184 = vpop.f32.mrf.mxu0
      %v6185 = vadd.f32 %v5993, %v6184
      %v6186 = vpop.f32.mrf.mxu0
      %v6187 = vadd.f32 %v5995, %v6186
      %6188 = vmatmul.bf16.gmra.mxu0 %v3174
      %v6189 = vpop.f32.mrf.mxu0
      %v6190 = vadd.f32 %v5998, %v6189
      %v6191 = vpop.f32.mrf.mxu0
      %v6192 = vadd.f32 %v6000, %v6191
      %6193 = vmatmul.bf16.gmra.mxu0 %v3175
      %v6194 = vpop.f32.mrf.mxu0
      %v6195 = vadd.f32 %v6003, %v6194
      %v6196 = vpop.f32.mrf.mxu0
      %v6197 = vadd.f32 %v6005, %v6196
      %6198 = vmatmul.bf16.gmra.mxu0 %v3176
      %v6199 = vpop.f32.mrf.mxu0
      %v6200 = vadd.f32 %v6008, %v6199
      %v6201 = vpop.f32.mrf.mxu0
      %v6202 = vadd.f32 %v6010, %v6201
      %6203 = vmatmul.bf16.gmra.mxu0 %v3177
      %v6204 = vpop.f32.mrf.mxu0
      %v6205 = vadd.f32 %v6013, %v6204
      %v6206 = vpop.f32.mrf.mxu0
      %v6207 = vadd.f32 %v6015, %v6206
      %6208 = vmatmul.bf16.gmra.mxu0 %v3178
      %v6209 = vpop.f32.mrf.mxu0
      %v6210 = vadd.f32 %v6018, %v6209
      %v6211 = vpop.f32.mrf.mxu0
      %v6212 = vadd.f32 %v6020, %v6211
      %6213 = vmatmul.bf16.gmra.mxu0 %v3179
      %v6214 = vpop.f32.mrf.mxu0
      %v6215 = vadd.f32 %v6023, %v6214
      %v6216 = vpop.f32.mrf.mxu0
      %v6217 = vadd.f32 %v6025, %v6216
      %6218 = vmatmul.bf16.gmra.mxu0 %v3180
      %v6219 = vpop.f32.mrf.mxu0
      %v6220 = vadd.f32 %v6028, %v6219
      %v6221 = vpop.f32.mrf.mxu0
      %v6222 = vadd.f32 %v6030, %v6221
      %6223 = vmatmul.bf16.gmra.mxu0 %v3181
      %v6224 = vpop.f32.mrf.mxu0
      %v6225 = vadd.f32 %v6033, %v6224
      %v6226 = vpop.f32.mrf.mxu0
      %v6227 = vadd.f32 %v6035, %v6226
      %6228 = vmatmul.bf16.gmra.mxu0 %v3182
      %v6229 = vpop.f32.mrf.mxu0
      %v6230 = vadd.f32 %v6038, %v6229
      %v6231 = vpop.f32.mrf.mxu0
      %v6232 = vadd.f32 %v6040, %v6231
      %6233 = vmatmul.bf16.gmra.mxu0 %v3183
      %v6234 = vpop.f32.mrf.mxu0
      %v6235 = vadd.f32 %v6043, %v6234
      %v6236 = vpop.f32.mrf.mxu0
      %v6237 = vadd.f32 %v6045, %v6236
      %6238 = vmatmul.bf16.gmra.mxu0 %v3184
      %v6239 = vpop.f32.mrf.mxu0
      %v6240 = vadd.f32 %v6048, %v6239
      %v6241 = vpop.f32.mrf.mxu0
      %v6242 = vadd.f32 %v6050, %v6241
      %6243 = vmatmul.bf16.gmra.mxu0 %v3185
      %v6244 = vpop.f32.mrf.mxu0
      %v6245 = vadd.f32 %v6053, %v6244
      %v6246 = vpop.f32.mrf.mxu0
      %v6247 = vadd.f32 %v6055, %v6246
      %6248 = vmatmul.bf16.gmra.mxu0 %v3186
      %v6249 = vpop.f32.mrf.mxu0
      %v6250 = vadd.f32 %v6058, %v6249
      %v6251 = vpop.f32.mrf.mxu0
      %v6252 = vadd.f32 %v6060, %v6251
      %6253 = vmatmul.bf16.gmra.mxu0 %v3187
      %v6254 = vpop.f32.mrf.mxu0
      %v6255 = vadd.f32 %v6063, %v6254
      %v6256 = vpop.f32.mrf.mxu0
      %v6257 = vadd.f32 %v6065, %v6256
      %6258 = vmatmul.bf16.gmra.mxu0 %v3188
      %v6259 = vpop.f32.mrf.mxu0
      %v6260 = vadd.f32 %v6068, %v6259
      %v6261 = vpop.f32.mrf.mxu0
      %v6262 = vadd.f32 %v6070, %v6261
      %6263 = vmatmul.bf16.gmra.mxu0 %v3189
      %v6264 = vpop.f32.mrf.mxu0
      %v6265 = vadd.f32 %v6073, %v6264
      %v6266 = vpop.f32.mrf.mxu0
      %v6267 = vadd.f32 %v6075, %v6266
      %6268 = vmatmul.bf16.gmra.mxu0 %v3190
      %v6269 = vpop.f32.mrf.mxu0
      %v6270 = vadd.f32 %v6078, %v6269
      %v6271 = vpop.f32.mrf.mxu0
      %v6272 = vadd.f32 %v6080, %v6271
      %6273 = vmatmul.bf16.gmra.mxu0 %v3191
      %v6274 = vpop.f32.mrf.mxu0
      %v6275 = vadd.f32 %v6083, %v6274
      %v6276 = vpop.f32.mrf.mxu0
      %v6277 = vadd.f32 %v6085, %v6276
      %6278 = vmatmul.bf16.gmra.mxu0 %v3192
      %v6279 = vpop.f32.mrf.mxu0
      %v6280 = vadd.f32 %v6088, %v6279
      %v6281 = vpop.f32.mrf.mxu0
      %v6282 = vadd.f32 %v6090, %v6281
      %6283 = vmatmul.bf16.gmra.mxu0 %v3193
      %v6284 = vpop.f32.mrf.mxu0
      %v6285 = vadd.f32 %v6093, %v6284
      %v6286 = vpop.f32.mrf.mxu0
      %v6287 = vadd.f32 %v6095, %v6286
      %6288 = vmatmul.bf16.gmra.mxu0 %v3194
      %v6289 = vpop.f32.mrf.mxu0
      %v6290 = vadd.f32 %v6098, %v6289
      %v6291 = vpop.f32.mrf.mxu0
      %v6292 = vadd.f32 %v6100, %v6291
      %6293 = vdwg.mxu0
      %v6294 = vld [vmem:[%s4] sm:$0x1]
      %v6296 = vperm.slane %v6294, 0
      %v6298 = vmul.f32 %v6160, %v6296
      %v6299 = vmul.f32 %v6162, %v6296
      %v6300 = vmul.f32 %v6165, %v6296
      %v6301 = vmul.f32 %v6167, %v6296
      %v6302 = vmul.f32 %v6170, %v6296
      %v6303 = vmul.f32 %v6172, %v6296
      %v6304 = vmul.f32 %v6175, %v6296
      %v6305 = vmul.f32 %v6177, %v6296
      %v6306 = vmul.f32 %v6180, %v6296
      %v6307 = vmul.f32 %v6182, %v6296
      %v6308 = vmul.f32 %v6185, %v6296
      %v6309 = vmul.f32 %v6187, %v6296
      %v6310 = vmul.f32 %v6190, %v6296
      %v6311 = vmul.f32 %v6192, %v6296
      %v6312 = vmul.f32 %v6195, %v6296
      %v6313 = vmul.f32 %v6197, %v6296
      %v6314 = vmul.f32 %v6200, %v6296
      %v6315 = vmul.f32 %v6202, %v6296
      %v6316 = vmul.f32 %v6205, %v6296
      %v6317 = vmul.f32 %v6207, %v6296
      %v6318 = vmul.f32 %v6210, %v6296
      %v6319 = vmul.f32 %v6212, %v6296
      %v6320 = vmul.f32 %v6215, %v6296
      %v6321 = vmul.f32 %v6217, %v6296
      %v6322 = vmul.f32 %v6220, %v6296
      %v6323 = vmul.f32 %v6222, %v6296
      %v6324 = vmul.f32 %v6225, %v6296
      %v6325 = vmul.f32 %v6227, %v6296
      %v6326 = vmul.f32 %v6230, %v6296
      %v6327 = vmul.f32 %v6232, %v6296
      %v6328 = vmul.f32 %v6235, %v6296
      %v6329 = vmul.f32 %v6237, %v6296
      %v6330 = vmul.f32 %v6240, %v6296
      %v6331 = vmul.f32 %v6242, %v6296
      %v6332 = vmul.f32 %v6245, %v6296
      %v6333 = vmul.f32 %v6247, %v6296
      %v6334 = vmul.f32 %v6250, %v6296
      %v6335 = vmul.f32 %v6252, %v6296
      %v6336 = vmul.f32 %v6255, %v6296
      %v6337 = vmul.f32 %v6257, %v6296
      %v6338 = vmul.f32 %v6260, %v6296
      %v6339 = vmul.f32 %v6262, %v6296
      %v6340 = vmul.f32 %v6265, %v6296
      %v6341 = vmul.f32 %v6267, %v6296
      %v6342 = vmul.f32 %v6270, %v6296
      %v6343 = vmul.f32 %v6272, %v6296
      %v6344 = vmul.f32 %v6275, %v6296
      %v6345 = vmul.f32 %v6277, %v6296
      %v6346 = vmul.f32 %v6280, %v6296
      %v6347 = vmul.f32 %v6282, %v6296
      %v6348 = vmul.f32 %v6285, %v6296
      %v6349 = vmul.f32 %v6287, %v6296
      %v6350 = vmul.f32 %v6290, %v6296
      %v6351 = vmul.f32 %v6292, %v6296
      %v6352 = vld [vmem:[%s5] sm:$0x1]
      %v6354 = vperm.slane %v6352, 0
      %v6356 = vadd.f32 %v6298, %v6354
      %v6357 = vadd.f32 %v6299, %v6354
      %v6358 = vadd.f32 %v6300, %v6354
      %v6359 = vadd.f32 %v6301, %v6354
      %v6360 = vadd.f32 %v6302, %v6354
      %v6361 = vadd.f32 %v6303, %v6354
      %v6362 = vadd.f32 %v6304, %v6354
      %v6363 = vadd.f32 %v6305, %v6354
      %v6364 = vadd.f32 %v6306, %v6354
      %v6365 = vadd.f32 %v6307, %v6354
      %v6366 = vadd.f32 %v6308, %v6354
      %v6367 = vadd.f32 %v6309, %v6354
      %v6368 = vadd.f32 %v6310, %v6354
      %v6369 = vadd.f32 %v6311, %v6354
      %v6370 = vadd.f32 %v6312, %v6354
      %v6371 = vadd.f32 %v6313, %v6354
      %v6372 = vadd.f32 %v6314, %v6354
      %v6373 = vadd.f32 %v6315, %v6354
      %v6374 = vadd.f32 %v6316, %v6354
      %v6375 = vadd.f32 %v6317, %v6354
      %v6376 = vadd.f32 %v6318, %v6354
      %v6377 = vadd.f32 %v6319, %v6354
      %v6378 = vadd.f32 %v6320, %v6354
      %v6379 = vadd.f32 %v6321, %v6354
      %v6380 = vadd.f32 %v6322, %v6354
      %v6381 = vadd.f32 %v6323, %v6354
      %v6382 = vadd.f32 %v6324, %v6354
      %v6383 = vadd.f32 %v6325, %v6354
      %v6384 = vadd.f32 %v6326, %v6354
      %v6385 = vadd.f32 %v6327, %v6354
      %v6386 = vadd.f32 %v6328, %v6354
      %v6387 = vadd.f32 %v6329, %v6354
      %v6388 = vadd.f32 %v6330, %v6354
      %v6389 = vadd.f32 %v6331, %v6354
      %v6390 = vadd.f32 %v6332, %v6354
      %v6391 = vadd.f32 %v6333, %v6354
      %v6392 = vadd.f32 %v6334, %v6354
      %v6393 = vadd.f32 %v6335, %v6354
      %v6394 = vadd.f32 %v6336, %v6354
      %v6395 = vadd.f32 %v6337, %v6354
      %v6396 = vadd.f32 %v6338, %v6354
      %v6397 = vadd.f32 %v6339, %v6354
      %v6398 = vadd.f32 %v6340, %v6354
      %v6399 = vadd.f32 %v6341, %v6354
      %v6400 = vadd.f32 %v6342, %v6354
      %v6401 = vadd.f32 %v6343, %v6354
      %v6402 = vadd.f32 %v6344, %v6354
      %v6403 = vadd.f32 %v6345, %v6354
      %v6404 = vadd.f32 %v6346, %v6354
      %v6405 = vadd.f32 %v6347, %v6354
      %v6406 = vadd.f32 %v6348, %v6354
      %v6407 = vadd.f32 %v6349, %v6354
      %v6408 = vadd.f32 %v6350, %v6354
      %v6409 = vadd.f32 %v6351, %v6354
      %v6410 = vmax.f32 %v6356, 0.0
      %v6411 = vmax.f32 %v6357, 0.0
      %v6412 = vmax.f32 %v6358, 0.0
      %v6413 = vmax.f32 %v6359, 0.0
      %v6414 = vmax.f32 %v6360, 0.0
      %v6415 = vmax.f32 %v6361, 0.0
      %v6416 = vmax.f32 %v6362, 0.0
      %v6417 = vmax.f32 %v6363, 0.0
      %v6418 = vmax.f32 %v6364, 0.0
      %v6419 = vmax.f32 %v6365, 0.0
      %v6420 = vmax.f32 %v6366, 0.0
      %v6421 = vmax.f32 %v6367, 0.0
      %v6422 = vmax.f32 %v6368, 0.0
      %v6423 = vmax.f32 %v6369, 0.0
      %v6424 = vmax.f32 %v6370, 0.0
      %v6425 = vmax.f32 %v6371, 0.0
      %v6426 = vmax.f32 %v6372, 0.0
      %v6427 = vmax.f32 %v6373, 0.0
      %v6428 = vmax.f32 %v6374, 0.0
      %v6429 = vmax.f32 %v6375, 0.0
      %v6430 = vmax.f32 %v6376, 0.0
      %v6431 = vmax.f32 %v6377, 0.0
      %v6432 = vmax.f32 %v6378, 0.0
      %v6433 = vmax.f32 %v6379, 0.0
      %v6434 = vmax.f32 %v6380, 0.0
      %v6435 = vmax.f32 %v6381, 0.0
      %v6436 = vmax.f32 %v6382, 0.0
      %v6437 = vmax.f32 %v6383, 0.0
      %v6438 = vmax.f32 %v6384, 0.0
      %v6439 = vmax.f32 %v6385, 0.0
      %v6440 = vmax.f32 %v6386, 0.0
      %v6441 = vmax.f32 %v6387, 0.0
      %v6442 = vmax.f32 %v6388, 0.0
      %v6443 = vmax.f32 %v6389, 0.0
      %v6444 = vmax.f32 %v6390, 0.0
      %v6445 = vmax.f32 %v6391, 0.0
      %v6446 = vmax.f32 %v6392, 0.0
      %v6447 = vmax.f32 %v6393, 0.0
      %v6448 = vmax.f32 %v6394, 0.0
      %v6449 = vmax.f32 %v6395, 0.0
      %v6450 = vmax.f32 %v6396, 0.0
      %v6451 = vmax.f32 %v6397, 0.0
      %v6452 = vmax.f32 %v6398, 0.0
      %v6453 = vmax.f32 %v6399, 0.0
      %v6454 = vmax.f32 %v6400, 0.0
      %v6455 = vmax.f32 %v6401, 0.0
      %v6456 = vmax.f32 %v6402, 0.0
      %v6457 = vmax.f32 %v6403, 0.0
      %v6458 = vmax.f32 %v6404, 0.0
      %v6459 = vmax.f32 %v6405, 0.0
      %v6460 = vmax.f32 %v6406, 0.0
      %v6461 = vmax.f32 %v6407, 0.0
      %v6462 = vmax.f32 %v6408, 0.0
      %v6463 = vmax.f32 %v6409, 0.0
      %s6464 = smul.u32 %s27, 16
      %s6465 = ssub.s32 %s6464, 1
      %v6466 = vstv %s6465
      %v6467 = vadd.s32 %v6466, 1
      %v6468 = vadd.s32 %v6466, 2
      %v6469 = vadd.s32 %v6466, 3
      %v6470 = vadd.s32 %v6466, 4
      %v6471 = vadd.s32 %v6466, 5
      %v6472 = vadd.s32 %v6466, 6
      %v6473 = vadd.s32 %v6466, 7
      %v6474 = vadd.s32 %v6466, 8
      %v6475 = vadd.s32 %v6466, 9
      %v6476 = vadd.s32 %v6466, 10
      %v6477 = vadd.s32 %v6466, 11
      %v6478 = vadd.s32 %v6466, 12
      %v6479 = vadd.s32 %v6466, 13
      %v6480 = vadd.s32 %v6466, 14
      %v6481 = vadd.s32 %v6466, 15
      %v6482 = vadd.s32 %v6466, 16
      %v6483 = vadd.s32 %v6466, 17
      %v6484 = vlaneseq
      %v6485 = vshrl.u32 %v6484, 7
      %v6486 = vadd.s32 %v6485, 8
      %v6487 = vadd.s32 %v6485, 16
      %v6488 = vsub.s32 %v6485, 1
      %v6489 = vsub.s32 %v6486, 1
      %v6490 = vsub.s32 %v6487, 1
      %vm6491 = vcmp.ge.s32.totalorder %v6466, 0
      %vm6492 = vcmp.ge.s32.totalorder %v6467, 0
      %vm6493 = vcmp.ge.s32.totalorder %v6468, 0
      %vm6494 = vcmp.ge.s32.totalorder %v6469, 0
      %vm6495 = vcmp.ge.s32.totalorder %v6470, 0
      %vm6496 = vcmp.ge.s32.totalorder %v6471, 0
      %vm6497 = vcmp.ge.s32.totalorder %v6472, 0
      %vm6498 = vcmp.ge.s32.totalorder %v6473, 0
      %vm6499 = vcmp.ge.s32.totalorder %v6474, 0
      %vm6500 = vcmp.ge.s32.totalorder %v6475, 0
      %vm6501 = vcmp.ge.s32.totalorder %v6476, 0
      %vm6502 = vcmp.ge.s32.totalorder %v6477, 0
      %vm6503 = vcmp.ge.s32.totalorder %v6478, 0
      %vm6504 = vcmp.ge.s32.totalorder %v6479, 0
      %vm6505 = vcmp.ge.s32.totalorder %v6480, 0
      %vm6506 = vcmp.ge.s32.totalorder %v6481, 0
      %vm6507 = vcmp.ge.s32.totalorder %v6482, 0
      %vm6508 = vcmp.ge.s32.totalorder %v6483, 0
      %vm6509 = vcmp.lt.s32.totalorder %v6466, 16
      %vm6510 = vcmp.lt.s32.totalorder %v6467, 16
      %vm6511 = vcmp.lt.s32.totalorder %v6468, 16
      %vm6512 = vcmp.lt.s32.totalorder %v6469, 16
      %vm6513 = vcmp.lt.s32.totalorder %v6470, 16
      %vm6514 = vcmp.lt.s32.totalorder %v6471, 16
      %vm6515 = vcmp.lt.s32.totalorder %v6472, 16
      %vm6516 = vcmp.lt.s32.totalorder %v6473, 16
      %vm6517 = vcmp.lt.s32.totalorder %v6474, 16
      %vm6518 = vcmp.lt.s32.totalorder %v6475, 16
      %vm6519 = vcmp.lt.s32.totalorder %v6476, 16
      %vm6520 = vcmp.lt.s32.totalorder %v6477, 16
      %vm6521 = vcmp.lt.s32.totalorder %v6478, 16
      %vm6522 = vcmp.lt.s32.totalorder %v6479, 16
      %vm6523 = vcmp.lt.s32.totalorder %v6480, 16
      %vm6524 = vcmp.lt.s32.totalorder %v6481, 16
      %vm6525 = vcmp.lt.s32.totalorder %v6482, 16
      %vm6526 = vcmp.lt.s32.totalorder %v6483, 16
      %vm6527 = vmand %vm6491, %vm6509
      %vm6528 = vmand %vm6492, %vm6510
      %vm6529 = vmand %vm6493, %vm6511
      %vm6530 = vmand %vm6494, %vm6512
      %vm6531 = vmand %vm6495, %vm6513
      %vm6532 = vmand %vm6496, %vm6514
      %vm6533 = vmand %vm6497, %vm6515
      %vm6534 = vmand %vm6498, %vm6516
      %vm6535 = vmand %vm6499, %vm6517
      %vm6536 = vmand %vm6500, %vm6518
      %vm6537 = vmand %vm6501, %vm6519
      %vm6538 = vmand %vm6502, %vm6520
      %vm6539 = vmand %vm6503, %vm6521
      %vm6540 = vmand %vm6504, %vm6522
      %vm6541 = vmand %vm6505, %vm6523
      %vm6542 = vmand %vm6506, %vm6524
      %vm6543 = vmand %vm6507, %vm6525
      %vm6544 = vmand %vm6508, %vm6526
      %vm6545 = vcmp.ge.s32.totalorder %v6488, 0
      %vm6546 = vcmp.ge.s32.totalorder %v6489, 0
      %vm6547 = vcmp.ge.s32.totalorder %v6490, 0
      %vm6548 = vmand %vm6527, %vm6545
      %vm6549 = vmand %vm6527, %vm6546
      %vm6550 = vmand %vm6527, %vm6547
      %vm6551 = vmand %vm6528, %vm6545
      %vm6552 = vmand %vm6528, %vm6546
      %vm6553 = vmand %vm6528, %vm6547
      %vm6554 = vmand %vm6529, %vm6545
      %vm6555 = vmand %vm6529, %vm6546
      %vm6556 = vmand %vm6529, %vm6547
      %vm6557 = vmand %vm6530, %vm6545
      %vm6558 = vmand %vm6530, %vm6546
      %vm6559 = vmand %vm6530, %vm6547
      %vm6560 = vmand %vm6531, %vm6545
      %vm6561 = vmand %vm6531, %vm6546
      %vm6562 = vmand %vm6531, %vm6547
      %vm6563 = vmand %vm6532, %vm6545
      %vm6564 = vmand %vm6532, %vm6546
      %vm6565 = vmand %vm6532, %vm6547
      %vm6566 = vmand %vm6533, %vm6545
      %vm6567 = vmand %vm6533, %vm6546
      %vm6568 = vmand %vm6533, %vm6547
      %vm6569 = vmand %vm6534, %vm6545
      %vm6570 = vmand %vm6534, %vm6546
      %vm6571 = vmand %vm6534, %vm6547
      %vm6572 = vmand %vm6535, %vm6545
      %vm6573 = vmand %vm6535, %vm6546
      %vm6574 = vmand %vm6535, %vm6547
      %vm6575 = vmand %vm6536, %vm6545
      %vm6576 = vmand %vm6536, %vm6546
      %vm6577 = vmand %vm6536, %vm6547
      %vm6578 = vmand %vm6537, %vm6545
      %vm6579 = vmand %vm6537, %vm6546
      %vm6580 = vmand %vm6537, %vm6547
      %vm6581 = vmand %vm6538, %vm6545
      %vm6582 = vmand %vm6538, %vm6546
      %vm6583 = vmand %vm6538, %vm6547
      %vm6584 = vmand %vm6539, %vm6545
      %vm6585 = vmand %vm6539, %vm6546
      %vm6586 = vmand %vm6539, %vm6547
      %vm6587 = vmand %vm6540, %vm6545
      %vm6588 = vmand %vm6540, %vm6546
      %vm6589 = vmand %vm6540, %vm6547
      %vm6590 = vmand %vm6541, %vm6545
      %vm6591 = vmand %vm6541, %vm6546
      %vm6592 = vmand %vm6541, %vm6547
      %vm6593 = vmand %vm6542, %vm6545
      %vm6594 = vmand %vm6542, %vm6546
      %vm6595 = vmand %vm6542, %vm6547
      %vm6596 = vmand %vm6543, %vm6545
      %vm6597 = vmand %vm6543, %vm6546
      %vm6598 = vmand %vm6543, %vm6547
      %vm6599 = vmand %vm6544, %vm6545
      %vm6600 = vmand %vm6544, %vm6546
      %vm6601 = vmand %vm6544, %vm6547
      %vm6602 = vcmp.lt.s32.totalorder %v6488, 16
      %vm6603 = vcmp.lt.s32.totalorder %v6489, 16
      %vm6604 = vcmp.lt.s32.totalorder %v6490, 16
      %vm6605 = vmand %vm6548, %vm6602
      %vm6606 = vmand %vm6549, %vm6603
      %vm6607 = vmand %vm6550, %vm6604
      %vm6608 = vmand %vm6551, %vm6602
      %vm6609 = vmand %vm6552, %vm6603
      %vm6610 = vmand %vm6553, %vm6604
      %vm6611 = vmand %vm6554, %vm6602
      %vm6612 = vmand %vm6555, %vm6603
      %vm6613 = vmand %vm6556, %vm6604
      %vm6614 = vmand %vm6557, %vm6602
      %vm6615 = vmand %vm6558, %vm6603
      %vm6616 = vmand %vm6559, %vm6604
      %vm6617 = vmand %vm6560, %vm6602
      %vm6618 = vmand %vm6561, %vm6603
      %vm6619 = vmand %vm6562, %vm6604
      %vm6620 = vmand %vm6563, %vm6602
      %vm6621 = vmand %vm6564, %vm6603
      %vm6622 = vmand %vm6565, %vm6604
      %vm6623 = vmand %vm6566, %vm6602
      %vm6624 = vmand %vm6567, %vm6603
      %vm6625 = vmand %vm6568, %vm6604
      %vm6626 = vmand %vm6569, %vm6602
      %vm6627 = vmand %vm6570, %vm6603
      %vm6628 = vmand %vm6571, %vm6604
      %vm6629 = vmand %vm6572, %vm6602
      %vm6630 = vmand %vm6573, %vm6603
      %vm6631 = vmand %vm6574, %vm6604
      %vm6632 = vmand %vm6575, %vm6602
      %vm6633 = vmand %vm6576, %vm6603
      %vm6634 = vmand %vm6577, %vm6604
      %vm6635 = vmand %vm6578, %vm6602
      %vm6636 = vmand %vm6579, %vm6603
      %vm6637 = vmand %vm6580, %vm6604
      %vm6638 = vmand %vm6581, %vm6602
      %vm6639 = vmand %vm6582, %vm6603
      %vm6640 = vmand %vm6583, %vm6604
      %vm6641 = vmand %vm6584, %vm6602
      %vm6642 = vmand %vm6585, %vm6603
      %vm6643 = vmand %vm6586, %vm6604
      %vm6644 = vmand %vm6587, %vm6602
      %vm6645 = vmand %vm6588, %vm6603
      %vm6646 = vmand %vm6589, %vm6604
      %vm6647 = vmand %vm6590, %vm6602
      %vm6648 = vmand %vm6591, %vm6603
      %vm6649 = vmand %vm6592, %vm6604
      %vm6650 = vmand %vm6593, %vm6602
      %vm6651 = vmand %vm6594, %vm6603
      %vm6652 = vmand %vm6595, %vm6604
      %vm6653 = vmand %vm6596, %vm6602
      %vm6654 = vmand %vm6597, %vm6603
      %vm6655 = vmand %vm6598, %vm6604
      %vm6656 = vmand %vm6599, %vm6602
      %vm6657 = vmand %vm6600, %vm6603
      %vm6658 = vmand %vm6601, %vm6604
      %v6659 = vsel %vm6605, %v6410, 0.0
      %v6660 = vsel %vm6606, %v6411, 0.0
      %v6661 = vsel %vm6607, %v6412, 0.0
      %v6662 = vsel %vm6608, %v6413, 0.0
      %v6663 = vsel %vm6609, %v6414, 0.0
      %v6664 = vsel %vm6610, %v6415, 0.0
      %v6665 = vsel %vm6611, %v6416, 0.0
      %v6666 = vsel %vm6612, %v6417, 0.0
      %v6667 = vsel %vm6613, %v6418, 0.0
      %v6668 = vsel %vm6614, %v6419, 0.0
      %v6669 = vsel %vm6615, %v6420, 0.0
      %v6670 = vsel %vm6616, %v6421, 0.0
      %v6671 = vsel %vm6617, %v6422, 0.0
      %v6672 = vsel %vm6618, %v6423, 0.0
      %v6673 = vsel %vm6619, %v6424, 0.0
      %v6674 = vsel %vm6620, %v6425, 0.0
      %v6675 = vsel %vm6621, %v6426, 0.0
      %v6676 = vsel %vm6622, %v6427, 0.0
      %v6677 = vsel %vm6623, %v6428, 0.0
      %v6678 = vsel %vm6624, %v6429, 0.0
      %v6679 = vsel %vm6625, %v6430, 0.0
      %v6680 = vsel %vm6626, %v6431, 0.0
      %v6681 = vsel %vm6627, %v6432, 0.0
      %v6682 = vsel %vm6628, %v6433, 0.0
      %v6683 = vsel %vm6629, %v6434, 0.0
      %v6684 = vsel %vm6630, %v6435, 0.0
      %v6685 = vsel %vm6631, %v6436, 0.0
      %v6686 = vsel %vm6632, %v6437, 0.0
      %v6687 = vsel %vm6633, %v6438, 0.0
      %v6688 = vsel %vm6634, %v6439, 0.0
      %v6689 = vsel %vm6635, %v6440, 0.0
      %v6690 = vsel %vm6636, %v6441, 0.0
      %v6691 = vsel %vm6637, %v6442, 0.0
      %v6692 = vsel %vm6638, %v6443, 0.0
      %v6693 = vsel %vm6639, %v6444, 0.0
      %v6694 = vsel %vm6640, %v6445, 0.0
      %v6695 = vsel %vm6641, %v6446, 0.0
      %v6696 = vsel %vm6642, %v6447, 0.0
      %v6697 = vsel %vm6643, %v6448, 0.0
      %v6698 = vsel %vm6644, %v6449, 0.0
      %v6699 = vsel %vm6645, %v6450, 0.0
      %v6700 = vsel %vm6646, %v6451, 0.0
      %v6701 = vsel %vm6647, %v6452, 0.0
      %v6702 = vsel %vm6648, %v6453, 0.0
      %v6703 = vsel %vm6649, %v6454, 0.0
      %v6704 = vsel %vm6650, %v6455, 0.0
      %v6705 = vsel %vm6651, %v6456, 0.0
      %v6706 = vsel %vm6652, %v6457, 0.0
      %v6707 = vsel %vm6653, %v6458, 0.0
      %v6708 = vsel %vm6654, %v6459, 0.0
      %v6709 = vsel %vm6655, %v6460, 0.0
      %v6710 = vsel %vm6656, %v6461, 0.0
      %v6711 = vsel %vm6657, %v6462, 0.0
      %v6712 = vsel %vm6658, %v6463, 0.0
      %v6713 = vld [vmem:[%s6] sm:$0xff]
      %v6714 = vld [vmem:[%s6 + $0x8] sm:$0xff]
      %v6715 = vld [vmem:[%s6 + $0x10] sm:$0x3]
      %v6716 = vld [vmem:[%s7] sm:$0x3]
      %v6717 = vperm.slane %v6713, 0
      %v6718 = vmul.f32 %v6659, %v6717
      %v6719 = vmul.f32 %v6660, %v6717
      %v6720 = vmul.f32 %v6662, %v6717
      %v6721 = vmul.f32 %v6663, %v6717
      %v6722 = vmul.f32 %v6665, %v6717
      %v6723 = vmul.f32 %v6666, %v6717
      %v6724 = vmul.f32 %v6668, %v6717
      %v6725 = vmul.f32 %v6669, %v6717
      %v6726 = vmul.f32 %v6671, %v6717
      %v6727 = vmul.f32 %v6672, %v6717
      %v6728 = vmul.f32 %v6674, %v6717
      %v6729 = vmul.f32 %v6675, %v6717
      %v6730 = vmul.f32 %v6677, %v6717
      %v6731 = vmul.f32 %v6678, %v6717
      %v6732 = vmul.f32 %v6680, %v6717
      %v6733 = vmul.f32 %v6681, %v6717
      %v6734 = vmul.f32 %v6683, %v6717
      %v6735 = vmul.f32 %v6684, %v6717
      %v6736 = vmul.f32 %v6686, %v6717
      %v6737 = vmul.f32 %v6687, %v6717
      %v6738 = vmul.f32 %v6689, %v6717
      %v6739 = vmul.f32 %v6690, %v6717
      %v6740 = vmul.f32 %v6692, %v6717
      %v6741 = vmul.f32 %v6693, %v6717
      %v6742 = vmul.f32 %v6695, %v6717
      %v6743 = vmul.f32 %v6696, %v6717
      %v6744 = vmul.f32 %v6698, %v6717
      %v6745 = vmul.f32 %v6699, %v6717
      %v6746 = vmul.f32 %v6701, %v6717
      %v6747 = vmul.f32 %v6702, %v6717
      %v6748 = vmul.f32 %v6704, %v6717
      %v6749 = vmul.f32 %v6705, %v6717
      %v6750 = vadd.f32 %v6718, 0.0
      %v6751 = vadd.f32 %v6719, 0.0
      %v6752 = vadd.f32 %v6720, 0.0
      %v6753 = vadd.f32 %v6721, 0.0
      %v6754 = vadd.f32 %v6722, 0.0
      %v6755 = vadd.f32 %v6723, 0.0
      %v6756 = vadd.f32 %v6724, 0.0
      %v6757 = vadd.f32 %v6725, 0.0
      %v6758 = vadd.f32 %v6726, 0.0
      %v6759 = vadd.f32 %v6727, 0.0
      %v6760 = vadd.f32 %v6728, 0.0
      %v6761 = vadd.f32 %v6729, 0.0
      %v6762 = vadd.f32 %v6730, 0.0
      %v6763 = vadd.f32 %v6731, 0.0
      %v6764 = vadd.f32 %v6732, 0.0
      %v6765 = vadd.f32 %v6733, 0.0
      %v6766 = vadd.f32 %v6734, 0.0
      %v6767 = vadd.f32 %v6735, 0.0
      %v6768 = vadd.f32 %v6736, 0.0
      %v6769 = vadd.f32 %v6737, 0.0
      %v6770 = vadd.f32 %v6738, 0.0
      %v6771 = vadd.f32 %v6739, 0.0
      %v6772 = vadd.f32 %v6740, 0.0
      %v6773 = vadd.f32 %v6741, 0.0
      %v6774 = vadd.f32 %v6742, 0.0
      %v6775 = vadd.f32 %v6743, 0.0
      %v6776 = vadd.f32 %v6744, 0.0
      %v6777 = vadd.f32 %v6745, 0.0
      %v6778 = vadd.f32 %v6746, 0.0
      %v6779 = vadd.f32 %v6747, 0.0
      %v6780 = vadd.f32 %v6748, 0.0
      %v6781 = vadd.f32 %v6749, 0.0
      %v6782 = vperm.slane %v6713, 2
      %v6783 = vmul.f32 %v6659, %v6782
      %v6784 = vmul.f32 %v6660, %v6782
      %v6785 = vmul.f32 %v6661, %v6782
      %v6786 = vmul.f32 %v6662, %v6782
      %v6787 = vmul.f32 %v6663, %v6782
      %v6788 = vmul.f32 %v6664, %v6782
      %v6789 = vmul.f32 %v6665, %v6782
      %v6790 = vmul.f32 %v6666, %v6782
      %v6791 = vmul.f32 %v6667, %v6782
      %v6792 = vmul.f32 %v6668, %v6782
      %v6793 = vmul.f32 %v6669, %v6782
      %v6794 = vmul.f32 %v6670, %v6782
      %v6795 = vmul.f32 %v6671, %v6782
      %v6796 = vmul.f32 %v6672, %v6782
      %v6797 = vmul.f32 %v6673, %v6782
      %v6798 = vmul.f32 %v6674, %v6782
      %v6799 = vmul.f32 %v6675, %v6782
      %v6800 = vmul.f32 %v6676, %v6782
      %v6801 = vmul.f32 %v6677, %v6782
      %v6802 = vmul.f32 %v6678, %v6782
      %v6803 = vmul.f32 %v6679, %v6782
      %v6804 = vmul.f32 %v6680, %v6782
      %v6805 = vmul.f32 %v6681, %v6782
      %v6806 = vmul.f32 %v6682, %v6782
      %v6807 = vmul.f32 %v6683, %v6782
      %v6808 = vmul.f32 %v6684, %v6782
      %v6809 = vmul.f32 %v6685, %v6782
      %v6810 = vmul.f32 %v6686, %v6782
      %v6811 = vmul.f32 %v6687, %v6782
      %v6812 = vmul.f32 %v6688, %v6782
      %v6813 = vmul.f32 %v6689, %v6782
      %v6814 = vmul.f32 %v6690, %v6782
      %v6815 = vmul.f32 %v6691, %v6782
      %v6816 = vmul.f32 %v6692, %v6782
      %v6817 = vmul.f32 %v6693, %v6782
      %v6818 = vmul.f32 %v6694, %v6782
      %v6819 = vmul.f32 %v6695, %v6782
      %v6820 = vmul.f32 %v6696, %v6782
      %v6821 = vmul.f32 %v6697, %v6782
      %v6822 = vmul.f32 %v6698, %v6782
      %v6823 = vmul.f32 %v6699, %v6782
      %v6824 = vmul.f32 %v6700, %v6782
      %v6825 = vmul.f32 %v6701, %v6782
      %v6826 = vmul.f32 %v6702, %v6782
      %v6827 = vmul.f32 %v6703, %v6782
      %v6828 = vmul.f32 %v6704, %v6782
      %v6829 = vmul.f32 %v6705, %v6782
      %v6830 = vmul.f32 %v6706, %v6782
      %v6879 = vrot.slane %v6783, 1
      %v6880 = vrot.slane %v6784, 1
      %v6881 = vsel %vm764, %v6879, %v6880
      %v6882 = vrot.slane %v6785, 1
      %v6883 = vsel %vm764, %v6880, %v6882
      %v6884 = vrot.slane %v6786, 1
      %v6885 = vrot.slane %v6787, 1
      %v6886 = vsel %vm764, %v6884, %v6885
      %v6887 = vrot.slane %v6788, 1
      %v6888 = vsel %vm764, %v6885, %v6887
      %v6889 = vrot.slane %v6789, 1
      %v6890 = vrot.slane %v6790, 1
      %v6891 = vsel %vm764, %v6889, %v6890
      %v6892 = vrot.slane %v6791, 1
      %v6893 = vsel %vm764, %v6890, %v6892
      %v6894 = vrot.slane %v6792, 1
      %v6895 = vrot.slane %v6793, 1
      %v6896 = vsel %vm764, %v6894, %v6895
      %v6897 = vrot.slane %v6794, 1
      %v6898 = vsel %vm764, %v6895, %v6897
      %v6899 = vrot.slane %v6795, 1
      %v6900 = vrot.slane %v6796, 1
      %v6901 = vsel %vm764, %v6899, %v6900
      %v6902 = vrot.slane %v6797, 1
      %v6903 = vsel %vm764, %v6900, %v6902
      %v6904 = vrot.slane %v6798, 1
      %v6905 = vrot.slane %v6799, 1
      %v6906 = vsel %vm764, %v6904, %v6905
      %v6907 = vrot.slane %v6800, 1
      %v6908 = vsel %vm764, %v6905, %v6907
      %v6909 = vrot.slane %v6801, 1
      %v6910 = vrot.slane %v6802, 1
      %v6911 = vsel %vm764, %v6909, %v6910
      %v6912 = vrot.slane %v6803, 1
      %v6913 = vsel %vm764, %v6910, %v6912
      %v6914 = vrot.slane %v6804, 1
      %v6915 = vrot.slane %v6805, 1
      %v6916 = vsel %vm764, %v6914, %v6915
      %v6917 = vrot.slane %v6806, 1
      %v6918 = vsel %vm764, %v6915, %v6917
      %v6919 = vrot.slane %v6807, 1
      %v6920 = vrot.slane %v6808, 1
      %v6921 = vsel %vm764, %v6919, %v6920
      %v6922 = vrot.slane %v6809, 1
      %v6923 = vsel %vm764, %v6920, %v6922
      %v6924 = vrot.slane %v6810, 1
      %v6925 = vrot.slane %v6811, 1
      %v6926 = vsel %vm764, %v6924, %v6925
      %v6927 = vrot.slane %v6812, 1
      %v6928 = vsel %vm764, %v6925, %v6927
      %v6929 = vrot.slane %v6813, 1
      %v6930 = vrot.slane %v6814, 1
      %v6931 = vsel %vm764, %v6929, %v6930
      %v6932 = vrot.slane %v6815, 1
      %v6933 = vsel %vm764, %v6930, %v6932
      %v6934 = vrot.slane %v6816, 1
      %v6935 = vrot.slane %v6817, 1
      %v6936 = vsel %vm764, %v6934, %v6935
      %v6937 = vrot.slane %v6818, 1
      %v6938 = vsel %vm764, %v6935, %v6937
      %v6939 = vrot.slane %v6819, 1
      %v6940 = vrot.slane %v6820, 1
      %v6941 = vsel %vm764, %v6939, %v6940
      %v6942 = vrot.slane %v6821, 1
      %v6943 = vsel %vm764, %v6940, %v6942
      %v6944 = vrot.slane %v6822, 1
      %v6945 = vrot.slane %v6823, 1
      %v6946 = vsel %vm764, %v6944, %v6945
      %v6947 = vrot.slane %v6824, 1
      %v6948 = vsel %vm764, %v6945, %v6947
      %v6949 = vrot.slane %v6825, 1
      %v6950 = vrot.slane %v6826, 1
      %v6951 = vsel %vm764, %v6949, %v6950
      %v6952 = vrot.slane %v6827, 1
      %v6953 = vsel %vm764, %v6950, %v6952
      %v6954 = vrot.slane %v6828, 1
      %v6955 = vrot.slane %v6829, 1
      %v6956 = vsel %vm764, %v6954, %v6955
      %v6957 = vrot.slane %v6830, 1
      %v6958 = vsel %vm764, %v6955, %v6957
      %v6991 = vadd.f32 %v6750, %v6881
      %v6992 = vadd.f32 %v6751, %v6883
      %v6993 = vadd.f32 %v6752, %v6886
      %v6994 = vadd.f32 %v6753, %v6888
      %v6995 = vadd.f32 %v6754, %v6891
      %v6996 = vadd.f32 %v6755, %v6893
      %v6997 = vadd.f32 %v6756, %v6896
      %v6998 = vadd.f32 %v6757, %v6898
      %v6999 = vadd.f32 %v6758, %v6901
      %v7000 = vadd.f32 %v6759, %v6903
      %v7001 = vadd.f32 %v6760, %v6906
      %v7002 = vadd.f32 %v6761, %v6908
      %v7003 = vadd.f32 %v6762, %v6911
      %v7004 = vadd.f32 %v6763, %v6913
      %v7005 = vadd.f32 %v6764, %v6916
      %v7006 = vadd.f32 %v6765, %v6918
      %v7007 = vadd.f32 %v6766, %v6921
      %v7008 = vadd.f32 %v6767, %v6923
      %v7009 = vadd.f32 %v6768, %v6926
      %v7010 = vadd.f32 %v6769, %v6928
      %v7011 = vadd.f32 %v6770, %v6931
      %v7012 = vadd.f32 %v6771, %v6933
      %v7013 = vadd.f32 %v6772, %v6936
      %v7014 = vadd.f32 %v6773, %v6938
      %v7015 = vadd.f32 %v6774, %v6941
      %v7016 = vadd.f32 %v6775, %v6943
      %v7017 = vadd.f32 %v6776, %v6946
      %v7018 = vadd.f32 %v6777, %v6948
      %v7019 = vadd.f32 %v6778, %v6951
      %v7020 = vadd.f32 %v6779, %v6953
      %v7021 = vadd.f32 %v6780, %v6956
      %v7022 = vadd.f32 %v6781, %v6958
      %v7023 = vperm.slane %v6713, 4
      %v7024 = vmul.f32 %v6659, %v7023
      %v7025 = vmul.f32 %v6660, %v7023
      %v7026 = vmul.f32 %v6661, %v7023
      %v7027 = vmul.f32 %v6662, %v7023
      %v7028 = vmul.f32 %v6663, %v7023
      %v7029 = vmul.f32 %v6664, %v7023
      %v7030 = vmul.f32 %v6665, %v7023
      %v7031 = vmul.f32 %v6666, %v7023
      %v7032 = vmul.f32 %v6667, %v7023
      %v7033 = vmul.f32 %v6668, %v7023
      %v7034 = vmul.f32 %v6669, %v7023
      %v7035 = vmul.f32 %v6670, %v7023
      %v7036 = vmul.f32 %v6671, %v7023
      %v7037 = vmul.f32 %v6672, %v7023
      %v7038 = vmul.f32 %v6673, %v7023
      %v7039 = vmul.f32 %v6674, %v7023
      %v7040 = vmul.f32 %v6675, %v7023
      %v7041 = vmul.f32 %v6676, %v7023
      %v7042 = vmul.f32 %v6677, %v7023
      %v7043 = vmul.f32 %v6678, %v7023
      %v7044 = vmul.f32 %v6679, %v7023
      %v7045 = vmul.f32 %v6680, %v7023
      %v7046 = vmul.f32 %v6681, %v7023
      %v7047 = vmul.f32 %v6682, %v7023
      %v7048 = vmul.f32 %v6683, %v7023
      %v7049 = vmul.f32 %v6684, %v7023
      %v7050 = vmul.f32 %v6685, %v7023
      %v7051 = vmul.f32 %v6686, %v7023
      %v7052 = vmul.f32 %v6687, %v7023
      %v7053 = vmul.f32 %v6688, %v7023
      %v7054 = vmul.f32 %v6689, %v7023
      %v7055 = vmul.f32 %v6690, %v7023
      %v7056 = vmul.f32 %v6691, %v7023
      %v7057 = vmul.f32 %v6692, %v7023
      %v7058 = vmul.f32 %v6693, %v7023
      %v7059 = vmul.f32 %v6694, %v7023
      %v7060 = vmul.f32 %v6695, %v7023
      %v7061 = vmul.f32 %v6696, %v7023
      %v7062 = vmul.f32 %v6697, %v7023
      %v7063 = vmul.f32 %v6698, %v7023
      %v7064 = vmul.f32 %v6699, %v7023
      %v7065 = vmul.f32 %v6700, %v7023
      %v7066 = vmul.f32 %v6701, %v7023
      %v7067 = vmul.f32 %v6702, %v7023
      %v7068 = vmul.f32 %v6703, %v7023
      %v7069 = vmul.f32 %v6704, %v7023
      %v7070 = vmul.f32 %v6705, %v7023
      %v7071 = vmul.f32 %v6706, %v7023
      %v7120 = vrot.slane %v7024, 2
      %v7121 = vrot.slane %v7025, 2
      %v7122 = vsel %vm1144, %v7120, %v7121
      %v7123 = vrot.slane %v7026, 2
      %v7124 = vsel %vm1144, %v7121, %v7123
      %v7125 = vrot.slane %v7027, 2
      %v7126 = vrot.slane %v7028, 2
      %v7127 = vsel %vm1144, %v7125, %v7126
      %v7128 = vrot.slane %v7029, 2
      %v7129 = vsel %vm1144, %v7126, %v7128
      %v7130 = vrot.slane %v7030, 2
      %v7131 = vrot.slane %v7031, 2
      %v7132 = vsel %vm1144, %v7130, %v7131
      %v7133 = vrot.slane %v7032, 2
      %v7134 = vsel %vm1144, %v7131, %v7133
      %v7135 = vrot.slane %v7033, 2
      %v7136 = vrot.slane %v7034, 2
      %v7137 = vsel %vm1144, %v7135, %v7136
      %v7138 = vrot.slane %v7035, 2
      %v7139 = vsel %vm1144, %v7136, %v7138
      %v7140 = vrot.slane %v7036, 2
      %v7141 = vrot.slane %v7037, 2
      %v7142 = vsel %vm1144, %v7140, %v7141
      %v7143 = vrot.slane %v7038, 2
      %v7144 = vsel %vm1144, %v7141, %v7143
      %v7145 = vrot.slane %v7039, 2
      %v7146 = vrot.slane %v7040, 2
      %v7147 = vsel %vm1144, %v7145, %v7146
      %v7148 = vrot.slane %v7041, 2
      %v7149 = vsel %vm1144, %v7146, %v7148
      %v7150 = vrot.slane %v7042, 2
      %v7151 = vrot.slane %v7043, 2
      %v7152 = vsel %vm1144, %v7150, %v7151
      %v7153 = vrot.slane %v7044, 2
      %v7154 = vsel %vm1144, %v7151, %v7153
      %v7155 = vrot.slane %v7045, 2
      %v7156 = vrot.slane %v7046, 2
      %v7157 = vsel %vm1144, %v7155, %v7156
      %v7158 = vrot.slane %v7047, 2
      %v7159 = vsel %vm1144, %v7156, %v7158
      %v7160 = vrot.slane %v7048, 2
      %v7161 = vrot.slane %v7049, 2
      %v7162 = vsel %vm1144, %v7160, %v7161
      %v7163 = vrot.slane %v7050, 2
      %v7164 = vsel %vm1144, %v7161, %v7163
      %v7165 = vrot.slane %v7051, 2
      %v7166 = vrot.slane %v7052, 2
      %v7167 = vsel %vm1144, %v7165, %v7166
      %v7168 = vrot.slane %v7053, 2
      %v7169 = vsel %vm1144, %v7166, %v7168
      %v7170 = vrot.slane %v7054, 2
      %v7171 = vrot.slane %v7055, 2
      %v7172 = vsel %vm1144, %v7170, %v7171
      %v7173 = vrot.slane %v7056, 2
      %v7174 = vsel %vm1144, %v7171, %v7173
      %v7175 = vrot.slane %v7057, 2
      %v7176 = vrot.slane %v7058, 2
      %v7177 = vsel %vm1144, %v7175, %v7176
      %v7178 = vrot.slane %v7059, 2
      %v7179 = vsel %vm1144, %v7176, %v7178
      %v7180 = vrot.slane %v7060, 2
      %v7181 = vrot.slane %v7061, 2
      %v7182 = vsel %vm1144, %v7180, %v7181
      %v7183 = vrot.slane %v7062, 2
      %v7184 = vsel %vm1144, %v7181, %v7183
      %v7185 = vrot.slane %v7063, 2
      %v7186 = vrot.slane %v7064, 2
      %v7187 = vsel %vm1144, %v7185, %v7186
      %v7188 = vrot.slane %v7065, 2
      %v7189 = vsel %vm1144, %v7186, %v7188
      %v7190 = vrot.slane %v7066, 2
      %v7191 = vrot.slane %v7067, 2
      %v7192 = vsel %vm1144, %v7190, %v7191
      %v7193 = vrot.slane %v7068, 2
      %v7194 = vsel %vm1144, %v7191, %v7193
      %v7195 = vrot.slane %v7069, 2
      %v7196 = vrot.slane %v7070, 2
      %v7197 = vsel %vm1144, %v7195, %v7196
      %v7198 = vrot.slane %v7071, 2
      %v7199 = vsel %vm1144, %v7196, %v7198
      %v7232 = vadd.f32 %v6991, %v7122
      %v7233 = vadd.f32 %v6992, %v7124
      %v7234 = vadd.f32 %v6993, %v7127
      %v7235 = vadd.f32 %v6994, %v7129
      %v7236 = vadd.f32 %v6995, %v7132
      %v7237 = vadd.f32 %v6996, %v7134
      %v7238 = vadd.f32 %v6997, %v7137
      %v7239 = vadd.f32 %v6998, %v7139
      %v7240 = vadd.f32 %v6999, %v7142
      %v7241 = vadd.f32 %v7000, %v7144
      %v7242 = vadd.f32 %v7001, %v7147
      %v7243 = vadd.f32 %v7002, %v7149
      %v7244 = vadd.f32 %v7003, %v7152
      %v7245 = vadd.f32 %v7004, %v7154
      %v7246 = vadd.f32 %v7005, %v7157
      %v7247 = vadd.f32 %v7006, %v7159
      %v7248 = vadd.f32 %v7007, %v7162
      %v7249 = vadd.f32 %v7008, %v7164
      %v7250 = vadd.f32 %v7009, %v7167
      %v7251 = vadd.f32 %v7010, %v7169
      %v7252 = vadd.f32 %v7011, %v7172
      %v7253 = vadd.f32 %v7012, %v7174
      %v7254 = vadd.f32 %v7013, %v7177
      %v7255 = vadd.f32 %v7014, %v7179
      %v7256 = vadd.f32 %v7015, %v7182
      %v7257 = vadd.f32 %v7016, %v7184
      %v7258 = vadd.f32 %v7017, %v7187
      %v7259 = vadd.f32 %v7018, %v7189
      %v7260 = vadd.f32 %v7019, %v7192
      %v7261 = vadd.f32 %v7020, %v7194
      %v7262 = vadd.f32 %v7021, %v7197
      %v7263 = vadd.f32 %v7022, %v7199
      %v7264 = vperm.slane %v6713, 6
      %v7265 = vmul.f32 %v6662, %v7264
      %v7266 = vmul.f32 %v6663, %v7264
      %v7267 = vmul.f32 %v6665, %v7264
      %v7268 = vmul.f32 %v6666, %v7264
      %v7269 = vmul.f32 %v6668, %v7264
      %v7270 = vmul.f32 %v6669, %v7264
      %v7271 = vmul.f32 %v6671, %v7264
      %v7272 = vmul.f32 %v6672, %v7264
      %v7273 = vmul.f32 %v6674, %v7264
      %v7274 = vmul.f32 %v6675, %v7264
      %v7275 = vmul.f32 %v6677, %v7264
      %v7276 = vmul.f32 %v6678, %v7264
      %v7277 = vmul.f32 %v6680, %v7264
      %v7278 = vmul.f32 %v6681, %v7264
      %v7279 = vmul.f32 %v6683, %v7264
      %v7280 = vmul.f32 %v6684, %v7264
      %v7281 = vmul.f32 %v6686, %v7264
      %v7282 = vmul.f32 %v6687, %v7264
      %v7283 = vmul.f32 %v6689, %v7264
      %v7284 = vmul.f32 %v6690, %v7264
      %v7285 = vmul.f32 %v6692, %v7264
      %v7286 = vmul.f32 %v6693, %v7264
      %v7287 = vmul.f32 %v6695, %v7264
      %v7288 = vmul.f32 %v6696, %v7264
      %v7289 = vmul.f32 %v6698, %v7264
      %v7290 = vmul.f32 %v6699, %v7264
      %v7291 = vmul.f32 %v6701, %v7264
      %v7292 = vmul.f32 %v6702, %v7264
      %v7293 = vmul.f32 %v6704, %v7264
      %v7294 = vmul.f32 %v6705, %v7264
      %v7295 = vmul.f32 %v6707, %v7264
      %v7296 = vmul.f32 %v6708, %v7264
      %v7297 = vadd.f32 %v7232, %v7265
      %v7298 = vadd.f32 %v7233, %v7266
      %v7299 = vadd.f32 %v7234, %v7267
      %v7300 = vadd.f32 %v7235, %v7268
      %v7301 = vadd.f32 %v7236, %v7269
      %v7302 = vadd.f32 %v7237, %v7270
      %v7303 = vadd.f32 %v7238, %v7271
      %v7304 = vadd.f32 %v7239, %v7272
      %v7305 = vadd.f32 %v7240, %v7273
      %v7306 = vadd.f32 %v7241, %v7274
      %v7307 = vadd.f32 %v7242, %v7275
      %v7308 = vadd.f32 %v7243, %v7276
      %v7309 = vadd.f32 %v7244, %v7277
      %v7310 = vadd.f32 %v7245, %v7278
      %v7311 = vadd.f32 %v7246, %v7279
      %v7312 = vadd.f32 %v7247, %v7280
      %v7313 = vadd.f32 %v7248, %v7281
      %v7314 = vadd.f32 %v7249, %v7282
      %v7315 = vadd.f32 %v7250, %v7283
      %v7316 = vadd.f32 %v7251, %v7284
      %v7317 = vadd.f32 %v7252, %v7285
      %v7318 = vadd.f32 %v7253, %v7286
      %v7319 = vadd.f32 %v7254, %v7287
      %v7320 = vadd.f32 %v7255, %v7288
      %v7321 = vadd.f32 %v7256, %v7289
      %v7322 = vadd.f32 %v7257, %v7290
      %v7323 = vadd.f32 %v7258, %v7291
      %v7324 = vadd.f32 %v7259, %v7292
      %v7325 = vadd.f32 %v7260, %v7293
      %v7326 = vadd.f32 %v7261, %v7294
      %v7327 = vadd.f32 %v7262, %v7295
      %v7328 = vadd.f32 %v7263, %v7296
      %v7329 = vperm.slane %v6714, 0
      %v7330 = vmul.f32 %v6662, %v7329
      %v7331 = vmul.f32 %v6663, %v7329
      %v7332 = vmul.f32 %v6664, %v7329
      %v7333 = vmul.f32 %v6665, %v7329
      %v7334 = vmul.f32 %v6666, %v7329
      %v7335 = vmul.f32 %v6667, %v7329
      %v7336 = vmul.f32 %v6668, %v7329
      %v7337 = vmul.f32 %v6669, %v7329
      %v7338 = vmul.f32 %v6670, %v7329
      %v7339 = vmul.f32 %v6671, %v7329
      %v7340 = vmul.f32 %v6672, %v7329
      %v7341 = vmul.f32 %v6673, %v7329
      %v7342 = vmul.f32 %v6674, %v7329
      %v7343 = vmul.f32 %v6675, %v7329
      %v7344 = vmul.f32 %v6676, %v7329
      %v7345 = vmul.f32 %v6677, %v7329
      %v7346 = vmul.f32 %v6678, %v7329
      %v7347 = vmul.f32 %v6679, %v7329
      %v7348 = vmul.f32 %v6680, %v7329
      %v7349 = vmul.f32 %v6681, %v7329
      %v7350 = vmul.f32 %v6682, %v7329
      %v7351 = vmul.f32 %v6683, %v7329
      %v7352 = vmul.f32 %v6684, %v7329
      %v7353 = vmul.f32 %v6685, %v7329
      %v7354 = vmul.f32 %v6686, %v7329
      %v7355 = vmul.f32 %v6687, %v7329
      %v7356 = vmul.f32 %v6688, %v7329
      %v7357 = vmul.f32 %v6689, %v7329
      %v7358 = vmul.f32 %v6690, %v7329
      %v7359 = vmul.f32 %v6691, %v7329
      %v7360 = vmul.f32 %v6692, %v7329
      %v7361 = vmul.f32 %v6693, %v7329
      %v7362 = vmul.f32 %v6694, %v7329
      %v7363 = vmul.f32 %v6695, %v7329
      %v7364 = vmul.f32 %v6696, %v7329
      %v7365 = vmul.f32 %v6697, %v7329
      %v7366 = vmul.f32 %v6698, %v7329
      %v7367 = vmul.f32 %v6699, %v7329
      %v7368 = vmul.f32 %v6700, %v7329
      %v7369 = vmul.f32 %v6701, %v7329
      %v7370 = vmul.f32 %v6702, %v7329
      %v7371 = vmul.f32 %v6703, %v7329
      %v7372 = vmul.f32 %v6704, %v7329
      %v7373 = vmul.f32 %v6705, %v7329
      %v7374 = vmul.f32 %v6706, %v7329
      %v7375 = vmul.f32 %v6707, %v7329
      %v7376 = vmul.f32 %v6708, %v7329
      %v7377 = vmul.f32 %v6709, %v7329
      %v7426 = vrot.slane %v7330, 1
      %v7427 = vrot.slane %v7331, 1
      %v7428 = vsel %vm764, %v7426, %v7427
      %v7429 = vrot.slane %v7332, 1
      %v7430 = vsel %vm764, %v7427, %v7429
      %v7431 = vrot.slane %v7333, 1
      %v7432 = vrot.slane %v7334, 1
      %v7433 = vsel %vm764, %v7431, %v7432
      %v7434 = vrot.slane %v7335, 1
      %v7435 = vsel %vm764, %v7432, %v7434
      %v7436 = vrot.slane %v7336, 1
      %v7437 = vrot.slane %v7337, 1
      %v7438 = vsel %vm764, %v7436, %v7437
      %v7439 = vrot.slane %v7338, 1
      %v7440 = vsel %vm764, %v7437, %v7439
      %v7441 = vrot.slane %v7339, 1
      %v7442 = vrot.slane %v7340, 1
      %v7443 = vsel %vm764, %v7441, %v7442
      %v7444 = vrot.slane %v7341, 1
      %v7445 = vsel %vm764, %v7442, %v7444
      %v7446 = vrot.slane %v7342, 1
      %v7447 = vrot.slane %v7343, 1
      %v7448 = vsel %vm764, %v7446, %v7447
      %v7449 = vrot.slane %v7344, 1
      %v7450 = vsel %vm764, %v7447, %v7449
      %v7451 = vrot.slane %v7345, 1
      %v7452 = vrot.slane %v7346, 1
      %v7453 = vsel %vm764, %v7451, %v7452
      %v7454 = vrot.slane %v7347, 1
      %v7455 = vsel %vm764, %v7452, %v7454
      %v7456 = vrot.slane %v7348, 1
      %v7457 = vrot.slane %v7349, 1
      %v7458 = vsel %vm764, %v7456, %v7457
      %v7459 = vrot.slane %v7350, 1
      %v7460 = vsel %vm764, %v7457, %v7459
      %v7461 = vrot.slane %v7351, 1
      %v7462 = vrot.slane %v7352, 1
      %v7463 = vsel %vm764, %v7461, %v7462
      %v7464 = vrot.slane %v7353, 1
      %v7465 = vsel %vm764, %v7462, %v7464
      %v7466 = vrot.slane %v7354, 1
      %v7467 = vrot.slane %v7355, 1
      %v7468 = vsel %vm764, %v7466, %v7467
      %v7469 = vrot.slane %v7356, 1
      %v7470 = vsel %vm764, %v7467, %v7469
      %v7471 = vrot.slane %v7357, 1
      %v7472 = vrot.slane %v7358, 1
      %v7473 = vsel %vm764, %v7471, %v7472
      %v7474 = vrot.slane %v7359, 1
      %v7475 = vsel %vm764, %v7472, %v7474
      %v7476 = vrot.slane %v7360, 1
      %v7477 = vrot.slane %v7361, 1
      %v7478 = vsel %vm764, %v7476, %v7477
      %v7479 = vrot.slane %v7362, 1
      %v7480 = vsel %vm764, %v7477, %v7479
      %v7481 = vrot.slane %v7363, 1
      %v7482 = vrot.slane %v7364, 1
      %v7483 = vsel %vm764, %v7481, %v7482
      %v7484 = vrot.slane %v7365, 1
      %v7485 = vsel %vm764, %v7482, %v7484
      %v7486 = vrot.slane %v7366, 1
      %v7487 = vrot.slane %v7367, 1
      %v7488 = vsel %vm764, %v7486, %v7487
      %v7489 = vrot.slane %v7368, 1
      %v7490 = vsel %vm764, %v7487, %v7489
      %v7491 = vrot.slane %v7369, 1
      %v7492 = vrot.slane %v7370, 1
      %v7493 = vsel %vm764, %v7491, %v7492
      %v7494 = vrot.slane %v7371, 1
      %v7495 = vsel %vm764, %v7492, %v7494
      %v7496 = vrot.slane %v7372, 1
      %v7497 = vrot.slane %v7373, 1
      %v7498 = vsel %vm764, %v7496, %v7497
      %v7499 = vrot.slane %v7374, 1
      %v7500 = vsel %vm764, %v7497, %v7499
      %v7501 = vrot.slane %v7375, 1
      %v7502 = vrot.slane %v7376, 1
      %v7503 = vsel %vm764, %v7501, %v7502
      %v7504 = vrot.slane %v7377, 1
      %v7505 = vsel %vm764, %v7502, %v7504
      %v7538 = vadd.f32 %v7297, %v7428
      %v7539 = vadd.f32 %v7298, %v7430
      %v7540 = vadd.f32 %v7299, %v7433
      %v7541 = vadd.f32 %v7300, %v7435
      %v7542 = vadd.f32 %v7301, %v7438
      %v7543 = vadd.f32 %v7302, %v7440
      %v7544 = vadd.f32 %v7303, %v7443
      %v7545 = vadd.f32 %v7304, %v7445
      %v7546 = vadd.f32 %v7305, %v7448
      %v7547 = vadd.f32 %v7306, %v7450
      %v7548 = vadd.f32 %v7307, %v7453
      %v7549 = vadd.f32 %v7308, %v7455
      %v7550 = vadd.f32 %v7309, %v7458
      %v7551 = vadd.f32 %v7310, %v7460
      %v7552 = vadd.f32 %v7311, %v7463
      %v7553 = vadd.f32 %v7312, %v7465
      %v7554 = vadd.f32 %v7313, %v7468
      %v7555 = vadd.f32 %v7314, %v7470
      %v7556 = vadd.f32 %v7315, %v7473
      %v7557 = vadd.f32 %v7316, %v7475
      %v7558 = vadd.f32 %v7317, %v7478
      %v7559 = vadd.f32 %v7318, %v7480
      %v7560 = vadd.f32 %v7319, %v7483
      %v7561 = vadd.f32 %v7320, %v7485
      %v7562 = vadd.f32 %v7321, %v7488
      %v7563 = vadd.f32 %v7322, %v7490
      %v7564 = vadd.f32 %v7323, %v7493
      %v7565 = vadd.f32 %v7324, %v7495
      %v7566 = vadd.f32 %v7325, %v7498
      %v7567 = vadd.f32 %v7326, %v7500
      %v7568 = vadd.f32 %v7327, %v7503
      %v7569 = vadd.f32 %v7328, %v7505
      %v7570 = vperm.slane %v6714, 2
      %v7571 = vmul.f32 %v6662, %v7570
      %v7572 = vmul.f32 %v6663, %v7570
      %v7573 = vmul.f32 %v6664, %v7570
      %v7574 = vmul.f32 %v6665, %v7570
      %v7575 = vmul.f32 %v6666, %v7570
      %v7576 = vmul.f32 %v6667, %v7570
      %v7577 = vmul.f32 %v6668, %v7570
      %v7578 = vmul.f32 %v6669, %v7570
      %v7579 = vmul.f32 %v6670, %v7570
      %v7580 = vmul.f32 %v6671, %v7570
      %v7581 = vmul.f32 %v6672, %v7570
      %v7582 = vmul.f32 %v6673, %v7570
      %v7583 = vmul.f32 %v6674, %v7570
      %v7584 = vmul.f32 %v6675, %v7570
      %v7585 = vmul.f32 %v6676, %v7570
      %v7586 = vmul.f32 %v6677, %v7570
      %v7587 = vmul.f32 %v6678, %v7570
      %v7588 = vmul.f32 %v6679, %v7570
      %v7589 = vmul.f32 %v6680, %v7570
      %v7590 = vmul.f32 %v6681, %v7570
      %v7591 = vmul.f32 %v6682, %v7570
      %v7592 = vmul.f32 %v6683, %v7570
      %v7593 = vmul.f32 %v6684, %v7570
      %v7594 = vmul.f32 %v6685, %v7570
      %v7595 = vmul.f32 %v6686, %v7570
      %v7596 = vmul.f32 %v6687, %v7570
      %v7597 = vmul.f32 %v6688, %v7570
      %v7598 = vmul.f32 %v6689, %v7570
      %v7599 = vmul.f32 %v6690, %v7570
      %v7600 = vmul.f32 %v6691, %v7570
      %v7601 = vmul.f32 %v6692, %v7570
      %v7602 = vmul.f32 %v6693, %v7570
      %v7603 = vmul.f32 %v6694, %v7570
      %v7604 = vmul.f32 %v6695, %v7570
      %v7605 = vmul.f32 %v6696, %v7570
      %v7606 = vmul.f32 %v6697, %v7570
      %v7607 = vmul.f32 %v6698, %v7570
      %v7608 = vmul.f32 %v6699, %v7570
      %v7609 = vmul.f32 %v6700, %v7570
      %v7610 = vmul.f32 %v6701, %v7570
      %v7611 = vmul.f32 %v6702, %v7570
      %v7612 = vmul.f32 %v6703, %v7570
      %v7613 = vmul.f32 %v6704, %v7570
      %v7614 = vmul.f32 %v6705, %v7570
      %v7615 = vmul.f32 %v6706, %v7570
      %v7616 = vmul.f32 %v6707, %v7570
      %v7617 = vmul.f32 %v6708, %v7570
      %v7618 = vmul.f32 %v6709, %v7570
      %v7667 = vrot.slane %v7571, 2
      %v7668 = vrot.slane %v7572, 2
      %v7669 = vsel %vm1144, %v7667, %v7668
      %v7670 = vrot.slane %v7573, 2
      %v7671 = vsel %vm1144, %v7668, %v7670
      %v7672 = vrot.slane %v7574, 2
      %v7673 = vrot.slane %v7575, 2
      %v7674 = vsel %vm1144, %v7672, %v7673
      %v7675 = vrot.slane %v7576, 2
      %v7676 = vsel %vm1144, %v7673, %v7675
      %v7677 = vrot.slane %v7577, 2
      %v7678 = vrot.slane %v7578, 2
      %v7679 = vsel %vm1144, %v7677, %v7678
      %v7680 = vrot.slane %v7579, 2
      %v7681 = vsel %vm1144, %v7678, %v7680
      %v7682 = vrot.slane %v7580, 2
      %v7683 = vrot.slane %v7581, 2
      %v7684 = vsel %vm1144, %v7682, %v7683
      %v7685 = vrot.slane %v7582, 2
      %v7686 = vsel %vm1144, %v7683, %v7685
      %v7687 = vrot.slane %v7583, 2
      %v7688 = vrot.slane %v7584, 2
      %v7689 = vsel %vm1144, %v7687, %v7688
      %v7690 = vrot.slane %v7585, 2
      %v7691 = vsel %vm1144, %v7688, %v7690
      %v7692 = vrot.slane %v7586, 2
      %v7693 = vrot.slane %v7587, 2
      %v7694 = vsel %vm1144, %v7692, %v7693
      %v7695 = vrot.slane %v7588, 2
      %v7696 = vsel %vm1144, %v7693, %v7695
      %v7697 = vrot.slane %v7589, 2
      %v7698 = vrot.slane %v7590, 2
      %v7699 = vsel %vm1144, %v7697, %v7698
      %v7700 = vrot.slane %v7591, 2
      %v7701 = vsel %vm1144, %v7698, %v7700
      %v7702 = vrot.slane %v7592, 2
      %v7703 = vrot.slane %v7593, 2
      %v7704 = vsel %vm1144, %v7702, %v7703
      %v7705 = vrot.slane %v7594, 2
      %v7706 = vsel %vm1144, %v7703, %v7705
      %v7707 = vrot.slane %v7595, 2
      %v7708 = vrot.slane %v7596, 2
      %v7709 = vsel %vm1144, %v7707, %v7708
      %v7710 = vrot.slane %v7597, 2
      %v7711 = vsel %vm1144, %v7708, %v7710
      %v7712 = vrot.slane %v7598, 2
      %v7713 = vrot.slane %v7599, 2
      %v7714 = vsel %vm1144, %v7712, %v7713
      %v7715 = vrot.slane %v7600, 2
      %v7716 = vsel %vm1144, %v7713, %v7715
      %v7717 = vrot.slane %v7601, 2
      %v7718 = vrot.slane %v7602, 2
      %v7719 = vsel %vm1144, %v7717, %v7718
      %v7720 = vrot.slane %v7603, 2
      %v7721 = vsel %vm1144, %v7718, %v7720
      %v7722 = vrot.slane %v7604, 2
      %v7723 = vrot.slane %v7605, 2
      %v7724 = vsel %vm1144, %v7722, %v7723
      %v7725 = vrot.slane %v7606, 2
      %v7726 = vsel %vm1144, %v7723, %v7725
      %v7727 = vrot.slane %v7607, 2
      %v7728 = vrot.slane %v7608, 2
      %v7729 = vsel %vm1144, %v7727, %v7728
      %v7730 = vrot.slane %v7609, 2
      %v7731 = vsel %vm1144, %v7728, %v7730
      %v7732 = vrot.slane %v7610, 2
      %v7733 = vrot.slane %v7611, 2
      %v7734 = vsel %vm1144, %v7732, %v7733
      %v7735 = vrot.slane %v7612, 2
      %v7736 = vsel %vm1144, %v7733, %v7735
      %v7737 = vrot.slane %v7613, 2
      %v7738 = vrot.slane %v7614, 2
      %v7739 = vsel %vm1144, %v7737, %v7738
      %v7740 = vrot.slane %v7615, 2
      %v7741 = vsel %vm1144, %v7738, %v7740
      %v7742 = vrot.slane %v7616, 2
      %v7743 = vrot.slane %v7617, 2
      %v7744 = vsel %vm1144, %v7742, %v7743
      %v7745 = vrot.slane %v7618, 2
      %v7746 = vsel %vm1144, %v7743, %v7745
      %v7779 = vadd.f32 %v7538, %v7669
      %v7780 = vadd.f32 %v7539, %v7671
      %v7781 = vadd.f32 %v7540, %v7674
      %v7782 = vadd.f32 %v7541, %v7676
      %v7783 = vadd.f32 %v7542, %v7679
      %v7784 = vadd.f32 %v7543, %v7681
      %v7785 = vadd.f32 %v7544, %v7684
      %v7786 = vadd.f32 %v7545, %v7686
      %v7787 = vadd.f32 %v7546, %v7689
      %v7788 = vadd.f32 %v7547, %v7691
      %v7789 = vadd.f32 %v7548, %v7694
      %v7790 = vadd.f32 %v7549, %v7696
      %v7791 = vadd.f32 %v7550, %v7699
      %v7792 = vadd.f32 %v7551, %v7701
      %v7793 = vadd.f32 %v7552, %v7704
      %v7794 = vadd.f32 %v7553, %v7706
      %v7795 = vadd.f32 %v7554, %v7709
      %v7796 = vadd.f32 %v7555, %v7711
      %v7797 = vadd.f32 %v7556, %v7714
      %v7798 = vadd.f32 %v7557, %v7716
      %v7799 = vadd.f32 %v7558, %v7719
      %v7800 = vadd.f32 %v7559, %v7721
      %v7801 = vadd.f32 %v7560, %v7724
      %v7802 = vadd.f32 %v7561, %v7726
      %v7803 = vadd.f32 %v7562, %v7729
      %v7804 = vadd.f32 %v7563, %v7731
      %v7805 = vadd.f32 %v7564, %v7734
      %v7806 = vadd.f32 %v7565, %v7736
      %v7807 = vadd.f32 %v7566, %v7739
      %v7808 = vadd.f32 %v7567, %v7741
      %v7809 = vadd.f32 %v7568, %v7744
      %v7810 = vadd.f32 %v7569, %v7746
      %v7811 = vperm.slane %v6714, 4
      %v7812 = vmul.f32 %v6665, %v7811
      %v7813 = vmul.f32 %v6666, %v7811
      %v7814 = vmul.f32 %v6668, %v7811
      %v7815 = vmul.f32 %v6669, %v7811
      %v7816 = vmul.f32 %v6671, %v7811
      %v7817 = vmul.f32 %v6672, %v7811
      %v7818 = vmul.f32 %v6674, %v7811
      %v7819 = vmul.f32 %v6675, %v7811
      %v7820 = vmul.f32 %v6677, %v7811
      %v7821 = vmul.f32 %v6678, %v7811
      %v7822 = vmul.f32 %v6680, %v7811
      %v7823 = vmul.f32 %v6681, %v7811
      %v7824 = vmul.f32 %v6683, %v7811
      %v7825 = vmul.f32 %v6684, %v7811
      %v7826 = vmul.f32 %v6686, %v7811
      %v7827 = vmul.f32 %v6687, %v7811
      %v7828 = vmul.f32 %v6689, %v7811
      %v7829 = vmul.f32 %v6690, %v7811
      %v7830 = vmul.f32 %v6692, %v7811
      %v7831 = vmul.f32 %v6693, %v7811
      %v7832 = vmul.f32 %v6695, %v7811
      %v7833 = vmul.f32 %v6696, %v7811
      %v7834 = vmul.f32 %v6698, %v7811
      %v7835 = vmul.f32 %v6699, %v7811
      %v7836 = vmul.f32 %v6701, %v7811
      %v7837 = vmul.f32 %v6702, %v7811
      %v7838 = vmul.f32 %v6704, %v7811
      %v7839 = vmul.f32 %v6705, %v7811
      %v7840 = vmul.f32 %v6707, %v7811
      %v7841 = vmul.f32 %v6708, %v7811
      %v7842 = vmul.f32 %v6710, %v7811
      %v7843 = vmul.f32 %v6711, %v7811
      %v7844 = vadd.f32 %v7779, %v7812
      %v7845 = vadd.f32 %v7780, %v7813
      %v7846 = vadd.f32 %v7781, %v7814
      %v7847 = vadd.f32 %v7782, %v7815
      %v7848 = vadd.f32 %v7783, %v7816
      %v7849 = vadd.f32 %v7784, %v7817
      %v7850 = vadd.f32 %v7785, %v7818
      %v7851 = vadd.f32 %v7786, %v7819
      %v7852 = vadd.f32 %v7787, %v7820
      %v7853 = vadd.f32 %v7788, %v7821
      %v7854 = vadd.f32 %v7789, %v7822
      %v7855 = vadd.f32 %v7790, %v7823
      %v7856 = vadd.f32 %v7791, %v7824
      %v7857 = vadd.f32 %v7792, %v7825
      %v7858 = vadd.f32 %v7793, %v7826
      %v7859 = vadd.f32 %v7794, %v7827
      %v7860 = vadd.f32 %v7795, %v7828
      %v7861 = vadd.f32 %v7796, %v7829
      %v7862 = vadd.f32 %v7797, %v7830
      %v7863 = vadd.f32 %v7798, %v7831
      %v7864 = vadd.f32 %v7799, %v7832
      %v7865 = vadd.f32 %v7800, %v7833
      %v7866 = vadd.f32 %v7801, %v7834
      %v7867 = vadd.f32 %v7802, %v7835
      %v7868 = vadd.f32 %v7803, %v7836
      %v7869 = vadd.f32 %v7804, %v7837
      %v7870 = vadd.f32 %v7805, %v7838
      %v7871 = vadd.f32 %v7806, %v7839
      %v7872 = vadd.f32 %v7807, %v7840
      %v7873 = vadd.f32 %v7808, %v7841
      %v7874 = vadd.f32 %v7809, %v7842
      %v7875 = vadd.f32 %v7810, %v7843
      %v7876 = vperm.slane %v6714, 6
      %v7877 = vmul.f32 %v6665, %v7876
      %v7878 = vmul.f32 %v6666, %v7876
      %v7879 = vmul.f32 %v6667, %v7876
      %v7880 = vmul.f32 %v6668, %v7876
      %v7881 = vmul.f32 %v6669, %v7876
      %v7882 = vmul.f32 %v6670, %v7876
      %v7883 = vmul.f32 %v6671, %v7876
      %v7884 = vmul.f32 %v6672, %v7876
      %v7885 = vmul.f32 %v6673, %v7876
      %v7886 = vmul.f32 %v6674, %v7876
      %v7887 = vmul.f32 %v6675, %v7876
      %v7888 = vmul.f32 %v6676, %v7876
      %v7889 = vmul.f32 %v6677, %v7876
      %v7890 = vmul.f32 %v6678, %v7876
      %v7891 = vmul.f32 %v6679, %v7876
      %v7892 = vmul.f32 %v6680, %v7876
      %v7893 = vmul.f32 %v6681, %v7876
      %v7894 = vmul.f32 %v6682, %v7876
      %v7895 = vmul.f32 %v6683, %v7876
      %v7896 = vmul.f32 %v6684, %v7876
      %v7897 = vmul.f32 %v6685, %v7876
      %v7898 = vmul.f32 %v6686, %v7876
      %v7899 = vmul.f32 %v6687, %v7876
      %v7900 = vmul.f32 %v6688, %v7876
      %v7901 = vmul.f32 %v6689, %v7876
      %v7902 = vmul.f32 %v6690, %v7876
      %v7903 = vmul.f32 %v6691, %v7876
      %v7904 = vmul.f32 %v6692, %v7876
      %v7905 = vmul.f32 %v6693, %v7876
      %v7906 = vmul.f32 %v6694, %v7876
      %v7907 = vmul.f32 %v6695, %v7876
      %v7908 = vmul.f32 %v6696, %v7876
      %v7909 = vmul.f32 %v6697, %v7876
      %v7910 = vmul.f32 %v6698, %v7876
      %v7911 = vmul.f32 %v6699, %v7876
      %v7912 = vmul.f32 %v6700, %v7876
      %v7913 = vmul.f32 %v6701, %v7876
      %v7914 = vmul.f32 %v6702, %v7876
      %v7915 = vmul.f32 %v6703, %v7876
      %v7916 = vmul.f32 %v6704, %v7876
      %v7917 = vmul.f32 %v6705, %v7876
      %v7918 = vmul.f32 %v6706, %v7876
      %v7919 = vmul.f32 %v6707, %v7876
      %v7920 = vmul.f32 %v6708, %v7876
      %v7921 = vmul.f32 %v6709, %v7876
      %v7922 = vmul.f32 %v6710, %v7876
      %v7923 = vmul.f32 %v6711, %v7876
      %v7924 = vmul.f32 %v6712, %v7876
      %v7973 = vrot.slane %v7877, 1
      %v7974 = vrot.slane %v7878, 1
      %v7975 = vsel %vm764, %v7973, %v7974
      %v7976 = vrot.slane %v7879, 1
      %v7977 = vsel %vm764, %v7974, %v7976
      %v7978 = vrot.slane %v7880, 1
      %v7979 = vrot.slane %v7881, 1
      %v7980 = vsel %vm764, %v7978, %v7979
      %v7981 = vrot.slane %v7882, 1
      %v7982 = vsel %vm764, %v7979, %v7981
      %v7983 = vrot.slane %v7883, 1
      %v7984 = vrot.slane %v7884, 1
      %v7985 = vsel %vm764, %v7983, %v7984
      %v7986 = vrot.slane %v7885, 1
      %v7987 = vsel %vm764, %v7984, %v7986
      %v7988 = vrot.slane %v7886, 1
      %v7989 = vrot.slane %v7887, 1
      %v7990 = vsel %vm764, %v7988, %v7989
      %v7991 = vrot.slane %v7888, 1
      %v7992 = vsel %vm764, %v7989, %v7991
      %v7993 = vrot.slane %v7889, 1
      %v7994 = vrot.slane %v7890, 1
      %v7995 = vsel %vm764, %v7993, %v7994
      %v7996 = vrot.slane %v7891, 1
      %v7997 = vsel %vm764, %v7994, %v7996
      %v7998 = vrot.slane %v7892, 1
      %v7999 = vrot.slane %v7893, 1
      %v8000 = vsel %vm764, %v7998, %v7999
      %v8001 = vrot.slane %v7894, 1
      %v8002 = vsel %vm764, %v7999, %v8001
      %v8003 = vrot.slane %v7895, 1
      %v8004 = vrot.slane %v7896, 1
      %v8005 = vsel %vm764, %v8003, %v8004
      %v8006 = vrot.slane %v7897, 1
      %v8007 = vsel %vm764, %v8004, %v8006
      %v8008 = vrot.slane %v7898, 1
      %v8009 = vrot.slane %v7899, 1
      %v8010 = vsel %vm764, %v8008, %v8009
      %v8011 = vrot.slane %v7900, 1
      %v8012 = vsel %vm764, %v8009, %v8011
      %v8013 = vrot.slane %v7901, 1
      %v8014 = vrot.slane %v7902, 1
      %v8015 = vsel %vm764, %v8013, %v8014
      %v8016 = vrot.slane %v7903, 1
      %v8017 = vsel %vm764, %v8014, %v8016
      %v8018 = vrot.slane %v7904, 1
      %v8019 = vrot.slane %v7905, 1
      %v8020 = vsel %vm764, %v8018, %v8019
      %v8021 = vrot.slane %v7906, 1
      %v8022 = vsel %vm764, %v8019, %v8021
      %v8023 = vrot.slane %v7907, 1
      %v8024 = vrot.slane %v7908, 1
      %v8025 = vsel %vm764, %v8023, %v8024
      %v8026 = vrot.slane %v7909, 1
      %v8027 = vsel %vm764, %v8024, %v8026
      %v8028 = vrot.slane %v7910, 1
      %v8029 = vrot.slane %v7911, 1
      %v8030 = vsel %vm764, %v8028, %v8029
      %v8031 = vrot.slane %v7912, 1
      %v8032 = vsel %vm764, %v8029, %v8031
      %v8033 = vrot.slane %v7913, 1
      %v8034 = vrot.slane %v7914, 1
      %v8035 = vsel %vm764, %v8033, %v8034
      %v8036 = vrot.slane %v7915, 1
      %v8037 = vsel %vm764, %v8034, %v8036
      %v8038 = vrot.slane %v7916, 1
      %v8039 = vrot.slane %v7917, 1
      %v8040 = vsel %vm764, %v8038, %v8039
      %v8041 = vrot.slane %v7918, 1
      %v8042 = vsel %vm764, %v8039, %v8041
      %v8043 = vrot.slane %v7919, 1
      %v8044 = vrot.slane %v7920, 1
      %v8045 = vsel %vm764, %v8043, %v8044
      %v8046 = vrot.slane %v7921, 1
      %v8047 = vsel %vm764, %v8044, %v8046
      %v8048 = vrot.slane %v7922, 1
      %v8049 = vrot.slane %v7923, 1
      %v8050 = vsel %vm764, %v8048, %v8049
      %v8051 = vrot.slane %v7924, 1
      %v8052 = vsel %vm764, %v8049, %v8051
      %v8085 = vadd.f32 %v7844, %v7975
      %v8086 = vadd.f32 %v7845, %v7977
      %v8087 = vadd.f32 %v7846, %v7980
      %v8088 = vadd.f32 %v7847, %v7982
      %v8089 = vadd.f32 %v7848, %v7985
      %v8090 = vadd.f32 %v7849, %v7987
      %v8091 = vadd.f32 %v7850, %v7990
      %v8092 = vadd.f32 %v7851, %v7992
      %v8093 = vadd.f32 %v7852, %v7995
      %v8094 = vadd.f32 %v7853, %v7997
      %v8095 = vadd.f32 %v7854, %v8000
      %v8096 = vadd.f32 %v7855, %v8002
      %v8097 = vadd.f32 %v7856, %v8005
      %v8098 = vadd.f32 %v7857, %v8007
      %v8099 = vadd.f32 %v7858, %v8010
      %v8100 = vadd.f32 %v7859, %v8012
      %v8101 = vadd.f32 %v7860, %v8015
      %v8102 = vadd.f32 %v7861, %v8017
      %v8103 = vadd.f32 %v7862, %v8020
      %v8104 = vadd.f32 %v7863, %v8022
      %v8105 = vadd.f32 %v7864, %v8025
      %v8106 = vadd.f32 %v7865, %v8027
      %v8107 = vadd.f32 %v7866, %v8030
      %v8108 = vadd.f32 %v7867, %v8032
      %v8109 = vadd.f32 %v7868, %v8035
      %v8110 = vadd.f32 %v7869, %v8037
      %v8111 = vadd.f32 %v7870, %v8040
      %v8112 = vadd.f32 %v7871, %v8042
      %v8113 = vadd.f32 %v7872, %v8045
      %v8114 = vadd.f32 %v7873, %v8047
      %v8115 = vadd.f32 %v7874, %v8050
      %v8116 = vadd.f32 %v7875, %v8052
      %v8117 = vperm.slane %v6715, 0
      %v8118 = vmul.f32 %v6665, %v8117
      %v8119 = vmul.f32 %v6666, %v8117
      %v8120 = vmul.f32 %v6667, %v8117
      %v8121 = vmul.f32 %v6668, %v8117
      %v8122 = vmul.f32 %v6669, %v8117
      %v8123 = vmul.f32 %v6670, %v8117
      %v8124 = vmul.f32 %v6671, %v8117
      %v8125 = vmul.f32 %v6672, %v8117
      %v8126 = vmul.f32 %v6673, %v8117
      %v8127 = vmul.f32 %v6674, %v8117
      %v8128 = vmul.f32 %v6675, %v8117
      %v8129 = vmul.f32 %v6676, %v8117
      %v8130 = vmul.f32 %v6677, %v8117
      %v8131 = vmul.f32 %v6678, %v8117
      %v8132 = vmul.f32 %v6679, %v8117
      %v8133 = vmul.f32 %v6680, %v8117
      %v8134 = vmul.f32 %v6681, %v8117
      %v8135 = vmul.f32 %v6682, %v8117
      %v8136 = vmul.f32 %v6683, %v8117
      %v8137 = vmul.f32 %v6684, %v8117
      %v8138 = vmul.f32 %v6685, %v8117
      %v8139 = vmul.f32 %v6686, %v8117
      %v8140 = vmul.f32 %v6687, %v8117
      %v8141 = vmul.f32 %v6688, %v8117
      %v8142 = vmul.f32 %v6689, %v8117
      %v8143 = vmul.f32 %v6690, %v8117
      %v8144 = vmul.f32 %v6691, %v8117
      %v8145 = vmul.f32 %v6692, %v8117
      %v8146 = vmul.f32 %v6693, %v8117
      %v8147 = vmul.f32 %v6694, %v8117
      %v8148 = vmul.f32 %v6695, %v8117
      %v8149 = vmul.f32 %v6696, %v8117
      %v8150 = vmul.f32 %v6697, %v8117
      %v8151 = vmul.f32 %v6698, %v8117
      %v8152 = vmul.f32 %v6699, %v8117
      %v8153 = vmul.f32 %v6700, %v8117
      %v8154 = vmul.f32 %v6701, %v8117
      %v8155 = vmul.f32 %v6702, %v8117
      %v8156 = vmul.f32 %v6703, %v8117
      %v8157 = vmul.f32 %v6704, %v8117
      %v8158 = vmul.f32 %v6705, %v8117
      %v8159 = vmul.f32 %v6706, %v8117
      %v8160 = vmul.f32 %v6707, %v8117
      %v8161 = vmul.f32 %v6708, %v8117
      %v8162 = vmul.f32 %v6709, %v8117
      %v8163 = vmul.f32 %v6710, %v8117
      %v8164 = vmul.f32 %v6711, %v8117
      %v8165 = vmul.f32 %v6712, %v8117
      %v8214 = vrot.slane %v8118, 2
      %v8215 = vrot.slane %v8119, 2
      %v8216 = vsel %vm1144, %v8214, %v8215
      %v8217 = vrot.slane %v8120, 2
      %v8218 = vsel %vm1144, %v8215, %v8217
      %v8219 = vrot.slane %v8121, 2
      %v8220 = vrot.slane %v8122, 2
      %v8221 = vsel %vm1144, %v8219, %v8220
      %v8222 = vrot.slane %v8123, 2
      %v8223 = vsel %vm1144, %v8220, %v8222
      %v8224 = vrot.slane %v8124, 2
      %v8225 = vrot.slane %v8125, 2
      %v8226 = vsel %vm1144, %v8224, %v8225
      %v8227 = vrot.slane %v8126, 2
      %v8228 = vsel %vm1144, %v8225, %v8227
      %v8229 = vrot.slane %v8127, 2
      %v8230 = vrot.slane %v8128, 2
      %v8231 = vsel %vm1144, %v8229, %v8230
      %v8232 = vrot.slane %v8129, 2
      %v8233 = vsel %vm1144, %v8230, %v8232
      %v8234 = vrot.slane %v8130, 2
      %v8235 = vrot.slane %v8131, 2
      %v8236 = vsel %vm1144, %v8234, %v8235
      %v8237 = vrot.slane %v8132, 2
      %v8238 = vsel %vm1144, %v8235, %v8237
      %v8239 = vrot.slane %v8133, 2
      %v8240 = vrot.slane %v8134, 2
      %v8241 = vsel %vm1144, %v8239, %v8240
      %v8242 = vrot.slane %v8135, 2
      %v8243 = vsel %vm1144, %v8240, %v8242
      %v8244 = vrot.slane %v8136, 2
      %v8245 = vrot.slane %v8137, 2
      %v8246 = vsel %vm1144, %v8244, %v8245
      %v8247 = vrot.slane %v8138, 2
      %v8248 = vsel %vm1144, %v8245, %v8247
      %v8249 = vrot.slane %v8139, 2
      %v8250 = vrot.slane %v8140, 2
      %v8251 = vsel %vm1144, %v8249, %v8250
      %v8252 = vrot.slane %v8141, 2
      %v8253 = vsel %vm1144, %v8250, %v8252
      %v8254 = vrot.slane %v8142, 2
      %v8255 = vrot.slane %v8143, 2
      %v8256 = vsel %vm1144, %v8254, %v8255
      %v8257 = vrot.slane %v8144, 2
      %v8258 = vsel %vm1144, %v8255, %v8257
      %v8259 = vrot.slane %v8145, 2
      %v8260 = vrot.slane %v8146, 2
      %v8261 = vsel %vm1144, %v8259, %v8260
      %v8262 = vrot.slane %v8147, 2
      %v8263 = vsel %vm1144, %v8260, %v8262
      %v8264 = vrot.slane %v8148, 2
      %v8265 = vrot.slane %v8149, 2
      %v8266 = vsel %vm1144, %v8264, %v8265
      %v8267 = vrot.slane %v8150, 2
      %v8268 = vsel %vm1144, %v8265, %v8267
      %v8269 = vrot.slane %v8151, 2
      %v8270 = vrot.slane %v8152, 2
      %v8271 = vsel %vm1144, %v8269, %v8270
      %v8272 = vrot.slane %v8153, 2
      %v8273 = vsel %vm1144, %v8270, %v8272
      %v8274 = vrot.slane %v8154, 2
      %v8275 = vrot.slane %v8155, 2
      %v8276 = vsel %vm1144, %v8274, %v8275
      %v8277 = vrot.slane %v8156, 2
      %v8278 = vsel %vm1144, %v8275, %v8277
      %v8279 = vrot.slane %v8157, 2
      %v8280 = vrot.slane %v8158, 2
      %v8281 = vsel %vm1144, %v8279, %v8280
      %v8282 = vrot.slane %v8159, 2
      %v8283 = vsel %vm1144, %v8280, %v8282
      %v8284 = vrot.slane %v8160, 2
      %v8285 = vrot.slane %v8161, 2
      %v8286 = vsel %vm1144, %v8284, %v8285
      %v8287 = vrot.slane %v8162, 2
      %v8288 = vsel %vm1144, %v8285, %v8287
      %v8289 = vrot.slane %v8163, 2
      %v8290 = vrot.slane %v8164, 2
      %v8291 = vsel %vm1144, %v8289, %v8290
      %v8292 = vrot.slane %v8165, 2
      %v8293 = vsel %vm1144, %v8290, %v8292
      %v8326 = vadd.f32 %v8085, %v8216
      %v8327 = vadd.f32 %v8086, %v8218
      %v8328 = vadd.f32 %v8087, %v8221
      %v8329 = vadd.f32 %v8088, %v8223
      %v8330 = vadd.f32 %v8089, %v8226
      %v8331 = vadd.f32 %v8090, %v8228
      %v8332 = vadd.f32 %v8091, %v8231
      %v8333 = vadd.f32 %v8092, %v8233
      %v8334 = vadd.f32 %v8093, %v8236
      %v8335 = vadd.f32 %v8094, %v8238
      %v8336 = vadd.f32 %v8095, %v8241
      %v8337 = vadd.f32 %v8096, %v8243
      %v8338 = vadd.f32 %v8097, %v8246
      %v8339 = vadd.f32 %v8098, %v8248
      %v8340 = vadd.f32 %v8099, %v8251
      %v8341 = vadd.f32 %v8100, %v8253
      %v8342 = vadd.f32 %v8101, %v8256
      %v8343 = vadd.f32 %v8102, %v8258
      %v8344 = vadd.f32 %v8103, %v8261
      %v8345 = vadd.f32 %v8104, %v8263
      %v8346 = vadd.f32 %v8105, %v8266
      %v8347 = vadd.f32 %v8106, %v8268
      %v8348 = vadd.f32 %v8107, %v8271
      %v8349 = vadd.f32 %v8108, %v8273
      %v8350 = vadd.f32 %v8109, %v8276
      %v8351 = vadd.f32 %v8110, %v8278
      %v8352 = vadd.f32 %v8111, %v8281
      %v8353 = vadd.f32 %v8112, %v8283
      %v8354 = vadd.f32 %v8113, %v8286
      %v8355 = vadd.f32 %v8114, %v8288
      %v8356 = vadd.f32 %v8115, %v8291
      %v8357 = vadd.f32 %v8116, %v8293
      %v8358 = vperm.slane %v6716, 0
      %v8359 = vadd.f32 %v8326, %v8358
      %v8360 = vadd.f32 %v8327, %v8358
      %v8361 = vadd.f32 %v8328, %v8358
      %v8362 = vadd.f32 %v8329, %v8358
      %v8363 = vadd.f32 %v8330, %v8358
      %v8364 = vadd.f32 %v8331, %v8358
      %v8365 = vadd.f32 %v8332, %v8358
      %v8366 = vadd.f32 %v8333, %v8358
      %v8367 = vadd.f32 %v8334, %v8358
      %v8368 = vadd.f32 %v8335, %v8358
      %v8369 = vadd.f32 %v8336, %v8358
      %v8370 = vadd.f32 %v8337, %v8358
      %v8371 = vadd.f32 %v8338, %v8358
      %v8372 = vadd.f32 %v8339, %v8358
      %v8373 = vadd.f32 %v8340, %v8358
      %v8374 = vadd.f32 %v8341, %v8358
      %v8375 = vadd.f32 %v8342, %v8358
      %v8376 = vadd.f32 %v8343, %v8358
      %v8377 = vadd.f32 %v8344, %v8358
      %v8378 = vadd.f32 %v8345, %v8358
      %v8379 = vadd.f32 %v8346, %v8358
      %v8380 = vadd.f32 %v8347, %v8358
      %v8381 = vadd.f32 %v8348, %v8358
      %v8382 = vadd.f32 %v8349, %v8358
      %v8383 = vadd.f32 %v8350, %v8358
      %v8384 = vadd.f32 %v8351, %v8358
      %v8385 = vadd.f32 %v8352, %v8358
      %v8386 = vadd.f32 %v8353, %v8358
      %v8387 = vadd.f32 %v8354, %v8358
      %v8388 = vadd.f32 %v8355, %v8358
      %v8389 = vadd.f32 %v8356, %v8358
      %v8390 = vadd.f32 %v8357, %v8358
      %v8391 = vpack.c.bf16 %v8360, %v8359
      %v8392 = vpack.c.bf16 %v8362, %v8361
      %v8393 = vpack.c.bf16 %v8364, %v8363
      %v8394 = vpack.c.bf16 %v8366, %v8365
      %v8395 = vpack.c.bf16 %v8368, %v8367
      %v8396 = vpack.c.bf16 %v8370, %v8369
      %v8397 = vpack.c.bf16 %v8372, %v8371
      %v8398 = vpack.c.bf16 %v8374, %v8373
      %v8399 = vpack.c.bf16 %v8376, %v8375
      %v8400 = vpack.c.bf16 %v8378, %v8377
      %v8401 = vpack.c.bf16 %v8380, %v8379
      %v8402 = vpack.c.bf16 %v8382, %v8381
      %v8403 = vpack.c.bf16 %v8384, %v8383
      %v8404 = vpack.c.bf16 %v8386, %v8385
      %v8405 = vpack.c.bf16 %v8388, %v8387
      %v8406 = vpack.c.bf16 %v8390, %v8389
      %v8407 = vld [vmem:[%s8] sm:$0xf]
      %v8408 = vld [vmem:[%s8 + $0x4] sm:$0xf]
      %v8409 = vld [vmem:[%s8 + $0x8] sm:$0xf]
      %v8410 = vld [vmem:[%s8 + $0xc] sm:$0xf]
      %v8411 = vld [vmem:[%s8 + $0x10] sm:$0xf]
      %v8412 = vld [vmem:[%s8 + $0x14] sm:$0xf]
      %v8413 = vld [vmem:[%s8 + $0x18] sm:$0xf]
      %v8414 = vld [vmem:[%s8 + $0x1c] sm:$0xf]
      %v8415 = vld [vmem:[%s8 + $0x20] sm:$0xf]
      %v8416 = vld [vmem:[%s8 + $0x24] sm:$0xf]
      %v8417 = vld [vmem:[%s8 + $0x28] sm:$0xf]
      %v8418 = vld [vmem:[%s8 + $0x2c] sm:$0xf]
      %v8419 = vld [vmem:[%s8 + $0x30] sm:$0xf]
      %v8420 = vld [vmem:[%s8 + $0x34] sm:$0xf]
      %v8421 = vld [vmem:[%s8 + $0x38] sm:$0xf]
      %v8422 = vld [vmem:[%s8 + $0x3c] sm:$0xf]
      %v8423 = vperm.slane %v6713, 1
      %v8424 = vmul.f32 %v6659, %v8423
      %v8425 = vmul.f32 %v6660, %v8423
      %v8426 = vmul.f32 %v6662, %v8423
      %v8427 = vmul.f32 %v6663, %v8423
      %v8428 = vmul.f32 %v6665, %v8423
      %v8429 = vmul.f32 %v6666, %v8423
      %v8430 = vmul.f32 %v6668, %v8423
      %v8431 = vmul.f32 %v6669, %v8423
      %v8432 = vmul.f32 %v6671, %v8423
      %v8433 = vmul.f32 %v6672, %v8423
      %v8434 = vmul.f32 %v6674, %v8423
      %v8435 = vmul.f32 %v6675, %v8423
      %v8436 = vmul.f32 %v6677, %v8423
      %v8437 = vmul.f32 %v6678, %v8423
      %v8438 = vmul.f32 %v6680, %v8423
      %v8439 = vmul.f32 %v6681, %v8423
      %v8440 = vmul.f32 %v6683, %v8423
      %v8441 = vmul.f32 %v6684, %v8423
      %v8442 = vmul.f32 %v6686, %v8423
      %v8443 = vmul.f32 %v6687, %v8423
      %v8444 = vmul.f32 %v6689, %v8423
      %v8445 = vmul.f32 %v6690, %v8423
      %v8446 = vmul.f32 %v6692, %v8423
      %v8447 = vmul.f32 %v6693, %v8423
      %v8448 = vmul.f32 %v6695, %v8423
      %v8449 = vmul.f32 %v6696, %v8423
      %v8450 = vmul.f32 %v6698, %v8423
      %v8451 = vmul.f32 %v6699, %v8423
      %v8452 = vmul.f32 %v6701, %v8423
      %v8453 = vmul.f32 %v6702, %v8423
      %v8454 = vmul.f32 %v6704, %v8423
      %v8455 = vmul.f32 %v6705, %v8423
      %v8456 = vadd.f32 %v8424, 0.0
      %v8457 = vadd.f32 %v8425, 0.0
      %v8458 = vadd.f32 %v8426, 0.0
      %v8459 = vadd.f32 %v8427, 0.0
      %v8460 = vadd.f32 %v8428, 0.0
      %v8461 = vadd.f32 %v8429, 0.0
      %v8462 = vadd.f32 %v8430, 0.0
      %v8463 = vadd.f32 %v8431, 0.0
      %v8464 = vadd.f32 %v8432, 0.0
      %v8465 = vadd.f32 %v8433, 0.0
      %v8466 = vadd.f32 %v8434, 0.0
      %v8467 = vadd.f32 %v8435, 0.0
      %v8468 = vadd.f32 %v8436, 0.0
      %v8469 = vadd.f32 %v8437, 0.0
      %v8470 = vadd.f32 %v8438, 0.0
      %v8471 = vadd.f32 %v8439, 0.0
      %v8472 = vadd.f32 %v8440, 0.0
      %v8473 = vadd.f32 %v8441, 0.0
      %v8474 = vadd.f32 %v8442, 0.0
      %v8475 = vadd.f32 %v8443, 0.0
      %v8476 = vadd.f32 %v8444, 0.0
      %v8477 = vadd.f32 %v8445, 0.0
      %v8478 = vadd.f32 %v8446, 0.0
      %v8479 = vadd.f32 %v8447, 0.0
      %v8480 = vadd.f32 %v8448, 0.0
      %v8481 = vadd.f32 %v8449, 0.0
      %v8482 = vadd.f32 %v8450, 0.0
      %v8483 = vadd.f32 %v8451, 0.0
      %v8484 = vadd.f32 %v8452, 0.0
      %v8485 = vadd.f32 %v8453, 0.0
      %v8486 = vadd.f32 %v8454, 0.0
      %v8487 = vadd.f32 %v8455, 0.0
      %v8488 = vperm.slane %v6713, 3
      %v8489 = vmul.f32 %v6659, %v8488
      %v8490 = vmul.f32 %v6660, %v8488
      %v8491 = vmul.f32 %v6661, %v8488
      %v8492 = vmul.f32 %v6662, %v8488
      %v8493 = vmul.f32 %v6663, %v8488
      %v8494 = vmul.f32 %v6664, %v8488
      %v8495 = vmul.f32 %v6665, %v8488
      %v8496 = vmul.f32 %v6666, %v8488
      %v8497 = vmul.f32 %v6667, %v8488
      %v8498 = vmul.f32 %v6668, %v8488
      %v8499 = vmul.f32 %v6669, %v8488
      %v8500 = vmul.f32 %v6670, %v8488
      %v8501 = vmul.f32 %v6671, %v8488
      %v8502 = vmul.f32 %v6672, %v8488
      %v8503 = vmul.f32 %v6673, %v8488
      %v8504 = vmul.f32 %v6674, %v8488
      %v8505 = vmul.f32 %v6675, %v8488
      %v8506 = vmul.f32 %v6676, %v8488
      %v8507 = vmul.f32 %v6677, %v8488
      %v8508 = vmul.f32 %v6678, %v8488
      %v8509 = vmul.f32 %v6679, %v8488
      %v8510 = vmul.f32 %v6680, %v8488
      %v8511 = vmul.f32 %v6681, %v8488
      %v8512 = vmul.f32 %v6682, %v8488
      %v8513 = vmul.f32 %v6683, %v8488
      %v8514 = vmul.f32 %v6684, %v8488
      %v8515 = vmul.f32 %v6685, %v8488
      %v8516 = vmul.f32 %v6686, %v8488
      %v8517 = vmul.f32 %v6687, %v8488
      %v8518 = vmul.f32 %v6688, %v8488
      %v8519 = vmul.f32 %v6689, %v8488
      %v8520 = vmul.f32 %v6690, %v8488
      %v8521 = vmul.f32 %v6691, %v8488
      %v8522 = vmul.f32 %v6692, %v8488
      %v8523 = vmul.f32 %v6693, %v8488
      %v8524 = vmul.f32 %v6694, %v8488
      %v8525 = vmul.f32 %v6695, %v8488
      %v8526 = vmul.f32 %v6696, %v8488
      %v8527 = vmul.f32 %v6697, %v8488
      %v8528 = vmul.f32 %v6698, %v8488
      %v8529 = vmul.f32 %v6699, %v8488
      %v8530 = vmul.f32 %v6700, %v8488
      %v8531 = vmul.f32 %v6701, %v8488
      %v8532 = vmul.f32 %v6702, %v8488
      %v8533 = vmul.f32 %v6703, %v8488
      %v8534 = vmul.f32 %v6704, %v8488
      %v8535 = vmul.f32 %v6705, %v8488
      %v8536 = vmul.f32 %v6706, %v8488
      %v8585 = vrot.slane %v8489, 1
      %v8586 = vrot.slane %v8490, 1
      %v8587 = vsel %vm764, %v8585, %v8586
      %v8588 = vrot.slane %v8491, 1
      %v8589 = vsel %vm764, %v8586, %v8588
      %v8590 = vrot.slane %v8492, 1
      %v8591 = vrot.slane %v8493, 1
      %v8592 = vsel %vm764, %v8590, %v8591
      %v8593 = vrot.slane %v8494, 1
      %v8594 = vsel %vm764, %v8591, %v8593
      %v8595 = vrot.slane %v8495, 1
      %v8596 = vrot.slane %v8496, 1
      %v8597 = vsel %vm764, %v8595, %v8596
      %v8598 = vrot.slane %v8497, 1
      %v8599 = vsel %vm764, %v8596, %v8598
      %v8600 = vrot.slane %v8498, 1
      %v8601 = vrot.slane %v8499, 1
      %v8602 = vsel %vm764, %v8600, %v8601
      %v8603 = vrot.slane %v8500, 1
      %v8604 = vsel %vm764, %v8601, %v8603
      %v8605 = vrot.slane %v8501, 1
      %v8606 = vrot.slane %v8502, 1
      %v8607 = vsel %vm764, %v8605, %v8606
      %v8608 = vrot.slane %v8503, 1
      %v8609 = vsel %vm764, %v8606, %v8608
      %v8610 = vrot.slane %v8504, 1
      %v8611 = vrot.slane %v8505, 1
      %v8612 = vsel %vm764, %v8610, %v8611
      %v8613 = vrot.slane %v8506, 1
      %v8614 = vsel %vm764, %v8611, %v8613
      %v8615 = vrot.slane %v8507, 1
      %v8616 = vrot.slane %v8508, 1
      %v8617 = vsel %vm764, %v8615, %v8616
      %v8618 = vrot.slane %v8509, 1
      %v8619 = vsel %vm764, %v8616, %v8618
      %v8620 = vrot.slane %v8510, 1
      %v8621 = vrot.slane %v8511, 1
      %v8622 = vsel %vm764, %v8620, %v8621
      %v8623 = vrot.slane %v8512, 1
      %v8624 = vsel %vm764, %v8621, %v8623
      %v8625 = vrot.slane %v8513, 1
      %v8626 = vrot.slane %v8514, 1
      %v8627 = vsel %vm764, %v8625, %v8626
      %v8628 = vrot.slane %v8515, 1
      %v8629 = vsel %vm764, %v8626, %v8628
      %v8630 = vrot.slane %v8516, 1
      %v8631 = vrot.slane %v8517, 1
      %v8632 = vsel %vm764, %v8630, %v8631
      %v8633 = vrot.slane %v8518, 1
      %v8634 = vsel %vm764, %v8631, %v8633
      %v8635 = vrot.slane %v8519, 1
      %v8636 = vrot.slane %v8520, 1
      %v8637 = vsel %vm764, %v8635, %v8636
      %v8638 = vrot.slane %v8521, 1
      %v8639 = vsel %vm764, %v8636, %v8638
      %v8640 = vrot.slane %v8522, 1
      %v8641 = vrot.slane %v8523, 1
      %v8642 = vsel %vm764, %v8640, %v8641
      %v8643 = vrot.slane %v8524, 1
      %v8644 = vsel %vm764, %v8641, %v8643
      %v8645 = vrot.slane %v8525, 1
      %v8646 = vrot.slane %v8526, 1
      %v8647 = vsel %vm764, %v8645, %v8646
      %v8648 = vrot.slane %v8527, 1
      %v8649 = vsel %vm764, %v8646, %v8648
      %v8650 = vrot.slane %v8528, 1
      %v8651 = vrot.slane %v8529, 1
      %v8652 = vsel %vm764, %v8650, %v8651
      %v8653 = vrot.slane %v8530, 1
      %v8654 = vsel %vm764, %v8651, %v8653
      %v8655 = vrot.slane %v8531, 1
      %v8656 = vrot.slane %v8532, 1
      %v8657 = vsel %vm764, %v8655, %v8656
      %v8658 = vrot.slane %v8533, 1
      %v8659 = vsel %vm764, %v8656, %v8658
      %v8660 = vrot.slane %v8534, 1
      %v8661 = vrot.slane %v8535, 1
      %v8662 = vsel %vm764, %v8660, %v8661
      %v8663 = vrot.slane %v8536, 1
      %v8664 = vsel %vm764, %v8661, %v8663
      %v8697 = vadd.f32 %v8456, %v8587
      %v8698 = vadd.f32 %v8457, %v8589
      %v8699 = vadd.f32 %v8458, %v8592
      %v8700 = vadd.f32 %v8459, %v8594
      %v8701 = vadd.f32 %v8460, %v8597
      %v8702 = vadd.f32 %v8461, %v8599
      %v8703 = vadd.f32 %v8462, %v8602
      %v8704 = vadd.f32 %v8463, %v8604
      %v8705 = vadd.f32 %v8464, %v8607
      %v8706 = vadd.f32 %v8465, %v8609
      %v8707 = vadd.f32 %v8466, %v8612
      %v8708 = vadd.f32 %v8467, %v8614
      %v8709 = vadd.f32 %v8468, %v8617
      %v8710 = vadd.f32 %v8469, %v8619
      %v8711 = vadd.f32 %v8470, %v8622
      %v8712 = vadd.f32 %v8471, %v8624
      %v8713 = vadd.f32 %v8472, %v8627
      %v8714 = vadd.f32 %v8473, %v8629
      %v8715 = vadd.f32 %v8474, %v8632
      %v8716 = vadd.f32 %v8475, %v8634
      %v8717 = vadd.f32 %v8476, %v8637
      %v8718 = vadd.f32 %v8477, %v8639
      %v8719 = vadd.f32 %v8478, %v8642
      %v8720 = vadd.f32 %v8479, %v8644
      %v8721 = vadd.f32 %v8480, %v8647
      %v8722 = vadd.f32 %v8481, %v8649
      %v8723 = vadd.f32 %v8482, %v8652
      %v8724 = vadd.f32 %v8483, %v8654
      %v8725 = vadd.f32 %v8484, %v8657
      %v8726 = vadd.f32 %v8485, %v8659
      %v8727 = vadd.f32 %v8486, %v8662
      %v8728 = vadd.f32 %v8487, %v8664
      %v8729 = vperm.slane %v6713, 5
      %v8730 = vmul.f32 %v6659, %v8729
      %v8731 = vmul.f32 %v6660, %v8729
      %v8732 = vmul.f32 %v6661, %v8729
      %v8733 = vmul.f32 %v6662, %v8729
      %v8734 = vmul.f32 %v6663, %v8729
      %v8735 = vmul.f32 %v6664, %v8729
      %v8736 = vmul.f32 %v6665, %v8729
      %v8737 = vmul.f32 %v6666, %v8729
      %v8738 = vmul.f32 %v6667, %v8729
      %v8739 = vmul.f32 %v6668, %v8729
      %v8740 = vmul.f32 %v6669, %v8729
      %v8741 = vmul.f32 %v6670, %v8729
      %v8742 = vmul.f32 %v6671, %v8729
      %v8743 = vmul.f32 %v6672, %v8729
      %v8744 = vmul.f32 %v6673, %v8729
      %v8745 = vmul.f32 %v6674, %v8729
      %v8746 = vmul.f32 %v6675, %v8729
      %v8747 = vmul.f32 %v6676, %v8729
      %v8748 = vmul.f32 %v6677, %v8729
      %v8749 = vmul.f32 %v6678, %v8729
      %v8750 = vmul.f32 %v6679, %v8729
      %v8751 = vmul.f32 %v6680, %v8729
      %v8752 = vmul.f32 %v6681, %v8729
      %v8753 = vmul.f32 %v6682, %v8729
      %v8754 = vmul.f32 %v6683, %v8729
      %v8755 = vmul.f32 %v6684, %v8729
      %v8756 = vmul.f32 %v6685, %v8729
      %v8757 = vmul.f32 %v6686, %v8729
      %v8758 = vmul.f32 %v6687, %v8729
      %v8759 = vmul.f32 %v6688, %v8729
      %v8760 = vmul.f32 %v6689, %v8729
      %v8761 = vmul.f32 %v6690, %v8729
      %v8762 = vmul.f32 %v6691, %v8729
      %v8763 = vmul.f32 %v6692, %v8729
      %v8764 = vmul.f32 %v6693, %v8729
      %v8765 = vmul.f32 %v6694, %v8729
      %v8766 = vmul.f32 %v6695, %v8729
      %v8767 = vmul.f32 %v6696, %v8729
      %v8768 = vmul.f32 %v6697, %v8729
      %v8769 = vmul.f32 %v6698, %v8729
      %v8770 = vmul.f32 %v6699, %v8729
      %v8771 = vmul.f32 %v6700, %v8729
      %v8772 = vmul.f32 %v6701, %v8729
      %v8773 = vmul.f32 %v6702, %v8729
      %v8774 = vmul.f32 %v6703, %v8729
      %v8775 = vmul.f32 %v6704, %v8729
      %v8776 = vmul.f32 %v6705, %v8729
      %v8777 = vmul.f32 %v6706, %v8729
      %v8826 = vrot.slane %v8730, 2
      %v8827 = vrot.slane %v8731, 2
      %v8828 = vsel %vm1144, %v8826, %v8827
      %v8829 = vrot.slane %v8732, 2
      %v8830 = vsel %vm1144, %v8827, %v8829
      %v8831 = vrot.slane %v8733, 2
      %v8832 = vrot.slane %v8734, 2
      %v8833 = vsel %vm1144, %v8831, %v8832
      %v8834 = vrot.slane %v8735, 2
      %v8835 = vsel %vm1144, %v8832, %v8834
      %v8836 = vrot.slane %v8736, 2
      %v8837 = vrot.slane %v8737, 2
      %v8838 = vsel %vm1144, %v8836, %v8837
      %v8839 = vrot.slane %v8738, 2
      %v8840 = vsel %vm1144, %v8837, %v8839
      %v8841 = vrot.slane %v8739, 2
      %v8842 = vrot.slane %v8740, 2
      %v8843 = vsel %vm1144, %v8841, %v8842
      %v8844 = vrot.slane %v8741, 2
      %v8845 = vsel %vm1144, %v8842, %v8844
      %v8846 = vrot.slane %v8742, 2
      %v8847 = vrot.slane %v8743, 2
      %v8848 = vsel %vm1144, %v8846, %v8847
      %v8849 = vrot.slane %v8744, 2
      %v8850 = vsel %vm1144, %v8847, %v8849
      %v8851 = vrot.slane %v8745, 2
      %v8852 = vrot.slane %v8746, 2
      %v8853 = vsel %vm1144, %v8851, %v8852
      %v8854 = vrot.slane %v8747, 2
      %v8855 = vsel %vm1144, %v8852, %v8854
      %v8856 = vrot.slane %v8748, 2
      %v8857 = vrot.slane %v8749, 2
      %v8858 = vsel %vm1144, %v8856, %v8857
      %v8859 = vrot.slane %v8750, 2
      %v8860 = vsel %vm1144, %v8857, %v8859
      %v8861 = vrot.slane %v8751, 2
      %v8862 = vrot.slane %v8752, 2
      %v8863 = vsel %vm1144, %v8861, %v8862
      %v8864 = vrot.slane %v8753, 2
      %v8865 = vsel %vm1144, %v8862, %v8864
      %v8866 = vrot.slane %v8754, 2
      %v8867 = vrot.slane %v8755, 2
      %v8868 = vsel %vm1144, %v8866, %v8867
      %v8869 = vrot.slane %v8756, 2
      %v8870 = vsel %vm1144, %v8867, %v8869
      %v8871 = vrot.slane %v8757, 2
      %v8872 = vrot.slane %v8758, 2
      %v8873 = vsel %vm1144, %v8871, %v8872
      %v8874 = vrot.slane %v8759, 2
      %v8875 = vsel %vm1144, %v8872, %v8874
      %v8876 = vrot.slane %v8760, 2
      %v8877 = vrot.slane %v8761, 2
      %v8878 = vsel %vm1144, %v8876, %v8877
      %v8879 = vrot.slane %v8762, 2
      %v8880 = vsel %vm1144, %v8877, %v8879
      %v8881 = vrot.slane %v8763, 2
      %v8882 = vrot.slane %v8764, 2
      %v8883 = vsel %vm1144, %v8881, %v8882
      %v8884 = vrot.slane %v8765, 2
      %v8885 = vsel %vm1144, %v8882, %v8884
      %v8886 = vrot.slane %v8766, 2
      %v8887 = vrot.slane %v8767, 2
      %v8888 = vsel %vm1144, %v8886, %v8887
      %v8889 = vrot.slane %v8768, 2
      %v8890 = vsel %vm1144, %v8887, %v8889
      %v8891 = vrot.slane %v8769, 2
      %v8892 = vrot.slane %v8770, 2
      %v8893 = vsel %vm1144, %v8891, %v8892
      %v8894 = vrot.slane %v8771, 2
      %v8895 = vsel %vm1144, %v8892, %v8894
      %v8896 = vrot.slane %v8772, 2
      %v8897 = vrot.slane %v8773, 2
      %v8898 = vsel %vm1144, %v8896, %v8897
      %v8899 = vrot.slane %v8774, 2
      %v8900 = vsel %vm1144, %v8897, %v8899
      %v8901 = vrot.slane %v8775, 2
      %v8902 = vrot.slane %v8776, 2
      %v8903 = vsel %vm1144, %v8901, %v8902
      %v8904 = vrot.slane %v8777, 2
      %v8905 = vsel %vm1144, %v8902, %v8904
      %v8938 = vadd.f32 %v8697, %v8828
      %v8939 = vadd.f32 %v8698, %v8830
      %v8940 = vadd.f32 %v8699, %v8833
      %v8941 = vadd.f32 %v8700, %v8835
      %v8942 = vadd.f32 %v8701, %v8838
      %v8943 = vadd.f32 %v8702, %v8840
      %v8944 = vadd.f32 %v8703, %v8843
      %v8945 = vadd.f32 %v8704, %v8845
      %v8946 = vadd.f32 %v8705, %v8848
      %v8947 = vadd.f32 %v8706, %v8850
      %v8948 = vadd.f32 %v8707, %v8853
      %v8949 = vadd.f32 %v8708, %v8855
      %v8950 = vadd.f32 %v8709, %v8858
      %v8951 = vadd.f32 %v8710, %v8860
      %v8952 = vadd.f32 %v8711, %v8863
      %v8953 = vadd.f32 %v8712, %v8865
      %v8954 = vadd.f32 %v8713, %v8868
      %v8955 = vadd.f32 %v8714, %v8870
      %v8956 = vadd.f32 %v8715, %v8873
      %v8957 = vadd.f32 %v8716, %v8875
      %v8958 = vadd.f32 %v8717, %v8878
      %v8959 = vadd.f32 %v8718, %v8880
      %v8960 = vadd.f32 %v8719, %v8883
      %v8961 = vadd.f32 %v8720, %v8885
      %v8962 = vadd.f32 %v8721, %v8888
      %v8963 = vadd.f32 %v8722, %v8890
      %v8964 = vadd.f32 %v8723, %v8893
      %v8965 = vadd.f32 %v8724, %v8895
      %v8966 = vadd.f32 %v8725, %v8898
      %v8967 = vadd.f32 %v8726, %v8900
      %v8968 = vadd.f32 %v8727, %v8903
      %v8969 = vadd.f32 %v8728, %v8905
      %v8970 = vperm.slane %v6713, 7
      %v8971 = vmul.f32 %v6662, %v8970
      %v8972 = vmul.f32 %v6663, %v8970
      %v8973 = vmul.f32 %v6665, %v8970
      %v8974 = vmul.f32 %v6666, %v8970
      %v8975 = vmul.f32 %v6668, %v8970
      %v8976 = vmul.f32 %v6669, %v8970
      %v8977 = vmul.f32 %v6671, %v8970
      %v8978 = vmul.f32 %v6672, %v8970
      %v8979 = vmul.f32 %v6674, %v8970
      %v8980 = vmul.f32 %v6675, %v8970
      %v8981 = vmul.f32 %v6677, %v8970
      %v8982 = vmul.f32 %v6678, %v8970
      %v8983 = vmul.f32 %v6680, %v8970
      %v8984 = vmul.f32 %v6681, %v8970
      %v8985 = vmul.f32 %v6683, %v8970
      %v8986 = vmul.f32 %v6684, %v8970
      %v8987 = vmul.f32 %v6686, %v8970
      %v8988 = vmul.f32 %v6687, %v8970
      %v8989 = vmul.f32 %v6689, %v8970
      %v8990 = vmul.f32 %v6690, %v8970
      %v8991 = vmul.f32 %v6692, %v8970
      %v8992 = vmul.f32 %v6693, %v8970
      %v8993 = vmul.f32 %v6695, %v8970
      %v8994 = vmul.f32 %v6696, %v8970
      %v8995 = vmul.f32 %v6698, %v8970
      %v8996 = vmul.f32 %v6699, %v8970
      %v8997 = vmul.f32 %v6701, %v8970
      %v8998 = vmul.f32 %v6702, %v8970
      %v8999 = vmul.f32 %v6704, %v8970
      %v9000 = vmul.f32 %v6705, %v8970
      %v9001 = vmul.f32 %v6707, %v8970
      %v9002 = vmul.f32 %v6708, %v8970
      %v9003 = vadd.f32 %v8938, %v8971
      %v9004 = vadd.f32 %v8939, %v8972
      %v9005 = vadd.f32 %v8940, %v8973
      %v9006 = vadd.f32 %v8941, %v8974
      %v9007 = vadd.f32 %v8942, %v8975
      %v9008 = vadd.f32 %v8943, %v8976
      %v9009 = vadd.f32 %v8944, %v8977
      %v9010 = vadd.f32 %v8945, %v8978
      %v9011 = vadd.f32 %v8946, %v8979
      %v9012 = vadd.f32 %v8947, %v8980
      %v9013 = vadd.f32 %v8948, %v8981
      %v9014 = vadd.f32 %v8949, %v8982
      %v9015 = vadd.f32 %v8950, %v8983
      %v9016 = vadd.f32 %v8951, %v8984
      %v9017 = vadd.f32 %v8952, %v8985
      %v9018 = vadd.f32 %v8953, %v8986
      %v9019 = vadd.f32 %v8954, %v8987
      %v9020 = vadd.f32 %v8955, %v8988
      %v9021 = vadd.f32 %v8956, %v8989
      %v9022 = vadd.f32 %v8957, %v8990
      %v9023 = vadd.f32 %v8958, %v8991
      %v9024 = vadd.f32 %v8959, %v8992
      %v9025 = vadd.f32 %v8960, %v8993
      %v9026 = vadd.f32 %v8961, %v8994
      %v9027 = vadd.f32 %v8962, %v8995
      %v9028 = vadd.f32 %v8963, %v8996
      %v9029 = vadd.f32 %v8964, %v8997
      %v9030 = vadd.f32 %v8965, %v8998
      %v9031 = vadd.f32 %v8966, %v8999
      %v9032 = vadd.f32 %v8967, %v9000
      %v9033 = vadd.f32 %v8968, %v9001
      %v9034 = vadd.f32 %v8969, %v9002
      %v9035 = vperm.slane %v6714, 1
      %v9036 = vmul.f32 %v6662, %v9035
      %v9037 = vmul.f32 %v6663, %v9035
      %v9038 = vmul.f32 %v6664, %v9035
      %v9039 = vmul.f32 %v6665, %v9035
      %v9040 = vmul.f32 %v6666, %v9035
      %v9041 = vmul.f32 %v6667, %v9035
      %v9042 = vmul.f32 %v6668, %v9035
      %v9043 = vmul.f32 %v6669, %v9035
      %v9044 = vmul.f32 %v6670, %v9035
      %v9045 = vmul.f32 %v6671, %v9035
      %v9046 = vmul.f32 %v6672, %v9035
      %v9047 = vmul.f32 %v6673, %v9035
      %v9048 = vmul.f32 %v6674, %v9035
      %v9049 = vmul.f32 %v6675, %v9035
      %v9050 = vmul.f32 %v6676, %v9035
      %v9051 = vmul.f32 %v6677, %v9035
      %v9052 = vmul.f32 %v6678, %v9035
      %v9053 = vmul.f32 %v6679, %v9035
      %v9054 = vmul.f32 %v6680, %v9035
      %v9055 = vmul.f32 %v6681, %v9035
      %v9056 = vmul.f32 %v6682, %v9035
      %v9057 = vmul.f32 %v6683, %v9035
      %v9058 = vmul.f32 %v6684, %v9035
      %v9059 = vmul.f32 %v6685, %v9035
      %v9060 = vmul.f32 %v6686, %v9035
      %v9061 = vmul.f32 %v6687, %v9035
      %v9062 = vmul.f32 %v6688, %v9035
      %v9063 = vmul.f32 %v6689, %v9035
      %v9064 = vmul.f32 %v6690, %v9035
      %v9065 = vmul.f32 %v6691, %v9035
      %v9066 = vmul.f32 %v6692, %v9035
      %v9067 = vmul.f32 %v6693, %v9035
      %v9068 = vmul.f32 %v6694, %v9035
      %v9069 = vmul.f32 %v6695, %v9035
      %v9070 = vmul.f32 %v6696, %v9035
      %v9071 = vmul.f32 %v6697, %v9035
      %v9072 = vmul.f32 %v6698, %v9035
      %v9073 = vmul.f32 %v6699, %v9035
      %v9074 = vmul.f32 %v6700, %v9035
      %v9075 = vmul.f32 %v6701, %v9035
      %v9076 = vmul.f32 %v6702, %v9035
      %v9077 = vmul.f32 %v6703, %v9035
      %v9078 = vmul.f32 %v6704, %v9035
      %v9079 = vmul.f32 %v6705, %v9035
      %v9080 = vmul.f32 %v6706, %v9035
      %v9081 = vmul.f32 %v6707, %v9035
      %v9082 = vmul.f32 %v6708, %v9035
      %v9083 = vmul.f32 %v6709, %v9035
      %v9132 = vrot.slane %v9036, 1
      %v9133 = vrot.slane %v9037, 1
      %v9134 = vsel %vm764, %v9132, %v9133
      %v9135 = vrot.slane %v9038, 1
      %v9136 = vsel %vm764, %v9133, %v9135
      %v9137 = vrot.slane %v9039, 1
      %v9138 = vrot.slane %v9040, 1
      %v9139 = vsel %vm764, %v9137, %v9138
      %v9140 = vrot.slane %v9041, 1
      %v9141 = vsel %vm764, %v9138, %v9140
      %v9142 = vrot.slane %v9042, 1
      %v9143 = vrot.slane %v9043, 1
      %v9144 = vsel %vm764, %v9142, %v9143
      %v9145 = vrot.slane %v9044, 1
      %v9146 = vsel %vm764, %v9143, %v9145
      %v9147 = vrot.slane %v9045, 1
      %v9148 = vrot.slane %v9046, 1
      %v9149 = vsel %vm764, %v9147, %v9148
      %v9150 = vrot.slane %v9047, 1
      %v9151 = vsel %vm764, %v9148, %v9150
      %v9152 = vrot.slane %v9048, 1
      %v9153 = vrot.slane %v9049, 1
      %v9154 = vsel %vm764, %v9152, %v9153
      %v9155 = vrot.slane %v9050, 1
      %v9156 = vsel %vm764, %v9153, %v9155
      %v9157 = vrot.slane %v9051, 1
      %v9158 = vrot.slane %v9052, 1
      %v9159 = vsel %vm764, %v9157, %v9158
      %v9160 = vrot.slane %v9053, 1
      %v9161 = vsel %vm764, %v9158, %v9160
      %v9162 = vrot.slane %v9054, 1
      %v9163 = vrot.slane %v9055, 1
      %v9164 = vsel %vm764, %v9162, %v9163
      %v9165 = vrot.slane %v9056, 1
      %v9166 = vsel %vm764, %v9163, %v9165
      %v9167 = vrot.slane %v9057, 1
      %v9168 = vrot.slane %v9058, 1
      %v9169 = vsel %vm764, %v9167, %v9168
      %v9170 = vrot.slane %v9059, 1
      %v9171 = vsel %vm764, %v9168, %v9170
      %v9172 = vrot.slane %v9060, 1
      %v9173 = vrot.slane %v9061, 1
      %v9174 = vsel %vm764, %v9172, %v9173
      %v9175 = vrot.slane %v9062, 1
      %v9176 = vsel %vm764, %v9173, %v9175
      %v9177 = vrot.slane %v9063, 1
      %v9178 = vrot.slane %v9064, 1
      %v9179 = vsel %vm764, %v9177, %v9178
      %v9180 = vrot.slane %v9065, 1
      %v9181 = vsel %vm764, %v9178, %v9180
      %v9182 = vrot.slane %v9066, 1
      %v9183 = vrot.slane %v9067, 1
      %v9184 = vsel %vm764, %v9182, %v9183
      %v9185 = vrot.slane %v9068, 1
      %v9186 = vsel %vm764, %v9183, %v9185
      %v9187 = vrot.slane %v9069, 1
      %v9188 = vrot.slane %v9070, 1
      %v9189 = vsel %vm764, %v9187, %v9188
      %v9190 = vrot.slane %v9071, 1
      %v9191 = vsel %vm764, %v9188, %v9190
      %v9192 = vrot.slane %v9072, 1
      %v9193 = vrot.slane %v9073, 1
      %v9194 = vsel %vm764, %v9192, %v9193
      %v9195 = vrot.slane %v9074, 1
      %v9196 = vsel %vm764, %v9193, %v9195
      %v9197 = vrot.slane %v9075, 1
      %v9198 = vrot.slane %v9076, 1
      %v9199 = vsel %vm764, %v9197, %v9198
      %v9200 = vrot.slane %v9077, 1
      %v9201 = vsel %vm764, %v9198, %v9200
      %v9202 = vrot.slane %v9078, 1
      %v9203 = vrot.slane %v9079, 1
      %v9204 = vsel %vm764, %v9202, %v9203
      %v9205 = vrot.slane %v9080, 1
      %v9206 = vsel %vm764, %v9203, %v9205
      %v9207 = vrot.slane %v9081, 1
      %v9208 = vrot.slane %v9082, 1
      %v9209 = vsel %vm764, %v9207, %v9208
      %v9210 = vrot.slane %v9083, 1
      %v9211 = vsel %vm764, %v9208, %v9210
      %v9244 = vadd.f32 %v9003, %v9134
      %v9245 = vadd.f32 %v9004, %v9136
      %v9246 = vadd.f32 %v9005, %v9139
      %v9247 = vadd.f32 %v9006, %v9141
      %v9248 = vadd.f32 %v9007, %v9144
      %v9249 = vadd.f32 %v9008, %v9146
      %v9250 = vadd.f32 %v9009, %v9149
      %v9251 = vadd.f32 %v9010, %v9151
      %v9252 = vadd.f32 %v9011, %v9154
      %v9253 = vadd.f32 %v9012, %v9156
      %v9254 = vadd.f32 %v9013, %v9159
      %v9255 = vadd.f32 %v9014, %v9161
      %v9256 = vadd.f32 %v9015, %v9164
      %v9257 = vadd.f32 %v9016, %v9166
      %v9258 = vadd.f32 %v9017, %v9169
      %v9259 = vadd.f32 %v9018, %v9171
      %v9260 = vadd.f32 %v9019, %v9174
      %v9261 = vadd.f32 %v9020, %v9176
      %v9262 = vadd.f32 %v9021, %v9179
      %v9263 = vadd.f32 %v9022, %v9181
      %v9264 = vadd.f32 %v9023, %v9184
      %v9265 = vadd.f32 %v9024, %v9186
      %v9266 = vadd.f32 %v9025, %v9189
      %v9267 = vadd.f32 %v9026, %v9191
      %v9268 = vadd.f32 %v9027, %v9194
      %v9269 = vadd.f32 %v9028, %v9196
      %v9270 = vadd.f32 %v9029, %v9199
      %v9271 = vadd.f32 %v9030, %v9201
      %v9272 = vadd.f32 %v9031, %v9204
      %v9273 = vadd.f32 %v9032, %v9206
      %v9274 = vadd.f32 %v9033, %v9209
      %v9275 = vadd.f32 %v9034, %v9211
      %v9276 = vperm.slane %v6714, 3
      %v9277 = vmul.f32 %v6662, %v9276
      %v9278 = vmul.f32 %v6663, %v9276
      %v9279 = vmul.f32 %v6664, %v9276
      %v9280 = vmul.f32 %v6665, %v9276
      %v9281 = vmul.f32 %v6666, %v9276
      %v9282 = vmul.f32 %v6667, %v9276
      %v9283 = vmul.f32 %v6668, %v9276
      %v9284 = vmul.f32 %v6669, %v9276
      %v9285 = vmul.f32 %v6670, %v9276
      %v9286 = vmul.f32 %v6671, %v9276
      %v9287 = vmul.f32 %v6672, %v9276
      %v9288 = vmul.f32 %v6673, %v9276
      %v9289 = vmul.f32 %v6674, %v9276
      %v9290 = vmul.f32 %v6675, %v9276
      %v9291 = vmul.f32 %v6676, %v9276
      %v9292 = vmul.f32 %v6677, %v9276
      %v9293 = vmul.f32 %v6678, %v9276
      %v9294 = vmul.f32 %v6679, %v9276
      %v9295 = vmul.f32 %v6680, %v9276
      %v9296 = vmul.f32 %v6681, %v9276
      %v9297 = vmul.f32 %v6682, %v9276
      %v9298 = vmul.f32 %v6683, %v9276
      %v9299 = vmul.f32 %v6684, %v9276
      %v9300 = vmul.f32 %v6685, %v9276
      %v9301 = vmul.f32 %v6686, %v9276
      %v9302 = vmul.f32 %v6687, %v9276
      %v9303 = vmul.f32 %v6688, %v9276
      %v9304 = vmul.f32 %v6689, %v9276
      %v9305 = vmul.f32 %v6690, %v9276
      %v9306 = vmul.f32 %v6691, %v9276
      %v9307 = vmul.f32 %v6692, %v9276
      %v9308 = vmul.f32 %v6693, %v9276
      %v9309 = vmul.f32 %v6694, %v9276
      %v9310 = vmul.f32 %v6695, %v9276
      %v9311 = vmul.f32 %v6696, %v9276
      %v9312 = vmul.f32 %v6697, %v9276
      %v9313 = vmul.f32 %v6698, %v9276
      %v9314 = vmul.f32 %v6699, %v9276
      %v9315 = vmul.f32 %v6700, %v9276
      %v9316 = vmul.f32 %v6701, %v9276
      %v9317 = vmul.f32 %v6702, %v9276
      %v9318 = vmul.f32 %v6703, %v9276
      %v9319 = vmul.f32 %v6704, %v9276
      %v9320 = vmul.f32 %v6705, %v9276
      %v9321 = vmul.f32 %v6706, %v9276
      %v9322 = vmul.f32 %v6707, %v9276
      %v9323 = vmul.f32 %v6708, %v9276
      %v9324 = vmul.f32 %v6709, %v9276
      %v9373 = vrot.slane %v9277, 2
      %v9374 = vrot.slane %v9278, 2
      %v9375 = vsel %vm1144, %v9373, %v9374
      %v9376 = vrot.slane %v9279, 2
      %v9377 = vsel %vm1144, %v9374, %v9376
      %v9378 = vrot.slane %v9280, 2
      %v9379 = vrot.slane %v9281, 2
      %v9380 = vsel %vm1144, %v9378, %v9379
      %v9381 = vrot.slane %v9282, 2
      %v9382 = vsel %vm1144, %v9379, %v9381
      %v9383 = vrot.slane %v9283, 2
      %v9384 = vrot.slane %v9284, 2
      %v9385 = vsel %vm1144, %v9383, %v9384
      %v9386 = vrot.slane %v9285, 2
      %v9387 = vsel %vm1144, %v9384, %v9386
      %v9388 = vrot.slane %v9286, 2
      %v9389 = vrot.slane %v9287, 2
      %v9390 = vsel %vm1144, %v9388, %v9389
      %v9391 = vrot.slane %v9288, 2
      %v9392 = vsel %vm1144, %v9389, %v9391
      %v9393 = vrot.slane %v9289, 2
      %v9394 = vrot.slane %v9290, 2
      %v9395 = vsel %vm1144, %v9393, %v9394
      %v9396 = vrot.slane %v9291, 2
      %v9397 = vsel %vm1144, %v9394, %v9396
      %v9398 = vrot.slane %v9292, 2
      %v9399 = vrot.slane %v9293, 2
      %v9400 = vsel %vm1144, %v9398, %v9399
      %v9401 = vrot.slane %v9294, 2
      %v9402 = vsel %vm1144, %v9399, %v9401
      %v9403 = vrot.slane %v9295, 2
      %v9404 = vrot.slane %v9296, 2
      %v9405 = vsel %vm1144, %v9403, %v9404
      %v9406 = vrot.slane %v9297, 2
      %v9407 = vsel %vm1144, %v9404, %v9406
      %v9408 = vrot.slane %v9298, 2
      %v9409 = vrot.slane %v9299, 2
      %v9410 = vsel %vm1144, %v9408, %v9409
      %v9411 = vrot.slane %v9300, 2
      %v9412 = vsel %vm1144, %v9409, %v9411
      %v9413 = vrot.slane %v9301, 2
      %v9414 = vrot.slane %v9302, 2
      %v9415 = vsel %vm1144, %v9413, %v9414
      %v9416 = vrot.slane %v9303, 2
      %v9417 = vsel %vm1144, %v9414, %v9416
      %v9418 = vrot.slane %v9304, 2
      %v9419 = vrot.slane %v9305, 2
      %v9420 = vsel %vm1144, %v9418, %v9419
      %v9421 = vrot.slane %v9306, 2
      %v9422 = vsel %vm1144, %v9419, %v9421
      %v9423 = vrot.slane %v9307, 2
      %v9424 = vrot.slane %v9308, 2
      %v9425 = vsel %vm1144, %v9423, %v9424
      %v9426 = vrot.slane %v9309, 2
      %v9427 = vsel %vm1144, %v9424, %v9426
      %v9428 = vrot.slane %v9310, 2
      %v9429 = vrot.slane %v9311, 2
      %v9430 = vsel %vm1144, %v9428, %v9429
      %v9431 = vrot.slane %v9312, 2
      %v9432 = vsel %vm1144, %v9429, %v9431
      %v9433 = vrot.slane %v9313, 2
      %v9434 = vrot.slane %v9314, 2
      %v9435 = vsel %vm1144, %v9433, %v9434
      %v9436 = vrot.slane %v9315, 2
      %v9437 = vsel %vm1144, %v9434, %v9436
      %v9438 = vrot.slane %v9316, 2
      %v9439 = vrot.slane %v9317, 2
      %v9440 = vsel %vm1144, %v9438, %v9439
      %v9441 = vrot.slane %v9318, 2
      %v9442 = vsel %vm1144, %v9439, %v9441
      %v9443 = vrot.slane %v9319, 2
      %v9444 = vrot.slane %v9320, 2
      %v9445 = vsel %vm1144, %v9443, %v9444
      %v9446 = vrot.slane %v9321, 2
      %v9447 = vsel %vm1144, %v9444, %v9446
      %v9448 = vrot.slane %v9322, 2
      %v9449 = vrot.slane %v9323, 2
      %v9450 = vsel %vm1144, %v9448, %v9449
      %v9451 = vrot.slane %v9324, 2
      %v9452 = vsel %vm1144, %v9449, %v9451
      %v9485 = vadd.f32 %v9244, %v9375
      %v9486 = vadd.f32 %v9245, %v9377
      %v9487 = vadd.f32 %v9246, %v9380
      %v9488 = vadd.f32 %v9247, %v9382
      %v9489 = vadd.f32 %v9248, %v9385
      %v9490 = vadd.f32 %v9249, %v9387
      %v9491 = vadd.f32 %v9250, %v9390
      %v9492 = vadd.f32 %v9251, %v9392
      %v9493 = vadd.f32 %v9252, %v9395
      %v9494 = vadd.f32 %v9253, %v9397
      %v9495 = vadd.f32 %v9254, %v9400
      %v9496 = vadd.f32 %v9255, %v9402
      %v9497 = vadd.f32 %v9256, %v9405
      %v9498 = vadd.f32 %v9257, %v9407
      %v9499 = vadd.f32 %v9258, %v9410
      %v9500 = vadd.f32 %v9259, %v9412
      %v9501 = vadd.f32 %v9260, %v9415
      %v9502 = vadd.f32 %v9261, %v9417
      %v9503 = vadd.f32 %v9262, %v9420
      %v9504 = vadd.f32 %v9263, %v9422
      %v9505 = vadd.f32 %v9264, %v9425
      %v9506 = vadd.f32 %v9265, %v9427
      %v9507 = vadd.f32 %v9266, %v9430
      %v9508 = vadd.f32 %v9267, %v9432
      %v9509 = vadd.f32 %v9268, %v9435
      %v9510 = vadd.f32 %v9269, %v9437
      %v9511 = vadd.f32 %v9270, %v9440
      %v9512 = vadd.f32 %v9271, %v9442
      %v9513 = vadd.f32 %v9272, %v9445
      %v9514 = vadd.f32 %v9273, %v9447
      %v9515 = vadd.f32 %v9274, %v9450
      %v9516 = vadd.f32 %v9275, %v9452
      %v9517 = vperm.slane %v6714, 5
      %v9518 = vmul.f32 %v6665, %v9517
      %v9519 = vmul.f32 %v6666, %v9517
      %v9520 = vmul.f32 %v6668, %v9517
      %v9521 = vmul.f32 %v6669, %v9517
      %v9522 = vmul.f32 %v6671, %v9517
      %v9523 = vmul.f32 %v6672, %v9517
      %v9524 = vmul.f32 %v6674, %v9517
      %v9525 = vmul.f32 %v6675, %v9517
      %v9526 = vmul.f32 %v6677, %v9517
      %v9527 = vmul.f32 %v6678, %v9517
      %v9528 = vmul.f32 %v6680, %v9517
      %v9529 = vmul.f32 %v6681, %v9517
      %v9530 = vmul.f32 %v6683, %v9517
      %v9531 = vmul.f32 %v6684, %v9517
      %v9532 = vmul.f32 %v6686, %v9517
      %v9533 = vmul.f32 %v6687, %v9517
      %v9534 = vmul.f32 %v6689, %v9517
      %v9535 = vmul.f32 %v6690, %v9517
      %v9536 = vmul.f32 %v6692, %v9517
      %v9537 = vmul.f32 %v6693, %v9517
      %v9538 = vmul.f32 %v6695, %v9517
      %v9539 = vmul.f32 %v6696, %v9517
      %v9540 = vmul.f32 %v6698, %v9517
      %v9541 = vmul.f32 %v6699, %v9517
      %v9542 = vmul.f32 %v6701, %v9517
      %v9543 = vmul.f32 %v6702, %v9517
      %v9544 = vmul.f32 %v6704, %v9517
      %v9545 = vmul.f32 %v6705, %v9517
      %v9546 = vmul.f32 %v6707, %v9517
      %v9547 = vmul.f32 %v6708, %v9517
      %v9548 = vmul.f32 %v6710, %v9517
      %v9549 = vmul.f32 %v6711, %v9517
      %v9550 = vadd.f32 %v9485, %v9518
      %v9551 = vadd.f32 %v9486, %v9519
      %v9552 = vadd.f32 %v9487, %v9520
      %v9553 = vadd.f32 %v9488, %v9521
      %v9554 = vadd.f32 %v9489, %v9522
      %v9555 = vadd.f32 %v9490, %v9523
      %v9556 = vadd.f32 %v9491, %v9524
      %v9557 = vadd.f32 %v9492, %v9525
      %v9558 = vadd.f32 %v9493, %v9526
      %v9559 = vadd.f32 %v9494, %v9527
      %v9560 = vadd.f32 %v9495, %v9528
      %v9561 = vadd.f32 %v9496, %v9529
      %v9562 = vadd.f32 %v9497, %v9530
      %v9563 = vadd.f32 %v9498, %v9531
      %v9564 = vadd.f32 %v9499, %v9532
      %v9565 = vadd.f32 %v9500, %v9533
      %v9566 = vadd.f32 %v9501, %v9534
      %v9567 = vadd.f32 %v9502, %v9535
      %v9568 = vadd.f32 %v9503, %v9536
      %v9569 = vadd.f32 %v9504, %v9537
      %v9570 = vadd.f32 %v9505, %v9538
      %v9571 = vadd.f32 %v9506, %v9539
      %v9572 = vadd.f32 %v9507, %v9540
      %v9573 = vadd.f32 %v9508, %v9541
      %v9574 = vadd.f32 %v9509, %v9542
      %v9575 = vadd.f32 %v9510, %v9543
      %v9576 = vadd.f32 %v9511, %v9544
      %v9577 = vadd.f32 %v9512, %v9545
      %v9578 = vadd.f32 %v9513, %v9546
      %v9579 = vadd.f32 %v9514, %v9547
      %v9580 = vadd.f32 %v9515, %v9548
      %v9581 = vadd.f32 %v9516, %v9549
      %v9582 = vperm.slane %v6714, 7
      %v9583 = vmul.f32 %v6665, %v9582
      %v9584 = vmul.f32 %v6666, %v9582
      %v9585 = vmul.f32 %v6667, %v9582
      %v9586 = vmul.f32 %v6668, %v9582
      %v9587 = vmul.f32 %v6669, %v9582
      %v9588 = vmul.f32 %v6670, %v9582
      %v9589 = vmul.f32 %v6671, %v9582
      %v9590 = vmul.f32 %v6672, %v9582
      %v9591 = vmul.f32 %v6673, %v9582
      %v9592 = vmul.f32 %v6674, %v9582
      %v9593 = vmul.f32 %v6675, %v9582
      %v9594 = vmul.f32 %v6676, %v9582
      %v9595 = vmul.f32 %v6677, %v9582
      %v9596 = vmul.f32 %v6678, %v9582
      %v9597 = vmul.f32 %v6679, %v9582
      %v9598 = vmul.f32 %v6680, %v9582
      %v9599 = vmul.f32 %v6681, %v9582
      %v9600 = vmul.f32 %v6682, %v9582
      %v9601 = vmul.f32 %v6683, %v9582
      %v9602 = vmul.f32 %v6684, %v9582
      %v9603 = vmul.f32 %v6685, %v9582
      %v9604 = vmul.f32 %v6686, %v9582
      %v9605 = vmul.f32 %v6687, %v9582
      %v9606 = vmul.f32 %v6688, %v9582
      %v9607 = vmul.f32 %v6689, %v9582
      %v9608 = vmul.f32 %v6690, %v9582
      %v9609 = vmul.f32 %v6691, %v9582
      %v9610 = vmul.f32 %v6692, %v9582
      %v9611 = vmul.f32 %v6693, %v9582
      %v9612 = vmul.f32 %v6694, %v9582
      %v9613 = vmul.f32 %v6695, %v9582
      %v9614 = vmul.f32 %v6696, %v9582
      %v9615 = vmul.f32 %v6697, %v9582
      %v9616 = vmul.f32 %v6698, %v9582
      %v9617 = vmul.f32 %v6699, %v9582
      %v9618 = vmul.f32 %v6700, %v9582
      %v9619 = vmul.f32 %v6701, %v9582
      %v9620 = vmul.f32 %v6702, %v9582
      %v9621 = vmul.f32 %v6703, %v9582
      %v9622 = vmul.f32 %v6704, %v9582
      %v9623 = vmul.f32 %v6705, %v9582
      %v9624 = vmul.f32 %v6706, %v9582
      %v9625 = vmul.f32 %v6707, %v9582
      %v9626 = vmul.f32 %v6708, %v9582
      %v9627 = vmul.f32 %v6709, %v9582
      %v9628 = vmul.f32 %v6710, %v9582
      %v9629 = vmul.f32 %v6711, %v9582
      %v9630 = vmul.f32 %v6712, %v9582
      %v9679 = vrot.slane %v9583, 1
      %v9680 = vrot.slane %v9584, 1
      %v9681 = vsel %vm764, %v9679, %v9680
      %v9682 = vrot.slane %v9585, 1
      %v9683 = vsel %vm764, %v9680, %v9682
      %v9684 = vrot.slane %v9586, 1
      %v9685 = vrot.slane %v9587, 1
      %v9686 = vsel %vm764, %v9684, %v9685
      %v9687 = vrot.slane %v9588, 1
      %v9688 = vsel %vm764, %v9685, %v9687
      %v9689 = vrot.slane %v9589, 1
      %v9690 = vrot.slane %v9590, 1
      %v9691 = vsel %vm764, %v9689, %v9690
      %v9692 = vrot.slane %v9591, 1
      %v9693 = vsel %vm764, %v9690, %v9692
      %v9694 = vrot.slane %v9592, 1
      %v9695 = vrot.slane %v9593, 1
      %v9696 = vsel %vm764, %v9694, %v9695
      %v9697 = vrot.slane %v9594, 1
      %v9698 = vsel %vm764, %v9695, %v9697
      %v9699 = vrot.slane %v9595, 1
      %v9700 = vrot.slane %v9596, 1
      %v9701 = vsel %vm764, %v9699, %v9700
      %v9702 = vrot.slane %v9597, 1
      %v9703 = vsel %vm764, %v9700, %v9702
      %v9704 = vrot.slane %v9598, 1
      %v9705 = vrot.slane %v9599, 1
      %v9706 = vsel %vm764, %v9704, %v9705
      %v9707 = vrot.slane %v9600, 1
      %v9708 = vsel %vm764, %v9705, %v9707
      %v9709 = vrot.slane %v9601, 1
      %v9710 = vrot.slane %v9602, 1
      %v9711 = vsel %vm764, %v9709, %v9710
      %v9712 = vrot.slane %v9603, 1
      %v9713 = vsel %vm764, %v9710, %v9712
      %v9714 = vrot.slane %v9604, 1
      %v9715 = vrot.slane %v9605, 1
      %v9716 = vsel %vm764, %v9714, %v9715
      %v9717 = vrot.slane %v9606, 1
      %v9718 = vsel %vm764, %v9715, %v9717
      %v9719 = vrot.slane %v9607, 1
      %v9720 = vrot.slane %v9608, 1
      %v9721 = vsel %vm764, %v9719, %v9720
      %v9722 = vrot.slane %v9609, 1
      %v9723 = vsel %vm764, %v9720, %v9722
      %v9724 = vrot.slane %v9610, 1
      %v9725 = vrot.slane %v9611, 1
      %v9726 = vsel %vm764, %v9724, %v9725
      %v9727 = vrot.slane %v9612, 1
      %v9728 = vsel %vm764, %v9725, %v9727
      %v9729 = vrot.slane %v9613, 1
      %v9730 = vrot.slane %v9614, 1
      %v9731 = vsel %vm764, %v9729, %v9730
      %v9732 = vrot.slane %v9615, 1
      %v9733 = vsel %vm764, %v9730, %v9732
      %v9734 = vrot.slane %v9616, 1
      %v9735 = vrot.slane %v9617, 1
      %v9736 = vsel %vm764, %v9734, %v9735
      %v9737 = vrot.slane %v9618, 1
      %v9738 = vsel %vm764, %v9735, %v9737
      %v9739 = vrot.slane %v9619, 1
      %v9740 = vrot.slane %v9620, 1
      %v9741 = vsel %vm764, %v9739, %v9740
      %v9742 = vrot.slane %v9621, 1
      %v9743 = vsel %vm764, %v9740, %v9742
      %v9744 = vrot.slane %v9622, 1
      %v9745 = vrot.slane %v9623, 1
      %v9746 = vsel %vm764, %v9744, %v9745
      %v9747 = vrot.slane %v9624, 1
      %v9748 = vsel %vm764, %v9745, %v9747
      %v9749 = vrot.slane %v9625, 1
      %v9750 = vrot.slane %v9626, 1
      %v9751 = vsel %vm764, %v9749, %v9750
      %v9752 = vrot.slane %v9627, 1
      %v9753 = vsel %vm764, %v9750, %v9752
      %v9754 = vrot.slane %v9628, 1
      %v9755 = vrot.slane %v9629, 1
      %v9756 = vsel %vm764, %v9754, %v9755
      %v9757 = vrot.slane %v9630, 1
      %v9758 = vsel %vm764, %v9755, %v9757
      %v9791 = vadd.f32 %v9550, %v9681
      %v9792 = vadd.f32 %v9551, %v9683
      %v9793 = vadd.f32 %v9552, %v9686
      %v9794 = vadd.f32 %v9553, %v9688
      %v9795 = vadd.f32 %v9554, %v9691
      %v9796 = vadd.f32 %v9555, %v9693
      %v9797 = vadd.f32 %v9556, %v9696
      %v9798 = vadd.f32 %v9557, %v9698
      %v9799 = vadd.f32 %v9558, %v9701
      %v9800 = vadd.f32 %v9559, %v9703
      %v9801 = vadd.f32 %v9560, %v9706
      %v9802 = vadd.f32 %v9561, %v9708
      %v9803 = vadd.f32 %v9562, %v9711
      %v9804 = vadd.f32 %v9563, %v9713
      %v9805 = vadd.f32 %v9564, %v9716
      %v9806 = vadd.f32 %v9565, %v9718
      %v9807 = vadd.f32 %v9566, %v9721
      %v9808 = vadd.f32 %v9567, %v9723
      %v9809 = vadd.f32 %v9568, %v9726
      %v9810 = vadd.f32 %v9569, %v9728
      %v9811 = vadd.f32 %v9570, %v9731
      %v9812 = vadd.f32 %v9571, %v9733
      %v9813 = vadd.f32 %v9572, %v9736
      %v9814 = vadd.f32 %v9573, %v9738
      %v9815 = vadd.f32 %v9574, %v9741
      %v9816 = vadd.f32 %v9575, %v9743
      %v9817 = vadd.f32 %v9576, %v9746
      %v9818 = vadd.f32 %v9577, %v9748
      %v9819 = vadd.f32 %v9578, %v9751
      %v9820 = vadd.f32 %v9579, %v9753
      %v9821 = vadd.f32 %v9580, %v9756
      %v9822 = vadd.f32 %v9581, %v9758
      %v9823 = vperm.slane %v6715, 1
      %v9824 = vmul.f32 %v6665, %v9823
      %v9825 = vmul.f32 %v6666, %v9823
      %v9826 = vmul.f32 %v6667, %v9823
      %v9827 = vmul.f32 %v6668, %v9823
      %v9828 = vmul.f32 %v6669, %v9823
      %v9829 = vmul.f32 %v6670, %v9823
      %v9830 = vmul.f32 %v6671, %v9823
      %v9831 = vmul.f32 %v6672, %v9823
      %v9832 = vmul.f32 %v6673, %v9823
      %v9833 = vmul.f32 %v6674, %v9823
      %v9834 = vmul.f32 %v6675, %v9823
      %v9835 = vmul.f32 %v6676, %v9823
      %v9836 = vmul.f32 %v6677, %v9823
      %v9837 = vmul.f32 %v6678, %v9823
      %v9838 = vmul.f32 %v6679, %v9823
      %v9839 = vmul.f32 %v6680, %v9823
      %v9840 = vmul.f32 %v6681, %v9823
      %v9841 = vmul.f32 %v6682, %v9823
      %v9842 = vmul.f32 %v6683, %v9823
      %v9843 = vmul.f32 %v6684, %v9823
      %v9844 = vmul.f32 %v6685, %v9823
      %v9845 = vmul.f32 %v6686, %v9823
      %v9846 = vmul.f32 %v6687, %v9823
      %v9847 = vmul.f32 %v6688, %v9823
      %v9848 = vmul.f32 %v6689, %v9823
      %v9849 = vmul.f32 %v6690, %v9823
      %v9850 = vmul.f32 %v6691, %v9823
      %v9851 = vmul.f32 %v6692, %v9823
      %v9852 = vmul.f32 %v6693, %v9823
      %v9853 = vmul.f32 %v6694, %v9823
      %v9854 = vmul.f32 %v6695, %v9823
      %v9855 = vmul.f32 %v6696, %v9823
      %v9856 = vmul.f32 %v6697, %v9823
      %v9857 = vmul.f32 %v6698, %v9823
      %v9858 = vmul.f32 %v6699, %v9823
      %v9859 = vmul.f32 %v6700, %v9823
      %v9860 = vmul.f32 %v6701, %v9823
      %v9861 = vmul.f32 %v6702, %v9823
      %v9862 = vmul.f32 %v6703, %v9823
      %v9863 = vmul.f32 %v6704, %v9823
      %v9864 = vmul.f32 %v6705, %v9823
      %v9865 = vmul.f32 %v6706, %v9823
      %v9866 = vmul.f32 %v6707, %v9823
      %v9867 = vmul.f32 %v6708, %v9823
      %v9868 = vmul.f32 %v6709, %v9823
      %v9869 = vmul.f32 %v6710, %v9823
      %v9870 = vmul.f32 %v6711, %v9823
      %v9871 = vmul.f32 %v6712, %v9823
      %v9920 = vrot.slane %v9824, 2
      %v9921 = vrot.slane %v9825, 2
      %v9922 = vsel %vm1144, %v9920, %v9921
      %v9923 = vrot.slane %v9826, 2
      %v9924 = vsel %vm1144, %v9921, %v9923
      %v9925 = vrot.slane %v9827, 2
      %v9926 = vrot.slane %v9828, 2
      %v9927 = vsel %vm1144, %v9925, %v9926
      %v9928 = vrot.slane %v9829, 2
      %v9929 = vsel %vm1144, %v9926, %v9928
      %v9930 = vrot.slane %v9830, 2
      %v9931 = vrot.slane %v9831, 2
      %v9932 = vsel %vm1144, %v9930, %v9931
      %v9933 = vrot.slane %v9832, 2
      %v9934 = vsel %vm1144, %v9931, %v9933
      %v9935 = vrot.slane %v9833, 2
      %v9936 = vrot.slane %v9834, 2
      %v9937 = vsel %vm1144, %v9935, %v9936
      %v9938 = vrot.slane %v9835, 2
      %v9939 = vsel %vm1144, %v9936, %v9938
      %v9940 = vrot.slane %v9836, 2
      %v9941 = vrot.slane %v9837, 2
      %v9942 = vsel %vm1144, %v9940, %v9941
      %v9943 = vrot.slane %v9838, 2
      %v9944 = vsel %vm1144, %v9941, %v9943
      %v9945 = vrot.slane %v9839, 2
      %v9946 = vrot.slane %v9840, 2
      %v9947 = vsel %vm1144, %v9945, %v9946
      %v9948 = vrot.slane %v9841, 2
      %v9949 = vsel %vm1144, %v9946, %v9948
      %v9950 = vrot.slane %v9842, 2
      %v9951 = vrot.slane %v9843, 2
      %v9952 = vsel %vm1144, %v9950, %v9951
      %v9953 = vrot.slane %v9844, 2
      %v9954 = vsel %vm1144, %v9951, %v9953
      %v9955 = vrot.slane %v9845, 2
      %v9956 = vrot.slane %v9846, 2
      %v9957 = vsel %vm1144, %v9955, %v9956
      %v9958 = vrot.slane %v9847, 2
      %v9959 = vsel %vm1144, %v9956, %v9958
      %v9960 = vrot.slane %v9848, 2
      %v9961 = vrot.slane %v9849, 2
      %v9962 = vsel %vm1144, %v9960, %v9961
      %v9963 = vrot.slane %v9850, 2
      %v9964 = vsel %vm1144, %v9961, %v9963
      %v9965 = vrot.slane %v9851, 2
      %v9966 = vrot.slane %v9852, 2
      %v9967 = vsel %vm1144, %v9965, %v9966
      %v9968 = vrot.slane %v9853, 2
      %v9969 = vsel %vm1144, %v9966, %v9968
      %v9970 = vrot.slane %v9854, 2
      %v9971 = vrot.slane %v9855, 2
      %v9972 = vsel %vm1144, %v9970, %v9971
      %v9973 = vrot.slane %v9856, 2
      %v9974 = vsel %vm1144, %v9971, %v9973
      %v9975 = vrot.slane %v9857, 2
      %v9976 = vrot.slane %v9858, 2
      %v9977 = vsel %vm1144, %v9975, %v9976
      %v9978 = vrot.slane %v9859, 2
      %v9979 = vsel %vm1144, %v9976, %v9978
      %v9980 = vrot.slane %v9860, 2
      %v9981 = vrot.slane %v9861, 2
      %v9982 = vsel %vm1144, %v9980, %v9981
      %v9983 = vrot.slane %v9862, 2
      %v9984 = vsel %vm1144, %v9981, %v9983
      %v9985 = vrot.slane %v9863, 2
      %v9986 = vrot.slane %v9864, 2
      %v9987 = vsel %vm1144, %v9985, %v9986
      %v9988 = vrot.slane %v9865, 2
      %v9989 = vsel %vm1144, %v9986, %v9988
      %v9990 = vrot.slane %v9866, 2
      %v9991 = vrot.slane %v9867, 2
      %v9992 = vsel %vm1144, %v9990, %v9991
      %v9993 = vrot.slane %v9868, 2
      %v9994 = vsel %vm1144, %v9991, %v9993
      %v9995 = vrot.slane %v9869, 2
      %v9996 = vrot.slane %v9870, 2
      %v9997 = vsel %vm1144, %v9995, %v9996
      %v9998 = vrot.slane %v9871, 2
      %v9999 = vsel %vm1144, %v9996, %v9998
      %v10032 = vadd.f32 %v9791, %v9922
      %v10033 = vadd.f32 %v9792, %v9924
      %v10034 = vadd.f32 %v9793, %v9927
      %v10035 = vadd.f32 %v9794, %v9929
      %v10036 = vadd.f32 %v9795, %v9932
      %v10037 = vadd.f32 %v9796, %v9934
      %v10038 = vadd.f32 %v9797, %v9937
      %v10039 = vadd.f32 %v9798, %v9939
      %v10040 = vadd.f32 %v9799, %v9942
      %v10041 = vadd.f32 %v9800, %v9944
      %v10042 = vadd.f32 %v9801, %v9947
      %v10043 = vadd.f32 %v9802, %v9949
      %v10044 = vadd.f32 %v9803, %v9952
      %v10045 = vadd.f32 %v9804, %v9954
      %v10046 = vadd.f32 %v9805, %v9957
      %v10047 = vadd.f32 %v9806, %v9959
      %v10048 = vadd.f32 %v9807, %v9962
      %v10049 = vadd.f32 %v9808, %v9964
      %v10050 = vadd.f32 %v9809, %v9967
      %v10051 = vadd.f32 %v9810, %v9969
      %v10052 = vadd.f32 %v9811, %v9972
      %v10053 = vadd.f32 %v9812, %v9974
      %v10054 = vadd.f32 %v9813, %v9977
      %v10055 = vadd.f32 %v9814, %v9979
      %v10056 = vadd.f32 %v9815, %v9982
      %v10057 = vadd.f32 %v9816, %v9984
      %v10058 = vadd.f32 %v9817, %v9987
      %v10059 = vadd.f32 %v9818, %v9989
      %v10060 = vadd.f32 %v9819, %v9992
      %v10061 = vadd.f32 %v9820, %v9994
      %v10062 = vadd.f32 %v9821, %v9997
      %v10063 = vadd.f32 %v9822, %v9999
      %v10064 = vperm.slane %v6716, 1
      %v10065 = vadd.f32 %v10032, %v10064
      %v10066 = vadd.f32 %v10033, %v10064
      %v10067 = vadd.f32 %v10034, %v10064
      %v10068 = vadd.f32 %v10035, %v10064
      %v10069 = vadd.f32 %v10036, %v10064
      %v10070 = vadd.f32 %v10037, %v10064
      %v10071 = vadd.f32 %v10038, %v10064
      %v10072 = vadd.f32 %v10039, %v10064
      %v10073 = vadd.f32 %v10040, %v10064
      %v10074 = vadd.f32 %v10041, %v10064
      %v10075 = vadd.f32 %v10042, %v10064
      %v10076 = vadd.f32 %v10043, %v10064
      %v10077 = vadd.f32 %v10044, %v10064
      %v10078 = vadd.f32 %v10045, %v10064
      %v10079 = vadd.f32 %v10046, %v10064
      %v10080 = vadd.f32 %v10047, %v10064
      %v10081 = vadd.f32 %v10048, %v10064
      %v10082 = vadd.f32 %v10049, %v10064
      %v10083 = vadd.f32 %v10050, %v10064
      %v10084 = vadd.f32 %v10051, %v10064
      %v10085 = vadd.f32 %v10052, %v10064
      %v10086 = vadd.f32 %v10053, %v10064
      %v10087 = vadd.f32 %v10054, %v10064
      %v10088 = vadd.f32 %v10055, %v10064
      %v10089 = vadd.f32 %v10056, %v10064
      %v10090 = vadd.f32 %v10057, %v10064
      %v10091 = vadd.f32 %v10058, %v10064
      %v10092 = vadd.f32 %v10059, %v10064
      %v10093 = vadd.f32 %v10060, %v10064
      %v10094 = vadd.f32 %v10061, %v10064
      %v10095 = vadd.f32 %v10062, %v10064
      %v10096 = vadd.f32 %v10063, %v10064
      %v10097 = vpack.c.bf16 %v10066, %v10065
      %v10098 = vpack.c.bf16 %v10068, %v10067
      %v10099 = vpack.c.bf16 %v10070, %v10069
      %v10100 = vpack.c.bf16 %v10072, %v10071
      %v10101 = vpack.c.bf16 %v10074, %v10073
      %v10102 = vpack.c.bf16 %v10076, %v10075
      %v10103 = vpack.c.bf16 %v10078, %v10077
      %v10104 = vpack.c.bf16 %v10080, %v10079
      %v10105 = vpack.c.bf16 %v10082, %v10081
      %v10106 = vpack.c.bf16 %v10084, %v10083
      %v10107 = vpack.c.bf16 %v10086, %v10085
      %v10108 = vpack.c.bf16 %v10088, %v10087
      %v10109 = vpack.c.bf16 %v10090, %v10089
      %v10110 = vpack.c.bf16 %v10092, %v10091
      %v10111 = vpack.c.bf16 %v10094, %v10093
      %v10112 = vpack.c.bf16 %v10096, %v10095
      %v10113 = vld [vmem:[%s8 + $0x40] sm:$0xf]
      %v10114 = vld [vmem:[%s8 + $0x44] sm:$0xf]
      %v10115 = vld [vmem:[%s8 + $0x48] sm:$0xf]
      %v10116 = vld [vmem:[%s8 + $0x4c] sm:$0xf]
      %v10117 = vld [vmem:[%s8 + $0x50] sm:$0xf]
      %v10118 = vld [vmem:[%s8 + $0x54] sm:$0xf]
      %v10119 = vld [vmem:[%s8 + $0x58] sm:$0xf]
      %v10120 = vld [vmem:[%s8 + $0x5c] sm:$0xf]
      %v10121 = vld [vmem:[%s8 + $0x60] sm:$0xf]
      %v10122 = vld [vmem:[%s8 + $0x64] sm:$0xf]
      %v10123 = vld [vmem:[%s8 + $0x68] sm:$0xf]
      %v10124 = vld [vmem:[%s8 + $0x6c] sm:$0xf]
      %v10125 = vld [vmem:[%s8 + $0x70] sm:$0xf]
      %v10126 = vld [vmem:[%s8 + $0x74] sm:$0xf]
      %v10127 = vld [vmem:[%s8 + $0x78] sm:$0xf]
      %v10128 = vld [vmem:[%s8 + $0x7c] sm:$0xf]
      %v10145 = vunpack.c.l.b16 %v10113
      %v10146 = vunpack.c.l.b16 %v10114
      %v10147 = vunpack.c.l.b16 %v10115
      %v10148 = vunpack.c.l.b16 %v10116
      %v10149 = vunpack.c.l.b16 %v10117
      %v10150 = vunpack.c.l.b16 %v10118
      %v10151 = vunpack.c.l.b16 %v10119
      %v10152 = vunpack.c.l.b16 %v10120
      %v10153 = vunpack.c.l.b16 %v10121
      %v10154 = vunpack.c.l.b16 %v10122
      %v10155 = vunpack.c.l.b16 %v10123
      %v10156 = vunpack.c.l.b16 %v10124
      %v10157 = vunpack.c.l.b16 %v10125
      %v10158 = vunpack.c.l.b16 %v10126
      %v10159 = vunpack.c.l.b16 %v10127
      %v10160 = vunpack.c.l.b16 %v10128
      %v10161 = vpack.c.b16 %v10146, %v10145
      %v10162 = vpack.c.b16 %v10148, %v10147
      %v10163 = vpack.c.b16 %v10150, %v10149
      %v10164 = vpack.c.b16 %v10152, %v10151
      %v10165 = vpack.c.b16 %v10154, %v10153
      %v10166 = vpack.c.b16 %v10156, %v10155
      %v10167 = vpack.c.b16 %v10158, %v10157
      %v10168 = vpack.c.b16 %v10160, %v10159
      %10177 = vmatpush.bf16.msra.mxu0 %v10168
      %10178 = vmatpush.bf16.msra.mxu0 %v10167
      %10179 = vmatpush.bf16.msra.mxu0 %v10166
      %10180 = vmatpush.bf16.msra.mxu0 %v10165
      %10181 = vmatpush.bf16.msra.mxu0 %v10164
      %10182 = vmatpush.bf16.msra.mxu0 %v10163
      %10183 = vmatpush.bf16.msra.mxu0 %v10162
      %10184 = vmatpush.bf16.msra.mxu0 %v10161
      %10185 = vmatmul.bf16.gmra.mxu0 %v10097
      %v10186 = vpop.f32.mrf.mxu0
      %v10187 = vadd.f32 0.0, %v10186
      %v10188 = vpop.f32.mrf.mxu0
      %v10189 = vadd.f32 0.0, %v10188
      %10190 = vmatmul.bf16.gmra.mxu0 %v10098
      %v10191 = vpop.f32.mrf.mxu0
      %v10192 = vadd.f32 0.0, %v10191
      %v10193 = vpop.f32.mrf.mxu0
      %v10194 = vadd.f32 0.0, %v10193
      %10195 = vmatmul.bf16.gmra.mxu0 %v10099
      %v10196 = vpop.f32.mrf.mxu0
      %v10197 = vadd.f32 0.0, %v10196
      %v10198 = vpop.f32.mrf.mxu0
      %v10199 = vadd.f32 0.0, %v10198
      %10200 = vmatmul.bf16.gmra.mxu0 %v10100
      %v10201 = vpop.f32.mrf.mxu0
      %v10202 = vadd.f32 0.0, %v10201
      %v10203 = vpop.f32.mrf.mxu0
      %v10204 = vadd.f32 0.0, %v10203
      %10205 = vmatmul.bf16.gmra.mxu0 %v10101
      %v10206 = vpop.f32.mrf.mxu0
      %v10207 = vadd.f32 0.0, %v10206
      %v10208 = vpop.f32.mrf.mxu0
      %v10209 = vadd.f32 0.0, %v10208
      %10210 = vmatmul.bf16.gmra.mxu0 %v10102
      %v10211 = vpop.f32.mrf.mxu0
      %v10212 = vadd.f32 0.0, %v10211
      %v10213 = vpop.f32.mrf.mxu0
      %v10214 = vadd.f32 0.0, %v10213
      %10215 = vmatmul.bf16.gmra.mxu0 %v10103
      %v10216 = vpop.f32.mrf.mxu0
      %v10217 = vadd.f32 0.0, %v10216
      %v10218 = vpop.f32.mrf.mxu0
      %v10219 = vadd.f32 0.0, %v10218
      %10220 = vmatmul.bf16.gmra.mxu0 %v10104
      %v10221 = vpop.f32.mrf.mxu0
      %v10222 = vadd.f32 0.0, %v10221
      %v10223 = vpop.f32.mrf.mxu0
      %v10224 = vadd.f32 0.0, %v10223
      %10225 = vmatmul.bf16.gmra.mxu0 %v10105
      %v10226 = vpop.f32.mrf.mxu0
      %v10227 = vadd.f32 0.0, %v10226
      %v10228 = vpop.f32.mrf.mxu0
      %v10229 = vadd.f32 0.0, %v10228
      %10230 = vmatmul.bf16.gmra.mxu0 %v10106
      %v10231 = vpop.f32.mrf.mxu0
      %v10232 = vadd.f32 0.0, %v10231
      %v10233 = vpop.f32.mrf.mxu0
      %v10234 = vadd.f32 0.0, %v10233
      %10235 = vmatmul.bf16.gmra.mxu0 %v10107
      %v10236 = vpop.f32.mrf.mxu0
      %v10237 = vadd.f32 0.0, %v10236
      %v10238 = vpop.f32.mrf.mxu0
      %v10239 = vadd.f32 0.0, %v10238
      %10240 = vmatmul.bf16.gmra.mxu0 %v10108
      %v10241 = vpop.f32.mrf.mxu0
      %v10242 = vadd.f32 0.0, %v10241
      %v10243 = vpop.f32.mrf.mxu0
      %v10244 = vadd.f32 0.0, %v10243
      %10245 = vmatmul.bf16.gmra.mxu0 %v10109
      %v10246 = vpop.f32.mrf.mxu0
      %v10247 = vadd.f32 0.0, %v10246
      %v10248 = vpop.f32.mrf.mxu0
      %v10249 = vadd.f32 0.0, %v10248
      %10250 = vmatmul.bf16.gmra.mxu0 %v10110
      %v10251 = vpop.f32.mrf.mxu0
      %v10252 = vadd.f32 0.0, %v10251
      %v10253 = vpop.f32.mrf.mxu0
      %v10254 = vadd.f32 0.0, %v10253
      %10255 = vmatmul.bf16.gmra.mxu0 %v10111
      %v10256 = vpop.f32.mrf.mxu0
      %v10257 = vadd.f32 0.0, %v10256
      %v10258 = vpop.f32.mrf.mxu0
      %v10259 = vadd.f32 0.0, %v10258
      %10260 = vmatmul.bf16.gmra.mxu0 %v10112
      %v10261 = vpop.f32.mrf.mxu0
      %v10262 = vadd.f32 0.0, %v10261
      %v10263 = vpop.f32.mrf.mxu0
      %v10264 = vadd.f32 0.0, %v10263
      %10265 = vdwg.mxu0
      %v10282 = vunpack.c.l.b16 %v8407
      %v10283 = vunpack.c.l.b16 %v8408
      %v10284 = vunpack.c.l.b16 %v8409
      %v10285 = vunpack.c.l.b16 %v8410
      %v10286 = vunpack.c.l.b16 %v8411
      %v10287 = vunpack.c.l.b16 %v8412
      %v10288 = vunpack.c.l.b16 %v8413
      %v10289 = vunpack.c.l.b16 %v8414
      %v10290 = vunpack.c.l.b16 %v8415
      %v10291 = vunpack.c.l.b16 %v8416
      %v10292 = vunpack.c.l.b16 %v8417
      %v10293 = vunpack.c.l.b16 %v8418
      %v10294 = vunpack.c.l.b16 %v8419
      %v10295 = vunpack.c.l.b16 %v8420
      %v10296 = vunpack.c.l.b16 %v8421
      %v10297 = vunpack.c.l.b16 %v8422
      %v10298 = vpack.c.b16 %v10283, %v10282
      %v10299 = vpack.c.b16 %v10285, %v10284
      %v10300 = vpack.c.b16 %v10287, %v10286
      %v10301 = vpack.c.b16 %v10289, %v10288
      %v10302 = vpack.c.b16 %v10291, %v10290
      %v10303 = vpack.c.b16 %v10293, %v10292
      %v10304 = vpack.c.b16 %v10295, %v10294
      %v10305 = vpack.c.b16 %v10297, %v10296
      %10314 = vmatpush.bf16.msra.mxu0 %v10305
      %10315 = vmatpush.bf16.msra.mxu0 %v10304
      %10316 = vmatpush.bf16.msra.mxu0 %v10303
      %10317 = vmatpush.bf16.msra.mxu0 %v10302
      %10318 = vmatpush.bf16.msra.mxu0 %v10301
      %10319 = vmatpush.bf16.msra.mxu0 %v10300
      %10320 = vmatpush.bf16.msra.mxu0 %v10299
      %10321 = vmatpush.bf16.msra.mxu0 %v10298
      %10322 = vmatmul.bf16.gmra.mxu0 %v8391
      %v10323 = vpop.f32.mrf.mxu0
      %v10324 = vadd.f32 %v10187, %v10323
      %v10325 = vpop.f32.mrf.mxu0
      %v10326 = vadd.f32 %v10189, %v10325
      %10327 = vmatmul.bf16.gmra.mxu0 %v8392
      %v10328 = vpop.f32.mrf.mxu0
      %v10329 = vadd.f32 %v10192, %v10328
      %v10330 = vpop.f32.mrf.mxu0
      %v10331 = vadd.f32 %v10194, %v10330
      %10332 = vmatmul.bf16.gmra.mxu0 %v8393
      %v10333 = vpop.f32.mrf.mxu0
      %v10334 = vadd.f32 %v10197, %v10333
      %v10335 = vpop.f32.mrf.mxu0
      %v10336 = vadd.f32 %v10199, %v10335
      %10337 = vmatmul.bf16.gmra.mxu0 %v8394
      %v10338 = vpop.f32.mrf.mxu0
      %v10339 = vadd.f32 %v10202, %v10338
      %v10340 = vpop.f32.mrf.mxu0
      %v10341 = vadd.f32 %v10204, %v10340
      %10342 = vmatmul.bf16.gmra.mxu0 %v8395
      %v10343 = vpop.f32.mrf.mxu0
      %v10344 = vadd.f32 %v10207, %v10343
      %v10345 = vpop.f32.mrf.mxu0
      %v10346 = vadd.f32 %v10209, %v10345
      %10347 = vmatmul.bf16.gmra.mxu0 %v8396
      %v10348 = vpop.f32.mrf.mxu0
      %v10349 = vadd.f32 %v10212, %v10348
      %v10350 = vpop.f32.mrf.mxu0
      %v10351 = vadd.f32 %v10214, %v10350
      %10352 = vmatmul.bf16.gmra.mxu0 %v8397
      %v10353 = vpop.f32.mrf.mxu0
      %v10354 = vadd.f32 %v10217, %v10353
      %v10355 = vpop.f32.mrf.mxu0
      %v10356 = vadd.f32 %v10219, %v10355
      %10357 = vmatmul.bf16.gmra.mxu0 %v8398
      %v10358 = vpop.f32.mrf.mxu0
      %v10359 = vadd.f32 %v10222, %v10358
      %v10360 = vpop.f32.mrf.mxu0
      %v10361 = vadd.f32 %v10224, %v10360
      %10362 = vmatmul.bf16.gmra.mxu0 %v8399
      %v10363 = vpop.f32.mrf.mxu0
      %v10364 = vadd.f32 %v10227, %v10363
      %v10365 = vpop.f32.mrf.mxu0
      %v10366 = vadd.f32 %v10229, %v10365
      %10367 = vmatmul.bf16.gmra.mxu0 %v8400
      %v10368 = vpop.f32.mrf.mxu0
      %v10369 = vadd.f32 %v10232, %v10368
      %v10370 = vpop.f32.mrf.mxu0
      %v10371 = vadd.f32 %v10234, %v10370
      %10372 = vmatmul.bf16.gmra.mxu0 %v8401
      %v10373 = vpop.f32.mrf.mxu0
      %v10374 = vadd.f32 %v10237, %v10373
      %v10375 = vpop.f32.mrf.mxu0
      %v10376 = vadd.f32 %v10239, %v10375
      %10377 = vmatmul.bf16.gmra.mxu0 %v8402
      %v10378 = vpop.f32.mrf.mxu0
      %v10379 = vadd.f32 %v10242, %v10378
      %v10380 = vpop.f32.mrf.mxu0
      %v10381 = vadd.f32 %v10244, %v10380
      %10382 = vmatmul.bf16.gmra.mxu0 %v8403
      %v10383 = vpop.f32.mrf.mxu0
      %v10384 = vadd.f32 %v10247, %v10383
      %v10385 = vpop.f32.mrf.mxu0
      %v10386 = vadd.f32 %v10249, %v10385
      %10387 = vmatmul.bf16.gmra.mxu0 %v8404
      %v10388 = vpop.f32.mrf.mxu0
      %v10389 = vadd.f32 %v10252, %v10388
      %v10390 = vpop.f32.mrf.mxu0
      %v10391 = vadd.f32 %v10254, %v10390
      %10392 = vmatmul.bf16.gmra.mxu0 %v8405
      %v10393 = vpop.f32.mrf.mxu0
      %v10394 = vadd.f32 %v10257, %v10393
      %v10395 = vpop.f32.mrf.mxu0
      %v10396 = vadd.f32 %v10259, %v10395
      %10397 = vmatmul.bf16.gmra.mxu0 %v8406
      %v10398 = vpop.f32.mrf.mxu0
      %v10399 = vadd.f32 %v10262, %v10398
      %v10400 = vpop.f32.mrf.mxu0
      %v10401 = vadd.f32 %v10264, %v10400
      %10402 = vdwg.mxu0
      %v10403 = vld [vmem:[%s9] sm:$0x1]
      %v10405 = vperm.slane %v10403, 0
      %v10407 = vmul.f32 %v10324, %v10405
      %v10408 = vmul.f32 %v10326, %v10405
      %v10409 = vmul.f32 %v10329, %v10405
      %v10410 = vmul.f32 %v10331, %v10405
      %v10411 = vmul.f32 %v10334, %v10405
      %v10412 = vmul.f32 %v10336, %v10405
      %v10413 = vmul.f32 %v10339, %v10405
      %v10414 = vmul.f32 %v10341, %v10405
      %v10415 = vmul.f32 %v10344, %v10405
      %v10416 = vmul.f32 %v10346, %v10405
      %v10417 = vmul.f32 %v10349, %v10405
      %v10418 = vmul.f32 %v10351, %v10405
      %v10419 = vmul.f32 %v10354, %v10405
      %v10420 = vmul.f32 %v10356, %v10405
      %v10421 = vmul.f32 %v10359, %v10405
      %v10422 = vmul.f32 %v10361, %v10405
      %v10423 = vmul.f32 %v10364, %v10405
      %v10424 = vmul.f32 %v10366, %v10405
      %v10425 = vmul.f32 %v10369, %v10405
      %v10426 = vmul.f32 %v10371, %v10405
      %v10427 = vmul.f32 %v10374, %v10405
      %v10428 = vmul.f32 %v10376, %v10405
      %v10429 = vmul.f32 %v10379, %v10405
      %v10430 = vmul.f32 %v10381, %v10405
      %v10431 = vmul.f32 %v10384, %v10405
      %v10432 = vmul.f32 %v10386, %v10405
      %v10433 = vmul.f32 %v10389, %v10405
      %v10434 = vmul.f32 %v10391, %v10405
      %v10435 = vmul.f32 %v10394, %v10405
      %v10436 = vmul.f32 %v10396, %v10405
      %v10437 = vmul.f32 %v10399, %v10405
      %v10438 = vmul.f32 %v10401, %v10405
      %v10439 = vld [vmem:[%s10] sm:$0x1]
      %v10441 = vperm.slane %v10439, 0
      %v10443 = vadd.f32 %v10407, %v10441
      %v10444 = vadd.f32 %v10408, %v10441
      %v10445 = vadd.f32 %v10409, %v10441
      %v10446 = vadd.f32 %v10410, %v10441
      %v10447 = vadd.f32 %v10411, %v10441
      %v10448 = vadd.f32 %v10412, %v10441
      %v10449 = vadd.f32 %v10413, %v10441
      %v10450 = vadd.f32 %v10414, %v10441
      %v10451 = vadd.f32 %v10415, %v10441
      %v10452 = vadd.f32 %v10416, %v10441
      %v10453 = vadd.f32 %v10417, %v10441
      %v10454 = vadd.f32 %v10418, %v10441
      %v10455 = vadd.f32 %v10419, %v10441
      %v10456 = vadd.f32 %v10420, %v10441
      %v10457 = vadd.f32 %v10421, %v10441
      %v10458 = vadd.f32 %v10422, %v10441
      %v10459 = vadd.f32 %v10423, %v10441
      %v10460 = vadd.f32 %v10424, %v10441
      %v10461 = vadd.f32 %v10425, %v10441
      %v10462 = vadd.f32 %v10426, %v10441
      %v10463 = vadd.f32 %v10427, %v10441
      %v10464 = vadd.f32 %v10428, %v10441
      %v10465 = vadd.f32 %v10429, %v10441
      %v10466 = vadd.f32 %v10430, %v10441
      %v10467 = vadd.f32 %v10431, %v10441
      %v10468 = vadd.f32 %v10432, %v10441
      %v10469 = vadd.f32 %v10433, %v10441
      %v10470 = vadd.f32 %v10434, %v10441
      %v10471 = vadd.f32 %v10435, %v10441
      %v10472 = vadd.f32 %v10436, %v10441
      %v10473 = vadd.f32 %v10437, %v10441
      %v10474 = vadd.f32 %v10438, %v10441
      %v10475 = vmax.f32 %v10443, 0.0
      %v10476 = vmax.f32 %v10444, 0.0
      %v10477 = vmax.f32 %v10445, 0.0
      %v10478 = vmax.f32 %v10446, 0.0
      %v10479 = vmax.f32 %v10447, 0.0
      %v10480 = vmax.f32 %v10448, 0.0
      %v10481 = vmax.f32 %v10449, 0.0
      %v10482 = vmax.f32 %v10450, 0.0
      %v10483 = vmax.f32 %v10451, 0.0
      %v10484 = vmax.f32 %v10452, 0.0
      %v10485 = vmax.f32 %v10453, 0.0
      %v10486 = vmax.f32 %v10454, 0.0
      %v10487 = vmax.f32 %v10455, 0.0
      %v10488 = vmax.f32 %v10456, 0.0
      %v10489 = vmax.f32 %v10457, 0.0
      %v10490 = vmax.f32 %v10458, 0.0
      %v10491 = vmax.f32 %v10459, 0.0
      %v10492 = vmax.f32 %v10460, 0.0
      %v10493 = vmax.f32 %v10461, 0.0
      %v10494 = vmax.f32 %v10462, 0.0
      %v10495 = vmax.f32 %v10463, 0.0
      %v10496 = vmax.f32 %v10464, 0.0
      %v10497 = vmax.f32 %v10465, 0.0
      %v10498 = vmax.f32 %v10466, 0.0
      %v10499 = vmax.f32 %v10467, 0.0
      %v10500 = vmax.f32 %v10468, 0.0
      %v10501 = vmax.f32 %v10469, 0.0
      %v10502 = vmax.f32 %v10470, 0.0
      %v10503 = vmax.f32 %v10471, 0.0
      %v10504 = vmax.f32 %v10472, 0.0
      %v10505 = vmax.f32 %v10473, 0.0
      %v10506 = vmax.f32 %v10474, 0.0
      %10507 = vst [vmem:[%s424] sm:$0xff] %v10475
      %10508 = vst [vmem:[%s424 + $0x8] sm:$0xff] %v10476
      %10509 = vst [vmem:[%s424 + $0x10] sm:$0xff] %v10477
      %10510 = vst [vmem:[%s424 + $0x18] sm:$0xff] %v10478
      %10511 = vst [vmem:[%s424 + $0x20] sm:$0xff] %v10479
      %10512 = vst [vmem:[%s424 + $0x28] sm:$0xff] %v10480
      %10513 = vst [vmem:[%s424 + $0x30] sm:$0xff] %v10481
      %10514 = vst [vmem:[%s424 + $0x38] sm:$0xff] %v10482
      %10515 = vst [vmem:[%s424 + $0x40] sm:$0xff] %v10483
      %10516 = vst [vmem:[%s424 + $0x48] sm:$0xff] %v10484
      %10517 = vst [vmem:[%s424 + $0x50] sm:$0xff] %v10485
      %10518 = vst [vmem:[%s424 + $0x58] sm:$0xff] %v10486
      %10519 = vst [vmem:[%s424 + $0x60] sm:$0xff] %v10487
      %10520 = vst [vmem:[%s424 + $0x68] sm:$0xff] %v10488
      %10521 = vst [vmem:[%s424 + $0x70] sm:$0xff] %v10489
      %10522 = vst [vmem:[%s424 + $0x78] sm:$0xff] %v10490
      %10523 = vst [vmem:[%s424 + $0x80] sm:$0xff] %v10491
      %10524 = vst [vmem:[%s424 + $0x88] sm:$0xff] %v10492
      %10525 = vst [vmem:[%s424 + $0x90] sm:$0xff] %v10493
      %10526 = vst [vmem:[%s424 + $0x98] sm:$0xff] %v10494
      %10527 = vst [vmem:[%s424 + $0xa0] sm:$0xff] %v10495
      %10528 = vst [vmem:[%s424 + $0xa8] sm:$0xff] %v10496
      %10529 = vst [vmem:[%s424 + $0xb0] sm:$0xff] %v10497
      %10530 = vst [vmem:[%s424 + $0xb8] sm:$0xff] %v10498
      %10531 = vst [vmem:[%s424 + $0xc0] sm:$0xff] %v10499
      %10532 = vst [vmem:[%s424 + $0xc8] sm:$0xff] %v10500
      %10533 = vst [vmem:[%s424 + $0xd0] sm:$0xff] %v10501
      %10534 = vst [vmem:[%s424 + $0xd8] sm:$0xff] %v10502
      %10535 = vst [vmem:[%s424 + $0xe0] sm:$0xff] %v10503
      %10536 = vst [vmem:[%s424 + $0xe8] sm:$0xff] %v10504
      %10537 = vst [vmem:[%s424 + $0xf0] sm:$0xff] %v10505
      %10538 = vst [vmem:[%s424 + $0xf8] sm:$0xff] %v10506
      %s10539 = smul.u32 16, %s27
      %p10540 = scmp.lt.s32.totalorder %s26, 1
      %s10541 = scalar_select %p10540, %s26, 1
      %p10542 = scmp.lt.s32.totalorder %s10539, 15
      %s10543 = scalar_select %p10542, %s10539, 15
      %s10544 = smul.addr %s10543, 2
      %s10545 = smul.addr %s10541, 32
      %s10546 = sadd.s32 %s10544, %s10545
      %s10547 = smul.addr %s10546, 8
      %s10548 = scalar_lea.vmem %s11, %s10547
      // Predicated region
      $region65: #{double_conv_ds_forward.1} parent=63 // pred_check
        %p10549 = pneg %p292
      $region66: #{double_conv_ds_forward.1} parent=63 // pred_check_branch
        %10551 = sbr.rel (%p10549) target = $region68
      $region67: #{double_conv_ds_forward.1} parent=63 // pred_region
        %s10552 = smul.u32 16, %s27
      $region68: #{double_conv_ds_forward.1} parent=63 // pred_fallthru
        _
    $region64: #{double_conv_ds_forward.1} parent=5 // pred_fallthru
      _
    %p10553 = scmp.le.s32.totalorder 2, %s17
    // Predicated region
    $region69: #{double_conv_ds_forward.1} parent=5 // pred_check
      %p10554 = pneg %p10553
    $region70: #{double_conv_ds_forward.1} parent=5 // pred_check_branch
      %10556 = sbr.rel (%p10554) target = $region72
    $region71: #{double_conv_ds_forward.1} parent=5 // pred_region
      %s10557 = ssub.s32 %s17, 2
      // Predicated region
      $region73: #{double_conv_ds_forward.1} parent=71 // pred_check
        %p10558 = pneg %p298
      $region74: #{double_conv_ds_forward.1} parent=71 // pred_check_branch
        %10560 = sbr.rel (%p10558) target = $region76
      $region75: #{double_conv_ds_forward.1} parent=71 // pred_region
        %s10561 = smul.u32 16, %s29
        %p10562 = scmp.lt.s32.totalorder %s28, 1
        %s10563 = scalar_select %p10562, %s28, 1
        %p10564 = scmp.lt.s32.totalorder %s10561, 15
        %s10565 = scalar_select %p10564, %s10561, 15
        %s10566 = smul.addr %s10565, 2
        %s10567 = smul.addr %s10563, 32
        %s10568 = sadd.s32 %s10566, %s10567
        %s10569 = smul.addr %s10568, 8
        %s10570 = scalar_lea.vmem %s11, %s10569
      $region76: #{double_conv_ds_forward.1} parent=71 // pred_fallthru
        _
    $region72: #{double_conv_ds_forward.1} parent=5 // pred_fallthru
      _
  $region6: #{double_conv_ds_forward.1} parent=0 // loop_footer
    %s21 = sadd.s32 1, %s17
  $region7: #{double_conv_ds_forward.1} parent=0 // loop_footer_branch
    %16 = sbr.rel target = $region3
  $region8: #{double_conv_ds_forward.1} parent=0 // loop_exit
    _

</llo_original>
